<compile_context>
chip_gen: v7x
topology: tpu7x:2x2x1
jax: 0.10.0
libtpu: 0.0.40
codegen_flags: <defaults>
</compile_context>

<pallas_src>
import functools
import math

import jax
import jax.numpy as jnp
from jax.experimental import pallas as pl
from jax.experimental.pallas import tpu as pltpu

_BF16 = jnp.bfloat16


# ----------------------------- in-kernel helpers -----------------------------

def _ln(x, g, b, eps=1e-5):
    m = jnp.mean(x, axis=-1, keepdims=True)
    v = jnp.mean((x - m) ** 2, axis=-1, keepdims=True)
    return (x - m) * jax.lax.rsqrt(v + eps) * g + b


def _gelu(x):
    c = math.sqrt(2.0 / math.pi)
    return 0.5 * x * (1.0 + jnp.tanh(c * (x + 0.044715 * x * x * x)))


def _softmax(s):
    s = s - jnp.max(s, axis=-1, keepdims=True)
    e = jnp.exp(s)
    return e * pl.reciprocal(jnp.sum(e, axis=-1, keepdims=True), approx=True)


def _mm(a, b):
    """bf16 MXU matmul with f32 accumulation."""
    return jnp.dot(a.astype(_BF16), b.astype(_BF16),
                   preferred_element_type=jnp.float32)


def _mm_t(a, b):
    """a @ b.T without materializing the transpose (contract on last dims)."""
    return jax.lax.dot_general(a.astype(_BF16), b.astype(_BF16),
                               (((1,), (1,)), ((), ())),
                               preferred_element_type=jnp.float32)


def _attn(xq, xkv, lnq_g, lnq_b, lnk_g, lnk_b, wq, wkv, wo, bias=None):
    """Pre-norm single-head attention with residual. wq is pre-scaled by 1/sqrt(D)."""
    dq = xq.shape[-1]
    qn = _ln(xq, lnq_g, lnq_b)
    kn = _ln(xkv, lnk_g, lnk_b)
    q = _mm(qn, wq)                          # (Lq, Dq) -- scale folded into wq
    kv = _mm(kn, wkv)                        # (Lk, 2*Dq)
    k, v = kv[:, :dq], kv[:, dq:]
    s = _mm_t(q, k)                          # (Lq, Lk)
    if bias is not None:
        s = s + bias                         # additive mask (0 / -1e9), precomputed
    p = _softmax(s)
    return xq + _mm(_mm(p, v), wo)


def _ff(x, g, b, w1, b1, w2, b2):
    """Pre-norm MLP with residual."""
    h = _ln(x, g, b)
    h = _mm(h, w1) + b1
    h = _gelu(h)
    h = _mm(h, w2) + b2
    return x + h


# ------------------------------- fused kernel --------------------------------

def fused_kernel(local_ref, bias_ref, gf_ref,
                 pos_ref, lat_ref,
                 c_lnq_g, c_lnq_b, c_lnk_g, c_lnk_b, c_wq, c_wkv, c_wo,
                 c_ff_g, c_ff_b, c_w1, c_b1, c_w2, c_b2,
                 s_lnq_g, s_lnq_b, s_lnk_g, s_lnk_b, s_wq, s_wkv, s_wo,
                 s_ff_g, s_ff_b, s_w1, s_b1, s_w2, s_b2,
                 last_g, last_b, logit_w, logit_b,
                 res_g, res_b, fc_w, fc_b,
                 out_ref, sp_ref, *, depth):
    # tokens for this batch element, with learned positional embedding
    x = local_ref[0] + pos_ref[...]                       # (N, d_in) f32
    bias = bias_ref[0]                                    # (1, N), 0 valid / -1e9 pad
    lat = lat_ref[...]                                    # (E, Dq) f32 latents

    # cross attention (masked) + FF over the input tokens
    lat = _attn(lat, x,
                c_lnq_g[...], c_lnq_b[...], c_lnk_g[...], c_lnk_b[...],
                c_wq[...], c_wkv[...], c_wo[...], bias=bias)
    lat = _ff(lat, c_ff_g[...], c_ff_b[...],
              c_w1[...], c_b1[...], c_w2[...], c_b2[...])

    # depth x (self attention + FF); no mask on the latent-latent path
    def body(l, lat):
        lat = _attn(lat, lat,
                    s_lnq_g[l], s_lnq_b[l], s_lnk_g[l], s_lnk_b[l],
                    s_wq[l], s_wkv[l], s_wo[l], bias=None)
        return _ff(lat, s_ff_g[l], s_ff_b[l],
                   s_w1[l], s_b1[l], s_w2[l], s_b2[l])

    lat = jax.lax.fori_loop(0, depth, body, lat, unroll=True)

    # head: last LayerNorm + projection to d_out -> set_prediction
    sp = _mm(_ln(lat, last_g[...], last_b[...]), logit_w[...]) + logit_b[...]
    sp_ref[0] = sp

    # residual_norm(broadcast global_feat) + set_prediction, then fc -> 1024
    y = _ln(gf_ref[0], res_g[...], res_b[...]) + sp       # (E, d_out)
    out_ref[0] = _mm(y, fc_w[...]) + fc_b[...]


# ------------------------------ pallas_call glue ------------------------------

_PARAM_ORDER = (
    "pos_emb", "latents",
    "c_lnq_g", "c_lnq_b", "c_lnk_g", "c_lnk_b", "c_wq", "c_wkv", "c_wo",
    "c_ff_g", "c_ff_b", "c_w1", "c_b1", "c_w2", "c_b2",
    "s_lnq_g", "s_lnq_b", "s_lnk_g", "s_lnk_b", "s_wq", "s_wkv", "s_wo",
    "s_ff_g", "s_ff_b", "s_w1", "s_b1", "s_w2", "s_b2",
    "last_g", "last_b", "logit_w", "logit_b",
    "res_g", "res_b", "fc_w", "fc_b",
)


def set_prediction_forward(kparams, local_feat, global_feat, pad_mask):
    """Mirrors SetPredictionModule.forward (inference): returns (out, None, set_prediction)."""
    B, N, d_in = local_feat.shape
    num_embeds, query_dim = kparams["latents"].shape
    d_out = kparams["logit_w"].shape[1]
    fc_dim = kparams["fc_w"].shape[1]
    depth = kparams["s_wq"].shape[0]

    # Additive attention-mask bias precomputed outside the kernel: 0 where the
    # key token is valid, -1e9 where it is padding (saves per-step VPU selects).
    bias3 = ((pad_mask.astype(jnp.float32) - 1.0) * 1e9).reshape(B, 1, N)
    gf3 = global_feat.reshape(B, 1, d_out).astype(jnp.float32)
    flat = [kparams[name] for name in _PARAM_ORDER]

    def _rep(a):  # full-extent, batch-replicated block (DMA'd once: constant index)
        return pl.BlockSpec(a.shape, lambda b, nd=a.ndim: (0,) * nd)

    in_specs = [
        pl.BlockSpec((1, N, d_in), lambda b: (b, 0, 0)),       # local_feat
        pl.BlockSpec((1, 1, N), lambda b: (b, 0, 0)),          # additive mask bias
        pl.BlockSpec((1, 1, d_out), lambda b: (b, 0, 0)),      # global_feat
    ] + [_rep(a) for a in flat]

    out, set_pred = pl.pallas_call(
        functools.partial(fused_kernel, depth=depth),
        out_shape=(jax.ShapeDtypeStruct((B, num_embeds, fc_dim), jnp.float32),
                   jax.ShapeDtypeStruct((B, num_embeds, d_out), jnp.float32)),
        grid=(B,),
        in_specs=in_specs,
        out_specs=(pl.BlockSpec((1, num_embeds, fc_dim), lambda b: (b, 0, 0)),
                   pl.BlockSpec((1, num_embeds, d_out), lambda b: (b, 0, 0))),
        compiler_params=pltpu.CompilerParams(
            dimension_semantics=("parallel",),    # B maps across v7x's 2 TCs
            vmem_limit_bytes=64 * 1024 * 1024),   # headroom for query_dim=512 configs
    )(local_feat, bias3, gf3, *flat)
    return out, None, set_pred


# --------------------------- parameter init / prep -----------------------------

def _glorot(key, shape):
    lim = math.sqrt(6.0 / (shape[0] + shape[1]))
    return jax.random.uniform(key, shape, jnp.float32, -lim, lim)


def init_params(key, *, num_embeds, d_in, d_out, query_dim, seq_len,
                depth=4, ff_mult=4, fc_dim=1024):
    keys = iter(jax.random.split(key, 64))
    nxt = lambda: next(keys)
    ones = lambda d: jnp.ones((1, d), jnp.float32)
    zeros = lambda d: jnp.zeros((1, d), jnp.float32)

    def attn_p(dq, dk):
        return dict(lnq_g=ones(dq), lnq_b=zeros(dq),
                    lnk_g=ones(dk), lnk_b=zeros(dk),
                    wq=_glorot(nxt(), (dq, dq)),
                    wk=_glorot(nxt(), (dk, dq)),
                    wv=_glorot(nxt(), (dk, dq)),
                    wo=_glorot(nxt(), (dq, dq)))

    def ff_p(d):
        return dict(ln_g=ones(d), ln_b=zeros(d),
                    w1=_glorot(nxt(), (d, ff_mult * d)), b1=zeros(ff_mult * d),
                    w2=_glorot(nxt(), (ff_mult * d, d)), b2=zeros(d))

    return dict(
        pos_emb=0.02 * jax.random.normal(nxt(), (seq_len, d_in), jnp.float32),
        latents=_glorot(nxt(), (num_embeds, query_dim)),
        cross_attn=attn_p(query_dim, d_in),
        cross_ff=ff_p(query_dim),
        self_layers=[dict(attn=attn_p(query_dim, query_dim), ff=ff_p(query_dim))
                     for _ in range(depth)],
        last_ln_g=ones(query_dim), last_ln_b=zeros(query_dim),
        to_logits_w=_glorot(nxt(), (query_dim, d_out)), to_logits_b=zeros(d_out),
        res_ln_g=ones(d_out), res_ln_b=zeros(d_out),
        fc_w=_glorot(nxt(), (d_out, fc_dim)), fc_b=zeros(fc_dim),
    )


def prepare_params(p):
    """One-time prep: fold 1/sqrt(D) into Wq, concat Wk|Wv, stack self layers,
    cast matmul weights to bf16 (LN params & biases stay f32)."""
    query_dim = p["latents"].shape[1]
    scale = 1.0 / math.sqrt(query_dim)
    bf = lambda a: a.astype(_BF16)

    def stack(fn):
        return jnp.stack([fn(layer) for layer in p["self_layers"]])

    ca, cf = p["cross_attn"], p["cross_ff"]
    return dict(
        pos_emb=p["pos_emb"],
        latents=p["latents"],
        c_lnq_g=ca["lnq_g"], c_lnq_b=ca["lnq_b"],
        c_lnk_g=ca["lnk_g"], c_lnk_b=ca["lnk_b"],
        c_wq=bf(ca["wq"] * scale),
        c_wkv=bf(jnp.concatenate([ca["wk"], ca["wv"]], axis=1)),
        c_wo=bf(ca["wo"]),
        c_ff_g=cf["ln_g"], c_ff_b=cf["ln_b"],
        c_w1=bf(cf["w1"]), c_b1=cf["b1"], c_w2=bf(cf["w2"]), c_b2=cf["b2"],
        s_lnq_g=stack(lambda l: l["attn"]["lnq_g"]),
        s_lnq_b=stack(lambda l: l["attn"]["lnq_b"]),
        s_lnk_g=stack(lambda l: l["attn"]["lnk_g"]),
        s_lnk_b=stack(lambda l: l["attn"]["lnk_b"]),
        s_wq=bf(stack(lambda l: l["attn"]["wq"]) * scale),
        s_wkv=bf(stack(lambda l: jnp.concatenate(
            [l["attn"]["wk"], l["attn"]["wv"]], axis=1))),
        s_wo=bf(stack(lambda l: l["attn"]["wo"])),
        s_ff_g=stack(lambda l: l["ff"]["ln_g"]),
        s_ff_b=stack(lambda l: l["ff"]["ln_b"]),
        s_w1=bf(stack(lambda l: l["ff"]["w1"])),
        s_b1=stack(lambda l: l["ff"]["b1"]),
        s_w2=bf(stack(lambda l: l["ff"]["w2"])),
        s_b2=stack(lambda l: l["ff"]["b2"]),
        last_g=p["last_ln_g"], last_b=p["last_ln_b"],
        logit_w=bf(p["to_logits_w"]), logit_b=p["to_logits_b"],
        res_g=p["res_ln_g"], res_b=p["res_ln_b"],
        fc_w=bf(p["fc_w"]), fc_b=p["fc_b"],
    )


# ------------------------------------ main -------------------------------------

if __name__ == "__main__":
    B, N, d_in = 2, 16, 16
    num_embeds, query_dim, d_out = 8, 32, 32

    key = jax.random.PRNGKey(0)
    kp, kx, kg = jax.random.split(key, 3)

    params = init_params(kp, num_embeds=num_embeds, d_in=d_in, d_out=d_out,
                         query_dim=query_dim, seq_len=N)
    kernel_params = prepare_params(params)   # once, outside the kernel

    local_feat = jax.random.normal(kx, (B, N, d_in), jnp.float32)
    global_feat = jax.random.normal(kg, (B, d_out), jnp.float32)
    lengths = jnp.array([N, 10], jnp.int32)
    pad_mask = (jnp.arange(N)[None, :] < lengths[:, None]).astype(jnp.float32)

    out, _, set_pred = jax.jit(set_prediction_forward)(
        kernel_params, local_feat, global_feat, pad_mask)
    jax.block_until_ready((out, set_pred))

    assert out.shape == (B, num_embeds, 1024), out.shape
    assert set_pred.shape == (B, num_embeds, d_out), set_pred.shape
    assert bool(jnp.all(jnp.isfinite(out))) and bool(jnp.all(jnp.isfinite(set_pred)))
    print("KERNEL_OK")
</pallas_src>

<mosaic_0001>
module attributes {stable_mosaic.version = 11 : i64} {
  func.func @fused_kernel(%arg0: i32, %arg1: memref<1x16x16xf32, #tpu.memory_space<vmem>>, %arg2: memref<1x1x16xf32, #tpu.memory_space<vmem>>, %arg3: memref<1x1x32xf32, #tpu.memory_space<vmem>>, %arg4: memref<16x16xf32, #tpu.memory_space<vmem>>, %arg5: memref<8x32xf32, #tpu.memory_space<vmem>>, %arg6: memref<1x32xf32, #tpu.memory_space<vmem>>, %arg7: memref<1x32xf32, #tpu.memory_space<vmem>>, %arg8: memref<1x16xf32, #tpu.memory_space<vmem>>, %arg9: memref<1x16xf32, #tpu.memory_space<vmem>>, %arg10: memref<32x32xbf16, #tpu.memory_space<vmem>>, %arg11: memref<16x64xbf16, #tpu.memory_space<vmem>>, %arg12: memref<32x32xbf16, #tpu.memory_space<vmem>>, %arg13: memref<1x32xf32, #tpu.memory_space<vmem>>, %arg14: memref<1x32xf32, #tpu.memory_space<vmem>>, %arg15: memref<32x128xbf16, #tpu.memory_space<vmem>>, %arg16: memref<1x128xf32, #tpu.memory_space<vmem>>, %arg17: memref<128x32xbf16, #tpu.memory_space<vmem>>, %arg18: memref<1x32xf32, #tpu.memory_space<vmem>>, %arg19: memref<4x1x32xf32, #tpu.memory_space<vmem>>, %arg20: memref<4x1x32xf32, #tpu.memory_space<vmem>>, %arg21: memref<4x1x32xf32, #tpu.memory_space<vmem>>, %arg22: memref<4x1x32xf32, #tpu.memory_space<vmem>>, %arg23: memref<4x32x32xbf16, #tpu.memory_space<vmem>>, %arg24: memref<4x32x64xbf16, #tpu.memory_space<vmem>>, %arg25: memref<4x32x32xbf16, #tpu.memory_space<vmem>>, %arg26: memref<4x1x32xf32, #tpu.memory_space<vmem>>, %arg27: memref<4x1x32xf32, #tpu.memory_space<vmem>>, %arg28: memref<4x32x128xbf16, #tpu.memory_space<vmem>>, %arg29: memref<4x1x128xf32, #tpu.memory_space<vmem>>, %arg30: memref<4x128x32xbf16, #tpu.memory_space<vmem>>, %arg31: memref<4x1x32xf32, #tpu.memory_space<vmem>>, %arg32: memref<1x32xf32, #tpu.memory_space<vmem>>, %arg33: memref<1x32xf32, #tpu.memory_space<vmem>>, %arg34: memref<32x32xbf16, #tpu.memory_space<vmem>>, %arg35: memref<1x32xf32, #tpu.memory_space<vmem>>, %arg36: memref<1x32xf32, #tpu.memory_space<vmem>>, %arg37: memref<1x32xf32, #tpu.memory_space<vmem>>, %arg38: memref<32x1024xbf16, #tpu.memory_space<vmem>>, %arg39: memref<1x1024xf32, #tpu.memory_space<vmem>>, %arg40: memref<1x8x1024xf32, #tpu.memory_space<vmem>>, %arg41: memref<1x8x32xf32, #tpu.memory_space<vmem>>) attributes {dimension_semantics = [#tpu.dimension_semantics<parallel>], iteration_bounds = array<i64: 2>, scalar_prefetch = 0 : i64, scratch_operands = 0 : i64, tpu.core_type = #tpu.core_type<tc>, window_params = [{transform_indices = @transform_0, window_bounds = array<i64: 1, 16, 16>}, {transform_indices = @transform_1, window_bounds = array<i64: 1, 1, 16>}, {transform_indices = @transform_2, window_bounds = array<i64: 1, 1, 32>}, {pipeline_mode = #tpu.pipeline_mode<synchronous>, transform_indices = @transform_3, window_bounds = array<i64: 16, 16>}, {pipeline_mode = #tpu.pipeline_mode<synchronous>, transform_indices = @transform_4, window_bounds = array<i64: 8, 32>}, {pipeline_mode = #tpu.pipeline_mode<synchronous>, transform_indices = @transform_5, window_bounds = array<i64: 1, 32>}, {pipeline_mode = #tpu.pipeline_mode<synchronous>, transform_indices = @transform_6, window_bounds = array<i64: 1, 32>}, {pipeline_mode = #tpu.pipeline_mode<synchronous>, transform_indices = @transform_7, window_bounds = array<i64: 1, 16>}, {pipeline_mode = #tpu.pipeline_mode<synchronous>, transform_indices = @transform_8, window_bounds = array<i64: 1, 16>}, {pipeline_mode = #tpu.pipeline_mode<synchronous>, transform_indices = @transform_9, window_bounds = array<i64: 32, 32>}, {pipeline_mode = #tpu.pipeline_mode<synchronous>, transform_indices = @transform_10, window_bounds = array<i64: 16, 64>}, {pipeline_mode = #tpu.pipeline_mode<synchronous>, transform_indices = @transform_11, window_bounds = array<i64: 32, 32>}, {pipeline_mode = #tpu.pipeline_mode<synchronous>, transform_indices = @transform_12, window_bounds = array<i64: 1, 32>}, {pipeline_mode = #tpu.pipeline_mode<synchronous>, transform_indices = @transform_13, window_bounds = array<i64: 1, 32>}, {pipeline_mode = #tpu.pipeline_mode<synchronous>, transform_indices = @transform_14, window_bounds = array<i64: 32, 128>}, {pipeline_mode = #tpu.pipeline_mode<synchronous>, transform_indices = @transform_15, window_bounds = array<i64: 1, 128>}, {pipeline_mode = #tpu.pipeline_mode<synchronous>, transform_indices = @transform_16, window_bounds = array<i64: 128, 32>}, {pipeline_mode = #tpu.pipeline_mode<synchronous>, transform_indices = @transform_17, window_bounds = array<i64: 1, 32>}, {pipeline_mode = #tpu.pipeline_mode<synchronous>, transform_indices = @transform_18, window_bounds = array<i64: 4, 1, 32>}, {pipeline_mode = #tpu.pipeline_mode<synchronous>, transform_indices = @transform_19, window_bounds = array<i64: 4, 1, 32>}, {pipeline_mode = #tpu.pipeline_mode<synchronous>, transform_indices = @transform_20, window_bounds = array<i64: 4, 1, 32>}, {pipeline_mode = #tpu.pipeline_mode<synchronous>, transform_indices = @transform_21, window_bounds = array<i64: 4, 1, 32>}, {pipeline_mode = #tpu.pipeline_mode<synchronous>, transform_indices = @transform_22, window_bounds = array<i64: 4, 32, 32>}, {pipeline_mode = #tpu.pipeline_mode<synchronous>, transform_indices = @transform_23, window_bounds = array<i64: 4, 32, 64>}, {pipeline_mode = #tpu.pipeline_mode<synchronous>, transform_indices = @transform_24, window_bounds = array<i64: 4, 32, 32>}, {pipeline_mode = #tpu.pipeline_mode<synchronous>, transform_indices = @transform_25, window_bounds = array<i64: 4, 1, 32>}, {pipeline_mode = #tpu.pipeline_mode<synchronous>, transform_indices = @transform_26, window_bounds = array<i64: 4, 1, 32>}, {pipeline_mode = #tpu.pipeline_mode<synchronous>, transform_indices = @transform_27, window_bounds = array<i64: 4, 32, 128>}, {pipeline_mode = #tpu.pipeline_mode<synchronous>, transform_indices = @transform_28, window_bounds = array<i64: 4, 1, 128>}, {pipeline_mode = #tpu.pipeline_mode<synchronous>, transform_indices = @transform_29, window_bounds = array<i64: 4, 128, 32>}, {pipeline_mode = #tpu.pipeline_mode<synchronous>, transform_indices = @transform_30, window_bounds = array<i64: 4, 1, 32>}, {pipeline_mode = #tpu.pipeline_mode<synchronous>, transform_indices = @transform_31, window_bounds = array<i64: 1, 32>}, {pipeline_mode = #tpu.pipeline_mode<synchronous>, transform_indices = @transform_32, window_bounds = array<i64: 1, 32>}, {pipeline_mode = #tpu.pipeline_mode<synchronous>, transform_indices = @transform_33, window_bounds = array<i64: 32, 32>}, {pipeline_mode = #tpu.pipeline_mode<synchronous>, transform_indices = @transform_34, window_bounds = array<i64: 1, 32>}, {pipeline_mode = #tpu.pipeline_mode<synchronous>, transform_indices = @transform_35, window_bounds = array<i64: 1, 32>}, {pipeline_mode = #tpu.pipeline_mode<synchronous>, transform_indices = @transform_36, window_bounds = array<i64: 1, 32>}, {pipeline_mode = #tpu.pipeline_mode<synchronous>, transform_indices = @transform_37, window_bounds = array<i64: 32, 1024>}, {pipeline_mode = #tpu.pipeline_mode<synchronous>, transform_indices = @transform_38, window_bounds = array<i64: 1, 1024>}, {transform_indices = @transform_39, window_bounds = array<i64: 1, 8, 1024>}, {transform_indices = @transform_40, window_bounds = array<i64: 1, 8, 32>}]} {
    %c0 = arith.constant 0 : index
    %c0_0 = arith.constant 0 : index
    %c0_1 = arith.constant 0 : index
    %0 = vector.load %arg1[%c0, %c0_0, %c0_1] : memref<1x16x16xf32, #tpu.memory_space<vmem>>, vector<1x16x16xf32>
    %1 = vector.shape_cast %0 : vector<1x16x16xf32> to vector<16x16xf32>
    %c0_2 = arith.constant 0 : index
    %c0_3 = arith.constant 0 : index
    %2 = vector.load %arg4[%c0_2, %c0_3] : memref<16x16xf32, #tpu.memory_space<vmem>>, vector<16x16xf32>
    %3 = arith.addf %1, %2 : vector<16x16xf32>
    %c0_4 = arith.constant 0 : index
    %c0_5 = arith.constant 0 : index
    %c0_6 = arith.constant 0 : index
    %4 = vector.load %arg2[%c0_4, %c0_5, %c0_6] : memref<1x1x16xf32, #tpu.memory_space<vmem>>, vector<1x1x16xf32>
    %5 = vector.shape_cast %4 : vector<1x1x16xf32> to vector<1x16xf32>
    %c0_7 = arith.constant 0 : index
    %c0_8 = arith.constant 0 : index
    %6 = vector.load %arg5[%c0_7, %c0_8] : memref<8x32xf32, #tpu.memory_space<vmem>>, vector<8x32xf32>
    %c0_9 = arith.constant 0 : index
    %c0_10 = arith.constant 0 : index
    %7 = vector.load %arg6[%c0_9, %c0_10] : memref<1x32xf32, #tpu.memory_space<vmem>>, vector<1x32xf32>
    %c0_11 = arith.constant 0 : index
    %c0_12 = arith.constant 0 : index
    %8 = vector.load %arg7[%c0_11, %c0_12] : memref<1x32xf32, #tpu.memory_space<vmem>>, vector<1x32xf32>
    %c0_13 = arith.constant 0 : index
    %c0_14 = arith.constant 0 : index
    %9 = vector.load %arg8[%c0_13, %c0_14] : memref<1x16xf32, #tpu.memory_space<vmem>>, vector<1x16xf32>
    %c0_15 = arith.constant 0 : index
    %c0_16 = arith.constant 0 : index
    %10 = vector.load %arg9[%c0_15, %c0_16] : memref<1x16xf32, #tpu.memory_space<vmem>>, vector<1x16xf32>
    %c0_17 = arith.constant 0 : index
    %c0_18 = arith.constant 0 : index
    %11 = vector.load %arg10[%c0_17, %c0_18] : memref<32x32xbf16, #tpu.memory_space<vmem>>, vector<32x32xbf16>
    %c0_19 = arith.constant 0 : index
    %c0_20 = arith.constant 0 : index
    %12 = vector.load %arg11[%c0_19, %c0_20] : memref<16x64xbf16, #tpu.memory_space<vmem>>, vector<16x64xbf16>
    %c0_21 = arith.constant 0 : index
    %c0_22 = arith.constant 0 : index
    %13 = vector.load %arg12[%c0_21, %c0_22] : memref<32x32xbf16, #tpu.memory_space<vmem>>, vector<32x32xbf16>
    %cst = arith.constant dense<0.000000e+00> : vector<8xf32>
    %14 = vector.multi_reduction <add>, %6, %cst [1] : vector<8x32xf32> to vector<8xf32>
    %15 = vector.shape_cast %14 : vector<8xf32> to vector<8x1xf32>
    %cst_23 = arith.constant 3.200000e+01 : f32
    %16 = vector.broadcast %cst_23 : f32 to vector<8x1xf32>
    %17 = arith.divf %15, %16 : vector<8x1xf32>
    %18 = vector.broadcast %17 : vector<8x1xf32> to vector<8x32xf32>
    %19 = arith.subf %6, %18 : vector<8x32xf32>
    %20 = arith.mulf %19, %19 : vector<8x32xf32>
    %cst_24 = arith.constant dense<0.000000e+00> : vector<8xf32>
    %21 = vector.multi_reduction <add>, %20, %cst_24 [1] : vector<8x32xf32> to vector<8xf32>
    %22 = vector.shape_cast %21 : vector<8xf32> to vector<8x1xf32>
    %cst_25 = arith.constant 3.200000e+01 : f32
    %23 = vector.broadcast %cst_25 : f32 to vector<8x1xf32>
    %24 = arith.divf %22, %23 : vector<8x1xf32>
    %25 = vector.broadcast %17 : vector<8x1xf32> to vector<8x32xf32>
    %26 = arith.subf %6, %25 : vector<8x32xf32>
    %cst_26 = arith.constant 9.99999974E-6 : f32
    %27 = vector.broadcast %cst_26 : f32 to vector<8x1xf32>
    %28 = arith.addf %24, %27 : vector<8x1xf32>
    %29 = math.rsqrt %28 : vector<8x1xf32>
    %30 = vector.broadcast %29 : vector<8x1xf32> to vector<8x32xf32>
    %31 = arith.mulf %26, %30 : vector<8x32xf32>
    %32 = vector.broadcast %7 : vector<1x32xf32> to vector<8x32xf32>
    %33 = arith.mulf %31, %32 : vector<8x32xf32>
    %34 = vector.broadcast %8 : vector<1x32xf32> to vector<8x32xf32>
    %35 = arith.addf %33, %34 : vector<8x32xf32>
    %cst_27 = arith.constant dense<0.000000e+00> : vector<16xf32>
    %36 = vector.multi_reduction <add>, %3, %cst_27 [1] : vector<16x16xf32> to vector<16xf32>
    %37 = vector.shape_cast %36 : vector<16xf32> to vector<16x1xf32>
    %cst_28 = arith.constant 1.600000e+01 : f32
    %38 = vector.broadcast %cst_28 : f32 to vector<16x1xf32>
    %39 = arith.divf %37, %38 : vector<16x1xf32>
    %40 = vector.broadcast %39 : vector<16x1xf32> to vector<16x16xf32>
    %41 = arith.subf %3, %40 : vector<16x16xf32>
    %42 = arith.mulf %41, %41 : vector<16x16xf32>
    %cst_29 = arith.constant dense<0.000000e+00> : vector<16xf32>
    %43 = vector.multi_reduction <add>, %42, %cst_29 [1] : vector<16x16xf32> to vector<16xf32>
    %44 = vector.shape_cast %43 : vector<16xf32> to vector<16x1xf32>
    %cst_30 = arith.constant 1.600000e+01 : f32
    %45 = vector.broadcast %cst_30 : f32 to vector<16x1xf32>
    %46 = arith.divf %44, %45 : vector<16x1xf32>
    %47 = vector.broadcast %39 : vector<16x1xf32> to vector<16x16xf32>
    %48 = arith.subf %3, %47 : vector<16x16xf32>
    %cst_31 = arith.constant 9.99999974E-6 : f32
    %49 = vector.broadcast %cst_31 : f32 to vector<16x1xf32>
    %50 = arith.addf %46, %49 : vector<16x1xf32>
    %51 = math.rsqrt %50 : vector<16x1xf32>
    %52 = vector.broadcast %51 : vector<16x1xf32> to vector<16x16xf32>
    %53 = arith.mulf %48, %52 : vector<16x16xf32>
    %54 = vector.broadcast %9 : vector<1x16xf32> to vector<16x16xf32>
    %55 = arith.mulf %53, %54 : vector<16x16xf32>
    %56 = vector.broadcast %10 : vector<1x16xf32> to vector<16x16xf32>
    %57 = arith.addf %55, %56 : vector<16x16xf32>
    %58 = arith.truncf %35 : vector<8x32xf32> to vector<8x32xbf16>
    %cst_32 = arith.constant dense<0.000000e+00> : vector<8x32xf32>
    %59 = tpu.matmul %58, %11, %cst_32 {dimension_numbers = #tpu.dot_dimension_numbers<[1], [0], [0], [1], [0, 0, 1, 1], [], []>} : vector<8x32xbf16>, vector<32x32xbf16>, vector<8x32xf32> -> vector<8x32xf32>
    %60 = arith.truncf %57 : vector<16x16xf32> to vector<16x16xbf16>
    %cst_33 = arith.constant dense<0.000000e+00> : vector<16x64xf32>
    %61 = tpu.matmul %60, %12, %cst_33 {dimension_numbers = #tpu.dot_dimension_numbers<[1], [0], [0], [1], [0, 0, 1, 1], [], []>} : vector<16x16xbf16>, vector<16x64xbf16>, vector<16x64xf32> -> vector<16x64xf32>
    %62 = vector.extract_strided_slice %61 {offsets = [0, 0], sizes = [16, 32], strides = [1, 1]} : vector<16x64xf32> to vector<16x32xf32>
    %63 = vector.extract_strided_slice %61 {offsets = [0, 32], sizes = [16, 32], strides = [1, 1]} : vector<16x64xf32> to vector<16x32xf32>
    %64 = arith.truncf %59 : vector<8x32xf32> to vector<8x32xbf16>
    %65 = arith.truncf %62 : vector<16x32xf32> to vector<16x32xbf16>
    %cst_34 = arith.constant dense<0.000000e+00> : vector<8x16xf32>
    %66 = tpu.matmul %64, %65, %cst_34 {dimension_numbers = #tpu.dot_dimension_numbers<[1], [1], [0], [0], [0, 0, 1, 0], [], []>} : vector<8x32xbf16>, vector<16x32xbf16>, vector<8x16xf32> -> vector<8x16xf32>
    %67 = vector.broadcast %5 : vector<1x16xf32> to vector<8x16xf32>
    %68 = arith.addf %66, %67 : vector<8x16xf32>
    %cst_35 = arith.constant dense<0xFF800000> : vector<8xf32>
    %69 = vector.multi_reduction <maximumf>, %68, %cst_35 [1] : vector<8x16xf32> to vector<8xf32>
    %70 = vector.shape_cast %69 : vector<8xf32> to vector<8x1xf32>
    %71 = vector.broadcast %70 : vector<8x1xf32> to vector<8x16xf32>
    %72 = arith.subf %68, %71 : vector<8x16xf32>
    %73 = math.exp %72 : vector<8x16xf32>
    %cst_36 = arith.constant dense<0.000000e+00> : vector<8xf32>
    %74 = vector.multi_reduction <add>, %73, %cst_36 [1] : vector<8x16xf32> to vector<8xf32>
    %75 = vector.shape_cast %74 : vector<8xf32> to vector<8x1xf32>
    %76 = tpu.reciprocal %75 {approx = true} : vector<8x1xf32> -> vector<8x1xf32>
    %77 = vector.broadcast %76 : vector<8x1xf32> to vector<8x16xf32>
    %78 = arith.mulf %73, %77 : vector<8x16xf32>
    %79 = arith.truncf %78 : vector<8x16xf32> to vector<8x16xbf16>
    %80 = arith.truncf %63 : vector<16x32xf32> to vector<16x32xbf16>
    %cst_37 = arith.constant dense<0.000000e+00> : vector<8x32xf32>
    %81 = tpu.matmul %79, %80, %cst_37 {dimension_numbers = #tpu.dot_dimension_numbers<[1], [0], [0], [1], [0, 0, 1, 1], [], []>} : vector<8x16xbf16>, vector<16x32xbf16>, vector<8x32xf32> -> vector<8x32xf32>
    %82 = arith.truncf %81 : vector<8x32xf32> to vector<8x32xbf16>
    %cst_38 = arith.constant dense<0.000000e+00> : vector<8x32xf32>
    %83 = tpu.matmul %82, %13, %cst_38 {dimension_numbers = #tpu.dot_dimension_numbers<[1], [0], [0], [1], [0, 0, 1, 1], [], []>} : vector<8x32xbf16>, vector<32x32xbf16>, vector<8x32xf32> -> vector<8x32xf32>
    %84 = arith.addf %6, %83 : vector<8x32xf32>
    %c0_39 = arith.constant 0 : index
    %c0_40 = arith.constant 0 : index
    %85 = vector.load %arg13[%c0_39, %c0_40] : memref<1x32xf32, #tpu.memory_space<vmem>>, vector<1x32xf32>
    %c0_41 = arith.constant 0 : index
    %c0_42 = arith.constant 0 : index
    %86 = vector.load %arg14[%c0_41, %c0_42] : memref<1x32xf32, #tpu.memory_space<vmem>>, vector<1x32xf32>
    %c0_43 = arith.constant 0 : index
    %c0_44 = arith.constant 0 : index
    %87 = vector.load %arg15[%c0_43, %c0_44] : memref<32x128xbf16, #tpu.memory_space<vmem>>, vector<32x128xbf16>
    %c0_45 = arith.constant 0 : index
    %c0_46 = arith.constant 0 : index
    %88 = vector.load %arg16[%c0_45, %c0_46] : memref<1x128xf32, #tpu.memory_space<vmem>>, vector<1x128xf32>
    %c0_47 = arith.constant 0 : index
    %c0_48 = arith.constant 0 : index
    %89 = vector.load %arg17[%c0_47, %c0_48] : memref<128x32xbf16, #tpu.memory_space<vmem>>, vector<128x32xbf16>
    %c0_49 = arith.constant 0 : index
    %c0_50 = arith.constant 0 : index
    %90 = vector.load %arg18[%c0_49, %c0_50] : memref<1x32xf32, #tpu.memory_space<vmem>>, vector<1x32xf32>
    %cst_51 = arith.constant dense<0.000000e+00> : vector<8xf32>
    %91 = vector.multi_reduction <add>, %84, %cst_51 [1] : vector<8x32xf32> to vector<8xf32>
    %92 = vector.shape_cast %91 : vector<8xf32> to vector<8x1xf32>
    %cst_52 = arith.constant 3.200000e+01 : f32
    %93 = vector.broadcast %cst_52 : f32 to vector<8x1xf32>
    %94 = arith.divf %92, %93 : vector<8x1xf32>
    %95 = vector.broadcast %94 : vector<8x1xf32> to vector<8x32xf32>
    %96 = arith.subf %84, %95 : vector<8x32xf32>
    %97 = arith.mulf %96, %96 : vector<8x32xf32>
    %cst_53 = arith.constant dense<0.000000e+00> : vector<8xf32>
    %98 = vector.multi_reduction <add>, %97, %cst_53 [1] : vector<8x32xf32> to vector<8xf32>
    %99 = vector.shape_cast %98 : vector<8xf32> to vector<8x1xf32>
    %cst_54 = arith.constant 3.200000e+01 : f32
    %100 = vector.broadcast %cst_54 : f32 to vector<8x1xf32>
    %101 = arith.divf %99, %100 : vector<8x1xf32>
    %102 = vector.broadcast %94 : vector<8x1xf32> to vector<8x32xf32>
    %103 = arith.subf %84, %102 : vector<8x32xf32>
    %cst_55 = arith.constant 9.99999974E-6 : f32
    %104 = vector.broadcast %cst_55 : f32 to vector<8x1xf32>
    %105 = arith.addf %101, %104 : vector<8x1xf32>
    %106 = math.rsqrt %105 : vector<8x1xf32>
    %107 = vector.broadcast %106 : vector<8x1xf32> to vector<8x32xf32>
    %108 = arith.mulf %103, %107 : vector<8x32xf32>
    %109 = vector.broadcast %85 : vector<1x32xf32> to vector<8x32xf32>
    %110 = arith.mulf %108, %109 : vector<8x32xf32>
    %111 = vector.broadcast %86 : vector<1x32xf32> to vector<8x32xf32>
    %112 = arith.addf %110, %111 : vector<8x32xf32>
    %113 = arith.truncf %112 : vector<8x32xf32> to vector<8x32xbf16>
    %cst_56 = arith.constant dense<0.000000e+00> : vector<8x128xf32>
    %114 = tpu.matmul %113, %87, %cst_56 {dimension_numbers = #tpu.dot_dimension_numbers<[1], [0], [0], [1], [0, 0, 1, 1], [], []>} : vector<8x32xbf16>, vector<32x128xbf16>, vector<8x128xf32> -> vector<8x128xf32>
    %115 = vector.broadcast %88 : vector<1x128xf32> to vector<8x128xf32>
    %116 = arith.addf %114, %115 : vector<8x128xf32>
    %cst_57 = arith.constant 5.000000e-01 : f32
    %117 = vector.broadcast %cst_57 : f32 to vector<8x128xf32>
    %118 = arith.mulf %117, %116 : vector<8x128xf32>
    %cst_58 = arith.constant 4.471500e-02 : f32
    %119 = vector.broadcast %cst_58 : f32 to vector<8x128xf32>
    %120 = arith.mulf %119, %116 : vector<8x128xf32>
    %121 = arith.mulf %120, %116 : vector<8x128xf32>
    %122 = arith.mulf %121, %116 : vector<8x128xf32>
    %123 = arith.addf %116, %122 : vector<8x128xf32>
    %cst_59 = arith.constant 0.797884583 : f32
    %124 = vector.broadcast %cst_59 : f32 to vector<8x128xf32>
    %125 = arith.mulf %124, %123 : vector<8x128xf32>
    %126 = math.tanh %125 : vector<8x128xf32>
    %cst_60 = arith.constant 1.000000e+00 : f32
    %127 = vector.broadcast %cst_60 : f32 to vector<8x128xf32>
    %128 = arith.addf %127, %126 : vector<8x128xf32>
    %129 = arith.mulf %118, %128 : vector<8x128xf32>
    %130 = arith.truncf %129 : vector<8x128xf32> to vector<8x128xbf16>
    %cst_61 = arith.constant dense<0.000000e+00> : vector<8x32xf32>
    %131 = tpu.matmul %130, %89, %cst_61 {dimension_numbers = #tpu.dot_dimension_numbers<[1], [0], [0], [1], [0, 0, 1, 1], [], []>} : vector<8x128xbf16>, vector<128x32xbf16>, vector<8x32xf32> -> vector<8x32xf32>
    %132 = vector.broadcast %90 : vector<1x32xf32> to vector<8x32xf32>
    %133 = arith.addf %131, %132 : vector<8x32xf32>
    %134 = arith.addf %84, %133 : vector<8x32xf32>
    %c0_i32 = arith.constant 0 : i32
    %135 = arith.index_cast %c0_i32 : i32 to index
    %c0_62 = arith.constant 0 : index
    %c0_63 = arith.constant 0 : index
    %136 = vector.load %arg19[%135, %c0_62, %c0_63] : memref<4x1x32xf32, #tpu.memory_space<vmem>>, vector<1x1x32xf32>
    %137 = vector.shape_cast %136 : vector<1x1x32xf32> to vector<1x32xf32>
    %138 = arith.index_cast %c0_i32 : i32 to index
    %c0_64 = arith.constant 0 : index
    %c0_65 = arith.constant 0 : index
    %139 = vector.load %arg20[%138, %c0_64, %c0_65] : memref<4x1x32xf32, #tpu.memory_space<vmem>>, vector<1x1x32xf32>
    %140 = vector.shape_cast %139 : vector<1x1x32xf32> to vector<1x32xf32>
    %141 = arith.index_cast %c0_i32 : i32 to index
    %c0_66 = arith.constant 0 : index
    %c0_67 = arith.constant 0 : index
    %142 = vector.load %arg21[%141, %c0_66, %c0_67] : memref<4x1x32xf32, #tpu.memory_space<vmem>>, vector<1x1x32xf32>
    %143 = vector.shape_cast %142 : vector<1x1x32xf32> to vector<1x32xf32>
    %144 = arith.index_cast %c0_i32 : i32 to index
    %c0_68 = arith.constant 0 : index
    %c0_69 = arith.constant 0 : index
    %145 = vector.load %arg22[%144, %c0_68, %c0_69] : memref<4x1x32xf32, #tpu.memory_space<vmem>>, vector<1x1x32xf32>
    %146 = vector.shape_cast %145 : vector<1x1x32xf32> to vector<1x32xf32>
    %147 = arith.index_cast %c0_i32 : i32 to index
    %c0_70 = arith.constant 0 : index
    %c0_71 = arith.constant 0 : index
    %148 = vector.load %arg23[%147, %c0_70, %c0_71] : memref<4x32x32xbf16, #tpu.memory_space<vmem>>, vector<1x32x32xbf16>
    %149 = vector.shape_cast %148 : vector<1x32x32xbf16> to vector<32x32xbf16>
    %150 = arith.index_cast %c0_i32 : i32 to index
    %c0_72 = arith.constant 0 : index
    %c0_73 = arith.constant 0 : index
    %151 = vector.load %arg24[%150, %c0_72, %c0_73] : memref<4x32x64xbf16, #tpu.memory_space<vmem>>, vector<1x32x64xbf16>
    %152 = vector.shape_cast %151 : vector<1x32x64xbf16> to vector<32x64xbf16>
    %153 = arith.index_cast %c0_i32 : i32 to index
    %c0_74 = arith.constant 0 : index
    %c0_75 = arith.constant 0 : index
    %154 = vector.load %arg25[%153, %c0_74, %c0_75] : memref<4x32x32xbf16, #tpu.memory_space<vmem>>, vector<1x32x32xbf16>
    %155 = vector.shape_cast %154 : vector<1x32x32xbf16> to vector<32x32xbf16>
    %cst_76 = arith.constant dense<0.000000e+00> : vector<8xf32>
    %156 = vector.multi_reduction <add>, %134, %cst_76 [1] : vector<8x32xf32> to vector<8xf32>
    %157 = vector.shape_cast %156 : vector<8xf32> to vector<8x1xf32>
    %cst_77 = arith.constant 3.200000e+01 : f32
    %158 = vector.broadcast %cst_77 : f32 to vector<8x1xf32>
    %159 = arith.divf %157, %158 : vector<8x1xf32>
    %160 = vector.broadcast %159 : vector<8x1xf32> to vector<8x32xf32>
    %161 = arith.subf %134, %160 : vector<8x32xf32>
    %162 = arith.mulf %161, %161 : vector<8x32xf32>
    %cst_78 = arith.constant dense<0.000000e+00> : vector<8xf32>
    %163 = vector.multi_reduction <add>, %162, %cst_78 [1] : vector<8x32xf32> to vector<8xf32>
    %164 = vector.shape_cast %163 : vector<8xf32> to vector<8x1xf32>
    %cst_79 = arith.constant 3.200000e+01 : f32
    %165 = vector.broadcast %cst_79 : f32 to vector<8x1xf32>
    %166 = arith.divf %164, %165 : vector<8x1xf32>
    %167 = vector.broadcast %159 : vector<8x1xf32> to vector<8x32xf32>
    %168 = arith.subf %134, %167 : vector<8x32xf32>
    %cst_80 = arith.constant 9.99999974E-6 : f32
    %169 = vector.broadcast %cst_80 : f32 to vector<8x1xf32>
    %170 = arith.addf %166, %169 : vector<8x1xf32>
    %171 = math.rsqrt %170 : vector<8x1xf32>
    %172 = vector.broadcast %171 : vector<8x1xf32> to vector<8x32xf32>
    %173 = arith.mulf %168, %172 : vector<8x32xf32>
    %174 = vector.broadcast %137 : vector<1x32xf32> to vector<8x32xf32>
    %175 = arith.mulf %173, %174 : vector<8x32xf32>
    %176 = vector.broadcast %140 : vector<1x32xf32> to vector<8x32xf32>
    %177 = arith.addf %175, %176 : vector<8x32xf32>
    %cst_81 = arith.constant dense<0.000000e+00> : vector<8xf32>
    %178 = vector.multi_reduction <add>, %134, %cst_81 [1] : vector<8x32xf32> to vector<8xf32>
    %179 = vector.shape_cast %178 : vector<8xf32> to vector<8x1xf32>
    %cst_82 = arith.constant 3.200000e+01 : f32
    %180 = vector.broadcast %cst_82 : f32 to vector<8x1xf32>
    %181 = arith.divf %179, %180 : vector<8x1xf32>
    %182 = vector.broadcast %181 : vector<8x1xf32> to vector<8x32xf32>
    %183 = arith.subf %134, %182 : vector<8x32xf32>
    %184 = arith.mulf %183, %183 : vector<8x32xf32>
    %cst_83 = arith.constant dense<0.000000e+00> : vector<8xf32>
    %185 = vector.multi_reduction <add>, %184, %cst_83 [1] : vector<8x32xf32> to vector<8xf32>
    %186 = vector.shape_cast %185 : vector<8xf32> to vector<8x1xf32>
    %cst_84 = arith.constant 3.200000e+01 : f32
    %187 = vector.broadcast %cst_84 : f32 to vector<8x1xf32>
    %188 = arith.divf %186, %187 : vector<8x1xf32>
    %189 = vector.broadcast %181 : vector<8x1xf32> to vector<8x32xf32>
    %190 = arith.subf %134, %189 : vector<8x32xf32>
    %cst_85 = arith.constant 9.99999974E-6 : f32
    %191 = vector.broadcast %cst_85 : f32 to vector<8x1xf32>
    %192 = arith.addf %188, %191 : vector<8x1xf32>
    %193 = math.rsqrt %192 : vector<8x1xf32>
    %194 = vector.broadcast %193 : vector<8x1xf32> to vector<8x32xf32>
    %195 = arith.mulf %190, %194 : vector<8x32xf32>
    %196 = vector.broadcast %143 : vector<1x32xf32> to vector<8x32xf32>
    %197 = arith.mulf %195, %196 : vector<8x32xf32>
    %198 = vector.broadcast %146 : vector<1x32xf32> to vector<8x32xf32>
    %199 = arith.addf %197, %198 : vector<8x32xf32>
    %200 = arith.truncf %177 : vector<8x32xf32> to vector<8x32xbf16>
    %cst_86 = arith.constant dense<0.000000e+00> : vector<8x32xf32>
    %201 = tpu.matmul %200, %149, %cst_86 {dimension_numbers = #tpu.dot_dimension_numbers<[1], [0], [0], [1], [0, 0, 1, 1], [], []>} : vector<8x32xbf16>, vector<32x32xbf16>, vector<8x32xf32> -> vector<8x32xf32>
    %202 = arith.truncf %199 : vector<8x32xf32> to vector<8x32xbf16>
    %cst_87 = arith.constant dense<0.000000e+00> : vector<8x64xf32>
    %203 = tpu.matmul %202, %152, %cst_87 {dimension_numbers = #tpu.dot_dimension_numbers<[1], [0], [0], [1], [0, 0, 1, 1], [], []>} : vector<8x32xbf16>, vector<32x64xbf16>, vector<8x64xf32> -> vector<8x64xf32>
    %204 = vector.extract_strided_slice %203 {offsets = [0, 0], sizes = [8, 32], strides = [1, 1]} : vector<8x64xf32> to vector<8x32xf32>
    %205 = vector.extract_strided_slice %203 {offsets = [0, 32], sizes = [8, 32], strides = [1, 1]} : vector<8x64xf32> to vector<8x32xf32>
    %206 = arith.truncf %201 : vector<8x32xf32> to vector<8x32xbf16>
    %207 = arith.truncf %204 : vector<8x32xf32> to vector<8x32xbf16>
    %cst_88 = arith.constant dense<0.000000e+00> : vector<8x8xf32>
    %208 = tpu.matmul %206, %207, %cst_88 {dimension_numbers = #tpu.dot_dimension_numbers<[1], [1], [0], [0], [0, 0, 1, 0], [], []>} : vector<8x32xbf16>, vector<8x32xbf16>, vector<8x8xf32> -> vector<8x8xf32>
    %cst_89 = arith.constant dense<0xFF800000> : vector<8xf32>
    %209 = vector.multi_reduction <maximumf>, %208, %cst_89 [1] : vector<8x8xf32> to vector<8xf32>
    %210 = vector.shape_cast %209 : vector<8xf32> to vector<8x1xf32>
    %211 = vector.broadcast %210 : vector<8x1xf32> to vector<8x8xf32>
    %212 = arith.subf %208, %211 : vector<8x8xf32>
    %213 = math.exp %212 : vector<8x8xf32>
    %cst_90 = arith.constant dense<0.000000e+00> : vector<8xf32>
    %214 = vector.multi_reduction <add>, %213, %cst_90 [1] : vector<8x8xf32> to vector<8xf32>
    %215 = vector.shape_cast %214 : vector<8xf32> to vector<8x1xf32>
    %216 = tpu.reciprocal %215 {approx = true} : vector<8x1xf32> -> vector<8x1xf32>
    %217 = vector.broadcast %216 : vector<8x1xf32> to vector<8x8xf32>
    %218 = arith.mulf %213, %217 : vector<8x8xf32>
    %219 = arith.truncf %218 : vector<8x8xf32> to vector<8x8xbf16>
    %220 = arith.truncf %205 : vector<8x32xf32> to vector<8x32xbf16>
    %cst_91 = arith.constant dense<0.000000e+00> : vector<8x32xf32>
    %221 = tpu.matmul %219, %220, %cst_91 {dimension_numbers = #tpu.dot_dimension_numbers<[1], [0], [0], [1], [0, 0, 1, 1], [], []>} : vector<8x8xbf16>, vector<8x32xbf16>, vector<8x32xf32> -> vector<8x32xf32>
    %222 = arith.truncf %221 : vector<8x32xf32> to vector<8x32xbf16>
    %cst_92 = arith.constant dense<0.000000e+00> : vector<8x32xf32>
    %223 = tpu.matmul %222, %155, %cst_92 {dimension_numbers = #tpu.dot_dimension_numbers<[1], [0], [0], [1], [0, 0, 1, 1], [], []>} : vector<8x32xbf16>, vector<32x32xbf16>, vector<8x32xf32> -> vector<8x32xf32>
    %224 = arith.addf %134, %223 : vector<8x32xf32>
    %225 = arith.index_cast %c0_i32 : i32 to index
    %c0_93 = arith.constant 0 : index
    %c0_94 = arith.constant 0 : index
    %226 = vector.load %arg26[%225, %c0_93, %c0_94] : memref<4x1x32xf32, #tpu.memory_space<vmem>>, vector<1x1x32xf32>
    %227 = vector.shape_cast %226 : vector<1x1x32xf32> to vector<1x32xf32>
    %228 = arith.index_cast %c0_i32 : i32 to index
    %c0_95 = arith.constant 0 : index
    %c0_96 = arith.constant 0 : index
    %229 = vector.load %arg27[%228, %c0_95, %c0_96] : memref<4x1x32xf32, #tpu.memory_space<vmem>>, vector<1x1x32xf32>
    %230 = vector.shape_cast %229 : vector<1x1x32xf32> to vector<1x32xf32>
    %231 = arith.index_cast %c0_i32 : i32 to index
    %c0_97 = arith.constant 0 : index
    %c0_98 = arith.constant 0 : index
    %232 = vector.load %arg28[%231, %c0_97, %c0_98] : memref<4x32x128xbf16, #tpu.memory_space<vmem>>, vector<1x32x128xbf16>
    %233 = vector.shape_cast %232 : vector<1x32x128xbf16> to vector<32x128xbf16>
    %234 = arith.index_cast %c0_i32 : i32 to index
    %c0_99 = arith.constant 0 : index
    %c0_100 = arith.constant 0 : index
    %235 = vector.load %arg29[%234, %c0_99, %c0_100] : memref<4x1x128xf32, #tpu.memory_space<vmem>>, vector<1x1x128xf32>
    %236 = vector.shape_cast %235 : vector<1x1x128xf32> to vector<1x128xf32>
    %237 = arith.index_cast %c0_i32 : i32 to index
    %c0_101 = arith.constant 0 : index
    %c0_102 = arith.constant 0 : index
    %238 = vector.load %arg30[%237, %c0_101, %c0_102] : memref<4x128x32xbf16, #tpu.memory_space<vmem>>, vector<1x128x32xbf16>
    %239 = vector.shape_cast %238 : vector<1x128x32xbf16> to vector<128x32xbf16>
    %240 = arith.index_cast %c0_i32 : i32 to index
    %c0_103 = arith.constant 0 : index
    %c0_104 = arith.constant 0 : index
    %241 = vector.load %arg31[%240, %c0_103, %c0_104] : memref<4x1x32xf32, #tpu.memory_space<vmem>>, vector<1x1x32xf32>
    %242 = vector.shape_cast %241 : vector<1x1x32xf32> to vector<1x32xf32>
    %cst_105 = arith.constant dense<0.000000e+00> : vector<8xf32>
    %243 = vector.multi_reduction <add>, %224, %cst_105 [1] : vector<8x32xf32> to vector<8xf32>
    %244 = vector.shape_cast %243 : vector<8xf32> to vector<8x1xf32>
    %cst_106 = arith.constant 3.200000e+01 : f32
    %245 = vector.broadcast %cst_106 : f32 to vector<8x1xf32>
    %246 = arith.divf %244, %245 : vector<8x1xf32>
    %247 = vector.broadcast %246 : vector<8x1xf32> to vector<8x32xf32>
    %248 = arith.subf %224, %247 : vector<8x32xf32>
    %249 = arith.mulf %248, %248 : vector<8x32xf32>
    %cst_107 = arith.constant dense<0.000000e+00> : vector<8xf32>
    %250 = vector.multi_reduction <add>, %249, %cst_107 [1] : vector<8x32xf32> to vector<8xf32>
    %251 = vector.shape_cast %250 : vector<8xf32> to vector<8x1xf32>
    %cst_108 = arith.constant 3.200000e+01 : f32
    %252 = vector.broadcast %cst_108 : f32 to vector<8x1xf32>
    %253 = arith.divf %251, %252 : vector<8x1xf32>
    %254 = vector.broadcast %246 : vector<8x1xf32> to vector<8x32xf32>
    %255 = arith.subf %224, %254 : vector<8x32xf32>
    %cst_109 = arith.constant 9.99999974E-6 : f32
    %256 = vector.broadcast %cst_109 : f32 to vector<8x1xf32>
    %257 = arith.addf %253, %256 : vector<8x1xf32>
    %258 = math.rsqrt %257 : vector<8x1xf32>
    %259 = vector.broadcast %258 : vector<8x1xf32> to vector<8x32xf32>
    %260 = arith.mulf %255, %259 : vector<8x32xf32>
    %261 = vector.broadcast %227 : vector<1x32xf32> to vector<8x32xf32>
    %262 = arith.mulf %260, %261 : vector<8x32xf32>
    %263 = vector.broadcast %230 : vector<1x32xf32> to vector<8x32xf32>
    %264 = arith.addf %262, %263 : vector<8x32xf32>
    %265 = arith.truncf %264 : vector<8x32xf32> to vector<8x32xbf16>
    %cst_110 = arith.constant dense<0.000000e+00> : vector<8x128xf32>
    %266 = tpu.matmul %265, %233, %cst_110 {dimension_numbers = #tpu.dot_dimension_numbers<[1], [0], [0], [1], [0, 0, 1, 1], [], []>} : vector<8x32xbf16>, vector<32x128xbf16>, vector<8x128xf32> -> vector<8x128xf32>
    %267 = vector.broadcast %236 : vector<1x128xf32> to vector<8x128xf32>
    %268 = arith.addf %266, %267 : vector<8x128xf32>
    %cst_111 = arith.constant 5.000000e-01 : f32
    %269 = vector.broadcast %cst_111 : f32 to vector<8x128xf32>
    %270 = arith.mulf %269, %268 : vector<8x128xf32>
    %cst_112 = arith.constant 4.471500e-02 : f32
    %271 = vector.broadcast %cst_112 : f32 to vector<8x128xf32>
    %272 = arith.mulf %271, %268 : vector<8x128xf32>
    %273 = arith.mulf %272, %268 : vector<8x128xf32>
    %274 = arith.mulf %273, %268 : vector<8x128xf32>
    %275 = arith.addf %268, %274 : vector<8x128xf32>
    %cst_113 = arith.constant 0.797884583 : f32
    %276 = vector.broadcast %cst_113 : f32 to vector<8x128xf32>
    %277 = arith.mulf %276, %275 : vector<8x128xf32>
    %278 = math.tanh %277 : vector<8x128xf32>
    %cst_114 = arith.constant 1.000000e+00 : f32
    %279 = vector.broadcast %cst_114 : f32 to vector<8x128xf32>
    %280 = arith.addf %279, %278 : vector<8x128xf32>
    %281 = arith.mulf %270, %280 : vector<8x128xf32>
    %282 = arith.truncf %281 : vector<8x128xf32> to vector<8x128xbf16>
    %cst_115 = arith.constant dense<0.000000e+00> : vector<8x32xf32>
    %283 = tpu.matmul %282, %239, %cst_115 {dimension_numbers = #tpu.dot_dimension_numbers<[1], [0], [0], [1], [0, 0, 1, 1], [], []>} : vector<8x128xbf16>, vector<128x32xbf16>, vector<8x32xf32> -> vector<8x32xf32>
    %284 = vector.broadcast %242 : vector<1x32xf32> to vector<8x32xf32>
    %285 = arith.addf %283, %284 : vector<8x32xf32>
    %286 = arith.addf %224, %285 : vector<8x32xf32>
    %c1_i32 = arith.constant 1 : i32
    %287 = arith.index_cast %c1_i32 : i32 to index
    %c0_116 = arith.constant 0 : index
    %c0_117 = arith.constant 0 : index
    %288 = vector.load %arg19[%287, %c0_116, %c0_117] : memref<4x1x32xf32, #tpu.memory_space<vmem>>, vector<1x1x32xf32>
    %289 = vector.shape_cast %288 : vector<1x1x32xf32> to vector<1x32xf32>
    %290 = arith.index_cast %c1_i32 : i32 to index
    %c0_118 = arith.constant 0 : index
    %c0_119 = arith.constant 0 : index
    %291 = vector.load %arg20[%290, %c0_118, %c0_119] : memref<4x1x32xf32, #tpu.memory_space<vmem>>, vector<1x1x32xf32>
    %292 = vector.shape_cast %291 : vector<1x1x32xf32> to vector<1x32xf32>
    %293 = arith.index_cast %c1_i32 : i32 to index
    %c0_120 = arith.constant 0 : index
    %c0_121 = arith.constant 0 : index
    %294 = vector.load %arg21[%293, %c0_120, %c0_121] : memref<4x1x32xf32, #tpu.memory_space<vmem>>, vector<1x1x32xf32>
    %295 = vector.shape_cast %294 : vector<1x1x32xf32> to vector<1x32xf32>
    %296 = arith.index_cast %c1_i32 : i32 to index
    %c0_122 = arith.constant 0 : index
    %c0_123 = arith.constant 0 : index
    %297 = vector.load %arg22[%296, %c0_122, %c0_123] : memref<4x1x32xf32, #tpu.memory_space<vmem>>, vector<1x1x32xf32>
    %298 = vector.shape_cast %297 : vector<1x1x32xf32> to vector<1x32xf32>
    %299 = arith.index_cast %c1_i32 : i32 to index
    %c0_124 = arith.constant 0 : index
    %c0_125 = arith.constant 0 : index
    %300 = vector.load %arg23[%299, %c0_124, %c0_125] : memref<4x32x32xbf16, #tpu.memory_space<vmem>>, vector<1x32x32xbf16>
    %301 = vector.shape_cast %300 : vector<1x32x32xbf16> to vector<32x32xbf16>
    %302 = arith.index_cast %c1_i32 : i32 to index
    %c0_126 = arith.constant 0 : index
    %c0_127 = arith.constant 0 : index
    %303 = vector.load %arg24[%302, %c0_126, %c0_127] : memref<4x32x64xbf16, #tpu.memory_space<vmem>>, vector<1x32x64xbf16>
    %304 = vector.shape_cast %303 : vector<1x32x64xbf16> to vector<32x64xbf16>
    %305 = arith.index_cast %c1_i32 : i32 to index
    %c0_128 = arith.constant 0 : index
    %c0_129 = arith.constant 0 : index
    %306 = vector.load %arg25[%305, %c0_128, %c0_129] : memref<4x32x32xbf16, #tpu.memory_space<vmem>>, vector<1x32x32xbf16>
    %307 = vector.shape_cast %306 : vector<1x32x32xbf16> to vector<32x32xbf16>
    %cst_130 = arith.constant dense<0.000000e+00> : vector<8xf32>
    %308 = vector.multi_reduction <add>, %286, %cst_130 [1] : vector<8x32xf32> to vector<8xf32>
    %309 = vector.shape_cast %308 : vector<8xf32> to vector<8x1xf32>
    %cst_131 = arith.constant 3.200000e+01 : f32
    %310 = vector.broadcast %cst_131 : f32 to vector<8x1xf32>
    %311 = arith.divf %309, %310 : vector<8x1xf32>
    %312 = vector.broadcast %311 : vector<8x1xf32> to vector<8x32xf32>
    %313 = arith.subf %286, %312 : vector<8x32xf32>
    %314 = arith.mulf %313, %313 : vector<8x32xf32>
    %cst_132 = arith.constant dense<0.000000e+00> : vector<8xf32>
    %315 = vector.multi_reduction <add>, %314, %cst_132 [1] : vector<8x32xf32> to vector<8xf32>
    %316 = vector.shape_cast %315 : vector<8xf32> to vector<8x1xf32>
    %cst_133 = arith.constant 3.200000e+01 : f32
    %317 = vector.broadcast %cst_133 : f32 to vector<8x1xf32>
    %318 = arith.divf %316, %317 : vector<8x1xf32>
    %319 = vector.broadcast %311 : vector<8x1xf32> to vector<8x32xf32>
    %320 = arith.subf %286, %319 : vector<8x32xf32>
    %cst_134 = arith.constant 9.99999974E-6 : f32
    %321 = vector.broadcast %cst_134 : f32 to vector<8x1xf32>
    %322 = arith.addf %318, %321 : vector<8x1xf32>
    %323 = math.rsqrt %322 : vector<8x1xf32>
    %324 = vector.broadcast %323 : vector<8x1xf32> to vector<8x32xf32>
    %325 = arith.mulf %320, %324 : vector<8x32xf32>
    %326 = vector.broadcast %289 : vector<1x32xf32> to vector<8x32xf32>
    %327 = arith.mulf %325, %326 : vector<8x32xf32>
    %328 = vector.broadcast %292 : vector<1x32xf32> to vector<8x32xf32>
    %329 = arith.addf %327, %328 : vector<8x32xf32>
    %cst_135 = arith.constant dense<0.000000e+00> : vector<8xf32>
    %330 = vector.multi_reduction <add>, %286, %cst_135 [1] : vector<8x32xf32> to vector<8xf32>
    %331 = vector.shape_cast %330 : vector<8xf32> to vector<8x1xf32>
    %cst_136 = arith.constant 3.200000e+01 : f32
    %332 = vector.broadcast %cst_136 : f32 to vector<8x1xf32>
    %333 = arith.divf %331, %332 : vector<8x1xf32>
    %334 = vector.broadcast %333 : vector<8x1xf32> to vector<8x32xf32>
    %335 = arith.subf %286, %334 : vector<8x32xf32>
    %336 = arith.mulf %335, %335 : vector<8x32xf32>
    %cst_137 = arith.constant dense<0.000000e+00> : vector<8xf32>
    %337 = vector.multi_reduction <add>, %336, %cst_137 [1] : vector<8x32xf32> to vector<8xf32>
    %338 = vector.shape_cast %337 : vector<8xf32> to vector<8x1xf32>
    %cst_138 = arith.constant 3.200000e+01 : f32
    %339 = vector.broadcast %cst_138 : f32 to vector<8x1xf32>
    %340 = arith.divf %338, %339 : vector<8x1xf32>
    %341 = vector.broadcast %333 : vector<8x1xf32> to vector<8x32xf32>
    %342 = arith.subf %286, %341 : vector<8x32xf32>
    %cst_139 = arith.constant 9.99999974E-6 : f32
    %343 = vector.broadcast %cst_139 : f32 to vector<8x1xf32>
    %344 = arith.addf %340, %343 : vector<8x1xf32>
    %345 = math.rsqrt %344 : vector<8x1xf32>
    %346 = vector.broadcast %345 : vector<8x1xf32> to vector<8x32xf32>
    %347 = arith.mulf %342, %346 : vector<8x32xf32>
    %348 = vector.broadcast %295 : vector<1x32xf32> to vector<8x32xf32>
    %349 = arith.mulf %347, %348 : vector<8x32xf32>
    %350 = vector.broadcast %298 : vector<1x32xf32> to vector<8x32xf32>
    %351 = arith.addf %349, %350 : vector<8x32xf32>
    %352 = arith.truncf %329 : vector<8x32xf32> to vector<8x32xbf16>
    %cst_140 = arith.constant dense<0.000000e+00> : vector<8x32xf32>
    %353 = tpu.matmul %352, %301, %cst_140 {dimension_numbers = #tpu.dot_dimension_numbers<[1], [0], [0], [1], [0, 0, 1, 1], [], []>} : vector<8x32xbf16>, vector<32x32xbf16>, vector<8x32xf32> -> vector<8x32xf32>
    %354 = arith.truncf %351 : vector<8x32xf32> to vector<8x32xbf16>
    %cst_141 = arith.constant dense<0.000000e+00> : vector<8x64xf32>
    %355 = tpu.matmul %354, %304, %cst_141 {dimension_numbers = #tpu.dot_dimension_numbers<[1], [0], [0], [1], [0, 0, 1, 1], [], []>} : vector<8x32xbf16>, vector<32x64xbf16>, vector<8x64xf32> -> vector<8x64xf32>
    %356 = vector.extract_strided_slice %355 {offsets = [0, 0], sizes = [8, 32], strides = [1, 1]} : vector<8x64xf32> to vector<8x32xf32>
    %357 = vector.extract_strided_slice %355 {offsets = [0, 32], sizes = [8, 32], strides = [1, 1]} : vector<8x64xf32> to vector<8x32xf32>
    %358 = arith.truncf %353 : vector<8x32xf32> to vector<8x32xbf16>
    %359 = arith.truncf %356 : vector<8x32xf32> to vector<8x32xbf16>
    %cst_142 = arith.constant dense<0.000000e+00> : vector<8x8xf32>
    %360 = tpu.matmul %358, %359, %cst_142 {dimension_numbers = #tpu.dot_dimension_numbers<[1], [1], [0], [0], [0, 0, 1, 0], [], []>} : vector<8x32xbf16>, vector<8x32xbf16>, vector<8x8xf32> -> vector<8x8xf32>
    %cst_143 = arith.constant dense<0xFF800000> : vector<8xf32>
    %361 = vector.multi_reduction <maximumf>, %360, %cst_143 [1] : vector<8x8xf32> to vector<8xf32>
    %362 = vector.shape_cast %361 : vector<8xf32> to vector<8x1xf32>
    %363 = vector.broadcast %362 : vector<8x1xf32> to vector<8x8xf32>
    %364 = arith.subf %360, %363 : vector<8x8xf32>
    %365 = math.exp %364 : vector<8x8xf32>
    %cst_144 = arith.constant dense<0.000000e+00> : vector<8xf32>
    %366 = vector.multi_reduction <add>, %365, %cst_144 [1] : vector<8x8xf32> to vector<8xf32>
    %367 = vector.shape_cast %366 : vector<8xf32> to vector<8x1xf32>
    %368 = tpu.reciprocal %367 {approx = true} : vector<8x1xf32> -> vector<8x1xf32>
    %369 = vector.broadcast %368 : vector<8x1xf32> to vector<8x8xf32>
    %370 = arith.mulf %365, %369 : vector<8x8xf32>
    %371 = arith.truncf %370 : vector<8x8xf32> to vector<8x8xbf16>
    %372 = arith.truncf %357 : vector<8x32xf32> to vector<8x32xbf16>
    %cst_145 = arith.constant dense<0.000000e+00> : vector<8x32xf32>
    %373 = tpu.matmul %371, %372, %cst_145 {dimension_numbers = #tpu.dot_dimension_numbers<[1], [0], [0], [1], [0, 0, 1, 1], [], []>} : vector<8x8xbf16>, vector<8x32xbf16>, vector<8x32xf32> -> vector<8x32xf32>
    %374 = arith.truncf %373 : vector<8x32xf32> to vector<8x32xbf16>
    %cst_146 = arith.constant dense<0.000000e+00> : vector<8x32xf32>
    %375 = tpu.matmul %374, %307, %cst_146 {dimension_numbers = #tpu.dot_dimension_numbers<[1], [0], [0], [1], [0, 0, 1, 1], [], []>} : vector<8x32xbf16>, vector<32x32xbf16>, vector<8x32xf32> -> vector<8x32xf32>
    %376 = arith.addf %286, %375 : vector<8x32xf32>
    %377 = arith.index_cast %c1_i32 : i32 to index
    %c0_147 = arith.constant 0 : index
    %c0_148 = arith.constant 0 : index
    %378 = vector.load %arg26[%377, %c0_147, %c0_148] : memref<4x1x32xf32, #tpu.memory_space<vmem>>, vector<1x1x32xf32>
    %379 = vector.shape_cast %378 : vector<1x1x32xf32> to vector<1x32xf32>
    %380 = arith.index_cast %c1_i32 : i32 to index
    %c0_149 = arith.constant 0 : index
    %c0_150 = arith.constant 0 : index
    %381 = vector.load %arg27[%380, %c0_149, %c0_150] : memref<4x1x32xf32, #tpu.memory_space<vmem>>, vector<1x1x32xf32>
    %382 = vector.shape_cast %381 : vector<1x1x32xf32> to vector<1x32xf32>
    %383 = arith.index_cast %c1_i32 : i32 to index
    %c0_151 = arith.constant 0 : index
    %c0_152 = arith.constant 0 : index
    %384 = vector.load %arg28[%383, %c0_151, %c0_152] : memref<4x32x128xbf16, #tpu.memory_space<vmem>>, vector<1x32x128xbf16>
    %385 = vector.shape_cast %384 : vector<1x32x128xbf16> to vector<32x128xbf16>
    %386 = arith.index_cast %c1_i32 : i32 to index
    %c0_153 = arith.constant 0 : index
    %c0_154 = arith.constant 0 : index
    %387 = vector.load %arg29[%386, %c0_153, %c0_154] : memref<4x1x128xf32, #tpu.memory_space<vmem>>, vector<1x1x128xf32>
    %388 = vector.shape_cast %387 : vector<1x1x128xf32> to vector<1x128xf32>
    %389 = arith.index_cast %c1_i32 : i32 to index
    %c0_155 = arith.constant 0 : index
    %c0_156 = arith.constant 0 : index
    %390 = vector.load %arg30[%389, %c0_155, %c0_156] : memref<4x128x32xbf16, #tpu.memory_space<vmem>>, vector<1x128x32xbf16>
    %391 = vector.shape_cast %390 : vector<1x128x32xbf16> to vector<128x32xbf16>
    %392 = arith.index_cast %c1_i32 : i32 to index
    %c0_157 = arith.constant 0 : index
    %c0_158 = arith.constant 0 : index
    %393 = vector.load %arg31[%392, %c0_157, %c0_158] : memref<4x1x32xf32, #tpu.memory_space<vmem>>, vector<1x1x32xf32>
    %394 = vector.shape_cast %393 : vector<1x1x32xf32> to vector<1x32xf32>
    %cst_159 = arith.constant dense<0.000000e+00> : vector<8xf32>
    %395 = vector.multi_reduction <add>, %376, %cst_159 [1] : vector<8x32xf32> to vector<8xf32>
    %396 = vector.shape_cast %395 : vector<8xf32> to vector<8x1xf32>
    %cst_160 = arith.constant 3.200000e+01 : f32
    %397 = vector.broadcast %cst_160 : f32 to vector<8x1xf32>
    %398 = arith.divf %396, %397 : vector<8x1xf32>
    %399 = vector.broadcast %398 : vector<8x1xf32> to vector<8x32xf32>
    %400 = arith.subf %376, %399 : vector<8x32xf32>
    %401 = arith.mulf %400, %400 : vector<8x32xf32>
    %cst_161 = arith.constant dense<0.000000e+00> : vector<8xf32>
    %402 = vector.multi_reduction <add>, %401, %cst_161 [1] : vector<8x32xf32> to vector<8xf32>
    %403 = vector.shape_cast %402 : vector<8xf32> to vector<8x1xf32>
    %cst_162 = arith.constant 3.200000e+01 : f32
    %404 = vector.broadcast %cst_162 : f32 to vector<8x1xf32>
    %405 = arith.divf %403, %404 : vector<8x1xf32>
    %406 = vector.broadcast %398 : vector<8x1xf32> to vector<8x32xf32>
    %407 = arith.subf %376, %406 : vector<8x32xf32>
    %cst_163 = arith.constant 9.99999974E-6 : f32
    %408 = vector.broadcast %cst_163 : f32 to vector<8x1xf32>
    %409 = arith.addf %405, %408 : vector<8x1xf32>
    %410 = math.rsqrt %409 : vector<8x1xf32>
    %411 = vector.broadcast %410 : vector<8x1xf32> to vector<8x32xf32>
    %412 = arith.mulf %407, %411 : vector<8x32xf32>
    %413 = vector.broadcast %379 : vector<1x32xf32> to vector<8x32xf32>
    %414 = arith.mulf %412, %413 : vector<8x32xf32>
    %415 = vector.broadcast %382 : vector<1x32xf32> to vector<8x32xf32>
    %416 = arith.addf %414, %415 : vector<8x32xf32>
    %417 = arith.truncf %416 : vector<8x32xf32> to vector<8x32xbf16>
    %cst_164 = arith.constant dense<0.000000e+00> : vector<8x128xf32>
    %418 = tpu.matmul %417, %385, %cst_164 {dimension_numbers = #tpu.dot_dimension_numbers<[1], [0], [0], [1], [0, 0, 1, 1], [], []>} : vector<8x32xbf16>, vector<32x128xbf16>, vector<8x128xf32> -> vector<8x128xf32>
    %419 = vector.broadcast %388 : vector<1x128xf32> to vector<8x128xf32>
    %420 = arith.addf %418, %419 : vector<8x128xf32>
    %cst_165 = arith.constant 5.000000e-01 : f32
    %421 = vector.broadcast %cst_165 : f32 to vector<8x128xf32>
    %422 = arith.mulf %421, %420 : vector<8x128xf32>
    %cst_166 = arith.constant 4.471500e-02 : f32
    %423 = vector.broadcast %cst_166 : f32 to vector<8x128xf32>
    %424 = arith.mulf %423, %420 : vector<8x128xf32>
    %425 = arith.mulf %424, %420 : vector<8x128xf32>
    %426 = arith.mulf %425, %420 : vector<8x128xf32>
    %427 = arith.addf %420, %426 : vector<8x128xf32>
    %cst_167 = arith.constant 0.797884583 : f32
    %428 = vector.broadcast %cst_167 : f32 to vector<8x128xf32>
    %429 = arith.mulf %428, %427 : vector<8x128xf32>
    %430 = math.tanh %429 : vector<8x128xf32>
    %cst_168 = arith.constant 1.000000e+00 : f32
    %431 = vector.broadcast %cst_168 : f32 to vector<8x128xf32>
    %432 = arith.addf %431, %430 : vector<8x128xf32>
    %433 = arith.mulf %422, %432 : vector<8x128xf32>
    %434 = arith.truncf %433 : vector<8x128xf32> to vector<8x128xbf16>
    %cst_169 = arith.constant dense<0.000000e+00> : vector<8x32xf32>
    %435 = tpu.matmul %434, %391, %cst_169 {dimension_numbers = #tpu.dot_dimension_numbers<[1], [0], [0], [1], [0, 0, 1, 1], [], []>} : vector<8x128xbf16>, vector<128x32xbf16>, vector<8x32xf32> -> vector<8x32xf32>
    %436 = vector.broadcast %394 : vector<1x32xf32> to vector<8x32xf32>
    %437 = arith.addf %435, %436 : vector<8x32xf32>
    %438 = arith.addf %376, %437 : vector<8x32xf32>
    %c2_i32 = arith.constant 2 : i32
    %439 = arith.index_cast %c2_i32 : i32 to index
    %c0_170 = arith.constant 0 : index
    %c0_171 = arith.constant 0 : index
    %440 = vector.load %arg19[%439, %c0_170, %c0_171] : memref<4x1x32xf32, #tpu.memory_space<vmem>>, vector<1x1x32xf32>
    %441 = vector.shape_cast %440 : vector<1x1x32xf32> to vector<1x32xf32>
    %442 = arith.index_cast %c2_i32 : i32 to index
    %c0_172 = arith.constant 0 : index
    %c0_173 = arith.constant 0 : index
    %443 = vector.load %arg20[%442, %c0_172, %c0_173] : memref<4x1x32xf32, #tpu.memory_space<vmem>>, vector<1x1x32xf32>
    %444 = vector.shape_cast %443 : vector<1x1x32xf32> to vector<1x32xf32>
    %445 = arith.index_cast %c2_i32 : i32 to index
    %c0_174 = arith.constant 0 : index
    %c0_175 = arith.constant 0 : index
    %446 = vector.load %arg21[%445, %c0_174, %c0_175] : memref<4x1x32xf32, #tpu.memory_space<vmem>>, vector<1x1x32xf32>
    %447 = vector.shape_cast %446 : vector<1x1x32xf32> to vector<1x32xf32>
    %448 = arith.index_cast %c2_i32 : i32 to index
    %c0_176 = arith.constant 0 : index
    %c0_177 = arith.constant 0 : index
    %449 = vector.load %arg22[%448, %c0_176, %c0_177] : memref<4x1x32xf32, #tpu.memory_space<vmem>>, vector<1x1x32xf32>
    %450 = vector.shape_cast %449 : vector<1x1x32xf32> to vector<1x32xf32>
    %451 = arith.index_cast %c2_i32 : i32 to index
    %c0_178 = arith.constant 0 : index
    %c0_179 = arith.constant 0 : index
    %452 = vector.load %arg23[%451, %c0_178, %c0_179] : memref<4x32x32xbf16, #tpu.memory_space<vmem>>, vector<1x32x32xbf16>
    %453 = vector.shape_cast %452 : vector<1x32x32xbf16> to vector<32x32xbf16>
    %454 = arith.index_cast %c2_i32 : i32 to index
    %c0_180 = arith.constant 0 : index
    %c0_181 = arith.constant 0 : index
    %455 = vector.load %arg24[%454, %c0_180, %c0_181] : memref<4x32x64xbf16, #tpu.memory_space<vmem>>, vector<1x32x64xbf16>
    %456 = vector.shape_cast %455 : vector<1x32x64xbf16> to vector<32x64xbf16>
    %457 = arith.index_cast %c2_i32 : i32 to index
    %c0_182 = arith.constant 0 : index
    %c0_183 = arith.constant 0 : index
    %458 = vector.load %arg25[%457, %c0_182, %c0_183] : memref<4x32x32xbf16, #tpu.memory_space<vmem>>, vector<1x32x32xbf16>
    %459 = vector.shape_cast %458 : vector<1x32x32xbf16> to vector<32x32xbf16>
    %cst_184 = arith.constant dense<0.000000e+00> : vector<8xf32>
    %460 = vector.multi_reduction <add>, %438, %cst_184 [1] : vector<8x32xf32> to vector<8xf32>
    %461 = vector.shape_cast %460 : vector<8xf32> to vector<8x1xf32>
    %cst_185 = arith.constant 3.200000e+01 : f32
    %462 = vector.broadcast %cst_185 : f32 to vector<8x1xf32>
    %463 = arith.divf %461, %462 : vector<8x1xf32>
    %464 = vector.broadcast %463 : vector<8x1xf32> to vector<8x32xf32>
    %465 = arith.subf %438, %464 : vector<8x32xf32>
    %466 = arith.mulf %465, %465 : vector<8x32xf32>
    %cst_186 = arith.constant dense<0.000000e+00> : vector<8xf32>
    %467 = vector.multi_reduction <add>, %466, %cst_186 [1] : vector<8x32xf32> to vector<8xf32>
    %468 = vector.shape_cast %467 : vector<8xf32> to vector<8x1xf32>
    %cst_187 = arith.constant 3.200000e+01 : f32
    %469 = vector.broadcast %cst_187 : f32 to vector<8x1xf32>
    %470 = arith.divf %468, %469 : vector<8x1xf32>
    %471 = vector.broadcast %463 : vector<8x1xf32> to vector<8x32xf32>
    %472 = arith.subf %438, %471 : vector<8x32xf32>
    %cst_188 = arith.constant 9.99999974E-6 : f32
    %473 = vector.broadcast %cst_188 : f32 to vector<8x1xf32>
    %474 = arith.addf %470, %473 : vector<8x1xf32>
    %475 = math.rsqrt %474 : vector<8x1xf32>
    %476 = vector.broadcast %475 : vector<8x1xf32> to vector<8x32xf32>
    %477 = arith.mulf %472, %476 : vector<8x32xf32>
    %478 = vector.broadcast %441 : vector<1x32xf32> to vector<8x32xf32>
    %479 = arith.mulf %477, %478 : vector<8x32xf32>
    %480 = vector.broadcast %444 : vector<1x32xf32> to vector<8x32xf32>
    %481 = arith.addf %479, %480 : vector<8x32xf32>
    %cst_189 = arith.constant dense<0.000000e+00> : vector<8xf32>
    %482 = vector.multi_reduction <add>, %438, %cst_189 [1] : vector<8x32xf32> to vector<8xf32>
    %483 = vector.shape_cast %482 : vector<8xf32> to vector<8x1xf32>
    %cst_190 = arith.constant 3.200000e+01 : f32
    %484 = vector.broadcast %cst_190 : f32 to vector<8x1xf32>
    %485 = arith.divf %483, %484 : vector<8x1xf32>
    %486 = vector.broadcast %485 : vector<8x1xf32> to vector<8x32xf32>
    %487 = arith.subf %438, %486 : vector<8x32xf32>
    %488 = arith.mulf %487, %487 : vector<8x32xf32>
    %cst_191 = arith.constant dense<0.000000e+00> : vector<8xf32>
    %489 = vector.multi_reduction <add>, %488, %cst_191 [1] : vector<8x32xf32> to vector<8xf32>
    %490 = vector.shape_cast %489 : vector<8xf32> to vector<8x1xf32>
    %cst_192 = arith.constant 3.200000e+01 : f32
    %491 = vector.broadcast %cst_192 : f32 to vector<8x1xf32>
    %492 = arith.divf %490, %491 : vector<8x1xf32>
    %493 = vector.broadcast %485 : vector<8x1xf32> to vector<8x32xf32>
    %494 = arith.subf %438, %493 : vector<8x32xf32>
    %cst_193 = arith.constant 9.99999974E-6 : f32
    %495 = vector.broadcast %cst_193 : f32 to vector<8x1xf32>
    %496 = arith.addf %492, %495 : vector<8x1xf32>
    %497 = math.rsqrt %496 : vector<8x1xf32>
    %498 = vector.broadcast %497 : vector<8x1xf32> to vector<8x32xf32>
    %499 = arith.mulf %494, %498 : vector<8x32xf32>
    %500 = vector.broadcast %447 : vector<1x32xf32> to vector<8x32xf32>
    %501 = arith.mulf %499, %500 : vector<8x32xf32>
    %502 = vector.broadcast %450 : vector<1x32xf32> to vector<8x32xf32>
    %503 = arith.addf %501, %502 : vector<8x32xf32>
    %504 = arith.truncf %481 : vector<8x32xf32> to vector<8x32xbf16>
    %cst_194 = arith.constant dense<0.000000e+00> : vector<8x32xf32>
    %505 = tpu.matmul %504, %453, %cst_194 {dimension_numbers = #tpu.dot_dimension_numbers<[1], [0], [0], [1], [0, 0, 1, 1], [], []>} : vector<8x32xbf16>, vector<32x32xbf16>, vector<8x32xf32> -> vector<8x32xf32>
    %506 = arith.truncf %503 : vector<8x32xf32> to vector<8x32xbf16>
    %cst_195 = arith.constant dense<0.000000e+00> : vector<8x64xf32>
    %507 = tpu.matmul %506, %456, %cst_195 {dimension_numbers = #tpu.dot_dimension_numbers<[1], [0], [0], [1], [0, 0, 1, 1], [], []>} : vector<8x32xbf16>, vector<32x64xbf16>, vector<8x64xf32> -> vector<8x64xf32>
    %508 = vector.extract_strided_slice %507 {offsets = [0, 0], sizes = [8, 32], strides = [1, 1]} : vector<8x64xf32> to vector<8x32xf32>
    %509 = vector.extract_strided_slice %507 {offsets = [0, 32], sizes = [8, 32], strides = [1, 1]} : vector<8x64xf32> to vector<8x32xf32>
    %510 = arith.truncf %505 : vector<8x32xf32> to vector<8x32xbf16>
    %511 = arith.truncf %508 : vector<8x32xf32> to vector<8x32xbf16>
    %cst_196 = arith.constant dense<0.000000e+00> : vector<8x8xf32>
    %512 = tpu.matmul %510, %511, %cst_196 {dimension_numbers = #tpu.dot_dimension_numbers<[1], [1], [0], [0], [0, 0, 1, 0], [], []>} : vector<8x32xbf16>, vector<8x32xbf16>, vector<8x8xf32> -> vector<8x8xf32>
    %cst_197 = arith.constant dense<0xFF800000> : vector<8xf32>
    %513 = vector.multi_reduction <maximumf>, %512, %cst_197 [1] : vector<8x8xf32> to vector<8xf32>
    %514 = vector.shape_cast %513 : vector<8xf32> to vector<8x1xf32>
    %515 = vector.broadcast %514 : vector<8x1xf32> to vector<8x8xf32>
    %516 = arith.subf %512, %515 : vector<8x8xf32>
    %517 = math.exp %516 : vector<8x8xf32>
    %cst_198 = arith.constant dense<0.000000e+00> : vector<8xf32>
    %518 = vector.multi_reduction <add>, %517, %cst_198 [1] : vector<8x8xf32> to vector<8xf32>
    %519 = vector.shape_cast %518 : vector<8xf32> to vector<8x1xf32>
    %520 = tpu.reciprocal %519 {approx = true} : vector<8x1xf32> -> vector<8x1xf32>
    %521 = vector.broadcast %520 : vector<8x1xf32> to vector<8x8xf32>
    %522 = arith.mulf %517, %521 : vector<8x8xf32>
    %523 = arith.truncf %522 : vector<8x8xf32> to vector<8x8xbf16>
    %524 = arith.truncf %509 : vector<8x32xf32> to vector<8x32xbf16>
    %cst_199 = arith.constant dense<0.000000e+00> : vector<8x32xf32>
    %525 = tpu.matmul %523, %524, %cst_199 {dimension_numbers = #tpu.dot_dimension_numbers<[1], [0], [0], [1], [0, 0, 1, 1], [], []>} : vector<8x8xbf16>, vector<8x32xbf16>, vector<8x32xf32> -> vector<8x32xf32>
    %526 = arith.truncf %525 : vector<8x32xf32> to vector<8x32xbf16>
    %cst_200 = arith.constant dense<0.000000e+00> : vector<8x32xf32>
    %527 = tpu.matmul %526, %459, %cst_200 {dimension_numbers = #tpu.dot_dimension_numbers<[1], [0], [0], [1], [0, 0, 1, 1], [], []>} : vector<8x32xbf16>, vector<32x32xbf16>, vector<8x32xf32> -> vector<8x32xf32>
    %528 = arith.addf %438, %527 : vector<8x32xf32>
    %529 = arith.index_cast %c2_i32 : i32 to index
    %c0_201 = arith.constant 0 : index
    %c0_202 = arith.constant 0 : index
    %530 = vector.load %arg26[%529, %c0_201, %c0_202] : memref<4x1x32xf32, #tpu.memory_space<vmem>>, vector<1x1x32xf32>
    %531 = vector.shape_cast %530 : vector<1x1x32xf32> to vector<1x32xf32>
    %532 = arith.index_cast %c2_i32 : i32 to index
    %c0_203 = arith.constant 0 : index
    %c0_204 = arith.constant 0 : index
    %533 = vector.load %arg27[%532, %c0_203, %c0_204] : memref<4x1x32xf32, #tpu.memory_space<vmem>>, vector<1x1x32xf32>
    %534 = vector.shape_cast %533 : vector<1x1x32xf32> to vector<1x32xf32>
    %535 = arith.index_cast %c2_i32 : i32 to index
    %c0_205 = arith.constant 0 : index
    %c0_206 = arith.constant 0 : index
    %536 = vector.load %arg28[%535, %c0_205, %c0_206] : memref<4x32x128xbf16, #tpu.memory_space<vmem>>, vector<1x32x128xbf16>
    %537 = vector.shape_cast %536 : vector<1x32x128xbf16> to vector<32x128xbf16>
    %538 = arith.index_cast %c2_i32 : i32 to index
    %c0_207 = arith.constant 0 : index
    %c0_208 = arith.constant 0 : index
    %539 = vector.load %arg29[%538, %c0_207, %c0_208] : memref<4x1x128xf32, #tpu.memory_space<vmem>>, vector<1x1x128xf32>
    %540 = vector.shape_cast %539 : vector<1x1x128xf32> to vector<1x128xf32>
    %541 = arith.index_cast %c2_i32 : i32 to index
    %c0_209 = arith.constant 0 : index
    %c0_210 = arith.constant 0 : index
    %542 = vector.load %arg30[%541, %c0_209, %c0_210] : memref<4x128x32xbf16, #tpu.memory_space<vmem>>, vector<1x128x32xbf16>
    %543 = vector.shape_cast %542 : vector<1x128x32xbf16> to vector<128x32xbf16>
    %544 = arith.index_cast %c2_i32 : i32 to index
    %c0_211 = arith.constant 0 : index
    %c0_212 = arith.constant 0 : index
    %545 = vector.load %arg31[%544, %c0_211, %c0_212] : memref<4x1x32xf32, #tpu.memory_space<vmem>>, vector<1x1x32xf32>
    %546 = vector.shape_cast %545 : vector<1x1x32xf32> to vector<1x32xf32>
    %cst_213 = arith.constant dense<0.000000e+00> : vector<8xf32>
    %547 = vector.multi_reduction <add>, %528, %cst_213 [1] : vector<8x32xf32> to vector<8xf32>
    %548 = vector.shape_cast %547 : vector<8xf32> to vector<8x1xf32>
    %cst_214 = arith.constant 3.200000e+01 : f32
    %549 = vector.broadcast %cst_214 : f32 to vector<8x1xf32>
    %550 = arith.divf %548, %549 : vector<8x1xf32>
    %551 = vector.broadcast %550 : vector<8x1xf32> to vector<8x32xf32>
    %552 = arith.subf %528, %551 : vector<8x32xf32>
    %553 = arith.mulf %552, %552 : vector<8x32xf32>
    %cst_215 = arith.constant dense<0.000000e+00> : vector<8xf32>
    %554 = vector.multi_reduction <add>, %553, %cst_215 [1] : vector<8x32xf32> to vector<8xf32>
    %555 = vector.shape_cast %554 : vector<8xf32> to vector<8x1xf32>
    %cst_216 = arith.constant 3.200000e+01 : f32
    %556 = vector.broadcast %cst_216 : f32 to vector<8x1xf32>
    %557 = arith.divf %555, %556 : vector<8x1xf32>
    %558 = vector.broadcast %550 : vector<8x1xf32> to vector<8x32xf32>
    %559 = arith.subf %528, %558 : vector<8x32xf32>
    %cst_217 = arith.constant 9.99999974E-6 : f32
    %560 = vector.broadcast %cst_217 : f32 to vector<8x1xf32>
    %561 = arith.addf %557, %560 : vector<8x1xf32>
    %562 = math.rsqrt %561 : vector<8x1xf32>
    %563 = vector.broadcast %562 : vector<8x1xf32> to vector<8x32xf32>
    %564 = arith.mulf %559, %563 : vector<8x32xf32>
    %565 = vector.broadcast %531 : vector<1x32xf32> to vector<8x32xf32>
    %566 = arith.mulf %564, %565 : vector<8x32xf32>
    %567 = vector.broadcast %534 : vector<1x32xf32> to vector<8x32xf32>
    %568 = arith.addf %566, %567 : vector<8x32xf32>
    %569 = arith.truncf %568 : vector<8x32xf32> to vector<8x32xbf16>
    %cst_218 = arith.constant dense<0.000000e+00> : vector<8x128xf32>
    %570 = tpu.matmul %569, %537, %cst_218 {dimension_numbers = #tpu.dot_dimension_numbers<[1], [0], [0], [1], [0, 0, 1, 1], [], []>} : vector<8x32xbf16>, vector<32x128xbf16>, vector<8x128xf32> -> vector<8x128xf32>
    %571 = vector.broadcast %540 : vector<1x128xf32> to vector<8x128xf32>
    %572 = arith.addf %570, %571 : vector<8x128xf32>
    %cst_219 = arith.constant 5.000000e-01 : f32
    %573 = vector.broadcast %cst_219 : f32 to vector<8x128xf32>
    %574 = arith.mulf %573, %572 : vector<8x128xf32>
    %cst_220 = arith.constant 4.471500e-02 : f32
    %575 = vector.broadcast %cst_220 : f32 to vector<8x128xf32>
    %576 = arith.mulf %575, %572 : vector<8x128xf32>
    %577 = arith.mulf %576, %572 : vector<8x128xf32>
    %578 = arith.mulf %577, %572 : vector<8x128xf32>
    %579 = arith.addf %572, %578 : vector<8x128xf32>
    %cst_221 = arith.constant 0.797884583 : f32
    %580 = vector.broadcast %cst_221 : f32 to vector<8x128xf32>
    %581 = arith.mulf %580, %579 : vector<8x128xf32>
    %582 = math.tanh %581 : vector<8x128xf32>
    %cst_222 = arith.constant 1.000000e+00 : f32
    %583 = vector.broadcast %cst_222 : f32 to vector<8x128xf32>
    %584 = arith.addf %583, %582 : vector<8x128xf32>
    %585 = arith.mulf %574, %584 : vector<8x128xf32>
    %586 = arith.truncf %585 : vector<8x128xf32> to vector<8x128xbf16>
    %cst_223 = arith.constant dense<0.000000e+00> : vector<8x32xf32>
    %587 = tpu.matmul %586, %543, %cst_223 {dimension_numbers = #tpu.dot_dimension_numbers<[1], [0], [0], [1], [0, 0, 1, 1], [], []>} : vector<8x128xbf16>, vector<128x32xbf16>, vector<8x32xf32> -> vector<8x32xf32>
    %588 = vector.broadcast %546 : vector<1x32xf32> to vector<8x32xf32>
    %589 = arith.addf %587, %588 : vector<8x32xf32>
    %590 = arith.addf %528, %589 : vector<8x32xf32>
    %c3_i32 = arith.constant 3 : i32
    %591 = arith.index_cast %c3_i32 : i32 to index
    %c0_224 = arith.constant 0 : index
    %c0_225 = arith.constant 0 : index
    %592 = vector.load %arg19[%591, %c0_224, %c0_225] : memref<4x1x32xf32, #tpu.memory_space<vmem>>, vector<1x1x32xf32>
    %593 = vector.shape_cast %592 : vector<1x1x32xf32> to vector<1x32xf32>
    %594 = arith.index_cast %c3_i32 : i32 to index
    %c0_226 = arith.constant 0 : index
    %c0_227 = arith.constant 0 : index
    %595 = vector.load %arg20[%594, %c0_226, %c0_227] : memref<4x1x32xf32, #tpu.memory_space<vmem>>, vector<1x1x32xf32>
    %596 = vector.shape_cast %595 : vector<1x1x32xf32> to vector<1x32xf32>
    %597 = arith.index_cast %c3_i32 : i32 to index
    %c0_228 = arith.constant 0 : index
    %c0_229 = arith.constant 0 : index
    %598 = vector.load %arg21[%597, %c0_228, %c0_229] : memref<4x1x32xf32, #tpu.memory_space<vmem>>, vector<1x1x32xf32>
    %599 = vector.shape_cast %598 : vector<1x1x32xf32> to vector<1x32xf32>
    %600 = arith.index_cast %c3_i32 : i32 to index
    %c0_230 = arith.constant 0 : index
    %c0_231 = arith.constant 0 : index
    %601 = vector.load %arg22[%600, %c0_230, %c0_231] : memref<4x1x32xf32, #tpu.memory_space<vmem>>, vector<1x1x32xf32>
    %602 = vector.shape_cast %601 : vector<1x1x32xf32> to vector<1x32xf32>
    %603 = arith.index_cast %c3_i32 : i32 to index
    %c0_232 = arith.constant 0 : index
    %c0_233 = arith.constant 0 : index
    %604 = vector.load %arg23[%603, %c0_232, %c0_233] : memref<4x32x32xbf16, #tpu.memory_space<vmem>>, vector<1x32x32xbf16>
    %605 = vector.shape_cast %604 : vector<1x32x32xbf16> to vector<32x32xbf16>
    %606 = arith.index_cast %c3_i32 : i32 to index
    %c0_234 = arith.constant 0 : index
    %c0_235 = arith.constant 0 : index
    %607 = vector.load %arg24[%606, %c0_234, %c0_235] : memref<4x32x64xbf16, #tpu.memory_space<vmem>>, vector<1x32x64xbf16>
    %608 = vector.shape_cast %607 : vector<1x32x64xbf16> to vector<32x64xbf16>
    %609 = arith.index_cast %c3_i32 : i32 to index
    %c0_236 = arith.constant 0 : index
    %c0_237 = arith.constant 0 : index
    %610 = vector.load %arg25[%609, %c0_236, %c0_237] : memref<4x32x32xbf16, #tpu.memory_space<vmem>>, vector<1x32x32xbf16>
    %611 = vector.shape_cast %610 : vector<1x32x32xbf16> to vector<32x32xbf16>
    %cst_238 = arith.constant dense<0.000000e+00> : vector<8xf32>
    %612 = vector.multi_reduction <add>, %590, %cst_238 [1] : vector<8x32xf32> to vector<8xf32>
    %613 = vector.shape_cast %612 : vector<8xf32> to vector<8x1xf32>
    %cst_239 = arith.constant 3.200000e+01 : f32
    %614 = vector.broadcast %cst_239 : f32 to vector<8x1xf32>
    %615 = arith.divf %613, %614 : vector<8x1xf32>
    %616 = vector.broadcast %615 : vector<8x1xf32> to vector<8x32xf32>
    %617 = arith.subf %590, %616 : vector<8x32xf32>
    %618 = arith.mulf %617, %617 : vector<8x32xf32>
    %cst_240 = arith.constant dense<0.000000e+00> : vector<8xf32>
    %619 = vector.multi_reduction <add>, %618, %cst_240 [1] : vector<8x32xf32> to vector<8xf32>
    %620 = vector.shape_cast %619 : vector<8xf32> to vector<8x1xf32>
    %cst_241 = arith.constant 3.200000e+01 : f32
    %621 = vector.broadcast %cst_241 : f32 to vector<8x1xf32>
    %622 = arith.divf %620, %621 : vector<8x1xf32>
    %623 = vector.broadcast %615 : vector<8x1xf32> to vector<8x32xf32>
    %624 = arith.subf %590, %623 : vector<8x32xf32>
    %cst_242 = arith.constant 9.99999974E-6 : f32
    %625 = vector.broadcast %cst_242 : f32 to vector<8x1xf32>
    %626 = arith.addf %622, %625 : vector<8x1xf32>
    %627 = math.rsqrt %626 : vector<8x1xf32>
    %628 = vector.broadcast %627 : vector<8x1xf32> to vector<8x32xf32>
    %629 = arith.mulf %624, %628 : vector<8x32xf32>
    %630 = vector.broadcast %593 : vector<1x32xf32> to vector<8x32xf32>
    %631 = arith.mulf %629, %630 : vector<8x32xf32>
    %632 = vector.broadcast %596 : vector<1x32xf32> to vector<8x32xf32>
    %633 = arith.addf %631, %632 : vector<8x32xf32>
    %cst_243 = arith.constant dense<0.000000e+00> : vector<8xf32>
    %634 = vector.multi_reduction <add>, %590, %cst_243 [1] : vector<8x32xf32> to vector<8xf32>
    %635 = vector.shape_cast %634 : vector<8xf32> to vector<8x1xf32>
    %cst_244 = arith.constant 3.200000e+01 : f32
    %636 = vector.broadcast %cst_244 : f32 to vector<8x1xf32>
    %637 = arith.divf %635, %636 : vector<8x1xf32>
    %638 = vector.broadcast %637 : vector<8x1xf32> to vector<8x32xf32>
    %639 = arith.subf %590, %638 : vector<8x32xf32>
    %640 = arith.mulf %639, %639 : vector<8x32xf32>
    %cst_245 = arith.constant dense<0.000000e+00> : vector<8xf32>
    %641 = vector.multi_reduction <add>, %640, %cst_245 [1] : vector<8x32xf32> to vector<8xf32>
    %642 = vector.shape_cast %641 : vector<8xf32> to vector<8x1xf32>
    %cst_246 = arith.constant 3.200000e+01 : f32
    %643 = vector.broadcast %cst_246 : f32 to vector<8x1xf32>
    %644 = arith.divf %642, %643 : vector<8x1xf32>
    %645 = vector.broadcast %637 : vector<8x1xf32> to vector<8x32xf32>
    %646 = arith.subf %590, %645 : vector<8x32xf32>
    %cst_247 = arith.constant 9.99999974E-6 : f32
    %647 = vector.broadcast %cst_247 : f32 to vector<8x1xf32>
    %648 = arith.addf %644, %647 : vector<8x1xf32>
    %649 = math.rsqrt %648 : vector<8x1xf32>
    %650 = vector.broadcast %649 : vector<8x1xf32> to vector<8x32xf32>
    %651 = arith.mulf %646, %650 : vector<8x32xf32>
    %652 = vector.broadcast %599 : vector<1x32xf32> to vector<8x32xf32>
    %653 = arith.mulf %651, %652 : vector<8x32xf32>
    %654 = vector.broadcast %602 : vector<1x32xf32> to vector<8x32xf32>
    %655 = arith.addf %653, %654 : vector<8x32xf32>
    %656 = arith.truncf %633 : vector<8x32xf32> to vector<8x32xbf16>
    %cst_248 = arith.constant dense<0.000000e+00> : vector<8x32xf32>
    %657 = tpu.matmul %656, %605, %cst_248 {dimension_numbers = #tpu.dot_dimension_numbers<[1], [0], [0], [1], [0, 0, 1, 1], [], []>} : vector<8x32xbf16>, vector<32x32xbf16>, vector<8x32xf32> -> vector<8x32xf32>
    %658 = arith.truncf %655 : vector<8x32xf32> to vector<8x32xbf16>
    %cst_249 = arith.constant dense<0.000000e+00> : vector<8x64xf32>
    %659 = tpu.matmul %658, %608, %cst_249 {dimension_numbers = #tpu.dot_dimension_numbers<[1], [0], [0], [1], [0, 0, 1, 1], [], []>} : vector<8x32xbf16>, vector<32x64xbf16>, vector<8x64xf32> -> vector<8x64xf32>
    %660 = vector.extract_strided_slice %659 {offsets = [0, 0], sizes = [8, 32], strides = [1, 1]} : vector<8x64xf32> to vector<8x32xf32>
    %661 = vector.extract_strided_slice %659 {offsets = [0, 32], sizes = [8, 32], strides = [1, 1]} : vector<8x64xf32> to vector<8x32xf32>
    %662 = arith.truncf %657 : vector<8x32xf32> to vector<8x32xbf16>
    %663 = arith.truncf %660 : vector<8x32xf32> to vector<8x32xbf16>
    %cst_250 = arith.constant dense<0.000000e+00> : vector<8x8xf32>
    %664 = tpu.matmul %662, %663, %cst_250 {dimension_numbers = #tpu.dot_dimension_numbers<[1], [1], [0], [0], [0, 0, 1, 0], [], []>} : vector<8x32xbf16>, vector<8x32xbf16>, vector<8x8xf32> -> vector<8x8xf32>
    %cst_251 = arith.constant dense<0xFF800000> : vector<8xf32>
    %665 = vector.multi_reduction <maximumf>, %664, %cst_251 [1] : vector<8x8xf32> to vector<8xf32>
    %666 = vector.shape_cast %665 : vector<8xf32> to vector<8x1xf32>
    %667 = vector.broadcast %666 : vector<8x1xf32> to vector<8x8xf32>
    %668 = arith.subf %664, %667 : vector<8x8xf32>
    %669 = math.exp %668 : vector<8x8xf32>
    %cst_252 = arith.constant dense<0.000000e+00> : vector<8xf32>
    %670 = vector.multi_reduction <add>, %669, %cst_252 [1] : vector<8x8xf32> to vector<8xf32>
    %671 = vector.shape_cast %670 : vector<8xf32> to vector<8x1xf32>
    %672 = tpu.reciprocal %671 {approx = true} : vector<8x1xf32> -> vector<8x1xf32>
    %673 = vector.broadcast %672 : vector<8x1xf32> to vector<8x8xf32>
    %674 = arith.mulf %669, %673 : vector<8x8xf32>
    %675 = arith.truncf %674 : vector<8x8xf32> to vector<8x8xbf16>
    %676 = arith.truncf %661 : vector<8x32xf32> to vector<8x32xbf16>
    %cst_253 = arith.constant dense<0.000000e+00> : vector<8x32xf32>
    %677 = tpu.matmul %675, %676, %cst_253 {dimension_numbers = #tpu.dot_dimension_numbers<[1], [0], [0], [1], [0, 0, 1, 1], [], []>} : vector<8x8xbf16>, vector<8x32xbf16>, vector<8x32xf32> -> vector<8x32xf32>
    %678 = arith.truncf %677 : vector<8x32xf32> to vector<8x32xbf16>
    %cst_254 = arith.constant dense<0.000000e+00> : vector<8x32xf32>
    %679 = tpu.matmul %678, %611, %cst_254 {dimension_numbers = #tpu.dot_dimension_numbers<[1], [0], [0], [1], [0, 0, 1, 1], [], []>} : vector<8x32xbf16>, vector<32x32xbf16>, vector<8x32xf32> -> vector<8x32xf32>
    %680 = arith.addf %590, %679 : vector<8x32xf32>
    %681 = arith.index_cast %c3_i32 : i32 to index
    %c0_255 = arith.constant 0 : index
    %c0_256 = arith.constant 0 : index
    %682 = vector.load %arg26[%681, %c0_255, %c0_256] : memref<4x1x32xf32, #tpu.memory_space<vmem>>, vector<1x1x32xf32>
    %683 = vector.shape_cast %682 : vector<1x1x32xf32> to vector<1x32xf32>
    %684 = arith.index_cast %c3_i32 : i32 to index
    %c0_257 = arith.constant 0 : index
    %c0_258 = arith.constant 0 : index
    %685 = vector.load %arg27[%684, %c0_257, %c0_258] : memref<4x1x32xf32, #tpu.memory_space<vmem>>, vector<1x1x32xf32>
    %686 = vector.shape_cast %685 : vector<1x1x32xf32> to vector<1x32xf32>
    %687 = arith.index_cast %c3_i32 : i32 to index
    %c0_259 = arith.constant 0 : index
    %c0_260 = arith.constant 0 : index
    %688 = vector.load %arg28[%687, %c0_259, %c0_260] : memref<4x32x128xbf16, #tpu.memory_space<vmem>>, vector<1x32x128xbf16>
    %689 = vector.shape_cast %688 : vector<1x32x128xbf16> to vector<32x128xbf16>
    %690 = arith.index_cast %c3_i32 : i32 to index
    %c0_261 = arith.constant 0 : index
    %c0_262 = arith.constant 0 : index
    %691 = vector.load %arg29[%690, %c0_261, %c0_262] : memref<4x1x128xf32, #tpu.memory_space<vmem>>, vector<1x1x128xf32>
    %692 = vector.shape_cast %691 : vector<1x1x128xf32> to vector<1x128xf32>
    %693 = arith.index_cast %c3_i32 : i32 to index
    %c0_263 = arith.constant 0 : index
    %c0_264 = arith.constant 0 : index
    %694 = vector.load %arg30[%693, %c0_263, %c0_264] : memref<4x128x32xbf16, #tpu.memory_space<vmem>>, vector<1x128x32xbf16>
    %695 = vector.shape_cast %694 : vector<1x128x32xbf16> to vector<128x32xbf16>
    %696 = arith.index_cast %c3_i32 : i32 to index
    %c0_265 = arith.constant 0 : index
    %c0_266 = arith.constant 0 : index
    %697 = vector.load %arg31[%696, %c0_265, %c0_266] : memref<4x1x32xf32, #tpu.memory_space<vmem>>, vector<1x1x32xf32>
    %698 = vector.shape_cast %697 : vector<1x1x32xf32> to vector<1x32xf32>
    %cst_267 = arith.constant dense<0.000000e+00> : vector<8xf32>
    %699 = vector.multi_reduction <add>, %680, %cst_267 [1] : vector<8x32xf32> to vector<8xf32>
    %700 = vector.shape_cast %699 : vector<8xf32> to vector<8x1xf32>
    %cst_268 = arith.constant 3.200000e+01 : f32
    %701 = vector.broadcast %cst_268 : f32 to vector<8x1xf32>
    %702 = arith.divf %700, %701 : vector<8x1xf32>
    %703 = vector.broadcast %702 : vector<8x1xf32> to vector<8x32xf32>
    %704 = arith.subf %680, %703 : vector<8x32xf32>
    %705 = arith.mulf %704, %704 : vector<8x32xf32>
    %cst_269 = arith.constant dense<0.000000e+00> : vector<8xf32>
    %706 = vector.multi_reduction <add>, %705, %cst_269 [1] : vector<8x32xf32> to vector<8xf32>
    %707 = vector.shape_cast %706 : vector<8xf32> to vector<8x1xf32>
    %cst_270 = arith.constant 3.200000e+01 : f32
    %708 = vector.broadcast %cst_270 : f32 to vector<8x1xf32>
    %709 = arith.divf %707, %708 : vector<8x1xf32>
    %710 = vector.broadcast %702 : vector<8x1xf32> to vector<8x32xf32>
    %711 = arith.subf %680, %710 : vector<8x32xf32>
    %cst_271 = arith.constant 9.99999974E-6 : f32
    %712 = vector.broadcast %cst_271 : f32 to vector<8x1xf32>
    %713 = arith.addf %709, %712 : vector<8x1xf32>
    %714 = math.rsqrt %713 : vector<8x1xf32>
    %715 = vector.broadcast %714 : vector<8x1xf32> to vector<8x32xf32>
    %716 = arith.mulf %711, %715 : vector<8x32xf32>
    %717 = vector.broadcast %683 : vector<1x32xf32> to vector<8x32xf32>
    %718 = arith.mulf %716, %717 : vector<8x32xf32>
    %719 = vector.broadcast %686 : vector<1x32xf32> to vector<8x32xf32>
    %720 = arith.addf %718, %719 : vector<8x32xf32>
    %721 = arith.truncf %720 : vector<8x32xf32> to vector<8x32xbf16>
    %cst_272 = arith.constant dense<0.000000e+00> : vector<8x128xf32>
    %722 = tpu.matmul %721, %689, %cst_272 {dimension_numbers = #tpu.dot_dimension_numbers<[1], [0], [0], [1], [0, 0, 1, 1], [], []>} : vector<8x32xbf16>, vector<32x128xbf16>, vector<8x128xf32> -> vector<8x128xf32>
    %723 = vector.broadcast %692 : vector<1x128xf32> to vector<8x128xf32>
    %724 = arith.addf %722, %723 : vector<8x128xf32>
    %cst_273 = arith.constant 5.000000e-01 : f32
    %725 = vector.broadcast %cst_273 : f32 to vector<8x128xf32>
    %726 = arith.mulf %725, %724 : vector<8x128xf32>
    %cst_274 = arith.constant 4.471500e-02 : f32
    %727 = vector.broadcast %cst_274 : f32 to vector<8x128xf32>
    %728 = arith.mulf %727, %724 : vector<8x128xf32>
    %729 = arith.mulf %728, %724 : vector<8x128xf32>
    %730 = arith.mulf %729, %724 : vector<8x128xf32>
    %731 = arith.addf %724, %730 : vector<8x128xf32>
    %cst_275 = arith.constant 0.797884583 : f32
    %732 = vector.broadcast %cst_275 : f32 to vector<8x128xf32>
    %733 = arith.mulf %732, %731 : vector<8x128xf32>
    %734 = math.tanh %733 : vector<8x128xf32>
    %cst_276 = arith.constant 1.000000e+00 : f32
    %735 = vector.broadcast %cst_276 : f32 to vector<8x128xf32>
    %736 = arith.addf %735, %734 : vector<8x128xf32>
    %737 = arith.mulf %726, %736 : vector<8x128xf32>
    %738 = arith.truncf %737 : vector<8x128xf32> to vector<8x128xbf16>
    %cst_277 = arith.constant dense<0.000000e+00> : vector<8x32xf32>
    %739 = tpu.matmul %738, %695, %cst_277 {dimension_numbers = #tpu.dot_dimension_numbers<[1], [0], [0], [1], [0, 0, 1, 1], [], []>} : vector<8x128xbf16>, vector<128x32xbf16>, vector<8x32xf32> -> vector<8x32xf32>
    %740 = vector.broadcast %698 : vector<1x32xf32> to vector<8x32xf32>
    %741 = arith.addf %739, %740 : vector<8x32xf32>
    %742 = arith.addf %680, %741 : vector<8x32xf32>
    %c4_i32 = arith.constant 4 : i32
    %c0_278 = arith.constant 0 : index
    %c0_279 = arith.constant 0 : index
    %743 = vector.load %arg32[%c0_278, %c0_279] : memref<1x32xf32, #tpu.memory_space<vmem>>, vector<1x32xf32>
    %c0_280 = arith.constant 0 : index
    %c0_281 = arith.constant 0 : index
    %744 = vector.load %arg33[%c0_280, %c0_281] : memref<1x32xf32, #tpu.memory_space<vmem>>, vector<1x32xf32>
    %cst_282 = arith.constant dense<0.000000e+00> : vector<8xf32>
    %745 = vector.multi_reduction <add>, %742, %cst_282 [1] : vector<8x32xf32> to vector<8xf32>
    %746 = vector.shape_cast %745 : vector<8xf32> to vector<8x1xf32>
    %cst_283 = arith.constant 3.200000e+01 : f32
    %747 = vector.broadcast %cst_283 : f32 to vector<8x1xf32>
    %748 = arith.divf %746, %747 : vector<8x1xf32>
    %749 = vector.broadcast %748 : vector<8x1xf32> to vector<8x32xf32>
    %750 = arith.subf %742, %749 : vector<8x32xf32>
    %751 = arith.mulf %750, %750 : vector<8x32xf32>
    %cst_284 = arith.constant dense<0.000000e+00> : vector<8xf32>
    %752 = vector.multi_reduction <add>, %751, %cst_284 [1] : vector<8x32xf32> to vector<8xf32>
    %753 = vector.shape_cast %752 : vector<8xf32> to vector<8x1xf32>
    %cst_285 = arith.constant 3.200000e+01 : f32
    %754 = vector.broadcast %cst_285 : f32 to vector<8x1xf32>
    %755 = arith.divf %753, %754 : vector<8x1xf32>
    %756 = vector.broadcast %748 : vector<8x1xf32> to vector<8x32xf32>
    %757 = arith.subf %742, %756 : vector<8x32xf32>
    %cst_286 = arith.constant 9.99999974E-6 : f32
    %758 = vector.broadcast %cst_286 : f32 to vector<8x1xf32>
    %759 = arith.addf %755, %758 : vector<8x1xf32>
    %760 = math.rsqrt %759 : vector<8x1xf32>
    %761 = vector.broadcast %760 : vector<8x1xf32> to vector<8x32xf32>
    %762 = arith.mulf %757, %761 : vector<8x32xf32>
    %763 = vector.broadcast %743 : vector<1x32xf32> to vector<8x32xf32>
    %764 = arith.mulf %762, %763 : vector<8x32xf32>
    %765 = vector.broadcast %744 : vector<1x32xf32> to vector<8x32xf32>
    %766 = arith.addf %764, %765 : vector<8x32xf32>
    %c0_287 = arith.constant 0 : index
    %c0_288 = arith.constant 0 : index
    %767 = vector.load %arg34[%c0_287, %c0_288] : memref<32x32xbf16, #tpu.memory_space<vmem>>, vector<32x32xbf16>
    %768 = arith.truncf %766 : vector<8x32xf32> to vector<8x32xbf16>
    %cst_289 = arith.constant dense<0.000000e+00> : vector<8x32xf32>
    %769 = tpu.matmul %768, %767, %cst_289 {dimension_numbers = #tpu.dot_dimension_numbers<[1], [0], [0], [1], [0, 0, 1, 1], [], []>} : vector<8x32xbf16>, vector<32x32xbf16>, vector<8x32xf32> -> vector<8x32xf32>
    %c0_290 = arith.constant 0 : index
    %c0_291 = arith.constant 0 : index
    %770 = vector.load %arg35[%c0_290, %c0_291] : memref<1x32xf32, #tpu.memory_space<vmem>>, vector<1x32xf32>
    %771 = vector.broadcast %770 : vector<1x32xf32> to vector<8x32xf32>
    %772 = arith.addf %769, %771 : vector<8x32xf32>
    %c0_292 = arith.constant 0 : index
    %c0_293 = arith.constant 0 : index
    %c0_294 = arith.constant 0 : index
    %773 = vector.load %arg41[%c0_292, %c0_293, %c0_294] : memref<1x8x32xf32, #tpu.memory_space<vmem>>, vector<1x8x32xf32>
    %774 = vector.shape_cast %773 : vector<1x8x32xf32> to vector<8x32xf32>
    %775 = vector.shape_cast %772 : vector<8x32xf32> to vector<1x8x32xf32>
    tpu.vector_store %arg41[%c0_292, %c0_293, %c0_294], %775 {strides = array<i32>} : memref<1x8x32xf32, #tpu.memory_space<vmem>>, vector<1x8x32xf32>,
    %c0_295 = arith.constant 0 : index
    %c0_296 = arith.constant 0 : index
    %c0_297 = arith.constant 0 : index
    %776 = vector.load %arg3[%c0_295, %c0_296, %c0_297] : memref<1x1x32xf32, #tpu.memory_space<vmem>>, vector<1x1x32xf32>
    %777 = vector.shape_cast %776 : vector<1x1x32xf32> to vector<1x32xf32>
    %c0_298 = arith.constant 0 : index
    %c0_299 = arith.constant 0 : index
    %778 = vector.load %arg36[%c0_298, %c0_299] : memref<1x32xf32, #tpu.memory_space<vmem>>, vector<1x32xf32>
    %c0_300 = arith.constant 0 : index
    %c0_301 = arith.constant 0 : index
    %779 = vector.load %arg37[%c0_300, %c0_301] : memref<1x32xf32, #tpu.memory_space<vmem>>, vector<1x32xf32>
    %cst_302 = arith.constant dense<0.000000e+00> : vector<1xf32>
    %780 = vector.multi_reduction <add>, %777, %cst_302 [1] : vector<1x32xf32> to vector<1xf32>
    %781 = vector.shape_cast %780 : vector<1xf32> to vector<1x1xf32>
    %cst_303 = arith.constant 3.200000e+01 : f32
    %782 = vector.broadcast %cst_303 : f32 to vector<1x1xf32>
    %783 = arith.divf %781, %782 : vector<1x1xf32>
    %784 = vector.broadcast %783 : vector<1x1xf32> to vector<1x32xf32>
    %785 = arith.subf %777, %784 : vector<1x32xf32>
    %786 = arith.mulf %785, %785 : vector<1x32xf32>
    %cst_304 = arith.constant dense<0.000000e+00> : vector<1xf32>
    %787 = vector.multi_reduction <add>, %786, %cst_304 [1] : vector<1x32xf32> to vector<1xf32>
    %788 = vector.shape_cast %787 : vector<1xf32> to vector<1x1xf32>
    %cst_305 = arith.constant 3.200000e+01 : f32
    %789 = vector.broadcast %cst_305 : f32 to vector<1x1xf32>
    %790 = arith.divf %788, %789 : vector<1x1xf32>
    %791 = vector.broadcast %783 : vector<1x1xf32> to vector<1x32xf32>
    %792 = arith.subf %777, %791 : vector<1x32xf32>
    %cst_306 = arith.constant 9.99999974E-6 : f32
    %793 = vector.broadcast %cst_306 : f32 to vector<1x1xf32>
    %794 = arith.addf %790, %793 : vector<1x1xf32>
    %795 = math.rsqrt %794 : vector<1x1xf32>
    %796 = vector.broadcast %795 : vector<1x1xf32> to vector<1x32xf32>
    %797 = arith.mulf %792, %796 : vector<1x32xf32>
    %798 = arith.mulf %797, %778 : vector<1x32xf32>
    %799 = arith.addf %798, %779 : vector<1x32xf32>
    %800 = vector.broadcast %799 : vector<1x32xf32> to vector<8x32xf32>
    %801 = arith.addf %800, %772 : vector<8x32xf32>
    %c0_307 = arith.constant 0 : index
    %c0_308 = arith.constant 0 : index
    %802 = vector.load %arg38[%c0_307, %c0_308] : memref<32x1024xbf16, #tpu.memory_space<vmem>>, vector<32x1024xbf16>
    %803 = arith.truncf %801 : vector<8x32xf32> to vector<8x32xbf16>
    %cst_309 = arith.constant dense<0.000000e+00> : vector<8x1024xf32>
    %804 = tpu.matmul %803, %802, %cst_309 {dimension_numbers = #tpu.dot_dimension_numbers<[1], [0], [0], [1], [0, 0, 1, 1], [], []>} : vector<8x32xbf16>, vector<32x1024xbf16>, vector<8x1024xf32> -> vector<8x1024xf32>
    %c0_310 = arith.constant 0 : index
    %c0_311 = arith.constant 0 : index
    %805 = vector.load %arg39[%c0_310, %c0_311] : memref<1x1024xf32, #tpu.memory_space<vmem>>, vector<1x1024xf32>
    %806 = vector.broadcast %805 : vector<1x1024xf32> to vector<8x1024xf32>
    %807 = arith.addf %804, %806 : vector<8x1024xf32>
    %c0_312 = arith.constant 0 : index
    %c0_313 = arith.constant 0 : index
    %c0_314 = arith.constant 0 : index
    %808 = vector.load %arg40[%c0_312, %c0_313, %c0_314] : memref<1x8x1024xf32, #tpu.memory_space<vmem>>, vector<1x8x1024xf32>
    %809 = vector.shape_cast %808 : vector<1x8x1024xf32> to vector<8x1024xf32>
    %810 = vector.shape_cast %807 : vector<8x1024xf32> to vector<1x8x1024xf32>
    tpu.vector_store %arg40[%c0_312, %c0_313, %c0_314], %810 {strides = array<i32>} : memref<1x8x1024xf32, #tpu.memory_space<vmem>>, vector<1x8x1024xf32>,
    return
  }
  func.func @transform_0(%arg0: i32) -> (i32, i32, i32) {
    %c0_i32 = arith.constant 0 : i32
    %c0_i32_0 = arith.constant 0 : i32
    %c0_i32_1 = arith.constant 0 : i32
    return %arg0, %c0_i32, %c0_i32_0 : i32, i32, i32
  }
  func.func @transform_1(%arg0: i32) -> (i32, i32, i32) {
    %c0_i32 = arith.constant 0 : i32
    %c0_i32_0 = arith.constant 0 : i32
    %c0_i32_1 = arith.constant 0 : i32
    return %arg0, %c0_i32, %c0_i32_0 : i32, i32, i32
  }
  func.func @transform_2(%arg0: i32) -> (i32, i32, i32) {
    %c0_i32 = arith.constant 0 : i32
    %c0_i32_0 = arith.constant 0 : i32
    %c0_i32_1 = arith.constant 0 : i32
    return %arg0, %c0_i32, %c0_i32_0 : i32, i32, i32
  }
  func.func @transform_3(%arg0: i32) -> (i32, i32) {
    %c0_i32 = arith.constant 0 : i32
    %c0_i32_0 = arith.constant 0 : i32
    %c0_i32_1 = arith.constant 0 : i32
    return %c0_i32, %c0_i32_0 : i32, i32
  }
  func.func @transform_4(%arg0: i32) -> (i32, i32) {
    %c0_i32 = arith.constant 0 : i32
    %c0_i32_0 = arith.constant 0 : i32
    %c0_i32_1 = arith.constant 0 : i32
    return %c0_i32, %c0_i32_0 : i32, i32
  }
  func.func @transform_5(%arg0: i32) -> (i32, i32) {
    %c0_i32 = arith.constant 0 : i32
    %c0_i32_0 = arith.constant 0 : i32
    %c0_i32_1 = arith.constant 0 : i32
    return %c0_i32, %c0_i32_0 : i32, i32
  }
  func.func @transform_6(%arg0: i32) -> (i32, i32) {
    %c0_i32 = arith.constant 0 : i32
    %c0_i32_0 = arith.constant 0 : i32
    %c0_i32_1 = arith.constant 0 : i32
    return %c0_i32, %c0_i32_0 : i32, i32
  }
  func.func @transform_7(%arg0: i32) -> (i32, i32) {
    %c0_i32 = arith.constant 0 : i32
    %c0_i32_0 = arith.constant 0 : i32
    %c0_i32_1 = arith.constant 0 : i32
    return %c0_i32, %c0_i32_0 : i32, i32
  }
  func.func @transform_8(%arg0: i32) -> (i32, i32) {
    %c0_i32 = arith.constant 0 : i32
    %c0_i32_0 = arith.constant 0 : i32
    %c0_i32_1 = arith.constant 0 : i32
    return %c0_i32, %c0_i32_0 : i32, i32
  }
  func.func @transform_9(%arg0: i32) -> (i32, i32) {
    %c0_i32 = arith.constant 0 : i32
    %c0_i32_0 = arith.constant 0 : i32
    %c0_i32_1 = arith.constant 0 : i32
    return %c0_i32, %c0_i32_0 : i32, i32
  }
  func.func @transform_10(%arg0: i32) -> (i32, i32) {
    %c0_i32 = arith.constant 0 : i32
    %c0_i32_0 = arith.constant 0 : i32
    %c0_i32_1 = arith.constant 0 : i32
    return %c0_i32, %c0_i32_0 : i32, i32
  }
  func.func @transform_11(%arg0: i32) -> (i32, i32) {
    %c0_i32 = arith.constant 0 : i32
    %c0_i32_0 = arith.constant 0 : i32
    %c0_i32_1 = arith.constant 0 : i32
    return %c0_i32, %c0_i32_0 : i32, i32
  }
  func.func @transform_12(%arg0: i32) -> (i32, i32) {
    %c0_i32 = arith.constant 0 : i32
    %c0_i32_0 = arith.constant 0 : i32
    %c0_i32_1 = arith.constant 0 : i32
    return %c0_i32, %c0_i32_0 : i32, i32
  }
  func.func @transform_13(%arg0: i32) -> (i32, i32) {
    %c0_i32 = arith.constant 0 : i32
    %c0_i32_0 = arith.constant 0 : i32
    %c0_i32_1 = arith.constant 0 : i32
    return %c0_i32, %c0_i32_0 : i32, i32
  }
  func.func @transform_14(%arg0: i32) -> (i32, i32) {
    %c0_i32 = arith.constant 0 : i32
    %c0_i32_0 = arith.constant 0 : i32
    %c0_i32_1 = arith.constant 0 : i32
    return %c0_i32, %c0_i32_0 : i32, i32
  }
  func.func @transform_15(%arg0: i32) -> (i32, i32) {
    %c0_i32 = arith.constant 0 : i32
    %c0_i32_0 = arith.constant 0 : i32
    %c0_i32_1 = arith.constant 0 : i32
    return %c0_i32, %c0_i32_0 : i32, i32
  }
  func.func @transform_16(%arg0: i32) -> (i32, i32) {
    %c0_i32 = arith.constant 0 : i32
    %c0_i32_0 = arith.constant 0 : i32
    %c0_i32_1 = arith.constant 0 : i32
    return %c0_i32, %c0_i32_0 : i32, i32
  }
  func.func @transform_17(%arg0: i32) -> (i32, i32) {
    %c0_i32 = arith.constant 0 : i32
    %c0_i32_0 = arith.constant 0 : i32
    %c0_i32_1 = arith.constant 0 : i32
    return %c0_i32, %c0_i32_0 : i32, i32
  }
  func.func @transform_18(%arg0: i32) -> (i32, i32, i32) {
    %c0_i32 = arith.constant 0 : i32
    %c0_i32_0 = arith.constant 0 : i32
    %c0_i32_1 = arith.constant 0 : i32
    %c0_i32_2 = arith.constant 0 : i32
    return %c0_i32, %c0_i32_0, %c0_i32_1 : i32, i32, i32
  }
  func.func @transform_19(%arg0: i32) -> (i32, i32, i32) {
    %c0_i32 = arith.constant 0 : i32
    %c0_i32_0 = arith.constant 0 : i32
    %c0_i32_1 = arith.constant 0 : i32
    %c0_i32_2 = arith.constant 0 : i32
    return %c0_i32, %c0_i32_0, %c0_i32_1 : i32, i32, i32
  }
  func.func @transform_20(%arg0: i32) -> (i32, i32, i32) {
    %c0_i32 = arith.constant 0 : i32
    %c0_i32_0 = arith.constant 0 : i32
    %c0_i32_1 = arith.constant 0 : i32
    %c0_i32_2 = arith.constant 0 : i32
    return %c0_i32, %c0_i32_0, %c0_i32_1 : i32, i32, i32
  }
  func.func @transform_21(%arg0: i32) -> (i32, i32, i32) {
    %c0_i32 = arith.constant 0 : i32
    %c0_i32_0 = arith.constant 0 : i32
    %c0_i32_1 = arith.constant 0 : i32
    %c0_i32_2 = arith.constant 0 : i32
    return %c0_i32, %c0_i32_0, %c0_i32_1 : i32, i32, i32
  }
  func.func @transform_22(%arg0: i32) -> (i32, i32, i32) {
    %c0_i32 = arith.constant 0 : i32
    %c0_i32_0 = arith.constant 0 : i32
    %c0_i32_1 = arith.constant 0 : i32
    %c0_i32_2 = arith.constant 0 : i32
    return %c0_i32, %c0_i32_0, %c0_i32_1 : i32, i32, i32
  }
  func.func @transform_23(%arg0: i32) -> (i32, i32, i32) {
    %c0_i32 = arith.constant 0 : i32
    %c0_i32_0 = arith.constant 0 : i32
    %c0_i32_1 = arith.constant 0 : i32
    %c0_i32_2 = arith.constant 0 : i32
    return %c0_i32, %c0_i32_0, %c0_i32_1 : i32, i32, i32
  }
  func.func @transform_24(%arg0: i32) -> (i32, i32, i32) {
    %c0_i32 = arith.constant 0 : i32
    %c0_i32_0 = arith.constant 0 : i32
    %c0_i32_1 = arith.constant 0 : i32
    %c0_i32_2 = arith.constant 0 : i32
    return %c0_i32, %c0_i32_0, %c0_i32_1 : i32, i32, i32
  }
  func.func @transform_25(%arg0: i32) -> (i32, i32, i32) {
    %c0_i32 = arith.constant 0 : i32
    %c0_i32_0 = arith.constant 0 : i32
    %c0_i32_1 = arith.constant 0 : i32
    %c0_i32_2 = arith.constant 0 : i32
    return %c0_i32, %c0_i32_0, %c0_i32_1 : i32, i32, i32
  }
  func.func @transform_26(%arg0: i32) -> (i32, i32, i32) {
    %c0_i32 = arith.constant 0 : i32
    %c0_i32_0 = arith.constant 0 : i32
    %c0_i32_1 = arith.constant 0 : i32
    %c0_i32_2 = arith.constant 0 : i32
    return %c0_i32, %c0_i32_0, %c0_i32_1 : i32, i32, i32
  }
  func.func @transform_27(%arg0: i32) -> (i32, i32, i32) {
    %c0_i32 = arith.constant 0 : i32
    %c0_i32_0 = arith.constant 0 : i32
    %c0_i32_1 = arith.constant 0 : i32
    %c0_i32_2 = arith.constant 0 : i32
    return %c0_i32, %c0_i32_0, %c0_i32_1 : i32, i32, i32
  }
  func.func @transform_28(%arg0: i32) -> (i32, i32, i32) {
    %c0_i32 = arith.constant 0 : i32
    %c0_i32_0 = arith.constant 0 : i32
    %c0_i32_1 = arith.constant 0 : i32
    %c0_i32_2 = arith.constant 0 : i32
    return %c0_i32, %c0_i32_0, %c0_i32_1 : i32, i32, i32
  }
  func.func @transform_29(%arg0: i32) -> (i32, i32, i32) {
    %c0_i32 = arith.constant 0 : i32
    %c0_i32_0 = arith.constant 0 : i32
    %c0_i32_1 = arith.constant 0 : i32
    %c0_i32_2 = arith.constant 0 : i32
    return %c0_i32, %c0_i32_0, %c0_i32_1 : i32, i32, i32
  }
  func.func @transform_30(%arg0: i32) -> (i32, i32, i32) {
    %c0_i32 = arith.constant 0 : i32
    %c0_i32_0 = arith.constant 0 : i32
    %c0_i32_1 = arith.constant 0 : i32
    %c0_i32_2 = arith.constant 0 : i32
    return %c0_i32, %c0_i32_0, %c0_i32_1 : i32, i32, i32
  }
  func.func @transform_31(%arg0: i32) -> (i32, i32) {
    %c0_i32 = arith.constant 0 : i32
    %c0_i32_0 = arith.constant 0 : i32
    %c0_i32_1 = arith.constant 0 : i32
    return %c0_i32, %c0_i32_0 : i32, i32
  }
  func.func @transform_32(%arg0: i32) -> (i32, i32) {
    %c0_i32 = arith.constant 0 : i32
    %c0_i32_0 = arith.constant 0 : i32
    %c0_i32_1 = arith.constant 0 : i32
    return %c0_i32, %c0_i32_0 : i32, i32
  }
  func.func @transform_33(%arg0: i32) -> (i32, i32) {
    %c0_i32 = arith.constant 0 : i32
    %c0_i32_0 = arith.constant 0 : i32
    %c0_i32_1 = arith.constant 0 : i32
    return %c0_i32, %c0_i32_0 : i32, i32
  }
  func.func @transform_34(%arg0: i32) -> (i32, i32) {
    %c0_i32 = arith.constant 0 : i32
    %c0_i32_0 = arith.constant 0 : i32
    %c0_i32_1 = arith.constant 0 : i32
    return %c0_i32, %c0_i32_0 : i32, i32
  }
  func.func @transform_35(%arg0: i32) -> (i32, i32) {
    %c0_i32 = arith.constant 0 : i32
    %c0_i32_0 = arith.constant 0 : i32
    %c0_i32_1 = arith.constant 0 : i32
    return %c0_i32, %c0_i32_0 : i32, i32
  }
  func.func @transform_36(%arg0: i32) -> (i32, i32) {
    %c0_i32 = arith.constant 0 : i32
    %c0_i32_0 = arith.constant 0 : i32
    %c0_i32_1 = arith.constant 0 : i32
    return %c0_i32, %c0_i32_0 : i32, i32
  }
  func.func @transform_37(%arg0: i32) -> (i32, i32) {
    %c0_i32 = arith.constant 0 : i32
    %c0_i32_0 = arith.constant 0 : i32
    %c0_i32_1 = arith.constant 0 : i32
    return %c0_i32, %c0_i32_0 : i32, i32
  }
  func.func @transform_38(%arg0: i32) -> (i32, i32) {
    %c0_i32 = arith.constant 0 : i32
    %c0_i32_0 = arith.constant 0 : i32
    %c0_i32_1 = arith.constant 0 : i32
    return %c0_i32, %c0_i32_0 : i32, i32
  }
  func.func @transform_39(%arg0: i32) -> (i32, i32, i32) {
    %c0_i32 = arith.constant 0 : i32
    %c0_i32_0 = arith.constant 0 : i32
    %c0_i32_1 = arith.constant 0 : i32
    return %arg0, %c0_i32, %c0_i32_0 : i32, i32, i32
  }
  func.func @transform_40(%arg0: i32) -> (i32, i32, i32) {
    %c0_i32 = arith.constant 0 : i32
    %c0_i32_0 = arith.constant 0 : i32
    %c0_i32_1 = arith.constant 0 : i32
    return %arg0, %c0_i32, %c0_i32_0 : i32, i32, i32
  }
}

</mosaic_0001>

<llo_original>
// kernel: set_prediction_forward.1
$region0: #{set_prediction_forward.1}
  #allocation0 [shape = 'u32[]', space=smem, size = 0x4, offset = 0x4, fixed_abs, tag = 'smem constant byte address 0x4 - core index']
  #allocation1 [shape = 'u32[144,128]{1,0:T(1,128)}', space=vmem, size = 0x12000, scoped, tag = 'internal scratch']
  %s0 = inlined_call_operand.smem [shape: u32[41], index: -1, kind: input, shape index: {}]
  %s1 = sld [smem:[%s0]]
  %s2 = scalar_lea.smem %s0, 1
  %s3 = sld [smem:[%s2]]
  %s4 = scalar_lea.smem %s0, 2
  %s5 = sld [smem:[%s4]]
  %s6 = scalar_lea.smem %s0, 3
  %s7 = sld [smem:[%s6]]
  %s8 = scalar_lea.smem %s0, 4
  %s9 = sld [smem:[%s8]]
  %s10 = scalar_lea.smem %s0, 5
  %s11 = sld [smem:[%s10]]
  %s12 = scalar_lea.smem %s0, 6
  %s13 = sld [smem:[%s12]]
  %s14 = scalar_lea.smem %s0, 7
  %s15 = sld [smem:[%s14]]
  %s16 = scalar_lea.smem %s0, 8
  %s17 = sld [smem:[%s16]]
  %s18 = scalar_lea.smem %s0, 9
  %s19 = sld [smem:[%s18]]
  %s20 = scalar_lea.smem %s0, 10
  %s21 = sld [smem:[%s20]]
  %s22 = scalar_lea.smem %s0, 11
  %s23 = sld [smem:[%s22]]
  %s24 = scalar_lea.smem %s0, 12
  %s25 = sld [smem:[%s24]]
  %s26 = scalar_lea.smem %s0, 13
  %s27 = sld [smem:[%s26]]
  %s28 = scalar_lea.smem %s0, 14
  %s29 = sld [smem:[%s28]]
  %s30 = scalar_lea.smem %s0, 15
  %s31 = sld [smem:[%s30]]
  %s32 = scalar_lea.smem %s0, 16
  %s33 = sld [smem:[%s32]]
  %s34 = scalar_lea.smem %s0, 17
  %s35 = sld [smem:[%s34]]
  %s36 = scalar_lea.smem %s0, 18
  %s37 = sld [smem:[%s36]]
  %s38 = scalar_lea.smem %s0, 19
  %s39 = sld [smem:[%s38]]
  %s40 = scalar_lea.smem %s0, 20
  %s41 = sld [smem:[%s40]]
  %s42 = scalar_lea.smem %s0, 21
  %s43 = sld [smem:[%s42]]
  %s44 = scalar_lea.smem %s0, 22
  %s45 = sld [smem:[%s44]]
  %s46 = scalar_lea.smem %s0, 23
  %s47 = sld [smem:[%s46]]
  %s48 = scalar_lea.smem %s0, 24
  %s49 = sld [smem:[%s48]]
  %s50 = scalar_lea.smem %s0, 25
  %s51 = sld [smem:[%s50]]
  %s52 = scalar_lea.smem %s0, 26
  %s53 = sld [smem:[%s52]]
  %s54 = scalar_lea.smem %s0, 27
  %s55 = sld [smem:[%s54]]
  %s56 = scalar_lea.smem %s0, 28
  %s57 = sld [smem:[%s56]]
  %s58 = scalar_lea.smem %s0, 29
  %s59 = sld [smem:[%s58]]
  %s60 = scalar_lea.smem %s0, 30
  %s61 = sld [smem:[%s60]]
  %s62 = scalar_lea.smem %s0, 31
  %s63 = sld [smem:[%s62]]
  %s64 = scalar_lea.smem %s0, 32
  %s65 = sld [smem:[%s64]]
  %s66 = scalar_lea.smem %s0, 33
  %s67 = sld [smem:[%s66]]
  %s68 = scalar_lea.smem %s0, 34
  %s69 = sld [smem:[%s68]]
  %s70 = scalar_lea.smem %s0, 35
  %s71 = sld [smem:[%s70]]
  %s72 = scalar_lea.smem %s0, 36
  %s73 = sld [smem:[%s72]]
  %s74 = scalar_lea.smem %s0, 37
  %s75 = sld [smem:[%s74]]
  %s76 = scalar_lea.smem %s0, 38
  %s77 = sld [smem:[%s76]]
  %s78 = scalar_lea.smem %s0, 39
  %s79 = sld [smem:[%s78]]
  %s80 = scalar_lea.smem %s0, 40
  %s81 = sld [smem:[%s80]]
  %82 = xla_tuple %s79, %s81
  %s83 = sld [smem:[#allocation0]]
  $region353: #{set_prediction_forward.1} parent=0
    _
  %s85 = ssub.s32 1, %s83
  %s86 = scalar_select 0, %s85, %s83
  $region1: #{set_prediction_forward.1} parent=0
    #allocation2 [shape = 'u8[16384]{0}', space=vmem, size = 0x4000, scoped, tag = 'input window, operand 0']
    #allocation3 [shape = 's32[2]{0}', space=sflag, size = 0x8, scoped, tag = 'scoped memory for set_prediction_forward.1']
    #allocation4 [shape = 's32[2]{0}', space=sflag, size = 0x8, scoped, tag = 'scoped memory for set_prediction_forward.1']
    #allocation5 [shape = 'u8[1024]{0}', space=vmem, size = 0x400, scoped, tag = 'input window, operand 1']
    #allocation6 [shape = 's32[2]{0}', space=sflag, size = 0x8, scoped, tag = 'scoped memory for set_prediction_forward.1']
    #allocation7 [shape = 'u8[1024]{0}', space=vmem, size = 0x400, scoped, tag = 'input window, operand 2']
    #allocation8 [shape = 'u8[8192]{0}', space=vmem, size = 0x2000, scoped, tag = 'input window, operand 3, single buffered']
    #allocation9 [shape = 's32[1]{0}', space=sflag, size = 0x4, scoped, tag = 'scoped memory for set_prediction_forward.1']
    #allocation10 [shape = 'u8[4096]{0}', space=vmem, size = 0x1000, scoped, tag = 'input window, operand 4, single buffered']
    #allocation11 [shape = 'u8[512]{0}', space=vmem, size = 0x400, scoped, tag = 'input window, operand 5, single buffered']
    #allocation12 [shape = 's32[1]{0}', space=sflag, size = 0x4, scoped, tag = 'scoped memory for set_prediction_forward.1']
    #allocation13 [shape = 'u8[512]{0}', space=vmem, size = 0x400, scoped, tag = 'input window, operand 6, single buffered']
    #allocation14 [shape = 'u8[512]{0}', space=vmem, size = 0x400, scoped, tag = 'input window, operand 7, single buffered']
    #allocation15 [shape = 's32[1]{0}', space=sflag, size = 0x4, scoped, tag = 'scoped memory for set_prediction_forward.1']
    #allocation16 [shape = 'u8[512]{0}', space=vmem, size = 0x400, scoped, tag = 'input window, operand 8, single buffered']
    #allocation17 [shape = 'u8[8192]{0}', space=vmem, size = 0x2000, scoped, tag = 'input window, operand 9, single buffered']
    #allocation18 [shape = 's32[1]{0}', space=sflag, size = 0x4, scoped, tag = 'scoped memory for set_prediction_forward.1']
    #allocation19 [shape = 'u8[4096]{0}', space=vmem, size = 0x1000, scoped, tag = 'input window, operand 10, single buffered']
    #allocation20 [shape = 'u8[8192]{0}', space=vmem, size = 0x2000, scoped, tag = 'input window, operand 11, single buffered']
    #allocation21 [shape = 's32[1]{0}', space=sflag, size = 0x4, scoped, tag = 'scoped memory for set_prediction_forward.1']
    #allocation22 [shape = 'u8[512]{0}', space=vmem, size = 0x400, scoped, tag = 'input window, operand 12, single buffered']
    #allocation23 [shape = 'u8[512]{0}', space=vmem, size = 0x400, scoped, tag = 'input window, operand 13, single buffered']
    #allocation24 [shape = 's32[1]{0}', space=sflag, size = 0x4, scoped, tag = 'scoped memory for set_prediction_forward.1']
    #allocation25 [shape = 'u8[8192]{0}', space=vmem, size = 0x2000, scoped, tag = 'input window, operand 14, single buffered']
    #allocation26 [shape = 'u8[512]{0}', space=vmem, size = 0x400, scoped, tag = 'input window, operand 15, single buffered']
    #allocation27 [shape = 's32[1]{0}', space=sflag, size = 0x4, scoped, tag = 'scoped memory for set_prediction_forward.1']
    #allocation28 [shape = 'u8[32768]{0}', space=vmem, size = 0x8000, scoped, tag = 'input window, operand 16, single buffered']
    #allocation29 [shape = 'u8[512]{0}', space=vmem, size = 0x400, scoped, tag = 'input window, operand 17, single buffered']
    #allocation30 [shape = 's32[1]{0}', space=sflag, size = 0x4, scoped, tag = 'scoped memory for set_prediction_forward.1']
    #allocation31 [shape = 'u8[2048]{0}', space=vmem, size = 0x800, scoped, tag = 'input window, operand 18, single buffered']
    #allocation32 [shape = 'u8[2048]{0}', space=vmem, size = 0x800, scoped, tag = 'input window, operand 19, single buffered']
    #allocation33 [shape = 's32[1]{0}', space=sflag, size = 0x4, scoped, tag = 'scoped memory for set_prediction_forward.1']
    #allocation34 [shape = 'u8[2048]{0}', space=vmem, size = 0x800, scoped, tag = 'input window, operand 20, single buffered']
    #allocation35 [shape = 'u8[2048]{0}', space=vmem, size = 0x800, scoped, tag = 'input window, operand 21, single buffered']
    #allocation36 [shape = 's32[1]{0}', space=sflag, size = 0x4, scoped, tag = 'scoped memory for set_prediction_forward.1']
    #allocation37 [shape = 'u8[32768]{0}', space=vmem, size = 0x8000, scoped, tag = 'input window, operand 22, single buffered']
    #allocation38 [shape = 'u8[32768]{0}', space=vmem, size = 0x8000, scoped, tag = 'input window, operand 23, single buffered']
    #allocation39 [shape = 's32[1]{0}', space=sflag, size = 0x4, scoped, tag = 'scoped memory for set_prediction_forward.1']
    #allocation40 [shape = 'u8[32768]{0}', space=vmem, size = 0x8000, scoped, tag = 'input window, operand 24, single buffered']
    #allocation41 [shape = 'u8[2048]{0}', space=vmem, size = 0x800, scoped, tag = 'input window, operand 25, single buffered']
    #allocation42 [shape = 's32[1]{0}', space=sflag, size = 0x4, scoped, tag = 'scoped memory for set_prediction_forward.1']
    #allocation43 [shape = 'u8[2048]{0}', space=vmem, size = 0x800, scoped, tag = 'input window, operand 26, single buffered']
    #allocation44 [shape = 'u8[32768]{0}', space=vmem, size = 0x8000, scoped, tag = 'input window, operand 27, single buffered']
    #allocation45 [shape = 's32[1]{0}', space=sflag, size = 0x4, scoped, tag = 'scoped memory for set_prediction_forward.1']
    #allocation46 [shape = 'u8[2048]{0}', space=vmem, size = 0x800, scoped, tag = 'input window, operand 28, single buffered']
    #allocation47 [shape = 'u8[131072]{0}', space=vmem, size = 0x20000, scoped, tag = 'input window, operand 29, single buffered']
    #allocation48 [shape = 's32[1]{0}', space=sflag, size = 0x4, scoped, tag = 'scoped memory for set_prediction_forward.1']
    #allocation49 [shape = 'u8[2048]{0}', space=vmem, size = 0x800, scoped, tag = 'input window, operand 30, single buffered']
    #allocation50 [shape = 'u8[512]{0}', space=vmem, size = 0x400, scoped, tag = 'input window, operand 31, single buffered']
    #allocation51 [shape = 's32[1]{0}', space=sflag, size = 0x4, scoped, tag = 'scoped memory for set_prediction_forward.1']
    #allocation52 [shape = 'u8[512]{0}', space=vmem, size = 0x400, scoped, tag = 'input window, operand 32, single buffered']
    #allocation53 [shape = 'u8[8192]{0}', space=vmem, size = 0x2000, scoped, tag = 'input window, operand 33, single buffered']
    #allocation54 [shape = 's32[1]{0}', space=sflag, size = 0x4, scoped, tag = 'scoped memory for set_prediction_forward.1']
    #allocation55 [shape = 'u8[512]{0}', space=vmem, size = 0x400, scoped, tag = 'input window, operand 34, single buffered']
    #allocation56 [shape = 'u8[512]{0}', space=vmem, size = 0x400, scoped, tag = 'input window, operand 35, single buffered']
    #allocation57 [shape = 's32[1]{0}', space=sflag, size = 0x4, scoped, tag = 'scoped memory for set_prediction_forward.1']
    #allocation58 [shape = 'u8[512]{0}', space=vmem, size = 0x400, scoped, tag = 'input window, operand 36, single buffered']
    #allocation59 [shape = 'u8[65536]{0}', space=vmem, size = 0x10000, scoped, tag = 'input window, operand 37, single buffered']
    #allocation60 [shape = 's32[1]{0}', space=sflag, size = 0x4, scoped, tag = 'scoped memory for set_prediction_forward.1']
    #allocation61 [shape = 'u8[4096]{0}', space=vmem, size = 0x1000, scoped, tag = 'input window, operand 38, single buffered']
    #allocation62 [shape = 'u8[65536]{0}', space=vmem, size = 0x10000, scoped, tag = 'output window, operand 0']
    #allocation63 [shape = 'u8[8192]{0}', space=vmem, size = 0x2000, scoped, tag = 'output window, operand 1']
    #allocation64 [shape = 's32[2]{0}', space=sflag, size = 0x8, scoped, tag = 'scoped memory for set_prediction_forward.1']
    %87 = vsyncpa [#allocation3], 0
    %s88 = scalar_lea.sflag [#allocation3], 1
    %89 = vsyncpa %s88, 0
    %90 = vsyncpa [#allocation6], 0
    %s91 = scalar_lea.sflag [#allocation6], 1
    %92 = vsyncpa %s91, 0
    %93 = vsyncpa [#allocation9], 0
    %94 = vsyncpa [#allocation12], 0
    %95 = vsyncpa [#allocation15], 0
    %96 = vsyncpa [#allocation18], 0
    %97 = vsyncpa [#allocation21], 0
    %98 = vsyncpa [#allocation24], 0
    %99 = vsyncpa [#allocation27], 0
    %100 = vsyncpa [#allocation30], 0
    %101 = vsyncpa [#allocation33], 0
    %102 = vsyncpa [#allocation36], 0
    %103 = vsyncpa [#allocation39], 0
    %104 = vsyncpa [#allocation42], 0
    %105 = vsyncpa [#allocation45], 0
    %106 = vsyncpa [#allocation48], 0
    %107 = vsyncpa [#allocation51], 0
    %108 = vsyncpa [#allocation54], 0
    %109 = vsyncpa [#allocation57], 0
    %110 = vsyncpa [#allocation60], 0
    %111 = vsyncpa [#allocation4], 0
    %s112 = scalar_lea.sflag [#allocation4], 1
    %113 = vsyncpa %s112, 0
    %114 = vsyncpa [#allocation64], 0
    %s115 = scalar_lea.sflag [#allocation64], 1
    %116 = vsyncpa %s115, 0
    loop: start=0, step=1, limit=4
    $region2: #{set_prediction_forward.1} parent=1 // loop_pre_header
      _
    $region3: #{set_prediction_forward.1} parent=1 // loop_header
      %s118 = sphi 0, %s122
      %p119 = scmp.ge.s32.totalorder %s118, 4
      %s128 = sphi 0, %s130
      %s131 = sphi 0, %s128
      %s132 = sphi 0, %s131
      %s148 = sphi 0, %s132
      %s154 = sphi 0, %s156
      %s157 = sphi 0, %s154
      %s158 = sphi 0, %s157
      %s174 = sphi 0, %s158
      %s180 = sphi 0, %s182
      %s183 = sphi 0, %s180
      %s184 = sphi 0, %s183
      %s200 = sphi 0, %s184
      %s204 = sphi 0, %s204
      %s206 = sphi 0, %s204
      %s207 = sphi 0, %s206
      %s221 = sphi 0, %s207
      %s225 = sphi 0, %s225
      %s227 = sphi 0, %s225
      %s228 = sphi 0, %s227
      %s242 = sphi 0, %s228
      %s246 = sphi 0, %s246
      %s248 = sphi 0, %s246
      %s249 = sphi 0, %s248
      %s263 = sphi 0, %s249
      %s267 = sphi 0, %s267
      %s269 = sphi 0, %s267
      %s270 = sphi 0, %s269
      %s284 = sphi 0, %s270
      %s288 = sphi 0, %s288
      %s290 = sphi 0, %s288
      %s291 = sphi 0, %s290
      %s305 = sphi 0, %s291
      %s309 = sphi 0, %s309
      %s311 = sphi 0, %s309
      %s312 = sphi 0, %s311
      %s326 = sphi 0, %s312
      %s330 = sphi 0, %s330
      %s332 = sphi 0, %s330
      %s333 = sphi 0, %s332
      %s347 = sphi 0, %s333
      %s351 = sphi 0, %s351
      %s353 = sphi 0, %s351
      %s354 = sphi 0, %s353
      %s368 = sphi 0, %s354
      %s372 = sphi 0, %s372
      %s374 = sphi 0, %s372
      %s375 = sphi 0, %s374
      %s389 = sphi 0, %s375
      %s393 = sphi 0, %s393
      %s395 = sphi 0, %s393
      %s396 = sphi 0, %s395
      %s410 = sphi 0, %s396
      %s414 = sphi 0, %s414
      %s416 = sphi 0, %s414
      %s417 = sphi 0, %s416
      %s431 = sphi 0, %s417
      %s435 = sphi 0, %s435
      %s437 = sphi 0, %s435
      %s438 = sphi 0, %s437
      %s452 = sphi 0, %s438
      %s456 = sphi 0, %s456
      %s458 = sphi 0, %s456
      %s459 = sphi 0, %s458
      %s473 = sphi 0, %s459
      %s477 = sphi 0, %s477
      %s479 = sphi 0, %s477
      %s480 = sphi 0, %s479
      %s494 = sphi 0, %s480
      %s498 = sphi 0, %s498
      %s500 = sphi 0, %s498
      %s501 = sphi 0, %s500
      %s515 = sphi 0, %s501
      %s519 = sphi 0, %s519
      %s521 = sphi 0, %s519
      %s522 = sphi 0, %s521
      %s536 = sphi 0, %s522
      %s540 = sphi 0, %s540
      %s542 = sphi 0, %s540
      %s543 = sphi 0, %s542
      %s557 = sphi 0, %s543
      %s561 = sphi 0, %s561
      %s563 = sphi 0, %s561
      %s564 = sphi 0, %s563
      %s578 = sphi 0, %s564
      %s582 = sphi 0, %s582
      %s584 = sphi 0, %s582
      %s585 = sphi 0, %s584
      %s599 = sphi 0, %s585
      %s603 = sphi 0, %s603
      %s605 = sphi 0, %s603
      %s606 = sphi 0, %s605
      %s620 = sphi 0, %s606
      %s624 = sphi 0, %s624
      %s626 = sphi 0, %s624
      %s627 = sphi 0, %s626
      %s641 = sphi 0, %s627
      %s645 = sphi 0, %s645
      %s647 = sphi 0, %s645
      %s648 = sphi 0, %s647
      %s662 = sphi 0, %s648
      %s666 = sphi 0, %s666
      %s668 = sphi 0, %s666
      %s669 = sphi 0, %s668
      %s683 = sphi 0, %s669
      %s687 = sphi 0, %s687
      %s689 = sphi 0, %s687
      %s690 = sphi 0, %s689
      %s704 = sphi 0, %s690
      %s708 = sphi 0, %s708
      %s710 = sphi 0, %s708
      %s711 = sphi 0, %s710
      %s725 = sphi 0, %s711
      %s729 = sphi 0, %s729
      %s731 = sphi 0, %s729
      %s732 = sphi 0, %s731
      %s746 = sphi 0, %s732
      %s750 = sphi 0, %s750
      %s752 = sphi 0, %s750
      %s753 = sphi 0, %s752
      %s767 = sphi 0, %s753
      %s771 = sphi 0, %s771
      %s773 = sphi 0, %s771
      %s774 = sphi 0, %s773
      %s788 = sphi 0, %s774
      %s792 = sphi 0, %s792
      %s794 = sphi 0, %s792
      %s795 = sphi 0, %s794
      %s809 = sphi 0, %s795
      %s813 = sphi 0, %s813
      %s815 = sphi 0, %s813
      %s816 = sphi 0, %s815
      %s830 = sphi 0, %s816
      %s834 = sphi 0, %s834
      %s836 = sphi 0, %s834
      %s837 = sphi 0, %s836
      %s851 = sphi 0, %s837
      %s855 = sphi 0, %s855
      %s857 = sphi 0, %s855
      %s858 = sphi 0, %s857
      %s872 = sphi 0, %s858
      %s876 = sphi 0, %s876
      %s878 = sphi 0, %s876
      %s879 = sphi 0, %s878
      %s893 = sphi 0, %s879
      %s897 = sphi 0, %s897
      %s899 = sphi 0, %s897
      %s900 = sphi 0, %s899
      %s914 = sphi 0, %s900
      %s918 = sphi 0, %s918
      %s920 = sphi 0, %s918
      %s921 = sphi 0, %s920
      %s935 = sphi 0, %s921
      %s939 = sphi 0, %s939
      %s941 = sphi 0, %s939
      %s942 = sphi 0, %s941
      %s956 = sphi 0, %s942
      %s962 = sphi 0, %s964
      %s965 = sphi 0, %s962
      %s966 = sphi 0, %s965
      %s982 = sphi 0, %s966
      %s988 = sphi 0, %s990
      %s991 = sphi 0, %s988
      %s992 = sphi 0, %s991
      %s1008 = sphi 0, %s992
    $region4: #{set_prediction_forward.1} parent=1 // loop_header_branch
      %121 = sbr.rel (%p119) target = $region8
    $region5: #{set_prediction_forward.1} parent=1 // loop_body
      %s123 = ssub.s32 %s118, 1
      %s124 = ssub.s32 %s118, 2
      %s125 = sadd.s32 %s118, 1
      %s126 = ssub.s32 %s118, %s125
      %p127 = scmp.eq.s32.totalorder %s126, 0
      %s129 = sadd.s32 %s128, 1
      %s130 = scalar_select %p127, %s128, %s129
      %p133 = pneg %p127
      %p134 = scmp.eq.s32.totalorder %s118, 1
      %p135 = por %p133, %p134
      %p136 = scmp.ne.s32.totalorder %s128, %s131
      %p137 = scmp.eq.s32.totalorder %s118, 0
      %p138 = por %p136, %p137
      %p139 = scmp.ne.s32.totalorder %s128, %s131
      %p140 = scmp.eq.s32.totalorder %s123, 1
      %p141 = por %p139, %p140
      %p142 = scmp.ne.s32.totalorder %s131, %s132
      %p143 = scmp.eq.s32.totalorder %s123, 0
      %p144 = por %p142, %p143
      %p145 = scmp.ne.s32.totalorder %s131, %s132
      %p146 = scmp.eq.s32.totalorder %s124, 1
      %p147 = por %p145, %p146
      %p149 = scmp.ne.s32.totalorder %s132, %s148
      %p150 = scmp.eq.s32.totalorder %s124, 0
      %p151 = por %p149, %p150
      %s152 = ssub.s32 %s118, %s125
      %p153 = scmp.eq.s32.totalorder %s152, 0
      %s155 = sadd.s32 %s154, 1
      %s156 = scalar_select %p153, %s154, %s155
      %p159 = pneg %p153
      %p160 = scmp.eq.s32.totalorder %s118, 1
      %p161 = por %p159, %p160
      %p162 = scmp.ne.s32.totalorder %s154, %s157
      %p163 = scmp.eq.s32.totalorder %s118, 0
      %p164 = por %p162, %p163
      %p165 = scmp.ne.s32.totalorder %s154, %s157
      %p166 = scmp.eq.s32.totalorder %s123, 1
      %p167 = por %p165, %p166
      %p168 = scmp.ne.s32.totalorder %s157, %s158
      %p169 = scmp.eq.s32.totalorder %s123, 0
      %p170 = por %p168, %p169
      %p171 = scmp.ne.s32.totalorder %s157, %s158
      %p172 = scmp.eq.s32.totalorder %s124, 1
      %p173 = por %p171, %p172
      %p175 = scmp.ne.s32.totalorder %s158, %s174
      %p176 = scmp.eq.s32.totalorder %s124, 0
      %p177 = por %p175, %p176
      %s178 = ssub.s32 %s118, %s125
      %p179 = scmp.eq.s32.totalorder %s178, 0
      %s181 = sadd.s32 %s180, 1
      %s182 = scalar_select %p179, %s180, %s181
      %p185 = pneg %p179
      %p186 = scmp.eq.s32.totalorder %s118, 1
      %p187 = por %p185, %p186
      %p188 = scmp.ne.s32.totalorder %s180, %s183
      %p189 = scmp.eq.s32.totalorder %s118, 0
      %p190 = por %p188, %p189
      %p191 = scmp.ne.s32.totalorder %s180, %s183
      %p192 = scmp.eq.s32.totalorder %s123, 1
      %p193 = por %p191, %p192
      %p194 = scmp.ne.s32.totalorder %s183, %s184
      %p195 = scmp.eq.s32.totalorder %s123, 0
      %p196 = por %p194, %p195
      %p197 = scmp.ne.s32.totalorder %s183, %s184
      %p198 = scmp.eq.s32.totalorder %s124, 1
      %p199 = por %p197, %p198
      %p201 = scmp.ne.s32.totalorder %s184, %s200
      %p202 = scmp.eq.s32.totalorder %s124, 0
      %p203 = por %p201, %p202
      %s205 = sadd.s32 %s204, 1
      %p208 = scmp.eq.s32.totalorder %s118, 1
      %p209 = scmp.ne.s32.totalorder %s204, %s206
      %p210 = scmp.eq.s32.totalorder %s118, 0
      %p211 = por %p209, %p210
      %p212 = scmp.ne.s32.totalorder %s204, %s206
      %p213 = scmp.eq.s32.totalorder %s123, 1
      %p214 = por %p212, %p213
      %p215 = scmp.ne.s32.totalorder %s206, %s207
      %p216 = scmp.eq.s32.totalorder %s123, 0
      %p217 = por %p215, %p216
      %p218 = scmp.ne.s32.totalorder %s206, %s207
      %p219 = scmp.eq.s32.totalorder %s124, 1
      %p220 = por %p218, %p219
      %p222 = scmp.ne.s32.totalorder %s207, %s221
      %p223 = scmp.eq.s32.totalorder %s124, 0
      %p224 = por %p222, %p223
      %s226 = sadd.s32 %s225, 1
      %p229 = scmp.eq.s32.totalorder %s118, 1
      %p230 = scmp.ne.s32.totalorder %s225, %s227
      %p231 = scmp.eq.s32.totalorder %s118, 0
      %p232 = por %p230, %p231
      %p233 = scmp.ne.s32.totalorder %s225, %s227
      %p234 = scmp.eq.s32.totalorder %s123, 1
      %p235 = por %p233, %p234
      %p236 = scmp.ne.s32.totalorder %s227, %s228
      %p237 = scmp.eq.s32.totalorder %s123, 0
      %p238 = por %p236, %p237
      %p239 = scmp.ne.s32.totalorder %s227, %s228
      %p240 = scmp.eq.s32.totalorder %s124, 1
      %p241 = por %p239, %p240
      %p243 = scmp.ne.s32.totalorder %s228, %s242
      %p244 = scmp.eq.s32.totalorder %s124, 0
      %p245 = por %p243, %p244
      %s247 = sadd.s32 %s246, 1
      %p250 = scmp.eq.s32.totalorder %s118, 1
      %p251 = scmp.ne.s32.totalorder %s246, %s248
      %p252 = scmp.eq.s32.totalorder %s118, 0
      %p253 = por %p251, %p252
      %p254 = scmp.ne.s32.totalorder %s246, %s248
      %p255 = scmp.eq.s32.totalorder %s123, 1
      %p256 = por %p254, %p255
      %p257 = scmp.ne.s32.totalorder %s248, %s249
      %p258 = scmp.eq.s32.totalorder %s123, 0
      %p259 = por %p257, %p258
      %p260 = scmp.ne.s32.totalorder %s248, %s249
      %p261 = scmp.eq.s32.totalorder %s124, 1
      %p262 = por %p260, %p261
      %p264 = scmp.ne.s32.totalorder %s249, %s263
      %p265 = scmp.eq.s32.totalorder %s124, 0
      %p266 = por %p264, %p265
      %s268 = sadd.s32 %s267, 1
      %p271 = scmp.eq.s32.totalorder %s118, 1
      %p272 = scmp.ne.s32.totalorder %s267, %s269
      %p273 = scmp.eq.s32.totalorder %s118, 0
      %p274 = por %p272, %p273
      %p275 = scmp.ne.s32.totalorder %s267, %s269
      %p276 = scmp.eq.s32.totalorder %s123, 1
      %p277 = por %p275, %p276
      %p278 = scmp.ne.s32.totalorder %s269, %s270
      %p279 = scmp.eq.s32.totalorder %s123, 0
      %p280 = por %p278, %p279
      %p281 = scmp.ne.s32.totalorder %s269, %s270
      %p282 = scmp.eq.s32.totalorder %s124, 1
      %p283 = por %p281, %p282
      %p285 = scmp.ne.s32.totalorder %s270, %s284
      %p286 = scmp.eq.s32.totalorder %s124, 0
      %p287 = por %p285, %p286
      %s289 = sadd.s32 %s288, 1
      %p292 = scmp.eq.s32.totalorder %s118, 1
      %p293 = scmp.ne.s32.totalorder %s288, %s290
      %p294 = scmp.eq.s32.totalorder %s118, 0
      %p295 = por %p293, %p294
      %p296 = scmp.ne.s32.totalorder %s288, %s290
      %p297 = scmp.eq.s32.totalorder %s123, 1
      %p298 = por %p296, %p297
      %p299 = scmp.ne.s32.totalorder %s290, %s291
      %p300 = scmp.eq.s32.totalorder %s123, 0
      %p301 = por %p299, %p300
      %p302 = scmp.ne.s32.totalorder %s290, %s291
      %p303 = scmp.eq.s32.totalorder %s124, 1
      %p304 = por %p302, %p303
      %p306 = scmp.ne.s32.totalorder %s291, %s305
      %p307 = scmp.eq.s32.totalorder %s124, 0
      %p308 = por %p306, %p307
      %s310 = sadd.s32 %s309, 1
      %p313 = scmp.eq.s32.totalorder %s118, 1
      %p314 = scmp.ne.s32.totalorder %s309, %s311
      %p315 = scmp.eq.s32.totalorder %s118, 0
      %p316 = por %p314, %p315
      %p317 = scmp.ne.s32.totalorder %s309, %s311
      %p318 = scmp.eq.s32.totalorder %s123, 1
      %p319 = por %p317, %p318
      %p320 = scmp.ne.s32.totalorder %s311, %s312
      %p321 = scmp.eq.s32.totalorder %s123, 0
      %p322 = por %p320, %p321
      %p323 = scmp.ne.s32.totalorder %s311, %s312
      %p324 = scmp.eq.s32.totalorder %s124, 1
      %p325 = por %p323, %p324
      %p327 = scmp.ne.s32.totalorder %s312, %s326
      %p328 = scmp.eq.s32.totalorder %s124, 0
      %p329 = por %p327, %p328
      %s331 = sadd.s32 %s330, 1
      %p334 = scmp.eq.s32.totalorder %s118, 1
      %p335 = scmp.ne.s32.totalorder %s330, %s332
      %p336 = scmp.eq.s32.totalorder %s118, 0
      %p337 = por %p335, %p336
      %p338 = scmp.ne.s32.totalorder %s330, %s332
      %p339 = scmp.eq.s32.totalorder %s123, 1
      %p340 = por %p338, %p339
      %p341 = scmp.ne.s32.totalorder %s332, %s333
      %p342 = scmp.eq.s32.totalorder %s123, 0
      %p343 = por %p341, %p342
      %p344 = scmp.ne.s32.totalorder %s332, %s333
      %p345 = scmp.eq.s32.totalorder %s124, 1
      %p346 = por %p344, %p345
      %p348 = scmp.ne.s32.totalorder %s333, %s347
      %p349 = scmp.eq.s32.totalorder %s124, 0
      %p350 = por %p348, %p349
      %s352 = sadd.s32 %s351, 1
      %p355 = scmp.eq.s32.totalorder %s118, 1
      %p356 = scmp.ne.s32.totalorder %s351, %s353
      %p357 = scmp.eq.s32.totalorder %s118, 0
      %p358 = por %p356, %p357
      %p359 = scmp.ne.s32.totalorder %s351, %s353
      %p360 = scmp.eq.s32.totalorder %s123, 1
      %p361 = por %p359, %p360
      %p362 = scmp.ne.s32.totalorder %s353, %s354
      %p363 = scmp.eq.s32.totalorder %s123, 0
      %p364 = por %p362, %p363
      %p365 = scmp.ne.s32.totalorder %s353, %s354
      %p366 = scmp.eq.s32.totalorder %s124, 1
      %p367 = por %p365, %p366
      %p369 = scmp.ne.s32.totalorder %s354, %s368
      %p370 = scmp.eq.s32.totalorder %s124, 0
      %p371 = por %p369, %p370
      %s373 = sadd.s32 %s372, 1
      %p376 = scmp.eq.s32.totalorder %s118, 1
      %p377 = scmp.ne.s32.totalorder %s372, %s374
      %p378 = scmp.eq.s32.totalorder %s118, 0
      %p379 = por %p377, %p378
      %p380 = scmp.ne.s32.totalorder %s372, %s374
      %p381 = scmp.eq.s32.totalorder %s123, 1
      %p382 = por %p380, %p381
      %p383 = scmp.ne.s32.totalorder %s374, %s375
      %p384 = scmp.eq.s32.totalorder %s123, 0
      %p385 = por %p383, %p384
      %p386 = scmp.ne.s32.totalorder %s374, %s375
      %p387 = scmp.eq.s32.totalorder %s124, 1
      %p388 = por %p386, %p387
      %p390 = scmp.ne.s32.totalorder %s375, %s389
      %p391 = scmp.eq.s32.totalorder %s124, 0
      %p392 = por %p390, %p391
      %s394 = sadd.s32 %s393, 1
      %p397 = scmp.eq.s32.totalorder %s118, 1
      %p398 = scmp.ne.s32.totalorder %s393, %s395
      %p399 = scmp.eq.s32.totalorder %s118, 0
      %p400 = por %p398, %p399
      %p401 = scmp.ne.s32.totalorder %s393, %s395
      %p402 = scmp.eq.s32.totalorder %s123, 1
      %p403 = por %p401, %p402
      %p404 = scmp.ne.s32.totalorder %s395, %s396
      %p405 = scmp.eq.s32.totalorder %s123, 0
      %p406 = por %p404, %p405
      %p407 = scmp.ne.s32.totalorder %s395, %s396
      %p408 = scmp.eq.s32.totalorder %s124, 1
      %p409 = por %p407, %p408
      %p411 = scmp.ne.s32.totalorder %s396, %s410
      %p412 = scmp.eq.s32.totalorder %s124, 0
      %p413 = por %p411, %p412
      %s415 = sadd.s32 %s414, 1
      %p418 = scmp.eq.s32.totalorder %s118, 1
      %p419 = scmp.ne.s32.totalorder %s414, %s416
      %p420 = scmp.eq.s32.totalorder %s118, 0
      %p421 = por %p419, %p420
      %p422 = scmp.ne.s32.totalorder %s414, %s416
      %p423 = scmp.eq.s32.totalorder %s123, 1
      %p424 = por %p422, %p423
      %p425 = scmp.ne.s32.totalorder %s416, %s417
      %p426 = scmp.eq.s32.totalorder %s123, 0
      %p427 = por %p425, %p426
      %p428 = scmp.ne.s32.totalorder %s416, %s417
      %p429 = scmp.eq.s32.totalorder %s124, 1
      %p430 = por %p428, %p429
      %p432 = scmp.ne.s32.totalorder %s417, %s431
      %p433 = scmp.eq.s32.totalorder %s124, 0
      %p434 = por %p432, %p433
      %s436 = sadd.s32 %s435, 1
      %p439 = scmp.eq.s32.totalorder %s118, 1
      %p440 = scmp.ne.s32.totalorder %s435, %s437
      %p441 = scmp.eq.s32.totalorder %s118, 0
      %p442 = por %p440, %p441
      %p443 = scmp.ne.s32.totalorder %s435, %s437
      %p444 = scmp.eq.s32.totalorder %s123, 1
      %p445 = por %p443, %p444
      %p446 = scmp.ne.s32.totalorder %s437, %s438
      %p447 = scmp.eq.s32.totalorder %s123, 0
      %p448 = por %p446, %p447
      %p449 = scmp.ne.s32.totalorder %s437, %s438
      %p450 = scmp.eq.s32.totalorder %s124, 1
      %p451 = por %p449, %p450
      %p453 = scmp.ne.s32.totalorder %s438, %s452
      %p454 = scmp.eq.s32.totalorder %s124, 0
      %p455 = por %p453, %p454
      %s457 = sadd.s32 %s456, 1
      %p460 = scmp.eq.s32.totalorder %s118, 1
      %p461 = scmp.ne.s32.totalorder %s456, %s458
      %p462 = scmp.eq.s32.totalorder %s118, 0
      %p463 = por %p461, %p462
      %p464 = scmp.ne.s32.totalorder %s456, %s458
      %p465 = scmp.eq.s32.totalorder %s123, 1
      %p466 = por %p464, %p465
      %p467 = scmp.ne.s32.totalorder %s458, %s459
      %p468 = scmp.eq.s32.totalorder %s123, 0
      %p469 = por %p467, %p468
      %p470 = scmp.ne.s32.totalorder %s458, %s459
      %p471 = scmp.eq.s32.totalorder %s124, 1
      %p472 = por %p470, %p471
      %p474 = scmp.ne.s32.totalorder %s459, %s473
      %p475 = scmp.eq.s32.totalorder %s124, 0
      %p476 = por %p474, %p475
      %s478 = sadd.s32 %s477, 1
      %p481 = scmp.eq.s32.totalorder %s118, 1
      %p482 = scmp.ne.s32.totalorder %s477, %s479
      %p483 = scmp.eq.s32.totalorder %s118, 0
      %p484 = por %p482, %p483
      %p485 = scmp.ne.s32.totalorder %s477, %s479
      %p486 = scmp.eq.s32.totalorder %s123, 1
      %p487 = por %p485, %p486
      %p488 = scmp.ne.s32.totalorder %s479, %s480
      %p489 = scmp.eq.s32.totalorder %s123, 0
      %p490 = por %p488, %p489
      %p491 = scmp.ne.s32.totalorder %s479, %s480
      %p492 = scmp.eq.s32.totalorder %s124, 1
      %p493 = por %p491, %p492
      %p495 = scmp.ne.s32.totalorder %s480, %s494
      %p496 = scmp.eq.s32.totalorder %s124, 0
      %p497 = por %p495, %p496
      %s499 = sadd.s32 %s498, 1
      %p502 = scmp.eq.s32.totalorder %s118, 1
      %p503 = scmp.ne.s32.totalorder %s498, %s500
      %p504 = scmp.eq.s32.totalorder %s118, 0
      %p505 = por %p503, %p504
      %p506 = scmp.ne.s32.totalorder %s498, %s500
      %p507 = scmp.eq.s32.totalorder %s123, 1
      %p508 = por %p506, %p507
      %p509 = scmp.ne.s32.totalorder %s500, %s501
      %p510 = scmp.eq.s32.totalorder %s123, 0
      %p511 = por %p509, %p510
      %p512 = scmp.ne.s32.totalorder %s500, %s501
      %p513 = scmp.eq.s32.totalorder %s124, 1
      %p514 = por %p512, %p513
      %p516 = scmp.ne.s32.totalorder %s501, %s515
      %p517 = scmp.eq.s32.totalorder %s124, 0
      %p518 = por %p516, %p517
      %s520 = sadd.s32 %s519, 1
      %p523 = scmp.eq.s32.totalorder %s118, 1
      %p524 = scmp.ne.s32.totalorder %s519, %s521
      %p525 = scmp.eq.s32.totalorder %s118, 0
      %p526 = por %p524, %p525
      %p527 = scmp.ne.s32.totalorder %s519, %s521
      %p528 = scmp.eq.s32.totalorder %s123, 1
      %p529 = por %p527, %p528
      %p530 = scmp.ne.s32.totalorder %s521, %s522
      %p531 = scmp.eq.s32.totalorder %s123, 0
      %p532 = por %p530, %p531
      %p533 = scmp.ne.s32.totalorder %s521, %s522
      %p534 = scmp.eq.s32.totalorder %s124, 1
      %p535 = por %p533, %p534
      %p537 = scmp.ne.s32.totalorder %s522, %s536
      %p538 = scmp.eq.s32.totalorder %s124, 0
      %p539 = por %p537, %p538
      %s541 = sadd.s32 %s540, 1
      %p544 = scmp.eq.s32.totalorder %s118, 1
      %p545 = scmp.ne.s32.totalorder %s540, %s542
      %p546 = scmp.eq.s32.totalorder %s118, 0
      %p547 = por %p545, %p546
      %p548 = scmp.ne.s32.totalorder %s540, %s542
      %p549 = scmp.eq.s32.totalorder %s123, 1
      %p550 = por %p548, %p549
      %p551 = scmp.ne.s32.totalorder %s542, %s543
      %p552 = scmp.eq.s32.totalorder %s123, 0
      %p553 = por %p551, %p552
      %p554 = scmp.ne.s32.totalorder %s542, %s543
      %p555 = scmp.eq.s32.totalorder %s124, 1
      %p556 = por %p554, %p555
      %p558 = scmp.ne.s32.totalorder %s543, %s557
      %p559 = scmp.eq.s32.totalorder %s124, 0
      %p560 = por %p558, %p559
      %s562 = sadd.s32 %s561, 1
      %p565 = scmp.eq.s32.totalorder %s118, 1
      %p566 = scmp.ne.s32.totalorder %s561, %s563
      %p567 = scmp.eq.s32.totalorder %s118, 0
      %p568 = por %p566, %p567
      %p569 = scmp.ne.s32.totalorder %s561, %s563
      %p570 = scmp.eq.s32.totalorder %s123, 1
      %p571 = por %p569, %p570
      %p572 = scmp.ne.s32.totalorder %s563, %s564
      %p573 = scmp.eq.s32.totalorder %s123, 0
      %p574 = por %p572, %p573
      %p575 = scmp.ne.s32.totalorder %s563, %s564
      %p576 = scmp.eq.s32.totalorder %s124, 1
      %p577 = por %p575, %p576
      %p579 = scmp.ne.s32.totalorder %s564, %s578
      %p580 = scmp.eq.s32.totalorder %s124, 0
      %p581 = por %p579, %p580
      %s583 = sadd.s32 %s582, 1
      %p586 = scmp.eq.s32.totalorder %s118, 1
      %p587 = scmp.ne.s32.totalorder %s582, %s584
      %p588 = scmp.eq.s32.totalorder %s118, 0
      %p589 = por %p587, %p588
      %p590 = scmp.ne.s32.totalorder %s582, %s584
      %p591 = scmp.eq.s32.totalorder %s123, 1
      %p592 = por %p590, %p591
      %p593 = scmp.ne.s32.totalorder %s584, %s585
      %p594 = scmp.eq.s32.totalorder %s123, 0
      %p595 = por %p593, %p594
      %p596 = scmp.ne.s32.totalorder %s584, %s585
      %p597 = scmp.eq.s32.totalorder %s124, 1
      %p598 = por %p596, %p597
      %p600 = scmp.ne.s32.totalorder %s585, %s599
      %p601 = scmp.eq.s32.totalorder %s124, 0
      %p602 = por %p600, %p601
      %s604 = sadd.s32 %s603, 1
      %p607 = scmp.eq.s32.totalorder %s118, 1
      %p608 = scmp.ne.s32.totalorder %s603, %s605
      %p609 = scmp.eq.s32.totalorder %s118, 0
      %p610 = por %p608, %p609
      %p611 = scmp.ne.s32.totalorder %s603, %s605
      %p612 = scmp.eq.s32.totalorder %s123, 1
      %p613 = por %p611, %p612
      %p614 = scmp.ne.s32.totalorder %s605, %s606
      %p615 = scmp.eq.s32.totalorder %s123, 0
      %p616 = por %p614, %p615
      %p617 = scmp.ne.s32.totalorder %s605, %s606
      %p618 = scmp.eq.s32.totalorder %s124, 1
      %p619 = por %p617, %p618
      %p621 = scmp.ne.s32.totalorder %s606, %s620
      %p622 = scmp.eq.s32.totalorder %s124, 0
      %p623 = por %p621, %p622
      %s625 = sadd.s32 %s624, 1
      %p628 = scmp.eq.s32.totalorder %s118, 1
      %p629 = scmp.ne.s32.totalorder %s624, %s626
      %p630 = scmp.eq.s32.totalorder %s118, 0
      %p631 = por %p629, %p630
      %p632 = scmp.ne.s32.totalorder %s624, %s626
      %p633 = scmp.eq.s32.totalorder %s123, 1
      %p634 = por %p632, %p633
      %p635 = scmp.ne.s32.totalorder %s626, %s627
      %p636 = scmp.eq.s32.totalorder %s123, 0
      %p637 = por %p635, %p636
      %p638 = scmp.ne.s32.totalorder %s626, %s627
      %p639 = scmp.eq.s32.totalorder %s124, 1
      %p640 = por %p638, %p639
      %p642 = scmp.ne.s32.totalorder %s627, %s641
      %p643 = scmp.eq.s32.totalorder %s124, 0
      %p644 = por %p642, %p643
      %s646 = sadd.s32 %s645, 1
      %p649 = scmp.eq.s32.totalorder %s118, 1
      %p650 = scmp.ne.s32.totalorder %s645, %s647
      %p651 = scmp.eq.s32.totalorder %s118, 0
      %p652 = por %p650, %p651
      %p653 = scmp.ne.s32.totalorder %s645, %s647
      %p654 = scmp.eq.s32.totalorder %s123, 1
      %p655 = por %p653, %p654
      %p656 = scmp.ne.s32.totalorder %s647, %s648
      %p657 = scmp.eq.s32.totalorder %s123, 0
      %p658 = por %p656, %p657
      %p659 = scmp.ne.s32.totalorder %s647, %s648
      %p660 = scmp.eq.s32.totalorder %s124, 1
      %p661 = por %p659, %p660
      %p663 = scmp.ne.s32.totalorder %s648, %s662
      %p664 = scmp.eq.s32.totalorder %s124, 0
      %p665 = por %p663, %p664
      %s667 = sadd.s32 %s666, 1
      %p670 = scmp.eq.s32.totalorder %s118, 1
      %p671 = scmp.ne.s32.totalorder %s666, %s668
      %p672 = scmp.eq.s32.totalorder %s118, 0
      %p673 = por %p671, %p672
      %p674 = scmp.ne.s32.totalorder %s666, %s668
      %p675 = scmp.eq.s32.totalorder %s123, 1
      %p676 = por %p674, %p675
      %p677 = scmp.ne.s32.totalorder %s668, %s669
      %p678 = scmp.eq.s32.totalorder %s123, 0
      %p679 = por %p677, %p678
      %p680 = scmp.ne.s32.totalorder %s668, %s669
      %p681 = scmp.eq.s32.totalorder %s124, 1
      %p682 = por %p680, %p681
      %p684 = scmp.ne.s32.totalorder %s669, %s683
      %p685 = scmp.eq.s32.totalorder %s124, 0
      %p686 = por %p684, %p685
      %s688 = sadd.s32 %s687, 1
      %p691 = scmp.eq.s32.totalorder %s118, 1
      %p692 = scmp.ne.s32.totalorder %s687, %s689
      %p693 = scmp.eq.s32.totalorder %s118, 0
      %p694 = por %p692, %p693
      %p695 = scmp.ne.s32.totalorder %s687, %s689
      %p696 = scmp.eq.s32.totalorder %s123, 1
      %p697 = por %p695, %p696
      %p698 = scmp.ne.s32.totalorder %s689, %s690
      %p699 = scmp.eq.s32.totalorder %s123, 0
      %p700 = por %p698, %p699
      %p701 = scmp.ne.s32.totalorder %s689, %s690
      %p702 = scmp.eq.s32.totalorder %s124, 1
      %p703 = por %p701, %p702
      %p705 = scmp.ne.s32.totalorder %s690, %s704
      %p706 = scmp.eq.s32.totalorder %s124, 0
      %p707 = por %p705, %p706
      %s709 = sadd.s32 %s708, 1
      %p712 = scmp.eq.s32.totalorder %s118, 1
      %p713 = scmp.ne.s32.totalorder %s708, %s710
      %p714 = scmp.eq.s32.totalorder %s118, 0
      %p715 = por %p713, %p714
      %p716 = scmp.ne.s32.totalorder %s708, %s710
      %p717 = scmp.eq.s32.totalorder %s123, 1
      %p718 = por %p716, %p717
      %p719 = scmp.ne.s32.totalorder %s710, %s711
      %p720 = scmp.eq.s32.totalorder %s123, 0
      %p721 = por %p719, %p720
      %p722 = scmp.ne.s32.totalorder %s710, %s711
      %p723 = scmp.eq.s32.totalorder %s124, 1
      %p724 = por %p722, %p723
      %p726 = scmp.ne.s32.totalorder %s711, %s725
      %p727 = scmp.eq.s32.totalorder %s124, 0
      %p728 = por %p726, %p727
      %s730 = sadd.s32 %s729, 1
      %p733 = scmp.eq.s32.totalorder %s118, 1
      %p734 = scmp.ne.s32.totalorder %s729, %s731
      %p735 = scmp.eq.s32.totalorder %s118, 0
      %p736 = por %p734, %p735
      %p737 = scmp.ne.s32.totalorder %s729, %s731
      %p738 = scmp.eq.s32.totalorder %s123, 1
      %p739 = por %p737, %p738
      %p740 = scmp.ne.s32.totalorder %s731, %s732
      %p741 = scmp.eq.s32.totalorder %s123, 0
      %p742 = por %p740, %p741
      %p743 = scmp.ne.s32.totalorder %s731, %s732
      %p744 = scmp.eq.s32.totalorder %s124, 1
      %p745 = por %p743, %p744
      %p747 = scmp.ne.s32.totalorder %s732, %s746
      %p748 = scmp.eq.s32.totalorder %s124, 0
      %p749 = por %p747, %p748
      %s751 = sadd.s32 %s750, 1
      %p754 = scmp.eq.s32.totalorder %s118, 1
      %p755 = scmp.ne.s32.totalorder %s750, %s752
      %p756 = scmp.eq.s32.totalorder %s118, 0
      %p757 = por %p755, %p756
      %p758 = scmp.ne.s32.totalorder %s750, %s752
      %p759 = scmp.eq.s32.totalorder %s123, 1
      %p760 = por %p758, %p759
      %p761 = scmp.ne.s32.totalorder %s752, %s753
      %p762 = scmp.eq.s32.totalorder %s123, 0
      %p763 = por %p761, %p762
      %p764 = scmp.ne.s32.totalorder %s752, %s753
      %p765 = scmp.eq.s32.totalorder %s124, 1
      %p766 = por %p764, %p765
      %p768 = scmp.ne.s32.totalorder %s753, %s767
      %p769 = scmp.eq.s32.totalorder %s124, 0
      %p770 = por %p768, %p769
      %s772 = sadd.s32 %s771, 1
      %p775 = scmp.eq.s32.totalorder %s118, 1
      %p776 = scmp.ne.s32.totalorder %s771, %s773
      %p777 = scmp.eq.s32.totalorder %s118, 0
      %p778 = por %p776, %p777
      %p779 = scmp.ne.s32.totalorder %s771, %s773
      %p780 = scmp.eq.s32.totalorder %s123, 1
      %p781 = por %p779, %p780
      %p782 = scmp.ne.s32.totalorder %s773, %s774
      %p783 = scmp.eq.s32.totalorder %s123, 0
      %p784 = por %p782, %p783
      %p785 = scmp.ne.s32.totalorder %s773, %s774
      %p786 = scmp.eq.s32.totalorder %s124, 1
      %p787 = por %p785, %p786
      %p789 = scmp.ne.s32.totalorder %s774, %s788
      %p790 = scmp.eq.s32.totalorder %s124, 0
      %p791 = por %p789, %p790
      %s793 = sadd.s32 %s792, 1
      %p796 = scmp.eq.s32.totalorder %s118, 1
      %p797 = scmp.ne.s32.totalorder %s792, %s794
      %p798 = scmp.eq.s32.totalorder %s118, 0
      %p799 = por %p797, %p798
      %p800 = scmp.ne.s32.totalorder %s792, %s794
      %p801 = scmp.eq.s32.totalorder %s123, 1
      %p802 = por %p800, %p801
      %p803 = scmp.ne.s32.totalorder %s794, %s795
      %p804 = scmp.eq.s32.totalorder %s123, 0
      %p805 = por %p803, %p804
      %p806 = scmp.ne.s32.totalorder %s794, %s795
      %p807 = scmp.eq.s32.totalorder %s124, 1
      %p808 = por %p806, %p807
      %p810 = scmp.ne.s32.totalorder %s795, %s809
      %p811 = scmp.eq.s32.totalorder %s124, 0
      %p812 = por %p810, %p811
      %s814 = sadd.s32 %s813, 1
      %p817 = scmp.eq.s32.totalorder %s118, 1
      %p818 = scmp.ne.s32.totalorder %s813, %s815
      %p819 = scmp.eq.s32.totalorder %s118, 0
      %p820 = por %p818, %p819
      %p821 = scmp.ne.s32.totalorder %s813, %s815
      %p822 = scmp.eq.s32.totalorder %s123, 1
      %p823 = por %p821, %p822
      %p824 = scmp.ne.s32.totalorder %s815, %s816
      %p825 = scmp.eq.s32.totalorder %s123, 0
      %p826 = por %p824, %p825
      %p827 = scmp.ne.s32.totalorder %s815, %s816
      %p828 = scmp.eq.s32.totalorder %s124, 1
      %p829 = por %p827, %p828
      %p831 = scmp.ne.s32.totalorder %s816, %s830
      %p832 = scmp.eq.s32.totalorder %s124, 0
      %p833 = por %p831, %p832
      %s835 = sadd.s32 %s834, 1
      %p838 = scmp.eq.s32.totalorder %s118, 1
      %p839 = scmp.ne.s32.totalorder %s834, %s836
      %p840 = scmp.eq.s32.totalorder %s118, 0
      %p841 = por %p839, %p840
      %p842 = scmp.ne.s32.totalorder %s834, %s836
      %p843 = scmp.eq.s32.totalorder %s123, 1
      %p844 = por %p842, %p843
      %p845 = scmp.ne.s32.totalorder %s836, %s837
      %p846 = scmp.eq.s32.totalorder %s123, 0
      %p847 = por %p845, %p846
      %p848 = scmp.ne.s32.totalorder %s836, %s837
      %p849 = scmp.eq.s32.totalorder %s124, 1
      %p850 = por %p848, %p849
      %p852 = scmp.ne.s32.totalorder %s837, %s851
      %p853 = scmp.eq.s32.totalorder %s124, 0
      %p854 = por %p852, %p853
      %s856 = sadd.s32 %s855, 1
      %p859 = scmp.eq.s32.totalorder %s118, 1
      %p860 = scmp.ne.s32.totalorder %s855, %s857
      %p861 = scmp.eq.s32.totalorder %s118, 0
      %p862 = por %p860, %p861
      %p863 = scmp.ne.s32.totalorder %s855, %s857
      %p864 = scmp.eq.s32.totalorder %s123, 1
      %p865 = por %p863, %p864
      %p866 = scmp.ne.s32.totalorder %s857, %s858
      %p867 = scmp.eq.s32.totalorder %s123, 0
      %p868 = por %p866, %p867
      %p869 = scmp.ne.s32.totalorder %s857, %s858
      %p870 = scmp.eq.s32.totalorder %s124, 1
      %p871 = por %p869, %p870
      %p873 = scmp.ne.s32.totalorder %s858, %s872
      %p874 = scmp.eq.s32.totalorder %s124, 0
      %p875 = por %p873, %p874
      %s877 = sadd.s32 %s876, 1
      %p880 = scmp.eq.s32.totalorder %s118, 1
      %p881 = scmp.ne.s32.totalorder %s876, %s878
      %p882 = scmp.eq.s32.totalorder %s118, 0
      %p883 = por %p881, %p882
      %p884 = scmp.ne.s32.totalorder %s876, %s878
      %p885 = scmp.eq.s32.totalorder %s123, 1
      %p886 = por %p884, %p885
      %p887 = scmp.ne.s32.totalorder %s878, %s879
      %p888 = scmp.eq.s32.totalorder %s123, 0
      %p889 = por %p887, %p888
      %p890 = scmp.ne.s32.totalorder %s878, %s879
      %p891 = scmp.eq.s32.totalorder %s124, 1
      %p892 = por %p890, %p891
      %p894 = scmp.ne.s32.totalorder %s879, %s893
      %p895 = scmp.eq.s32.totalorder %s124, 0
      %p896 = por %p894, %p895
      %s898 = sadd.s32 %s897, 1
      %p901 = scmp.eq.s32.totalorder %s118, 1
      %p902 = scmp.ne.s32.totalorder %s897, %s899
      %p903 = scmp.eq.s32.totalorder %s118, 0
      %p904 = por %p902, %p903
      %p905 = scmp.ne.s32.totalorder %s897, %s899
      %p906 = scmp.eq.s32.totalorder %s123, 1
      %p907 = por %p905, %p906
      %p908 = scmp.ne.s32.totalorder %s899, %s900
      %p909 = scmp.eq.s32.totalorder %s123, 0
      %p910 = por %p908, %p909
      %p911 = scmp.ne.s32.totalorder %s899, %s900
      %p912 = scmp.eq.s32.totalorder %s124, 1
      %p913 = por %p911, %p912
      %p915 = scmp.ne.s32.totalorder %s900, %s914
      %p916 = scmp.eq.s32.totalorder %s124, 0
      %p917 = por %p915, %p916
      %s919 = sadd.s32 %s918, 1
      %p922 = scmp.eq.s32.totalorder %s118, 1
      %p923 = scmp.ne.s32.totalorder %s918, %s920
      %p924 = scmp.eq.s32.totalorder %s118, 0
      %p925 = por %p923, %p924
      %p926 = scmp.ne.s32.totalorder %s918, %s920
      %p927 = scmp.eq.s32.totalorder %s123, 1
      %p928 = por %p926, %p927
      %p929 = scmp.ne.s32.totalorder %s920, %s921
      %p930 = scmp.eq.s32.totalorder %s123, 0
      %p931 = por %p929, %p930
      %p932 = scmp.ne.s32.totalorder %s920, %s921
      %p933 = scmp.eq.s32.totalorder %s124, 1
      %p934 = por %p932, %p933
      %p936 = scmp.ne.s32.totalorder %s921, %s935
      %p937 = scmp.eq.s32.totalorder %s124, 0
      %p938 = por %p936, %p937
      %s940 = sadd.s32 %s939, 1
      %p943 = scmp.eq.s32.totalorder %s118, 1
      %p944 = scmp.ne.s32.totalorder %s939, %s941
      %p945 = scmp.eq.s32.totalorder %s118, 0
      %p946 = por %p944, %p945
      %p947 = scmp.ne.s32.totalorder %s939, %s941
      %p948 = scmp.eq.s32.totalorder %s123, 1
      %p949 = por %p947, %p948
      %p950 = scmp.ne.s32.totalorder %s941, %s942
      %p951 = scmp.eq.s32.totalorder %s123, 0
      %p952 = por %p950, %p951
      %p953 = scmp.ne.s32.totalorder %s941, %s942
      %p954 = scmp.eq.s32.totalorder %s124, 1
      %p955 = por %p953, %p954
      %p957 = scmp.ne.s32.totalorder %s942, %s956
      %p958 = scmp.eq.s32.totalorder %s124, 0
      %p959 = por %p957, %p958
      %s960 = ssub.s32 %s118, %s125
      %p961 = scmp.eq.s32.totalorder %s960, 0
      %s963 = sadd.s32 %s962, 1
      %s964 = scalar_select %p961, %s962, %s963
      %p967 = pneg %p961
      %p968 = scmp.eq.s32.totalorder %s118, 1
      %p969 = por %p967, %p968
      %p970 = scmp.ne.s32.totalorder %s962, %s965
      %p971 = scmp.eq.s32.totalorder %s118, 0
      %p972 = por %p970, %p971
      %p973 = scmp.ne.s32.totalorder %s962, %s965
      %p974 = scmp.eq.s32.totalorder %s123, 1
      %p975 = por %p973, %p974
      %p976 = scmp.ne.s32.totalorder %s965, %s966
      %p977 = scmp.eq.s32.totalorder %s123, 0
      %p978 = por %p976, %p977
      %p979 = scmp.ne.s32.totalorder %s965, %s966
      %p980 = scmp.eq.s32.totalorder %s124, 1
      %p981 = por %p979, %p980
      %p983 = scmp.ne.s32.totalorder %s966, %s982
      %p984 = scmp.eq.s32.totalorder %s124, 0
      %p985 = por %p983, %p984
      %s986 = ssub.s32 %s118, %s125
      %p987 = scmp.eq.s32.totalorder %s986, 0
      %s989 = sadd.s32 %s988, 1
      %s990 = scalar_select %p987, %s988, %s989
      %p993 = pneg %p987
      %p994 = scmp.eq.s32.totalorder %s118, 1
      %p995 = por %p993, %p994
      %p996 = scmp.ne.s32.totalorder %s988, %s991
      %p997 = scmp.eq.s32.totalorder %s118, 0
      %p998 = por %p996, %p997
      %p999 = scmp.ne.s32.totalorder %s988, %s991
      %p1000 = scmp.eq.s32.totalorder %s123, 1
      %p1001 = por %p999, %p1000
      %p1002 = scmp.ne.s32.totalorder %s991, %s992
      %p1003 = scmp.eq.s32.totalorder %s123, 0
      %p1004 = por %p1002, %p1003
      %p1005 = scmp.ne.s32.totalorder %s991, %s992
      %p1006 = scmp.eq.s32.totalorder %s124, 1
      %p1007 = por %p1005, %p1006
      %p1009 = scmp.ne.s32.totalorder %s992, %s1008
      %p1010 = scmp.eq.s32.totalorder %s124, 0
      %p1011 = por %p1009, %p1010
      %p1012 = scmp.le.s32.totalorder 1, %s118
      %p1013 = scmp.lt.s32.totalorder %s118, 3
      %p1014 = pnand %p1012, %p1013
      %p1015 = pneg %p1014
      // Predicated region
      $region9: #{set_prediction_forward.1} parent=5 // pred_check
        _
      $region10: #{set_prediction_forward.1} parent=5 // pred_check_branch
        %1017 = sbr.rel (%p1014) target = $region12
      $region11: #{set_prediction_forward.1} parent=5 // pred_region
        %s1018 = ssub.s32 %s118, 1
        // Predicated region
        $region13: #{set_prediction_forward.1} parent=11 // pred_check
          %p1019 = pneg %p217
        $region14: #{set_prediction_forward.1} parent=11 // pred_check_branch
          %1021 = sbr.rel (%p1019) target = $region16
        $region15: #{set_prediction_forward.1} parent=11 // pred_region
          %s1023 = ssub.s32 256, 256
          %1024 = vsyncadd [#allocation9], %s1023
          %s1025 = sshll.u32 [#allocation8], 4
          %s1026 = int_to_ptr.vmem [resolvable:$true] %s1025
          %1031 = dma.hbm_to_vmem [thread:$0]  %s7, 256, %s1026, [#allocation9], 128, 128, 8
        $region16: #{set_prediction_forward.1} parent=11 // pred_fallthru
          _
        // Predicated region
        $region17: #{set_prediction_forward.1} parent=11 // pred_check
          %p1032 = pneg %p238
        $region18: #{set_prediction_forward.1} parent=11 // pred_check_branch
          %1034 = sbr.rel (%p1032) target = $region20
        $region19: #{set_prediction_forward.1} parent=11 // pred_region
          %s1036 = ssub.s32 128, 128
          %1037 = vsyncadd [#allocation9], %s1036
          %s1039 = sshll.u32 [#allocation10], 4
          %s1040 = int_to_ptr.vmem [resolvable:$true] %s1039
          %1042 = dma.hbm_to_vmem [thread:$0]  %s9, 128, %s1040, [#allocation9]
        $region20: #{set_prediction_forward.1} parent=11 // pred_fallthru
          _
        // Predicated region
        $region21: #{set_prediction_forward.1} parent=11 // pred_check
          %p1043 = pneg %p259
        $region22: #{set_prediction_forward.1} parent=11 // pred_check_branch
          %1045 = sbr.rel (%p1043) target = $region24
        $region23: #{set_prediction_forward.1} parent=11 // pred_region
          %s1047 = ssub.s32 16, 16
          %1048 = vsyncadd [#allocation12], %s1047
          %s1050 = sshll.u32 [#allocation11], 4
          %s1051 = int_to_ptr.vmem [resolvable:$true] %s1050
          %1053 = dma.hbm_to_vmem [thread:$0]  %s11, 16, %s1051, [#allocation12]
        $region24: #{set_prediction_forward.1} parent=11 // pred_fallthru
          _
        // Predicated region
        $region25: #{set_prediction_forward.1} parent=11 // pred_check
          %p1054 = pneg %p280
        $region26: #{set_prediction_forward.1} parent=11 // pred_check_branch
          %1056 = sbr.rel (%p1054) target = $region28
        $region27: #{set_prediction_forward.1} parent=11 // pred_region
          %s1058 = ssub.s32 16, 16
          %1059 = vsyncadd [#allocation12], %s1058
          %s1061 = sshll.u32 [#allocation13], 4
          %s1062 = int_to_ptr.vmem [resolvable:$true] %s1061
          %1064 = dma.hbm_to_vmem [thread:$0]  %s13, 16, %s1062, [#allocation12]
        $region28: #{set_prediction_forward.1} parent=11 // pred_fallthru
          _
        // Predicated region
        $region29: #{set_prediction_forward.1} parent=11 // pred_check
          %p1065 = pneg %p301
        $region30: #{set_prediction_forward.1} parent=11 // pred_check_branch
          %1067 = sbr.rel (%p1065) target = $region32
        $region31: #{set_prediction_forward.1} parent=11 // pred_region
          %s1069 = ssub.s32 16, 16
          %1070 = vsyncadd [#allocation15], %s1069
          %s1072 = sshll.u32 [#allocation14], 4
          %s1073 = int_to_ptr.vmem [resolvable:$true] %s1072
          %1075 = dma.hbm_to_vmem [thread:$0]  %s15, 16, %s1073, [#allocation15]
        $region32: #{set_prediction_forward.1} parent=11 // pred_fallthru
          _
        // Predicated region
        $region33: #{set_prediction_forward.1} parent=11 // pred_check
          %p1076 = pneg %p322
        $region34: #{set_prediction_forward.1} parent=11 // pred_check_branch
          %1078 = sbr.rel (%p1076) target = $region36
        $region35: #{set_prediction_forward.1} parent=11 // pred_region
          %s1080 = ssub.s32 16, 16
          %1081 = vsyncadd [#allocation15], %s1080
          %s1083 = sshll.u32 [#allocation16], 4
          %s1084 = int_to_ptr.vmem [resolvable:$true] %s1083
          %1086 = dma.hbm_to_vmem [thread:$0]  %s17, 16, %s1084, [#allocation15]
        $region36: #{set_prediction_forward.1} parent=11 // pred_fallthru
          _
        // Predicated region
        $region37: #{set_prediction_forward.1} parent=11 // pred_check
          %p1087 = pneg %p343
        $region38: #{set_prediction_forward.1} parent=11 // pred_check_branch
          %1089 = sbr.rel (%p1087) target = $region40
        $region39: #{set_prediction_forward.1} parent=11 // pred_region
          %s1091 = ssub.s32 256, 256
          %1092 = vsyncadd [#allocation18], %s1091
          %s1093 = sshll.u32 [#allocation17], 4
          %s1094 = int_to_ptr.vmem [resolvable:$true] %s1093
          %1099 = dma.hbm_to_vmem [thread:$0]  %s19, 256, %s1094, [#allocation18], 64, 64, 4
        $region40: #{set_prediction_forward.1} parent=11 // pred_fallthru
          _
        // Predicated region
        $region41: #{set_prediction_forward.1} parent=11 // pred_check
          %p1100 = pneg %p364
        $region42: #{set_prediction_forward.1} parent=11 // pred_check_branch
          %1102 = sbr.rel (%p1100) target = $region44
        $region43: #{set_prediction_forward.1} parent=11 // pred_region
          %s1104 = ssub.s32 128, 128
          %1105 = vsyncadd [#allocation18], %s1104
          %s1106 = sshll.u32 [#allocation19], 4
          %s1107 = int_to_ptr.vmem [resolvable:$true] %s1106
          %1112 = dma.hbm_to_vmem [thread:$0]  %s21, 128, %s1107, [#allocation18], 64, 64, 4
        $region44: #{set_prediction_forward.1} parent=11 // pred_fallthru
          _
        // Predicated region
        $region45: #{set_prediction_forward.1} parent=11 // pred_check
          %p1113 = pneg %p385
        $region46: #{set_prediction_forward.1} parent=11 // pred_check_branch
          %1115 = sbr.rel (%p1113) target = $region48
        $region47: #{set_prediction_forward.1} parent=11 // pred_region
          %s1117 = ssub.s32 256, 256
          %1118 = vsyncadd [#allocation21], %s1117
          %s1119 = sshll.u32 [#allocation20], 4
          %s1120 = int_to_ptr.vmem [resolvable:$true] %s1119
          %1125 = dma.hbm_to_vmem [thread:$0]  %s23, 256, %s1120, [#allocation21], 64, 64, 4
        $region48: #{set_prediction_forward.1} parent=11 // pred_fallthru
          _
        // Predicated region
        $region49: #{set_prediction_forward.1} parent=11 // pred_check
          %p1126 = pneg %p406
        $region50: #{set_prediction_forward.1} parent=11 // pred_check_branch
          %1128 = sbr.rel (%p1126) target = $region52
        $region51: #{set_prediction_forward.1} parent=11 // pred_region
          %s1130 = ssub.s32 16, 16
          %1131 = vsyncadd [#allocation21], %s1130
          %s1133 = sshll.u32 [#allocation22], 4
          %s1134 = int_to_ptr.vmem [resolvable:$true] %s1133
          %1136 = dma.hbm_to_vmem [thread:$0]  %s25, 16, %s1134, [#allocation21]
        $region52: #{set_prediction_forward.1} parent=11 // pred_fallthru
          _
        // Predicated region
        $region53: #{set_prediction_forward.1} parent=11 // pred_check
          %p1137 = pneg %p427
        $region54: #{set_prediction_forward.1} parent=11 // pred_check_branch
          %1139 = sbr.rel (%p1137) target = $region56
        $region55: #{set_prediction_forward.1} parent=11 // pred_region
          %s1141 = ssub.s32 16, 16
          %1142 = vsyncadd [#allocation24], %s1141
          %s1144 = sshll.u32 [#allocation23], 4
          %s1145 = int_to_ptr.vmem [resolvable:$true] %s1144
          %1147 = dma.hbm_to_vmem [thread:$0]  %s27, 16, %s1145, [#allocation24]
        $region56: #{set_prediction_forward.1} parent=11 // pred_fallthru
          _
        // Predicated region
        $region57: #{set_prediction_forward.1} parent=11 // pred_check
          %p1148 = pneg %p448
        $region58: #{set_prediction_forward.1} parent=11 // pred_check_branch
          %1150 = sbr.rel (%p1148) target = $region60
        $region59: #{set_prediction_forward.1} parent=11 // pred_region
          %s1152 = ssub.s32 256, 256
          %1153 = vsyncadd [#allocation24], %s1152
          %s1154 = sshll.u32 [#allocation25], 4
          %s1155 = int_to_ptr.vmem [resolvable:$true] %s1154
          %1160 = dma.hbm_to_vmem [thread:$0]  %s29, 256, %s1155, [#allocation24], 64, 64, 4
        $region60: #{set_prediction_forward.1} parent=11 // pred_fallthru
          _
        // Predicated region
        $region61: #{set_prediction_forward.1} parent=11 // pred_check
          %p1161 = pneg %p469
        $region62: #{set_prediction_forward.1} parent=11 // pred_check_branch
          %1163 = sbr.rel (%p1161) target = $region64
        $region63: #{set_prediction_forward.1} parent=11 // pred_region
          %s1165 = ssub.s32 16, 16
          %1166 = vsyncadd [#allocation27], %s1165
          %s1168 = sshll.u32 [#allocation26], 4
          %s1169 = int_to_ptr.vmem [resolvable:$true] %s1168
          %1171 = dma.hbm_to_vmem [thread:$0]  %s31, 16, %s1169, [#allocation27]
        $region64: #{set_prediction_forward.1} parent=11 // pred_fallthru
          _
        // Predicated region
        $region65: #{set_prediction_forward.1} parent=11 // pred_check
          %p1172 = pneg %p490
        $region66: #{set_prediction_forward.1} parent=11 // pred_check_branch
          %1174 = sbr.rel (%p1172) target = $region68
        $region67: #{set_prediction_forward.1} parent=11 // pred_region
          %s1176 = ssub.s32 1024, 1024
          %1177 = vsyncadd [#allocation27], %s1176
          %s1178 = sshll.u32 [#allocation28], 4
          %s1179 = int_to_ptr.vmem [resolvable:$true] %s1178
          %1184 = dma.hbm_to_vmem [thread:$0]  %s33, 1024, %s1179, [#allocation27], 64, 64, 4
        $region68: #{set_prediction_forward.1} parent=11 // pred_fallthru
          _
        // Predicated region
        $region69: #{set_prediction_forward.1} parent=11 // pred_check
          %p1185 = pneg %p511
        $region70: #{set_prediction_forward.1} parent=11 // pred_check_branch
          %1187 = sbr.rel (%p1185) target = $region72
        $region71: #{set_prediction_forward.1} parent=11 // pred_region
          %s1189 = ssub.s32 16, 16
          %1190 = vsyncadd [#allocation30], %s1189
          %s1192 = sshll.u32 [#allocation29], 4
          %s1193 = int_to_ptr.vmem [resolvable:$true] %s1192
          %1195 = dma.hbm_to_vmem [thread:$0]  %s35, 16, %s1193, [#allocation30]
        $region72: #{set_prediction_forward.1} parent=11 // pred_fallthru
          _
        // Predicated region
        $region73: #{set_prediction_forward.1} parent=11 // pred_check
          %p1196 = pneg %p532
        $region74: #{set_prediction_forward.1} parent=11 // pred_check_branch
          %1198 = sbr.rel (%p1196) target = $region76
        $region75: #{set_prediction_forward.1} parent=11 // pred_region
          %s1200 = ssub.s32 64, 64
          %1201 = vsyncadd [#allocation30], %s1200
          %s1202 = sshll.u32 [#allocation31], 4
          %s1203 = int_to_ptr.vmem [resolvable:$true] %s1202
          %1208 = dma.hbm_to_vmem [thread:$0]  %s37, 64, %s1203, [#allocation30], 16, 16, 1
        $region76: #{set_prediction_forward.1} parent=11 // pred_fallthru
          _
        // Predicated region
        $region77: #{set_prediction_forward.1} parent=11 // pred_check
          %p1209 = pneg %p553
        $region78: #{set_prediction_forward.1} parent=11 // pred_check_branch
          %1211 = sbr.rel (%p1209) target = $region80
        $region79: #{set_prediction_forward.1} parent=11 // pred_region
          %s1213 = ssub.s32 64, 64
          %1214 = vsyncadd [#allocation33], %s1213
          %s1215 = sshll.u32 [#allocation32], 4
          %s1216 = int_to_ptr.vmem [resolvable:$true] %s1215
          %1221 = dma.hbm_to_vmem [thread:$0]  %s39, 64, %s1216, [#allocation33], 16, 16, 1
        $region80: #{set_prediction_forward.1} parent=11 // pred_fallthru
          _
        // Predicated region
        $region81: #{set_prediction_forward.1} parent=11 // pred_check
          %p1222 = pneg %p574
        $region82: #{set_prediction_forward.1} parent=11 // pred_check_branch
          %1224 = sbr.rel (%p1222) target = $region84
        $region83: #{set_prediction_forward.1} parent=11 // pred_region
          %s1226 = ssub.s32 64, 64
          %1227 = vsyncadd [#allocation33], %s1226
          %s1228 = sshll.u32 [#allocation34], 4
          %s1229 = int_to_ptr.vmem [resolvable:$true] %s1228
          %1234 = dma.hbm_to_vmem [thread:$0]  %s41, 64, %s1229, [#allocation33], 16, 16, 1
        $region84: #{set_prediction_forward.1} parent=11 // pred_fallthru
          _
        // Predicated region
        $region85: #{set_prediction_forward.1} parent=11 // pred_check
          %p1235 = pneg %p595
        $region86: #{set_prediction_forward.1} parent=11 // pred_check_branch
          %1237 = sbr.rel (%p1235) target = $region88
        $region87: #{set_prediction_forward.1} parent=11 // pred_region
          %s1239 = ssub.s32 64, 64
          %1240 = vsyncadd [#allocation36], %s1239
          %s1241 = sshll.u32 [#allocation35], 4
          %s1242 = int_to_ptr.vmem [resolvable:$true] %s1241
          %1247 = dma.hbm_to_vmem [thread:$0]  %s43, 64, %s1242, [#allocation36], 16, 16, 1
        $region88: #{set_prediction_forward.1} parent=11 // pred_fallthru
          _
        // Predicated region
        $region89: #{set_prediction_forward.1} parent=11 // pred_check
          %p1248 = pneg %p616
        $region90: #{set_prediction_forward.1} parent=11 // pred_check_branch
          %1250 = sbr.rel (%p1248) target = $region92
        $region91: #{set_prediction_forward.1} parent=11 // pred_region
          %s1252 = ssub.s32 1024, 1024
          %1253 = vsyncadd [#allocation36], %s1252
          %s1254 = sshll.u32 [#allocation37], 4
          %s1255 = int_to_ptr.vmem [resolvable:$true] %s1254
          %1260 = dma.hbm_to_vmem [thread:$0]  %s45, 1024, %s1255, [#allocation36], 64, 64, 4
        $region92: #{set_prediction_forward.1} parent=11 // pred_fallthru
          _
        // Predicated region
        $region93: #{set_prediction_forward.1} parent=11 // pred_check
          %p1261 = pneg %p637
        $region94: #{set_prediction_forward.1} parent=11 // pred_check_branch
          %1263 = sbr.rel (%p1261) target = $region96
        $region95: #{set_prediction_forward.1} parent=11 // pred_region
          %s1265 = ssub.s32 1024, 1024
          %1266 = vsyncadd [#allocation39], %s1265
          %s1267 = sshll.u32 [#allocation38], 4
          %s1268 = int_to_ptr.vmem [resolvable:$true] %s1267
          %1273 = dma.hbm_to_vmem [thread:$0]  %s47, 1024, %s1268, [#allocation39], 64, 64, 4
        $region96: #{set_prediction_forward.1} parent=11 // pred_fallthru
          _
        // Predicated region
        $region97: #{set_prediction_forward.1} parent=11 // pred_check
          %p1274 = pneg %p658
        $region98: #{set_prediction_forward.1} parent=11 // pred_check_branch
          %1276 = sbr.rel (%p1274) target = $region100
        $region99: #{set_prediction_forward.1} parent=11 // pred_region
          %s1278 = ssub.s32 1024, 1024
          %1279 = vsyncadd [#allocation39], %s1278
          %s1280 = sshll.u32 [#allocation40], 4
          %s1281 = int_to_ptr.vmem [resolvable:$true] %s1280
          %1286 = dma.hbm_to_vmem [thread:$0]  %s49, 1024, %s1281, [#allocation39], 64, 64, 4
        $region100: #{set_prediction_forward.1} parent=11 // pred_fallthru
          _
        // Predicated region
        $region101: #{set_prediction_forward.1} parent=11 // pred_check
          %p1287 = pneg %p679
        $region102: #{set_prediction_forward.1} parent=11 // pred_check_branch
          %1289 = sbr.rel (%p1287) target = $region104
        $region103: #{set_prediction_forward.1} parent=11 // pred_region
          %s1291 = ssub.s32 64, 64
          %1292 = vsyncadd [#allocation42], %s1291
          %s1293 = sshll.u32 [#allocation41], 4
          %s1294 = int_to_ptr.vmem [resolvable:$true] %s1293
          %1299 = dma.hbm_to_vmem [thread:$0]  %s51, 64, %s1294, [#allocation42], 16, 16, 1
        $region104: #{set_prediction_forward.1} parent=11 // pred_fallthru
          _
        // Predicated region
        $region105: #{set_prediction_forward.1} parent=11 // pred_check
          %p1300 = pneg %p700
        $region106: #{set_prediction_forward.1} parent=11 // pred_check_branch
          %1302 = sbr.rel (%p1300) target = $region108
        $region107: #{set_prediction_forward.1} parent=11 // pred_region
          %s1304 = ssub.s32 64, 64
          %1305 = vsyncadd [#allocation42], %s1304
          %s1306 = sshll.u32 [#allocation43], 4
          %s1307 = int_to_ptr.vmem [resolvable:$true] %s1306
          %1312 = dma.hbm_to_vmem [thread:$0]  %s53, 64, %s1307, [#allocation42], 16, 16, 1
        $region108: #{set_prediction_forward.1} parent=11 // pred_fallthru
          _
        // Predicated region
        $region109: #{set_prediction_forward.1} parent=11 // pred_check
          %p1313 = pneg %p721
        $region110: #{set_prediction_forward.1} parent=11 // pred_check_branch
          %1315 = sbr.rel (%p1313) target = $region112
        $region111: #{set_prediction_forward.1} parent=11 // pred_region
          %s1317 = ssub.s32 1024, 1024
          %1318 = vsyncadd [#allocation45], %s1317
          %s1319 = sshll.u32 [#allocation44], 4
          %s1320 = int_to_ptr.vmem [resolvable:$true] %s1319
          %1325 = dma.hbm_to_vmem [thread:$0]  %s55, 1024, %s1320, [#allocation45], 64, 64, 4
        $region112: #{set_prediction_forward.1} parent=11 // pred_fallthru
          _
        // Predicated region
        $region113: #{set_prediction_forward.1} parent=11 // pred_check
          %p1326 = pneg %p742
        $region114: #{set_prediction_forward.1} parent=11 // pred_check_branch
          %1328 = sbr.rel (%p1326) target = $region116
        $region115: #{set_prediction_forward.1} parent=11 // pred_region
          %s1330 = ssub.s32 64, 64
          %1331 = vsyncadd [#allocation45], %s1330
          %s1332 = sshll.u32 [#allocation46], 4
          %s1333 = int_to_ptr.vmem [resolvable:$true] %s1332
          %1338 = dma.hbm_to_vmem [thread:$0]  %s57, 64, %s1333, [#allocation45], 16, 16, 1
        $region116: #{set_prediction_forward.1} parent=11 // pred_fallthru
          _
        // Predicated region
        $region117: #{set_prediction_forward.1} parent=11 // pred_check
          %p1339 = pneg %p763
        $region118: #{set_prediction_forward.1} parent=11 // pred_check_branch
          %1341 = sbr.rel (%p1339) target = $region120
        $region119: #{set_prediction_forward.1} parent=11 // pred_region
          %s1343 = ssub.s32 4096, 4096
          %1344 = vsyncadd [#allocation48], %s1343
          %s1345 = sshll.u32 [#allocation47], 4
          %s1346 = int_to_ptr.vmem [resolvable:$true] %s1345
          %1351 = dma.hbm_to_vmem [thread:$0]  %s59, 4096, %s1346, [#allocation48], 64, 64, 4
        $region120: #{set_prediction_forward.1} parent=11 // pred_fallthru
          _
        // Predicated region
        $region121: #{set_prediction_forward.1} parent=11 // pred_check
          %p1352 = pneg %p784
        $region122: #{set_prediction_forward.1} parent=11 // pred_check_branch
          %1354 = sbr.rel (%p1352) target = $region124
        $region123: #{set_prediction_forward.1} parent=11 // pred_region
          %s1356 = ssub.s32 64, 64
          %1357 = vsyncadd [#allocation48], %s1356
          %s1358 = sshll.u32 [#allocation49], 4
          %s1359 = int_to_ptr.vmem [resolvable:$true] %s1358
          %1364 = dma.hbm_to_vmem [thread:$0]  %s61, 64, %s1359, [#allocation48], 16, 16, 1
        $region124: #{set_prediction_forward.1} parent=11 // pred_fallthru
          _
        // Predicated region
        $region125: #{set_prediction_forward.1} parent=11 // pred_check
          %p1365 = pneg %p805
        $region126: #{set_prediction_forward.1} parent=11 // pred_check_branch
          %1367 = sbr.rel (%p1365) target = $region128
        $region127: #{set_prediction_forward.1} parent=11 // pred_region
          %s1369 = ssub.s32 16, 16
          %1370 = vsyncadd [#allocation51], %s1369
          %s1372 = sshll.u32 [#allocation50], 4
          %s1373 = int_to_ptr.vmem [resolvable:$true] %s1372
          %1375 = dma.hbm_to_vmem [thread:$0]  %s63, 16, %s1373, [#allocation51]
        $region128: #{set_prediction_forward.1} parent=11 // pred_fallthru
          _
        // Predicated region
        $region129: #{set_prediction_forward.1} parent=11 // pred_check
          %p1376 = pneg %p826
        $region130: #{set_prediction_forward.1} parent=11 // pred_check_branch
          %1378 = sbr.rel (%p1376) target = $region132
        $region131: #{set_prediction_forward.1} parent=11 // pred_region
          %s1380 = ssub.s32 16, 16
          %1381 = vsyncadd [#allocation51], %s1380
          %s1383 = sshll.u32 [#allocation52], 4
          %s1384 = int_to_ptr.vmem [resolvable:$true] %s1383
          %1386 = dma.hbm_to_vmem [thread:$0]  %s65, 16, %s1384, [#allocation51]
        $region132: #{set_prediction_forward.1} parent=11 // pred_fallthru
          _
        // Predicated region
        $region133: #{set_prediction_forward.1} parent=11 // pred_check
          %p1387 = pneg %p847
        $region134: #{set_prediction_forward.1} parent=11 // pred_check_branch
          %1389 = sbr.rel (%p1387) target = $region136
        $region135: #{set_prediction_forward.1} parent=11 // pred_region
          %s1391 = ssub.s32 256, 256
          %1392 = vsyncadd [#allocation54], %s1391
          %s1393 = sshll.u32 [#allocation53], 4
          %s1394 = int_to_ptr.vmem [resolvable:$true] %s1393
          %1399 = dma.hbm_to_vmem [thread:$0]  %s67, 256, %s1394, [#allocation54], 64, 64, 4
        $region136: #{set_prediction_forward.1} parent=11 // pred_fallthru
          _
        // Predicated region
        $region137: #{set_prediction_forward.1} parent=11 // pred_check
          %p1400 = pneg %p868
        $region138: #{set_prediction_forward.1} parent=11 // pred_check_branch
          %1402 = sbr.rel (%p1400) target = $region140
        $region139: #{set_prediction_forward.1} parent=11 // pred_region
          %s1404 = ssub.s32 16, 16
          %1405 = vsyncadd [#allocation54], %s1404
          %s1407 = sshll.u32 [#allocation55], 4
          %s1408 = int_to_ptr.vmem [resolvable:$true] %s1407
          %1410 = dma.hbm_to_vmem [thread:$0]  %s69, 16, %s1408, [#allocation54]
        $region140: #{set_prediction_forward.1} parent=11 // pred_fallthru
          _
        // Predicated region
        $region141: #{set_prediction_forward.1} parent=11 // pred_check
          %p1411 = pneg %p889
        $region142: #{set_prediction_forward.1} parent=11 // pred_check_branch
          %1413 = sbr.rel (%p1411) target = $region144
        $region143: #{set_prediction_forward.1} parent=11 // pred_region
          %s1415 = ssub.s32 16, 16
          %1416 = vsyncadd [#allocation57], %s1415
          %s1418 = sshll.u32 [#allocation56], 4
          %s1419 = int_to_ptr.vmem [resolvable:$true] %s1418
          %1421 = dma.hbm_to_vmem [thread:$0]  %s71, 16, %s1419, [#allocation57]
        $region144: #{set_prediction_forward.1} parent=11 // pred_fallthru
          _
        // Predicated region
        $region145: #{set_prediction_forward.1} parent=11 // pred_check
          %p1422 = pneg %p910
        $region146: #{set_prediction_forward.1} parent=11 // pred_check_branch
          %1424 = sbr.rel (%p1422) target = $region148
        $region147: #{set_prediction_forward.1} parent=11 // pred_region
          %s1426 = ssub.s32 16, 16
          %1427 = vsyncadd [#allocation57], %s1426
          %s1429 = sshll.u32 [#allocation58], 4
          %s1430 = int_to_ptr.vmem [resolvable:$true] %s1429
          %1432 = dma.hbm_to_vmem [thread:$0]  %s73, 16, %s1430, [#allocation57]
        $region148: #{set_prediction_forward.1} parent=11 // pred_fallthru
          _
        // Predicated region
        $region149: #{set_prediction_forward.1} parent=11 // pred_check
          %p1433 = pneg %p931
        $region150: #{set_prediction_forward.1} parent=11 // pred_check_branch
          %1435 = sbr.rel (%p1433) target = $region152
        $region151: #{set_prediction_forward.1} parent=11 // pred_region
          %s1437 = ssub.s32 2048, 2048
          %1438 = vsyncadd [#allocation60], %s1437
          %s1439 = sshll.u32 [#allocation59], 4
          %s1440 = int_to_ptr.vmem [resolvable:$true] %s1439
          %1445 = dma.hbm_to_vmem [thread:$0]  %s75, 2048, %s1440, [#allocation60], 512, 512, 32
        $region152: #{set_prediction_forward.1} parent=11 // pred_fallthru
          _
        // Predicated region
        $region153: #{set_prediction_forward.1} parent=11 // pred_check
          %p1446 = pneg %p952
        $region154: #{set_prediction_forward.1} parent=11 // pred_check_branch
          %1448 = sbr.rel (%p1446) target = $region156
        $region155: #{set_prediction_forward.1} parent=11 // pred_region
          %s1450 = ssub.s32 128, 128
          %1451 = vsyncadd [#allocation60], %s1450
          %s1453 = sshll.u32 [#allocation61], 4
          %s1454 = int_to_ptr.vmem [resolvable:$true] %s1453
          %1456 = dma.hbm_to_vmem [thread:$0]  %s77, 128, %s1454, [#allocation60]
        $region156: #{set_prediction_forward.1} parent=11 // pred_fallthru
          _
      $region12: #{set_prediction_forward.1} parent=5 // pred_fallthru
        _
      %p1457 = scmp.lt.s32.totalorder %s118, 2
      // Predicated region
      $region157: #{set_prediction_forward.1} parent=5 // pred_check
        %p1458 = pneg %p1457
      $region158: #{set_prediction_forward.1} parent=5 // pred_check_branch
        %1460 = sbr.rel (%p1458) target = $region160
      $region159: #{set_prediction_forward.1} parent=5 // pred_region
        // Predicated region
        $region161: #{set_prediction_forward.1} parent=159 // pred_check
          %p1461 = pneg %p138
        $region162: #{set_prediction_forward.1} parent=159 // pred_check_branch
          %1463 = sbr.rel (%p1461) target = $region164
        $region163: #{set_prediction_forward.1} parent=159 // pred_region
          %s1464 = sand.u32 %s128, 1
          %s1465 = scalar_lea.sflag [#allocation3], %s1464
          %s1466 = sand.u32 %s128, 1
          %s1467 = smul.addr %s1466, 16
          %s1468 = scalar_lea.vmem [#allocation2], %s1467
          %s1470 = ssub.s32 256, 256
          %1471 = vsyncadd %s1465, %s1470
          %s1472 = smul.addr %s118, 2
          %s1473 = smul.addr %s1472, 128
          %s1474 = scalar_lea.hbm %s1, %s1473
          %s1475 = sshll.u32 %s1468, 4
          %s1476 = int_to_ptr.vmem [resolvable:$true] %s1475
          %1481 = dma.hbm_to_vmem [thread:$0]  %s1474, 256, %s1476, %s1465, 128, 128, 8
        $region164: #{set_prediction_forward.1} parent=159 // pred_fallthru
          _
        // Predicated region
        $region165: #{set_prediction_forward.1} parent=159 // pred_check
          %p1482 = pneg %p164
        $region166: #{set_prediction_forward.1} parent=159 // pred_check_branch
          %1484 = sbr.rel (%p1482) target = $region168
        $region167: #{set_prediction_forward.1} parent=159 // pred_region
          %s1485 = sand.u32 %s118, 1
          %s1486 = scalar_lea.sflag [#allocation6], %s1485
          %s1487 = sand.u32 %s154, 1
          %s1488 = scalar_lea.vmem [#allocation5], %s1487
          %s1490 = ssub.s32 16, 16
          %1491 = vsyncadd %s1486, %s1490
          %s1492 = smul.addr %s118, 16
          %s1493 = scalar_lea.hbm %s3, %s1492
          %s1495 = sshll.u32 %s1488, 4
          %s1496 = int_to_ptr.vmem [resolvable:$true] %s1495
          %1498 = dma.hbm_to_vmem [thread:$0]  %s1493, 16, %s1496, %s1486
        $region168: #{set_prediction_forward.1} parent=159 // pred_fallthru
          _
        // Predicated region
        $region169: #{set_prediction_forward.1} parent=159 // pred_check
          %p1499 = pneg %p190
        $region170: #{set_prediction_forward.1} parent=159 // pred_check_branch
          %1501 = sbr.rel (%p1499) target = $region172
        $region171: #{set_prediction_forward.1} parent=159 // pred_region
          %s1502 = sand.u32 %s118, 1
          %s1503 = scalar_lea.sflag [#allocation6], %s1502
          %s1504 = sand.u32 %s180, 1
          %s1505 = scalar_lea.vmem [#allocation7], %s1504
          %s1507 = ssub.s32 16, 16
          %1508 = vsyncadd %s1503, %s1507
          %s1509 = smul.addr %s118, 16
          %s1510 = scalar_lea.hbm %s5, %s1509
          %s1512 = sshll.u32 %s1505, 4
          %s1513 = int_to_ptr.vmem [resolvable:$true] %s1512
          %1515 = dma.hbm_to_vmem [thread:$0]  %s1510, 16, %s1513, %s1503
        $region172: #{set_prediction_forward.1} parent=159 // pred_fallthru
          _
      $region160: #{set_prediction_forward.1} parent=5 // pred_fallthru
        _
      %p1516 = scmp.le.s32.totalorder 1, %s118
      %p1517 = scmp.lt.s32.totalorder %s118, 3
      %p1518 = pnand %p1516, %p1517
      %p1519 = pneg %p1518
      // Predicated region
      $region173: #{set_prediction_forward.1} parent=5 // pred_check
        _
      $region174: #{set_prediction_forward.1} parent=5 // pred_check_branch
        %1521 = sbr.rel (%p1518) target = $region176
      $region175: #{set_prediction_forward.1} parent=5 // pred_region
        %s1522 = ssub.s32 %s118, 1
        %s1523 = sand.u32 %s131, 1
        %s1524 = scalar_lea.sflag [#allocation3], %s1523
        %s1525 = sand.u32 %s131, 1
        %s1526 = smul.addr %s1525, 16
        %s1527 = scalar_lea.vmem [#allocation2], %s1526
        // Predicated region
        $region177: #{set_prediction_forward.1} parent=175 // pred_check
          %p1528 = pneg %p144
        $region178: #{set_prediction_forward.1} parent=175 // pred_check_branch
          %1530 = sbr.rel (%p1528) target = $region180
        $region179: #{set_prediction_forward.1} parent=175 // pred_region
          %1531 = dma.done %s1524, 256
        $region180: #{set_prediction_forward.1} parent=175 // pred_fallthru
          _
        %s1532 = sand.u32 %s123, 1
        %s1533 = scalar_lea.sflag [#allocation6], %s1532
        %s1534 = sand.u32 %s157, 1
        %s1535 = scalar_lea.vmem [#allocation5], %s1534
        // Predicated region
        $region181: #{set_prediction_forward.1} parent=175 // pred_check
          %p1536 = pneg %p170
        $region182: #{set_prediction_forward.1} parent=175 // pred_check_branch
          %1538 = sbr.rel (%p1536) target = $region184
        $region183: #{set_prediction_forward.1} parent=175 // pred_region
          %1539 = dma.done %s1533, 16
        $region184: #{set_prediction_forward.1} parent=175 // pred_fallthru
          _
        %s1540 = sand.u32 %s123, 1
        %s1541 = scalar_lea.sflag [#allocation6], %s1540
        %s1542 = sand.u32 %s183, 1
        %s1543 = scalar_lea.vmem [#allocation7], %s1542
        // Predicated region
        $region185: #{set_prediction_forward.1} parent=175 // pred_check
          %p1544 = pneg %p196
        $region186: #{set_prediction_forward.1} parent=175 // pred_check_branch
          %1546 = sbr.rel (%p1544) target = $region188
        $region187: #{set_prediction_forward.1} parent=175 // pred_region
          %1547 = dma.done %s1541, 16
        $region188: #{set_prediction_forward.1} parent=175 // pred_fallthru
          _
        // Predicated region
        $region189: #{set_prediction_forward.1} parent=175 // pred_check
          %p1548 = pneg %p217
        $region190: #{set_prediction_forward.1} parent=175 // pred_check_branch
          %1550 = sbr.rel (%p1548) target = $region192
        $region191: #{set_prediction_forward.1} parent=175 // pred_region
          %1551 = dma.done [#allocation9], 256
        $region192: #{set_prediction_forward.1} parent=175 // pred_fallthru
          _
        // Predicated region
        $region193: #{set_prediction_forward.1} parent=175 // pred_check
          %p1552 = pneg %p238
        $region194: #{set_prediction_forward.1} parent=175 // pred_check_branch
          %1554 = sbr.rel (%p1552) target = $region196
        $region195: #{set_prediction_forward.1} parent=175 // pred_region
          %1555 = dma.done [#allocation9], 128
        $region196: #{set_prediction_forward.1} parent=175 // pred_fallthru
          _
        // Predicated region
        $region197: #{set_prediction_forward.1} parent=175 // pred_check
          %p1556 = pneg %p259
        $region198: #{set_prediction_forward.1} parent=175 // pred_check_branch
          %1558 = sbr.rel (%p1556) target = $region200
        $region199: #{set_prediction_forward.1} parent=175 // pred_region
          %1559 = dma.done [#allocation12], 16
        $region200: #{set_prediction_forward.1} parent=175 // pred_fallthru
          _
        // Predicated region
        $region201: #{set_prediction_forward.1} parent=175 // pred_check
          %p1560 = pneg %p280
        $region202: #{set_prediction_forward.1} parent=175 // pred_check_branch
          %1562 = sbr.rel (%p1560) target = $region204
        $region203: #{set_prediction_forward.1} parent=175 // pred_region
          %1563 = dma.done [#allocation12], 16
        $region204: #{set_prediction_forward.1} parent=175 // pred_fallthru
          _
        // Predicated region
        $region205: #{set_prediction_forward.1} parent=175 // pred_check
          %p1564 = pneg %p301
        $region206: #{set_prediction_forward.1} parent=175 // pred_check_branch
          %1566 = sbr.rel (%p1564) target = $region208
        $region207: #{set_prediction_forward.1} parent=175 // pred_region
          %1567 = dma.done [#allocation15], 16
        $region208: #{set_prediction_forward.1} parent=175 // pred_fallthru
          _
        // Predicated region
        $region209: #{set_prediction_forward.1} parent=175 // pred_check
          %p1568 = pneg %p322
        $region210: #{set_prediction_forward.1} parent=175 // pred_check_branch
          %1570 = sbr.rel (%p1568) target = $region212
        $region211: #{set_prediction_forward.1} parent=175 // pred_region
          %1571 = dma.done [#allocation15], 16
        $region212: #{set_prediction_forward.1} parent=175 // pred_fallthru
          _
        // Predicated region
        $region213: #{set_prediction_forward.1} parent=175 // pred_check
          %p1572 = pneg %p343
        $region214: #{set_prediction_forward.1} parent=175 // pred_check_branch
          %1574 = sbr.rel (%p1572) target = $region216
        $region215: #{set_prediction_forward.1} parent=175 // pred_region
          %1575 = dma.done [#allocation18], 256
        $region216: #{set_prediction_forward.1} parent=175 // pred_fallthru
          _
        // Predicated region
        $region217: #{set_prediction_forward.1} parent=175 // pred_check
          %p1576 = pneg %p364
        $region218: #{set_prediction_forward.1} parent=175 // pred_check_branch
          %1578 = sbr.rel (%p1576) target = $region220
        $region219: #{set_prediction_forward.1} parent=175 // pred_region
          %1579 = dma.done [#allocation18], 128
        $region220: #{set_prediction_forward.1} parent=175 // pred_fallthru
          _
        // Predicated region
        $region221: #{set_prediction_forward.1} parent=175 // pred_check
          %p1580 = pneg %p385
        $region222: #{set_prediction_forward.1} parent=175 // pred_check_branch
          %1582 = sbr.rel (%p1580) target = $region224
        $region223: #{set_prediction_forward.1} parent=175 // pred_region
          %1583 = dma.done [#allocation21], 256
        $region224: #{set_prediction_forward.1} parent=175 // pred_fallthru
          _
        // Predicated region
        $region225: #{set_prediction_forward.1} parent=175 // pred_check
          %p1584 = pneg %p406
        $region226: #{set_prediction_forward.1} parent=175 // pred_check_branch
          %1586 = sbr.rel (%p1584) target = $region228
        $region227: #{set_prediction_forward.1} parent=175 // pred_region
          %1587 = dma.done [#allocation21], 16
        $region228: #{set_prediction_forward.1} parent=175 // pred_fallthru
          _
        // Predicated region
        $region229: #{set_prediction_forward.1} parent=175 // pred_check
          %p1588 = pneg %p427
        $region230: #{set_prediction_forward.1} parent=175 // pred_check_branch
          %1590 = sbr.rel (%p1588) target = $region232
        $region231: #{set_prediction_forward.1} parent=175 // pred_region
          %1591 = dma.done [#allocation24], 16
        $region232: #{set_prediction_forward.1} parent=175 // pred_fallthru
          _
        // Predicated region
        $region233: #{set_prediction_forward.1} parent=175 // pred_check
          %p1592 = pneg %p448
        $region234: #{set_prediction_forward.1} parent=175 // pred_check_branch
          %1594 = sbr.rel (%p1592) target = $region236
        $region235: #{set_prediction_forward.1} parent=175 // pred_region
          %1595 = dma.done [#allocation24], 256
        $region236: #{set_prediction_forward.1} parent=175 // pred_fallthru
          _
        // Predicated region
        $region237: #{set_prediction_forward.1} parent=175 // pred_check
          %p1596 = pneg %p469
        $region238: #{set_prediction_forward.1} parent=175 // pred_check_branch
          %1598 = sbr.rel (%p1596) target = $region240
        $region239: #{set_prediction_forward.1} parent=175 // pred_region
          %1599 = dma.done [#allocation27], 16
        $region240: #{set_prediction_forward.1} parent=175 // pred_fallthru
          _
        // Predicated region
        $region241: #{set_prediction_forward.1} parent=175 // pred_check
          %p1600 = pneg %p490
        $region242: #{set_prediction_forward.1} parent=175 // pred_check_branch
          %1602 = sbr.rel (%p1600) target = $region244
        $region243: #{set_prediction_forward.1} parent=175 // pred_region
          %1603 = dma.done [#allocation27], 1024
        $region244: #{set_prediction_forward.1} parent=175 // pred_fallthru
          _
        // Predicated region
        $region245: #{set_prediction_forward.1} parent=175 // pred_check
          %p1604 = pneg %p511
        $region246: #{set_prediction_forward.1} parent=175 // pred_check_branch
          %1606 = sbr.rel (%p1604) target = $region248
        $region247: #{set_prediction_forward.1} parent=175 // pred_region
          %1607 = dma.done [#allocation30], 16
        $region248: #{set_prediction_forward.1} parent=175 // pred_fallthru
          _
        // Predicated region
        $region249: #{set_prediction_forward.1} parent=175 // pred_check
          %p1608 = pneg %p532
        $region250: #{set_prediction_forward.1} parent=175 // pred_check_branch
          %1610 = sbr.rel (%p1608) target = $region252
        $region251: #{set_prediction_forward.1} parent=175 // pred_region
          %1611 = dma.done [#allocation30], 64
        $region252: #{set_prediction_forward.1} parent=175 // pred_fallthru
          _
        // Predicated region
        $region253: #{set_prediction_forward.1} parent=175 // pred_check
          %p1612 = pneg %p553
        $region254: #{set_prediction_forward.1} parent=175 // pred_check_branch
          %1614 = sbr.rel (%p1612) target = $region256
        $region255: #{set_prediction_forward.1} parent=175 // pred_region
          %1615 = dma.done [#allocation33], 64
        $region256: #{set_prediction_forward.1} parent=175 // pred_fallthru
          _
        // Predicated region
        $region257: #{set_prediction_forward.1} parent=175 // pred_check
          %p1616 = pneg %p574
        $region258: #{set_prediction_forward.1} parent=175 // pred_check_branch
          %1618 = sbr.rel (%p1616) target = $region260
        $region259: #{set_prediction_forward.1} parent=175 // pred_region
          %1619 = dma.done [#allocation33], 64
        $region260: #{set_prediction_forward.1} parent=175 // pred_fallthru
          _
        // Predicated region
        $region261: #{set_prediction_forward.1} parent=175 // pred_check
          %p1620 = pneg %p595
        $region262: #{set_prediction_forward.1} parent=175 // pred_check_branch
          %1622 = sbr.rel (%p1620) target = $region264
        $region263: #{set_prediction_forward.1} parent=175 // pred_region
          %1623 = dma.done [#allocation36], 64
        $region264: #{set_prediction_forward.1} parent=175 // pred_fallthru
          _
        // Predicated region
        $region265: #{set_prediction_forward.1} parent=175 // pred_check
          %p1624 = pneg %p616
        $region266: #{set_prediction_forward.1} parent=175 // pred_check_branch
          %1626 = sbr.rel (%p1624) target = $region268
        $region267: #{set_prediction_forward.1} parent=175 // pred_region
          %1627 = dma.done [#allocation36], 1024
        $region268: #{set_prediction_forward.1} parent=175 // pred_fallthru
          _
        // Predicated region
        $region269: #{set_prediction_forward.1} parent=175 // pred_check
          %p1628 = pneg %p637
        $region270: #{set_prediction_forward.1} parent=175 // pred_check_branch
          %1630 = sbr.rel (%p1628) target = $region272
        $region271: #{set_prediction_forward.1} parent=175 // pred_region
          %1631 = dma.done [#allocation39], 1024
        $region272: #{set_prediction_forward.1} parent=175 // pred_fallthru
          _
        // Predicated region
        $region273: #{set_prediction_forward.1} parent=175 // pred_check
          %p1632 = pneg %p658
        $region274: #{set_prediction_forward.1} parent=175 // pred_check_branch
          %1634 = sbr.rel (%p1632) target = $region276
        $region275: #{set_prediction_forward.1} parent=175 // pred_region
          %1635 = dma.done [#allocation39], 1024
        $region276: #{set_prediction_forward.1} parent=175 // pred_fallthru
          _
        // Predicated region
        $region277: #{set_prediction_forward.1} parent=175 // pred_check
          %p1636 = pneg %p679
        $region278: #{set_prediction_forward.1} parent=175 // pred_check_branch
          %1638 = sbr.rel (%p1636) target = $region280
        $region279: #{set_prediction_forward.1} parent=175 // pred_region
          %1639 = dma.done [#allocation42], 64
        $region280: #{set_prediction_forward.1} parent=175 // pred_fallthru
          _
        // Predicated region
        $region281: #{set_prediction_forward.1} parent=175 // pred_check
          %p1640 = pneg %p700
        $region282: #{set_prediction_forward.1} parent=175 // pred_check_branch
          %1642 = sbr.rel (%p1640) target = $region284
        $region283: #{set_prediction_forward.1} parent=175 // pred_region
          %1643 = dma.done [#allocation42], 64
        $region284: #{set_prediction_forward.1} parent=175 // pred_fallthru
          _
        // Predicated region
        $region285: #{set_prediction_forward.1} parent=175 // pred_check
          %p1644 = pneg %p721
        $region286: #{set_prediction_forward.1} parent=175 // pred_check_branch
          %1646 = sbr.rel (%p1644) target = $region288
        $region287: #{set_prediction_forward.1} parent=175 // pred_region
          %1647 = dma.done [#allocation45], 1024
        $region288: #{set_prediction_forward.1} parent=175 // pred_fallthru
          _
        // Predicated region
        $region289: #{set_prediction_forward.1} parent=175 // pred_check
          %p1648 = pneg %p742
        $region290: #{set_prediction_forward.1} parent=175 // pred_check_branch
          %1650 = sbr.rel (%p1648) target = $region292
        $region291: #{set_prediction_forward.1} parent=175 // pred_region
          %1651 = dma.done [#allocation45], 64
        $region292: #{set_prediction_forward.1} parent=175 // pred_fallthru
          _
        // Predicated region
        $region293: #{set_prediction_forward.1} parent=175 // pred_check
          %p1652 = pneg %p763
        $region294: #{set_prediction_forward.1} parent=175 // pred_check_branch
          %1654 = sbr.rel (%p1652) target = $region296
        $region295: #{set_prediction_forward.1} parent=175 // pred_region
          %1655 = dma.done [#allocation48], 4096
        $region296: #{set_prediction_forward.1} parent=175 // pred_fallthru
          _
        // Predicated region
        $region297: #{set_prediction_forward.1} parent=175 // pred_check
          %p1656 = pneg %p784
        $region298: #{set_prediction_forward.1} parent=175 // pred_check_branch
          %1658 = sbr.rel (%p1656) target = $region300
        $region299: #{set_prediction_forward.1} parent=175 // pred_region
          %1659 = dma.done [#allocation48], 64
        $region300: #{set_prediction_forward.1} parent=175 // pred_fallthru
          _
        // Predicated region
        $region301: #{set_prediction_forward.1} parent=175 // pred_check
          %p1660 = pneg %p805
        $region302: #{set_prediction_forward.1} parent=175 // pred_check_branch
          %1662 = sbr.rel (%p1660) target = $region304
        $region303: #{set_prediction_forward.1} parent=175 // pred_region
          %1663 = dma.done [#allocation51], 16
        $region304: #{set_prediction_forward.1} parent=175 // pred_fallthru
          _
        // Predicated region
        $region305: #{set_prediction_forward.1} parent=175 // pred_check
          %p1664 = pneg %p826
        $region306: #{set_prediction_forward.1} parent=175 // pred_check_branch
          %1666 = sbr.rel (%p1664) target = $region308
        $region307: #{set_prediction_forward.1} parent=175 // pred_region
          %1667 = dma.done [#allocation51], 16
        $region308: #{set_prediction_forward.1} parent=175 // pred_fallthru
          _
        // Predicated region
        $region309: #{set_prediction_forward.1} parent=175 // pred_check
          %p1668 = pneg %p847
        $region310: #{set_prediction_forward.1} parent=175 // pred_check_branch
          %1670 = sbr.rel (%p1668) target = $region312
        $region311: #{set_prediction_forward.1} parent=175 // pred_region
          %1671 = dma.done [#allocation54], 256
        $region312: #{set_prediction_forward.1} parent=175 // pred_fallthru
          _
        // Predicated region
        $region313: #{set_prediction_forward.1} parent=175 // pred_check
          %p1672 = pneg %p868
        $region314: #{set_prediction_forward.1} parent=175 // pred_check_branch
          %1674 = sbr.rel (%p1672) target = $region316
        $region315: #{set_prediction_forward.1} parent=175 // pred_region
          %1675 = dma.done [#allocation54], 16
        $region316: #{set_prediction_forward.1} parent=175 // pred_fallthru
          _
        // Predicated region
        $region317: #{set_prediction_forward.1} parent=175 // pred_check
          %p1676 = pneg %p889
        $region318: #{set_prediction_forward.1} parent=175 // pred_check_branch
          %1678 = sbr.rel (%p1676) target = $region320
        $region319: #{set_prediction_forward.1} parent=175 // pred_region
          %1679 = dma.done [#allocation57], 16
        $region320: #{set_prediction_forward.1} parent=175 // pred_fallthru
          _
        // Predicated region
        $region321: #{set_prediction_forward.1} parent=175 // pred_check
          %p1680 = pneg %p910
        $region322: #{set_prediction_forward.1} parent=175 // pred_check_branch
          %1682 = sbr.rel (%p1680) target = $region324
        $region323: #{set_prediction_forward.1} parent=175 // pred_region
          %1683 = dma.done [#allocation57], 16
        $region324: #{set_prediction_forward.1} parent=175 // pred_fallthru
          _
        // Predicated region
        $region325: #{set_prediction_forward.1} parent=175 // pred_check
          %p1684 = pneg %p931
        $region326: #{set_prediction_forward.1} parent=175 // pred_check_branch
          %1686 = sbr.rel (%p1684) target = $region328
        $region327: #{set_prediction_forward.1} parent=175 // pred_region
          %1687 = dma.done [#allocation60], 2048
        $region328: #{set_prediction_forward.1} parent=175 // pred_fallthru
          _
        // Predicated region
        $region329: #{set_prediction_forward.1} parent=175 // pred_check
          %p1688 = pneg %p952
        $region330: #{set_prediction_forward.1} parent=175 // pred_check_branch
          %1690 = sbr.rel (%p1688) target = $region332
        $region331: #{set_prediction_forward.1} parent=175 // pred_region
          %1691 = dma.done [#allocation60], 128
        $region332: #{set_prediction_forward.1} parent=175 // pred_fallthru
          _
        %s1692 = sand.u32 %s131, 1
        %s1693 = scalar_lea.sflag [#allocation3], %s1692
        %s1694 = sand.u32 %s131, 1
        %s1695 = smul.addr %s1694, 16
        %s1696 = scalar_lea.vmem [#allocation2], %s1695
        %p1697 = pneg %p144
        %p1698 = pneg %p141
        %s1699 = sand.u32 %s123, 1
        %s1700 = scalar_lea.sflag [#allocation6], %s1699
        %s1701 = sand.u32 %s157, 1
        %s1702 = scalar_lea.vmem [#allocation5], %s1701
        %p1703 = pneg %p170
        %p1704 = pneg %p167
        %s1705 = sand.u32 %s123, 1
        %s1706 = scalar_lea.sflag [#allocation6], %s1705
        %s1707 = sand.u32 %s183, 1
        %s1708 = scalar_lea.vmem [#allocation7], %s1707
        %p1709 = pneg %p196
        %p1710 = pneg %p193
        %p1711 = pneg %p217
        %p1712 = pneg %p214
        %p1713 = pneg %p238
        %p1714 = pneg %p235
        %p1715 = pneg %p259
        %p1716 = pneg %p256
        %p1717 = pneg %p280
        %p1718 = pneg %p277
        %p1719 = pneg %p301
        %p1720 = pneg %p298
        %p1721 = pneg %p322
        %p1722 = pneg %p319
        %p1723 = pneg %p343
        %p1724 = pneg %p340
        %p1725 = pneg %p364
        %p1726 = pneg %p361
        %p1727 = pneg %p385
        %p1728 = pneg %p382
        %p1729 = pneg %p406
        %p1730 = pneg %p403
        %p1731 = pneg %p427
        %p1732 = pneg %p424
        %p1733 = pneg %p448
        %p1734 = pneg %p445
        %p1735 = pneg %p469
        %p1736 = pneg %p466
        %p1737 = pneg %p490
        %p1738 = pneg %p487
        %p1739 = pneg %p511
        %p1740 = pneg %p508
        %p1741 = pneg %p532
        %p1742 = pneg %p529
        %p1743 = pneg %p553
        %p1744 = pneg %p550
        %p1745 = pneg %p574
        %p1746 = pneg %p571
        %p1747 = pneg %p595
        %p1748 = pneg %p592
        %p1749 = pneg %p616
        %p1750 = pneg %p613
        %p1751 = pneg %p637
        %p1752 = pneg %p634
        %p1753 = pneg %p658
        %p1754 = pneg %p655
        %p1755 = pneg %p679
        %p1756 = pneg %p676
        %p1757 = pneg %p700
        %p1758 = pneg %p697
        %p1759 = pneg %p721
        %p1760 = pneg %p718
        %p1761 = pneg %p742
        %p1762 = pneg %p739
        %p1763 = pneg %p763
        %p1764 = pneg %p760
        %p1765 = pneg %p784
        %p1766 = pneg %p781
        %p1767 = pneg %p805
        %p1768 = pneg %p802
        %p1769 = pneg %p826
        %p1770 = pneg %p823
        %p1771 = pneg %p847
        %p1772 = pneg %p844
        %p1773 = pneg %p868
        %p1774 = pneg %p865
        %p1775 = pneg %p889
        %p1776 = pneg %p886
        %p1777 = pneg %p910
        %p1778 = pneg %p907
        %p1779 = pneg %p931
        %p1780 = pneg %p928
        %p1781 = pneg %p952
        %p1782 = pneg %p949
        %p1783 = pneg %p978
        %p1784 = pneg %p975
        %s1785 = sand.u32 %s965, 1
        %s1786 = scalar_lea.sflag [#allocation4], %s1785
        %s1787 = sand.u32 %s965, 1
        %s1788 = smul.addr %s1787, 64
        %s1789 = scalar_lea.vmem [#allocation62], %s1788
        %p1790 = pneg %p1004
        %p1791 = pneg %p1001
        %s1792 = sand.u32 %s991, 1
        %s1793 = scalar_lea.sflag [#allocation64], %s1792
        %s1794 = sand.u32 %s991, 1
        %s1795 = smul.addr %s1794, 8
        %s1796 = scalar_lea.vmem [#allocation63], %s1795
        %v1798 = vld [vmem:[%s1527] sm:$0xff]
        %v1799 = vld [vmem:[%s1527 + $0x8] sm:$0xff]
        %v1800 = vld [vmem:[#allocation8] sm:$0xff]
        %v1801 = vld [vmem:[#allocation8 + $0x8] sm:$0xff]
        %v1802 = vadd.f32 %v1798, %v1800
        %v1803 = vadd.f32 %v1799, %v1801
        %v1804 = vld [vmem:[%s1535] sm:$0x1]
        %v1805 = vld [vmem:[#allocation10] sm:$0xff]
        %v1806 = vld [vmem:[#allocation11] sm:$0x1]
        %v1807 = vld [vmem:[#allocation13] sm:$0x1]
        %v1808 = vld [vmem:[#allocation14] sm:$0x1]
        %v1809 = vld [vmem:[#allocation16] sm:$0x1]
        %v1810 = vld [vmem:[#allocation17] sm:$0xf]
        %v1811 = vld [vmem:[#allocation17 + $0x4] sm:$0xf]
        %v1812 = vld [vmem:[#allocation17 + $0x8] sm:$0xf]
        %v1813 = vld [vmem:[#allocation17 + $0xc] sm:$0xf]
        %v1814 = vld [vmem:[#allocation19] sm:$0xf]
        %v1815 = vld [vmem:[#allocation19 + $0x4] sm:$0xf]
        %v1816 = vld [vmem:[#allocation20] sm:$0xf]
        %v1817 = vld [vmem:[#allocation20 + $0x4] sm:$0xf]
        %v1818 = vld [vmem:[#allocation20 + $0x8] sm:$0xf]
        %v1819 = vld [vmem:[#allocation20 + $0xc] sm:$0xf]
        %vm1820 = vcmask 261120
        %v1821 = vsel %vm1820, %v1805, 0.0
        %1822 = vadd.xlane.f32.xlu0 %v1821
        %v1823 = vpop.xlane.xlu0 %1822
        %v1824 = vrcp.pop 32.0
        %v1825 = vmul.f32 %v1823, %v1824
        %v1826 = vsub.f32 %v1805, %v1825
        %v1827 = vmul.f32 %v1826, %v1826
        %v1828 = vsel %vm1820, %v1827, 0.0
        %1829 = vadd.xlane.f32.xlu0 %v1828
        %v1830 = vpop.xlane.xlu0 %1829
        %v1831 = vmul.f32 %v1830, %v1824
        %v1832 = vadd.f32 %v1831, 1e-05
        %v1833 = vrsqrt.pop %v1832
        %v1834 = vmul.f32 %v1826, %v1833
        %v1836 = vlaneseq
        %v1837 = vshrl.u32 %v1836, 7
        %v1838 = vsub.s32 0, %v1837
        %v1839 = vrot.slane %v1806, %v1838
        %v1841 = vmul.f32 %v1834, %v1839
        %v1843 = vlaneseq
        %v1844 = vshrl.u32 %v1843, 7
        %v1845 = vsub.s32 0, %v1844
        %v1846 = vrot.slane %v1807, %v1845
        %v1848 = vadd.f32 %v1841, %v1846
        %vm1849 = vcmask 130048
        %v1850 = vsel %vm1849, %v1802, 0.0
        %1851 = vadd.xlane.f32.xlu0 %v1850
        %v1852 = vpop.xlane.xlu0 %1851
        %v1853 = vsel %vm1849, %v1803, 0.0
        %1854 = vadd.xlane.f32.xlu0 %v1853
        %v1855 = vpop.xlane.xlu0 %1854
        %v1856 = vrcp.pop 16.0
        %v1857 = vmul.f32 %v1852, %v1856
        %v1858 = vmul.f32 %v1855, %v1856
        %v1859 = vsub.f32 %v1802, %v1857
        %v1860 = vsub.f32 %v1803, %v1858
        %v1861 = vmul.f32 %v1859, %v1859
        %v1862 = vmul.f32 %v1860, %v1860
        %v1863 = vsel %vm1849, %v1861, 0.0
        %1864 = vadd.xlane.f32.xlu0 %v1863
        %v1865 = vpop.xlane.xlu0 %1864
        %v1866 = vsel %vm1849, %v1862, 0.0
        %1867 = vadd.xlane.f32.xlu0 %v1866
        %v1868 = vpop.xlane.xlu0 %1867
        %v1869 = vmul.f32 %v1865, %v1856
        %v1870 = vmul.f32 %v1868, %v1856
        %v1871 = vadd.f32 %v1869, 1e-05
        %v1872 = vadd.f32 %v1870, 1e-05
        %v1873 = vrsqrt.pop %v1871
        %v1874 = vrsqrt.pop %v1872
        %v1875 = vmul.f32 %v1859, %v1873
        %v1876 = vmul.f32 %v1860, %v1874
        %v1878 = vlaneseq
        %v1879 = vshrl.u32 %v1878, 7
        %v1880 = vsub.s32 0, %v1879
        %v1881 = vrot.slane %v1808, %v1880
        %v1883 = vmul.f32 %v1875, %v1881
        %v1884 = vmul.f32 %v1876, %v1881
        %v1886 = vlaneseq
        %v1887 = vshrl.u32 %v1886, 7
        %v1888 = vsub.s32 0, %v1887
        %v1889 = vrot.slane %v1809, %v1888
        %v1891 = vadd.f32 %v1883, %v1889
        %v1892 = vadd.f32 %v1884, %v1889
        %v1893 = vpack.c.bf16 %v1848, %v1848
        %v1898 = vunpack.c.l.b16 %v1810
        %v1899 = vunpack.c.l.b16 %v1811
        %v1900 = vunpack.c.l.b16 %v1812
        %v1901 = vunpack.c.l.b16 %v1813
        %v1902 = vpack.c.b16 %v1899, %v1898
        %v1903 = vpack.c.b16 %v1901, %v1900
        %v1907 = vsel %vm1820, %v1893, 0
        %1909 = vmatprep.subr.bf16.mxu0 0
        %1910 = vmatpush1.bf16.msra.mxu0 %v1902
        %1911 = vmatprep.subr.bf16.mxu0 0
        %1912 = vmatpush1.bf16.msra.mxu0 %v1903
        %1913 = vmatprep.subr.bf16.mxu0 0
        %1914 = vmatpush1.bf16.msra.mxu0 0
        %1915 = vmatprep.subr.bf16.mxu0 0
        %1916 = vmatpush1.bf16.msra.mxu0 0
        %1917 = vmatprep.subr.bf16.mxu0 0
        %1918 = vmatpush1.bf16.msra.mxu0 0
        %1919 = vmatprep.subr.bf16.mxu0 0
        %1920 = vmatpush1.bf16.msra.mxu0 0
        %1921 = vmatprep.subr.bf16.mxu0 0
        %1922 = vmatpush1.bf16.msra.mxu0 0
        %1923 = vmatprep.subr.bf16.mxu0 0
        %1924 = vmatpush1.bf16.msra.mxu0 0
        %1925 = vmatprep.subr.bf16.mxu0 0
        %1926 = vmatpush1.bf16.msra.mxu0 0
        %1927 = vmatprep.subr.bf16.mxu0 0
        %1928 = vmatpush1.bf16.msra.mxu0 0
        %1929 = vmatprep.subr.bf16.mxu0 0
        %1930 = vmatpush1.bf16.msra.mxu0 0
        %1931 = vmatprep.subr.bf16.mxu0 0
        %1932 = vmatpush1.bf16.msra.mxu0 0
        %1933 = vmatprep.subr.bf16.mxu0 0
        %1934 = vmatpush1.bf16.msra.mxu0 0
        %1935 = vmatprep.subr.bf16.mxu0 0
        %1936 = vmatpush1.bf16.msra.mxu0 0
        %1937 = vmatprep.subr.bf16.mxu0 0
        %1938 = vmatpush1.bf16.msra.mxu0 0
        %1939 = vmatprep.subr.bf16.mxu0 0
        %1940 = vmatpush1.bf16.msra.mxu0 0
        %1941 = vmatprep.mubr.bf16.mxu0 0
        %1942 = vmatmul.mubr.bf16.gmra.mrb[0].mxu0 %v1907
        %v1943 = vpop.f32.mrb[0].mxu0
        %v1944 = vadd.f32 0.0, %v1943
        %v1945 = vpop.f32.mrb[0].mxu0
        %v1946 = vpop.f32.mrb[0].mxu0
        %v1947 = vpop.f32.mrb[0].mxu0
        %1948 = vdwg.mxu0
        %v1949 = vpack.c.bf16 %v1892, %v1891
        %v1952 = vunpack.c.l.b16 %v1814
        %v1953 = vunpack.c.l.b16 %v1815
        %v1954 = vpack.c.b16 %v1953, %v1952
        %v1957 = vsel %vm1849, %v1949, 0
        %1959 = vmatprep.subr.bf16.mxu0 0
        %1960 = vmatpush1.bf16.msra.mxu0 %v1954
        %1961 = vmatprep.subr.bf16.mxu0 0
        %1962 = vmatpush1.bf16.msra.mxu0 0
        %1963 = vmatprep.subr.bf16.mxu0 0
        %1964 = vmatpush1.bf16.msra.mxu0 0
        %1965 = vmatprep.subr.bf16.mxu0 0
        %1966 = vmatpush1.bf16.msra.mxu0 0
        %1967 = vmatprep.subr.bf16.mxu0 0
        %1968 = vmatpush1.bf16.msra.mxu0 0
        %1969 = vmatprep.subr.bf16.mxu0 0
        %1970 = vmatpush1.bf16.msra.mxu0 0
        %1971 = vmatprep.subr.bf16.mxu0 0
        %1972 = vmatpush1.bf16.msra.mxu0 0
        %1973 = vmatprep.subr.bf16.mxu0 0
        %1974 = vmatpush1.bf16.msra.mxu0 0
        %1975 = vmatprep.subr.bf16.mxu0 0
        %1976 = vmatpush1.bf16.msra.mxu0 0
        %1977 = vmatprep.subr.bf16.mxu0 0
        %1978 = vmatpush1.bf16.msra.mxu0 0
        %1979 = vmatprep.subr.bf16.mxu0 0
        %1980 = vmatpush1.bf16.msra.mxu0 0
        %1981 = vmatprep.subr.bf16.mxu0 0
        %1982 = vmatpush1.bf16.msra.mxu0 0
        %1983 = vmatprep.subr.bf16.mxu0 0
        %1984 = vmatpush1.bf16.msra.mxu0 0
        %1985 = vmatprep.subr.bf16.mxu0 0
        %1986 = vmatpush1.bf16.msra.mxu0 0
        %1987 = vmatprep.subr.bf16.mxu0 0
        %1988 = vmatpush1.bf16.msra.mxu0 0
        %1989 = vmatprep.subr.bf16.mxu0 0
        %1990 = vmatpush1.bf16.msra.mxu0 0
        %1991 = vmatprep.mubr.bf16.mxu0 0
        %1992 = vmatmul.mubr.bf16.gmra.mrb[0].mxu0 %v1957
        %v1993 = vpop.f32.mrb[0].mxu0
        %v1994 = vadd.f32 0.0, %v1993
        %v1995 = vpop.f32.mrb[0].mxu0
        %v1996 = vpop.f32.mrb[0].mxu0
        %v1997 = vadd.f32 0.0, %v1996
        %v1998 = vpop.f32.mrb[0].mxu0
        %1999 = vdwg.mxu0
        %v2000 = vpack.c.bf16 %v1944, %v1944
        %v2001 = vpack.c.bf16 %v1997, %v1994
        %v2003 = vlaneseq
        %v2004 = vshrl.u32 %v2003, 7
        %v2005 = vsub.s32 0, %v2004
        %v2006 = vrot.slane %v1804, %v2005
        %v2009 = vsel %vm1820, %v2000, 0
        %v2012 = vsel %vm1820, %v2001, 0
        %2014 = vmatprep.subr.bf16.mxu0 0
        %2015 = vmatpush1.bf16.xpose.msra.mxu0 %v2012
        %2016 = vmatprep.subr.bf16.mxu0 0
        %2017 = vmatpush1.bf16.xpose.msra.mxu0 0
        %2018 = vmatprep.subr.bf16.mxu0 0
        %2019 = vmatpush1.bf16.xpose.msra.mxu0 0
        %2020 = vmatprep.subr.bf16.mxu0 0
        %2021 = vmatpush1.bf16.xpose.msra.mxu0 0
        %2022 = vmatprep.subr.bf16.mxu0 0
        %2023 = vmatpush1.bf16.xpose.msra.mxu0 0
        %2024 = vmatprep.subr.bf16.mxu0 0
        %2025 = vmatpush1.bf16.xpose.msra.mxu0 0
        %2026 = vmatprep.subr.bf16.mxu0 0
        %2027 = vmatpush1.bf16.xpose.msra.mxu0 0
        %2028 = vmatprep.subr.bf16.mxu0 0
        %2029 = vmatpush1.bf16.xpose.msra.mxu0 0
        %2030 = vmatprep.subr.bf16.mxu0 0
        %2031 = vmatpush1.bf16.xpose.msra.mxu0 0
        %2032 = vmatprep.subr.bf16.mxu0 0
        %2033 = vmatpush1.bf16.xpose.msra.mxu0 0
        %2034 = vmatprep.subr.bf16.mxu0 0
        %2035 = vmatpush1.bf16.xpose.msra.mxu0 0
        %2036 = vmatprep.subr.bf16.mxu0 0
        %2037 = vmatpush1.bf16.xpose.msra.mxu0 0
        %2038 = vmatprep.subr.bf16.mxu0 0
        %2039 = vmatpush1.bf16.xpose.msra.mxu0 0
        %2040 = vmatprep.subr.bf16.mxu0 0
        %2041 = vmatpush1.bf16.xpose.msra.mxu0 0
        %2042 = vmatprep.subr.bf16.mxu0 0
        %2043 = vmatpush1.bf16.xpose.msra.mxu0 0
        %2044 = vmatprep.subr.bf16.mxu0 0
        %2045 = vmatpush1.bf16.xpose.msra.mxu0 0
        %2046 = vmatprep.mubr.bf16.mxu0 0
        %2047 = vmatmul.mubr.bf16.gmra.mrb[0].mxu0 %v2009
        %v2048 = vpop.f32.mrb[0].mxu0
        %v2049 = vadd.f32 %v2006, %v2048
        %v2050 = vpop.f32.mrb[0].mxu0
        %v2051 = vpop.f32.mrb[0].mxu0
        %v2052 = vpop.f32.mrb[0].mxu0
        %2053 = vdwg.mxu0
        %v2054 = vsel %vm1849, %v2049, -inf
        %2055 = vmax.xlane.f32.xlu0 %v2054
        %v2056 = vpop.xlane.xlu0 %2055
        %v2057 = vsub.f32 %v2049, %v2056
        %v2058 = vmul.f32 %v2057, 1.442695
        %v2059 = vpow.pop %v2058
        %v2060 = vsel %vm1849, %v2059, 0.0
        %2061 = vadd.xlane.f32.xlu0 %v2060
        %v2062 = vpop.xlane.xlu0 %2061
        %v2063 = vrcp.pop %v2062
        %v2064 = vmul.f32 %v2059, %v2063
        %v2065 = vpack.c.bf16 %v2064, %v2064
        %2067 = vrot.lane.b32.xlu0 %v2001, 96
        %v2068 = vpop.permute.xlu0 %2067
        %v2071 = vsel %vm1849, %v2065, 0
        %2073 = vmatprep.subr.bf16.mxu0 0
        %2074 = vmatpush1.bf16.msra.mxu0 %v2068
        %2075 = vmatprep.subr.bf16.mxu0 0
        %2076 = vmatpush1.bf16.msra.mxu0 0
        %2077 = vmatprep.subr.bf16.mxu0 0
        %2078 = vmatpush1.bf16.msra.mxu0 0
        %2079 = vmatprep.subr.bf16.mxu0 0
        %2080 = vmatpush1.bf16.msra.mxu0 0
        %2081 = vmatprep.subr.bf16.mxu0 0
        %2082 = vmatpush1.bf16.msra.mxu0 0
        %2083 = vmatprep.subr.bf16.mxu0 0
        %2084 = vmatpush1.bf16.msra.mxu0 0
        %2085 = vmatprep.subr.bf16.mxu0 0
        %2086 = vmatpush1.bf16.msra.mxu0 0
        %2087 = vmatprep.subr.bf16.mxu0 0
        %2088 = vmatpush1.bf16.msra.mxu0 0
        %2089 = vmatprep.subr.bf16.mxu0 0
        %2090 = vmatpush1.bf16.msra.mxu0 0
        %2091 = vmatprep.subr.bf16.mxu0 0
        %2092 = vmatpush1.bf16.msra.mxu0 0
        %2093 = vmatprep.subr.bf16.mxu0 0
        %2094 = vmatpush1.bf16.msra.mxu0 0
        %2095 = vmatprep.subr.bf16.mxu0 0
        %2096 = vmatpush1.bf16.msra.mxu0 0
        %2097 = vmatprep.subr.bf16.mxu0 0
        %2098 = vmatpush1.bf16.msra.mxu0 0
        %2099 = vmatprep.subr.bf16.mxu0 0
        %2100 = vmatpush1.bf16.msra.mxu0 0
        %2101 = vmatprep.subr.bf16.mxu0 0
        %2102 = vmatpush1.bf16.msra.mxu0 0
        %2103 = vmatprep.subr.bf16.mxu0 0
        %2104 = vmatpush1.bf16.msra.mxu0 0
        %2105 = vmatprep.mubr.bf16.mxu0 0
        %2106 = vmatmul.mubr.bf16.gmra.mrb[0].mxu0 %v2071
        %v2107 = vpop.f32.mrb[0].mxu0
        %v2108 = vadd.f32 0.0, %v2107
        %v2109 = vpop.f32.mrb[0].mxu0
        %v2110 = vpop.f32.mrb[0].mxu0
        %v2111 = vpop.f32.mrb[0].mxu0
        %2112 = vdwg.mxu0
        %v2113 = vpack.c.bf16 %v2108, %v2108
        %v2118 = vunpack.c.l.b16 %v1816
        %v2119 = vunpack.c.l.b16 %v1817
        %v2120 = vunpack.c.l.b16 %v1818
        %v2121 = vunpack.c.l.b16 %v1819
        %v2122 = vpack.c.b16 %v2119, %v2118
        %v2123 = vpack.c.b16 %v2121, %v2120
        %v2127 = vsel %vm1820, %v2113, 0
        %2129 = vmatprep.subr.bf16.mxu0 0
        %2130 = vmatpush1.bf16.msra.mxu0 %v2122
        %2131 = vmatprep.subr.bf16.mxu0 0
        %2132 = vmatpush1.bf16.msra.mxu0 %v2123
        %2133 = vmatprep.subr.bf16.mxu0 0
        %2134 = vmatpush1.bf16.msra.mxu0 0
        %2135 = vmatprep.subr.bf16.mxu0 0
        %2136 = vmatpush1.bf16.msra.mxu0 0
        %2137 = vmatprep.subr.bf16.mxu0 0
        %2138 = vmatpush1.bf16.msra.mxu0 0
        %2139 = vmatprep.subr.bf16.mxu0 0
        %2140 = vmatpush1.bf16.msra.mxu0 0
        %2141 = vmatprep.subr.bf16.mxu0 0
        %2142 = vmatpush1.bf16.msra.mxu0 0
        %2143 = vmatprep.subr.bf16.mxu0 0
        %2144 = vmatpush1.bf16.msra.mxu0 0
        %2145 = vmatprep.subr.bf16.mxu0 0
        %2146 = vmatpush1.bf16.msra.mxu0 0
        %2147 = vmatprep.subr.bf16.mxu0 0
        %2148 = vmatpush1.bf16.msra.mxu0 0
        %2149 = vmatprep.subr.bf16.mxu0 0
        %2150 = vmatpush1.bf16.msra.mxu0 0
        %2151 = vmatprep.subr.bf16.mxu0 0
        %2152 = vmatpush1.bf16.msra.mxu0 0
        %2153 = vmatprep.subr.bf16.mxu0 0
        %2154 = vmatpush1.bf16.msra.mxu0 0
        %2155 = vmatprep.subr.bf16.mxu0 0
        %2156 = vmatpush1.bf16.msra.mxu0 0
        %2157 = vmatprep.subr.bf16.mxu0 0
        %2158 = vmatpush1.bf16.msra.mxu0 0
        %2159 = vmatprep.subr.bf16.mxu0 0
        %2160 = vmatpush1.bf16.msra.mxu0 0
        %2161 = vmatprep.mubr.bf16.mxu0 0
        %2162 = vmatmul.mubr.bf16.gmra.mrb[0].mxu0 %v2127
        %v2163 = vpop.f32.mrb[0].mxu0
        %v2164 = vadd.f32 0.0, %v2163
        %v2165 = vpop.f32.mrb[0].mxu0
        %v2166 = vpop.f32.mrb[0].mxu0
        %v2167 = vpop.f32.mrb[0].mxu0
        %2168 = vdwg.mxu0
        %v2169 = vadd.f32 %v1805, %v2164
        %v2170 = vld [vmem:[#allocation22] sm:$0x1]
        %v2171 = vld [vmem:[#allocation23] sm:$0x1]
        %v2172 = vld [vmem:[#allocation25] sm:$0xf]
        %v2173 = vld [vmem:[#allocation25 + $0x4] sm:$0xf]
        %v2174 = vld [vmem:[#allocation25 + $0x8] sm:$0xf]
        %v2175 = vld [vmem:[#allocation25 + $0xc] sm:$0xf]
        %v2176 = vld [vmem:[#allocation26] sm:$0x1]
        %v2177 = vld [vmem:[#allocation28] sm:$0xf]
        %v2178 = vld [vmem:[#allocation28 + $0x4] sm:$0xf]
        %v2179 = vld [vmem:[#allocation28 + $0x8] sm:$0xf]
        %v2180 = vld [vmem:[#allocation28 + $0xc] sm:$0xf]
        %v2181 = vld [vmem:[#allocation28 + $0x10] sm:$0xf]
        %v2182 = vld [vmem:[#allocation28 + $0x14] sm:$0xf]
        %v2183 = vld [vmem:[#allocation28 + $0x18] sm:$0xf]
        %v2184 = vld [vmem:[#allocation28 + $0x1c] sm:$0xf]
        %v2185 = vld [vmem:[#allocation28 + $0x20] sm:$0xf]
        %v2186 = vld [vmem:[#allocation28 + $0x24] sm:$0xf]
        %v2187 = vld [vmem:[#allocation28 + $0x28] sm:$0xf]
        %v2188 = vld [vmem:[#allocation28 + $0x2c] sm:$0xf]
        %v2189 = vld [vmem:[#allocation28 + $0x30] sm:$0xf]
        %v2190 = vld [vmem:[#allocation28 + $0x34] sm:$0xf]
        %v2191 = vld [vmem:[#allocation28 + $0x38] sm:$0xf]
        %v2192 = vld [vmem:[#allocation28 + $0x3c] sm:$0xf]
        %v2193 = vld [vmem:[#allocation29] sm:$0x1]
        %v2194 = vsel %vm1820, %v2169, 0.0
        %2195 = vadd.xlane.f32.xlu0 %v2194
        %v2196 = vpop.xlane.xlu0 %2195
        %v2197 = vmul.f32 %v2196, %v1824
        %v2198 = vsub.f32 %v2169, %v2197
        %v2199 = vmul.f32 %v2198, %v2198
        %v2200 = vsel %vm1820, %v2199, 0.0
        %2201 = vadd.xlane.f32.xlu0 %v2200
        %v2202 = vpop.xlane.xlu0 %2201
        %v2203 = vmul.f32 %v2202, %v1824
        %v2204 = vadd.f32 %v2203, 1e-05
        %v2205 = vrsqrt.pop %v2204
        %v2206 = vmul.f32 %v2198, %v2205
        %v2208 = vlaneseq
        %v2209 = vshrl.u32 %v2208, 7
        %v2210 = vsub.s32 0, %v2209
        %v2211 = vrot.slane %v2170, %v2210
        %v2213 = vmul.f32 %v2206, %v2211
        %v2215 = vlaneseq
        %v2216 = vshrl.u32 %v2215, 7
        %v2217 = vsub.s32 0, %v2216
        %v2218 = vrot.slane %v2171, %v2217
        %v2220 = vadd.f32 %v2213, %v2218
        %v2221 = vpack.c.bf16 %v2220, %v2220
        %v2223 = vlaneseq
        %v2224 = vshrl.u32 %v2223, 7
        %v2225 = vsub.s32 0, %v2224
        %v2226 = vrot.slane %v2176, %v2225
        %v2232 = vunpack.c.l.b16 %v2172
        %v2233 = vunpack.c.l.b16 %v2173
        %v2234 = vunpack.c.l.b16 %v2174
        %v2235 = vunpack.c.l.b16 %v2175
        %v2236 = vpack.c.b16 %v2233, %v2232
        %v2237 = vpack.c.b16 %v2235, %v2234
        %v2241 = vsel %vm1820, %v2221, 0
        %2243 = vmatprep.subr.bf16.mxu0 0
        %2244 = vmatpush1.bf16.msra.mxu0 %v2236
        %2245 = vmatprep.subr.bf16.mxu0 0
        %2246 = vmatpush1.bf16.msra.mxu0 %v2237
        %2247 = vmatprep.subr.bf16.mxu0 0
        %2248 = vmatpush1.bf16.msra.mxu0 0
        %2249 = vmatprep.subr.bf16.mxu0 0
        %2250 = vmatpush1.bf16.msra.mxu0 0
        %2251 = vmatprep.subr.bf16.mxu0 0
        %2252 = vmatpush1.bf16.msra.mxu0 0
        %2253 = vmatprep.subr.bf16.mxu0 0
        %2254 = vmatpush1.bf16.msra.mxu0 0
        %2255 = vmatprep.subr.bf16.mxu0 0
        %2256 = vmatpush1.bf16.msra.mxu0 0
        %2257 = vmatprep.subr.bf16.mxu0 0
        %2258 = vmatpush1.bf16.msra.mxu0 0
        %2259 = vmatprep.subr.bf16.mxu0 0
        %2260 = vmatpush1.bf16.msra.mxu0 0
        %2261 = vmatprep.subr.bf16.mxu0 0
        %2262 = vmatpush1.bf16.msra.mxu0 0
        %2263 = vmatprep.subr.bf16.mxu0 0
        %2264 = vmatpush1.bf16.msra.mxu0 0
        %2265 = vmatprep.subr.bf16.mxu0 0
        %2266 = vmatpush1.bf16.msra.mxu0 0
        %2267 = vmatprep.subr.bf16.mxu0 0
        %2268 = vmatpush1.bf16.msra.mxu0 0
        %2269 = vmatprep.subr.bf16.mxu0 0
        %2270 = vmatpush1.bf16.msra.mxu0 0
        %2271 = vmatprep.subr.bf16.mxu0 0
        %2272 = vmatpush1.bf16.msra.mxu0 0
        %2273 = vmatprep.subr.bf16.mxu0 0
        %2274 = vmatpush1.bf16.msra.mxu0 0
        %2275 = vmatprep.mubr.bf16.mxu0 0
        %2276 = vmatmul.mubr.bf16.gmra.mrb[0].mxu0 %v2241
        %v2277 = vpop.f32.mrb[0].mxu0
        %v2278 = vadd.f32 %v2226, %v2277
        %v2279 = vpop.f32.mrb[0].mxu0
        %v2280 = vpop.f32.mrb[0].mxu0
        %v2281 = vpop.f32.mrb[0].mxu0
        %2282 = vdwg.mxu0
        %v2283 = vmul.f32 %v2278, 0.5
        %v2284 = vmul.f32 %v2278, 0.044715
        %v2285 = vmul.f32 %v2284, %v2278
        %v2286 = vmul.f32 %v2285, %v2278
        %v2287 = vadd.f32 %v2278, %v2286
        %v2288 = vmul.f32 %v2287, 0.7978846
        %v2289 = vtanh.pop %v2288
        %v2290 = vadd.f32 %v2289, 1.0
        %v2291 = vmul.f32 %v2283, %v2290
        %v2292 = vpack.c.bf16 %v2291, %v2291
        %v2294 = vlaneseq
        %v2295 = vshrl.u32 %v2294, 7
        %v2296 = vsub.s32 0, %v2295
        %v2297 = vrot.slane %v2193, %v2296
        %v2315 = vunpack.c.l.b16 %v2177
        %v2316 = vunpack.c.l.b16 %v2178
        %v2317 = vunpack.c.l.b16 %v2179
        %v2318 = vunpack.c.l.b16 %v2180
        %v2319 = vunpack.c.l.b16 %v2181
        %v2320 = vunpack.c.l.b16 %v2182
        %v2321 = vunpack.c.l.b16 %v2183
        %v2322 = vunpack.c.l.b16 %v2184
        %v2323 = vunpack.c.l.b16 %v2185
        %v2324 = vunpack.c.l.b16 %v2186
        %v2325 = vunpack.c.l.b16 %v2187
        %v2326 = vunpack.c.l.b16 %v2188
        %v2327 = vunpack.c.l.b16 %v2189
        %v2328 = vunpack.c.l.b16 %v2190
        %v2329 = vunpack.c.l.b16 %v2191
        %v2330 = vunpack.c.l.b16 %v2192
        %v2331 = vpack.c.b16 %v2316, %v2315
        %v2332 = vpack.c.b16 %v2318, %v2317
        %v2333 = vpack.c.b16 %v2320, %v2319
        %v2334 = vpack.c.b16 %v2322, %v2321
        %v2335 = vpack.c.b16 %v2324, %v2323
        %v2336 = vpack.c.b16 %v2326, %v2325
        %v2337 = vpack.c.b16 %v2328, %v2327
        %v2338 = vpack.c.b16 %v2330, %v2329
        %2347 = vmatprep.subr.bf16.mxu0 0
        %2348 = vmatpush1.bf16.msra.mxu0 %v2331
        %2349 = vmatprep.subr.bf16.mxu0 0
        %2350 = vmatpush1.bf16.msra.mxu0 %v2332
        %2351 = vmatprep.subr.bf16.mxu0 0
        %2352 = vmatpush1.bf16.msra.mxu0 %v2333
        %2353 = vmatprep.subr.bf16.mxu0 0
        %2354 = vmatpush1.bf16.msra.mxu0 %v2334
        %2355 = vmatprep.subr.bf16.mxu0 0
        %2356 = vmatpush1.bf16.msra.mxu0 %v2335
        %2357 = vmatprep.subr.bf16.mxu0 0
        %2358 = vmatpush1.bf16.msra.mxu0 %v2336
        %2359 = vmatprep.subr.bf16.mxu0 0
        %2360 = vmatpush1.bf16.msra.mxu0 %v2337
        %2361 = vmatprep.subr.bf16.mxu0 0
        %2362 = vmatpush1.bf16.msra.mxu0 %v2338
        %2363 = vmatprep.subr.bf16.mxu0 0
        %2364 = vmatpush1.bf16.msra.mxu0 0
        %2365 = vmatprep.subr.bf16.mxu0 0
        %2366 = vmatpush1.bf16.msra.mxu0 0
        %2367 = vmatprep.subr.bf16.mxu0 0
        %2368 = vmatpush1.bf16.msra.mxu0 0
        %2369 = vmatprep.subr.bf16.mxu0 0
        %2370 = vmatpush1.bf16.msra.mxu0 0
        %2371 = vmatprep.subr.bf16.mxu0 0
        %2372 = vmatpush1.bf16.msra.mxu0 0
        %2373 = vmatprep.subr.bf16.mxu0 0
        %2374 = vmatpush1.bf16.msra.mxu0 0
        %2375 = vmatprep.subr.bf16.mxu0 0
        %2376 = vmatpush1.bf16.msra.mxu0 0
        %2377 = vmatprep.subr.bf16.mxu0 0
        %2378 = vmatpush1.bf16.msra.mxu0 0
        %2379 = vmatprep.mubr.bf16.mxu0 0
        %2380 = vmatmul.mubr.bf16.gmra.mrb[0].mxu0 %v2292
        %v2381 = vpop.f32.mrb[0].mxu0
        %v2382 = vadd.f32 %v2297, %v2381
        %v2383 = vpop.f32.mrb[0].mxu0
        %v2384 = vpop.f32.mrb[0].mxu0
        %v2385 = vpop.f32.mrb[0].mxu0
        %2386 = vdwg.mxu0
        %v2387 = vadd.f32 %v2169, %v2382
        %v2388 = vld [vmem:[#allocation31] sm:$0x1]
        %v2389 = vld [vmem:[#allocation32] sm:$0x1]
        %v2390 = vld [vmem:[#allocation34] sm:$0x1]
        %v2391 = vld [vmem:[#allocation35] sm:$0x1]
        %v2392 = vld [vmem:[#allocation37] sm:$0xf]
        %v2393 = vld [vmem:[#allocation37 + $0x4] sm:$0xf]
        %v2394 = vld [vmem:[#allocation37 + $0x8] sm:$0xf]
        %v2395 = vld [vmem:[#allocation37 + $0xc] sm:$0xf]
        %v2396 = vld [vmem:[#allocation38] sm:$0xf]
        %v2397 = vld [vmem:[#allocation38 + $0x4] sm:$0xf]
        %v2398 = vld [vmem:[#allocation38 + $0x8] sm:$0xf]
        %v2399 = vld [vmem:[#allocation38 + $0xc] sm:$0xf]
        %v2400 = vld [vmem:[#allocation40] sm:$0xf]
        %v2401 = vld [vmem:[#allocation40 + $0x4] sm:$0xf]
        %v2402 = vld [vmem:[#allocation40 + $0x8] sm:$0xf]
        %v2403 = vld [vmem:[#allocation40 + $0xc] sm:$0xf]
        %v2404 = vsel %vm1820, %v2387, 0.0
        %2405 = vadd.xlane.f32.xlu0 %v2404
        %v2406 = vpop.xlane.xlu0 %2405
        %v2407 = vmul.f32 %v2406, %v1824
        %v2408 = vsub.f32 %v2387, %v2407
        %v2409 = vmul.f32 %v2408, %v2408
        %v2410 = vsel %vm1820, %v2409, 0.0
        %2411 = vadd.xlane.f32.xlu0 %v2410
        %v2412 = vpop.xlane.xlu0 %2411
        %v2413 = vmul.f32 %v2412, %v1824
        %v2414 = vadd.f32 %v2413, 1e-05
        %v2415 = vrsqrt.pop %v2414
        %v2416 = vmul.f32 %v2408, %v2415
        %v2418 = vlaneseq
        %v2419 = vshrl.u32 %v2418, 7
        %v2420 = vsub.s32 0, %v2419
        %v2421 = vrot.slane %v2388, %v2420
        %v2423 = vmul.f32 %v2416, %v2421
        %v2425 = vlaneseq
        %v2426 = vshrl.u32 %v2425, 7
        %v2427 = vsub.s32 0, %v2426
        %v2428 = vrot.slane %v2389, %v2427
        %v2430 = vadd.f32 %v2423, %v2428
        %v2432 = vlaneseq
        %v2433 = vshrl.u32 %v2432, 7
        %v2434 = vsub.s32 0, %v2433
        %v2435 = vrot.slane %v2390, %v2434
        %v2437 = vmul.f32 %v2416, %v2435
        %v2439 = vlaneseq
        %v2440 = vshrl.u32 %v2439, 7
        %v2441 = vsub.s32 0, %v2440
        %v2442 = vrot.slane %v2391, %v2441
        %v2444 = vadd.f32 %v2437, %v2442
        %v2445 = vpack.c.bf16 %v2430, %v2430
        %v2450 = vunpack.c.l.b16 %v2392
        %v2451 = vunpack.c.l.b16 %v2393
        %v2452 = vunpack.c.l.b16 %v2394
        %v2453 = vunpack.c.l.b16 %v2395
        %v2454 = vpack.c.b16 %v2451, %v2450
        %v2455 = vpack.c.b16 %v2453, %v2452
        %v2459 = vsel %vm1820, %v2445, 0
        %2461 = vmatprep.subr.bf16.mxu0 0
        %2462 = vmatpush1.bf16.msra.mxu0 %v2454
        %2463 = vmatprep.subr.bf16.mxu0 0
        %2464 = vmatpush1.bf16.msra.mxu0 %v2455
        %2465 = vmatprep.subr.bf16.mxu0 0
        %2466 = vmatpush1.bf16.msra.mxu0 0
        %2467 = vmatprep.subr.bf16.mxu0 0
        %2468 = vmatpush1.bf16.msra.mxu0 0
        %2469 = vmatprep.subr.bf16.mxu0 0
        %2470 = vmatpush1.bf16.msra.mxu0 0
        %2471 = vmatprep.subr.bf16.mxu0 0
        %2472 = vmatpush1.bf16.msra.mxu0 0
        %2473 = vmatprep.subr.bf16.mxu0 0
        %2474 = vmatpush1.bf16.msra.mxu0 0
        %2475 = vmatprep.subr.bf16.mxu0 0
        %2476 = vmatpush1.bf16.msra.mxu0 0
        %2477 = vmatprep.subr.bf16.mxu0 0
        %2478 = vmatpush1.bf16.msra.mxu0 0
        %2479 = vmatprep.subr.bf16.mxu0 0
        %2480 = vmatpush1.bf16.msra.mxu0 0
        %2481 = vmatprep.subr.bf16.mxu0 0
        %2482 = vmatpush1.bf16.msra.mxu0 0
        %2483 = vmatprep.subr.bf16.mxu0 0
        %2484 = vmatpush1.bf16.msra.mxu0 0
        %2485 = vmatprep.subr.bf16.mxu0 0
        %2486 = vmatpush1.bf16.msra.mxu0 0
        %2487 = vmatprep.subr.bf16.mxu0 0
        %2488 = vmatpush1.bf16.msra.mxu0 0
        %2489 = vmatprep.subr.bf16.mxu0 0
        %2490 = vmatpush1.bf16.msra.mxu0 0
        %2491 = vmatprep.subr.bf16.mxu0 0
        %2492 = vmatpush1.bf16.msra.mxu0 0
        %2493 = vmatprep.mubr.bf16.mxu0 0
        %2494 = vmatmul.mubr.bf16.gmra.mrb[0].mxu0 %v2459
        %v2495 = vpop.f32.mrb[0].mxu0
        %v2496 = vadd.f32 0.0, %v2495
        %v2497 = vpop.f32.mrb[0].mxu0
        %v2498 = vpop.f32.mrb[0].mxu0
        %v2499 = vpop.f32.mrb[0].mxu0
        %2500 = vdwg.mxu0
        %v2501 = vpack.c.bf16 %v2444, %v2444
        %v2506 = vunpack.c.l.b16 %v2396
        %v2507 = vunpack.c.l.b16 %v2397
        %v2508 = vunpack.c.l.b16 %v2398
        %v2509 = vunpack.c.l.b16 %v2399
        %v2510 = vpack.c.b16 %v2507, %v2506
        %v2511 = vpack.c.b16 %v2509, %v2508
        %v2515 = vsel %vm1820, %v2501, 0
        %2517 = vmatprep.subr.bf16.mxu0 0
        %2518 = vmatpush1.bf16.msra.mxu0 %v2510
        %2519 = vmatprep.subr.bf16.mxu0 0
        %2520 = vmatpush1.bf16.msra.mxu0 %v2511
        %2521 = vmatprep.subr.bf16.mxu0 0
        %2522 = vmatpush1.bf16.msra.mxu0 0
        %2523 = vmatprep.subr.bf16.mxu0 0
        %2524 = vmatpush1.bf16.msra.mxu0 0
        %2525 = vmatprep.subr.bf16.mxu0 0
        %2526 = vmatpush1.bf16.msra.mxu0 0
        %2527 = vmatprep.subr.bf16.mxu0 0
        %2528 = vmatpush1.bf16.msra.mxu0 0
        %2529 = vmatprep.subr.bf16.mxu0 0
        %2530 = vmatpush1.bf16.msra.mxu0 0
        %2531 = vmatprep.subr.bf16.mxu0 0
        %2532 = vmatpush1.bf16.msra.mxu0 0
        %2533 = vmatprep.subr.bf16.mxu0 0
        %2534 = vmatpush1.bf16.msra.mxu0 0
        %2535 = vmatprep.subr.bf16.mxu0 0
        %2536 = vmatpush1.bf16.msra.mxu0 0
        %2537 = vmatprep.subr.bf16.mxu0 0
        %2538 = vmatpush1.bf16.msra.mxu0 0
        %2539 = vmatprep.subr.bf16.mxu0 0
        %2540 = vmatpush1.bf16.msra.mxu0 0
        %2541 = vmatprep.subr.bf16.mxu0 0
        %2542 = vmatpush1.bf16.msra.mxu0 0
        %2543 = vmatprep.subr.bf16.mxu0 0
        %2544 = vmatpush1.bf16.msra.mxu0 0
        %2545 = vmatprep.subr.bf16.mxu0 0
        %2546 = vmatpush1.bf16.msra.mxu0 0
        %2547 = vmatprep.subr.bf16.mxu0 0
        %2548 = vmatpush1.bf16.msra.mxu0 0
        %2549 = vmatprep.mubr.bf16.mxu0 0
        %2550 = vmatmul.mubr.bf16.gmra.mrb[0].mxu0 %v2515
        %v2551 = vpop.f32.mrb[0].mxu0
        %v2552 = vadd.f32 0.0, %v2551
        %v2553 = vpop.f32.mrb[0].mxu0
        %v2554 = vpop.f32.mrb[0].mxu0
        %v2555 = vpop.f32.mrb[0].mxu0
        %2556 = vdwg.mxu0
        %v2557 = vpack.c.bf16 %v2496, %v2496
        %v2558 = vpack.c.bf16 %v2552, %v2552
        %v2560 = vsel %vm1820, %v2557, 0
        %v2563 = vsel %vm1820, %v2558, 0
        %2565 = vmatprep.subr.bf16.mxu0 0
        %2566 = vmatpush1.bf16.xpose.msra.mxu0 %v2563
        %2567 = vmatprep.subr.bf16.mxu0 0
        %2568 = vmatpush1.bf16.xpose.msra.mxu0 0
        %2569 = vmatprep.subr.bf16.mxu0 0
        %2570 = vmatpush1.bf16.xpose.msra.mxu0 0
        %2571 = vmatprep.subr.bf16.mxu0 0
        %2572 = vmatpush1.bf16.xpose.msra.mxu0 0
        %2573 = vmatprep.subr.bf16.mxu0 0
        %2574 = vmatpush1.bf16.xpose.msra.mxu0 0
        %2575 = vmatprep.subr.bf16.mxu0 0
        %2576 = vmatpush1.bf16.xpose.msra.mxu0 0
        %2577 = vmatprep.subr.bf16.mxu0 0
        %2578 = vmatpush1.bf16.xpose.msra.mxu0 0
        %2579 = vmatprep.subr.bf16.mxu0 0
        %2580 = vmatpush1.bf16.xpose.msra.mxu0 0
        %2581 = vmatprep.subr.bf16.mxu0 0
        %2582 = vmatpush1.bf16.xpose.msra.mxu0 0
        %2583 = vmatprep.subr.bf16.mxu0 0
        %2584 = vmatpush1.bf16.xpose.msra.mxu0 0
        %2585 = vmatprep.subr.bf16.mxu0 0
        %2586 = vmatpush1.bf16.xpose.msra.mxu0 0
        %2587 = vmatprep.subr.bf16.mxu0 0
        %2588 = vmatpush1.bf16.xpose.msra.mxu0 0
        %2589 = vmatprep.subr.bf16.mxu0 0
        %2590 = vmatpush1.bf16.xpose.msra.mxu0 0
        %2591 = vmatprep.subr.bf16.mxu0 0
        %2592 = vmatpush1.bf16.xpose.msra.mxu0 0
        %2593 = vmatprep.subr.bf16.mxu0 0
        %2594 = vmatpush1.bf16.xpose.msra.mxu0 0
        %2595 = vmatprep.subr.bf16.mxu0 0
        %2596 = vmatpush1.bf16.xpose.msra.mxu0 0
        %2597 = vmatprep.mubr.bf16.mxu0 0
        %2598 = vmatmul.mubr.bf16.gmra.mrb[0].mxu0 %v2560
        %v2599 = vpop.f32.mrb[0].mxu0
        %v2600 = vadd.f32 0.0, %v2599
        %v2601 = vpop.f32.mrb[0].mxu0
        %v2602 = vpop.f32.mrb[0].mxu0
        %v2603 = vpop.f32.mrb[0].mxu0
        %2604 = vdwg.mxu0
        %vm2605 = vcmask 64512
        %v2606 = vsel %vm2605, %v2600, -inf
        %2607 = vmax.xlane.f32.xlu0 %v2606
        %v2608 = vpop.xlane.xlu0 %2607
        %v2609 = vsub.f32 %v2600, %v2608
        %v2610 = vmul.f32 %v2609, 1.442695
        %v2611 = vpow.pop %v2610
        %v2612 = vsel %vm2605, %v2611, 0.0
        %2613 = vadd.xlane.f32.xlu0 %v2612
        %v2614 = vpop.xlane.xlu0 %2613
        %v2615 = vrcp.pop %v2614
        %v2616 = vmul.f32 %v2611, %v2615
        %v2617 = vpack.c.bf16 %v2616, %v2616
        %2619 = vrot.lane.b32.xlu0 %v2558, 96
        %v2620 = vpop.permute.xlu0 %2619
        %v2622 = vsel %vm2605, %v2617, 0
        %vm2624 = vcmask 1043456
        %v2626 = vsel %vm2624, %v2620, 0
        %2628 = vmatprep.subr.bf16.mxu0 0
        %2629 = vmatpush1.bf16.msra.mxu0 %v2626
        %2630 = vmatprep.subr.bf16.mxu0 0
        %2631 = vmatpush1.bf16.msra.mxu0 0
        %2632 = vmatprep.subr.bf16.mxu0 0
        %2633 = vmatpush1.bf16.msra.mxu0 0
        %2634 = vmatprep.subr.bf16.mxu0 0
        %2635 = vmatpush1.bf16.msra.mxu0 0
        %2636 = vmatprep.subr.bf16.mxu0 0
        %2637 = vmatpush1.bf16.msra.mxu0 0
        %2638 = vmatprep.subr.bf16.mxu0 0
        %2639 = vmatpush1.bf16.msra.mxu0 0
        %2640 = vmatprep.subr.bf16.mxu0 0
        %2641 = vmatpush1.bf16.msra.mxu0 0
        %2642 = vmatprep.subr.bf16.mxu0 0
        %2643 = vmatpush1.bf16.msra.mxu0 0
        %2644 = vmatprep.subr.bf16.mxu0 0
        %2645 = vmatpush1.bf16.msra.mxu0 0
        %2646 = vmatprep.subr.bf16.mxu0 0
        %2647 = vmatpush1.bf16.msra.mxu0 0
        %2648 = vmatprep.subr.bf16.mxu0 0
        %2649 = vmatpush1.bf16.msra.mxu0 0
        %2650 = vmatprep.subr.bf16.mxu0 0
        %2651 = vmatpush1.bf16.msra.mxu0 0
        %2652 = vmatprep.subr.bf16.mxu0 0
        %2653 = vmatpush1.bf16.msra.mxu0 0
        %2654 = vmatprep.subr.bf16.mxu0 0
        %2655 = vmatpush1.bf16.msra.mxu0 0
        %2656 = vmatprep.subr.bf16.mxu0 0
        %2657 = vmatpush1.bf16.msra.mxu0 0
        %2658 = vmatprep.subr.bf16.mxu0 0
        %2659 = vmatpush1.bf16.msra.mxu0 0
        %2660 = vmatprep.mubr.bf16.mxu0 0
        %2661 = vmatmul.mubr.bf16.gmra.mrb[0].mxu0 %v2622
        %v2662 = vpop.f32.mrb[0].mxu0
        %v2663 = vadd.f32 0.0, %v2662
        %v2664 = vpop.f32.mrb[0].mxu0
        %v2665 = vpop.f32.mrb[0].mxu0
        %v2666 = vpop.f32.mrb[0].mxu0
        %2667 = vdwg.mxu0
        %v2668 = vpack.c.bf16 %v2663, %v2663
        %v2673 = vunpack.c.l.b16 %v2400
        %v2674 = vunpack.c.l.b16 %v2401
        %v2675 = vunpack.c.l.b16 %v2402
        %v2676 = vunpack.c.l.b16 %v2403
        %v2677 = vpack.c.b16 %v2674, %v2673
        %v2678 = vpack.c.b16 %v2676, %v2675
        %v2682 = vsel %vm1820, %v2668, 0
        %2684 = vmatprep.subr.bf16.mxu0 0
        %2685 = vmatpush1.bf16.msra.mxu0 %v2677
        %2686 = vmatprep.subr.bf16.mxu0 0
        %2687 = vmatpush1.bf16.msra.mxu0 %v2678
        %2688 = vmatprep.subr.bf16.mxu0 0
        %2689 = vmatpush1.bf16.msra.mxu0 0
        %2690 = vmatprep.subr.bf16.mxu0 0
        %2691 = vmatpush1.bf16.msra.mxu0 0
        %2692 = vmatprep.subr.bf16.mxu0 0
        %2693 = vmatpush1.bf16.msra.mxu0 0
        %2694 = vmatprep.subr.bf16.mxu0 0
        %2695 = vmatpush1.bf16.msra.mxu0 0
        %2696 = vmatprep.subr.bf16.mxu0 0
        %2697 = vmatpush1.bf16.msra.mxu0 0
        %2698 = vmatprep.subr.bf16.mxu0 0
        %2699 = vmatpush1.bf16.msra.mxu0 0
        %2700 = vmatprep.subr.bf16.mxu0 0
        %2701 = vmatpush1.bf16.msra.mxu0 0
        %2702 = vmatprep.subr.bf16.mxu0 0
        %2703 = vmatpush1.bf16.msra.mxu0 0
        %2704 = vmatprep.subr.bf16.mxu0 0
        %2705 = vmatpush1.bf16.msra.mxu0 0
        %2706 = vmatprep.subr.bf16.mxu0 0
        %2707 = vmatpush1.bf16.msra.mxu0 0
        %2708 = vmatprep.subr.bf16.mxu0 0
        %2709 = vmatpush1.bf16.msra.mxu0 0
        %2710 = vmatprep.subr.bf16.mxu0 0
        %2711 = vmatpush1.bf16.msra.mxu0 0
        %2712 = vmatprep.subr.bf16.mxu0 0
        %2713 = vmatpush1.bf16.msra.mxu0 0
        %2714 = vmatprep.subr.bf16.mxu0 0
        %2715 = vmatpush1.bf16.msra.mxu0 0
        %2716 = vmatprep.mubr.bf16.mxu0 0
        %2717 = vmatmul.mubr.bf16.gmra.mrb[0].mxu0 %v2682
        %v2718 = vpop.f32.mrb[0].mxu0
        %v2719 = vadd.f32 0.0, %v2718
        %v2720 = vpop.f32.mrb[0].mxu0
        %v2721 = vpop.f32.mrb[0].mxu0
        %v2722 = vpop.f32.mrb[0].mxu0
        %2723 = vdwg.mxu0
        %v2724 = vadd.f32 %v2387, %v2719
        %v2725 = vld [vmem:[#allocation41] sm:$0x1]
        %v2726 = vld [vmem:[#allocation43] sm:$0x1]
        %v2727 = vld [vmem:[#allocation44] sm:$0xf]
        %v2728 = vld [vmem:[#allocation44 + $0x4] sm:$0xf]
        %v2729 = vld [vmem:[#allocation44 + $0x8] sm:$0xf]
        %v2730 = vld [vmem:[#allocation44 + $0xc] sm:$0xf]
        %v2731 = vld [vmem:[#allocation46] sm:$0x1]
        %v2732 = vld [vmem:[#allocation47] sm:$0xf]
        %v2733 = vld [vmem:[#allocation47 + $0x4] sm:$0xf]
        %v2734 = vld [vmem:[#allocation47 + $0x8] sm:$0xf]
        %v2735 = vld [vmem:[#allocation47 + $0xc] sm:$0xf]
        %v2736 = vld [vmem:[#allocation47 + $0x10] sm:$0xf]
        %v2737 = vld [vmem:[#allocation47 + $0x14] sm:$0xf]
        %v2738 = vld [vmem:[#allocation47 + $0x18] sm:$0xf]
        %v2739 = vld [vmem:[#allocation47 + $0x1c] sm:$0xf]
        %v2740 = vld [vmem:[#allocation47 + $0x20] sm:$0xf]
        %v2741 = vld [vmem:[#allocation47 + $0x24] sm:$0xf]
        %v2742 = vld [vmem:[#allocation47 + $0x28] sm:$0xf]
        %v2743 = vld [vmem:[#allocation47 + $0x2c] sm:$0xf]
        %v2744 = vld [vmem:[#allocation47 + $0x30] sm:$0xf]
        %v2745 = vld [vmem:[#allocation47 + $0x34] sm:$0xf]
        %v2746 = vld [vmem:[#allocation47 + $0x38] sm:$0xf]
        %v2747 = vld [vmem:[#allocation47 + $0x3c] sm:$0xf]
        %v2748 = vld [vmem:[#allocation49] sm:$0x1]
        %v2749 = vsel %vm1820, %v2724, 0.0
        %2750 = vadd.xlane.f32.xlu0 %v2749
        %v2751 = vpop.xlane.xlu0 %2750
        %v2752 = vmul.f32 %v2751, %v1824
        %v2753 = vsub.f32 %v2724, %v2752
        %v2754 = vmul.f32 %v2753, %v2753
        %v2755 = vsel %vm1820, %v2754, 0.0
        %2756 = vadd.xlane.f32.xlu0 %v2755
        %v2757 = vpop.xlane.xlu0 %2756
        %v2758 = vmul.f32 %v2757, %v1824
        %v2759 = vadd.f32 %v2758, 1e-05
        %v2760 = vrsqrt.pop %v2759
        %v2761 = vmul.f32 %v2753, %v2760
        %v2763 = vlaneseq
        %v2764 = vshrl.u32 %v2763, 7
        %v2765 = vsub.s32 0, %v2764
        %v2766 = vrot.slane %v2725, %v2765
        %v2768 = vmul.f32 %v2761, %v2766
        %v2770 = vlaneseq
        %v2771 = vshrl.u32 %v2770, 7
        %v2772 = vsub.s32 0, %v2771
        %v2773 = vrot.slane %v2726, %v2772
        %v2775 = vadd.f32 %v2768, %v2773
        %v2776 = vpack.c.bf16 %v2775, %v2775
        %v2778 = vlaneseq
        %v2779 = vshrl.u32 %v2778, 7
        %v2780 = vsub.s32 0, %v2779
        %v2781 = vrot.slane %v2731, %v2780
        %v2787 = vunpack.c.l.b16 %v2727
        %v2788 = vunpack.c.l.b16 %v2728
        %v2789 = vunpack.c.l.b16 %v2729
        %v2790 = vunpack.c.l.b16 %v2730
        %v2791 = vpack.c.b16 %v2788, %v2787
        %v2792 = vpack.c.b16 %v2790, %v2789
        %v2796 = vsel %vm1820, %v2776, 0
        %2798 = vmatprep.subr.bf16.mxu0 0
        %2799 = vmatpush1.bf16.msra.mxu0 %v2791
        %2800 = vmatprep.subr.bf16.mxu0 0
        %2801 = vmatpush1.bf16.msra.mxu0 %v2792
        %2802 = vmatprep.subr.bf16.mxu0 0
        %2803 = vmatpush1.bf16.msra.mxu0 0
        %2804 = vmatprep.subr.bf16.mxu0 0
        %2805 = vmatpush1.bf16.msra.mxu0 0
        %2806 = vmatprep.subr.bf16.mxu0 0
        %2807 = vmatpush1.bf16.msra.mxu0 0
        %2808 = vmatprep.subr.bf16.mxu0 0
        %2809 = vmatpush1.bf16.msra.mxu0 0
        %2810 = vmatprep.subr.bf16.mxu0 0
        %2811 = vmatpush1.bf16.msra.mxu0 0
        %2812 = vmatprep.subr.bf16.mxu0 0
        %2813 = vmatpush1.bf16.msra.mxu0 0
        %2814 = vmatprep.subr.bf16.mxu0 0
        %2815 = vmatpush1.bf16.msra.mxu0 0
        %2816 = vmatprep.subr.bf16.mxu0 0
        %2817 = vmatpush1.bf16.msra.mxu0 0
        %2818 = vmatprep.subr.bf16.mxu0 0
        %2819 = vmatpush1.bf16.msra.mxu0 0
        %2820 = vmatprep.subr.bf16.mxu0 0
        %2821 = vmatpush1.bf16.msra.mxu0 0
        %2822 = vmatprep.subr.bf16.mxu0 0
        %2823 = vmatpush1.bf16.msra.mxu0 0
        %2824 = vmatprep.subr.bf16.mxu0 0
        %2825 = vmatpush1.bf16.msra.mxu0 0
        %2826 = vmatprep.subr.bf16.mxu0 0
        %2827 = vmatpush1.bf16.msra.mxu0 0
        %2828 = vmatprep.subr.bf16.mxu0 0
        %2829 = vmatpush1.bf16.msra.mxu0 0
        %2830 = vmatprep.mubr.bf16.mxu0 0
        %2831 = vmatmul.mubr.bf16.gmra.mrb[0].mxu0 %v2796
        %v2832 = vpop.f32.mrb[0].mxu0
        %v2833 = vadd.f32 %v2781, %v2832
        %v2834 = vpop.f32.mrb[0].mxu0
        %v2835 = vpop.f32.mrb[0].mxu0
        %v2836 = vpop.f32.mrb[0].mxu0
        %2837 = vdwg.mxu0
        %v2838 = vmul.f32 %v2833, 0.5
        %v2839 = vmul.f32 %v2833, 0.044715
        %v2840 = vmul.f32 %v2839, %v2833
        %v2841 = vmul.f32 %v2840, %v2833
        %v2842 = vadd.f32 %v2833, %v2841
        %v2843 = vmul.f32 %v2842, 0.7978846
        %v2844 = vtanh.pop %v2843
        %v2845 = vadd.f32 %v2844, 1.0
        %v2846 = vmul.f32 %v2838, %v2845
        %v2847 = vpack.c.bf16 %v2846, %v2846
        %v2849 = vlaneseq
        %v2850 = vshrl.u32 %v2849, 7
        %v2851 = vsub.s32 0, %v2850
        %v2852 = vrot.slane %v2748, %v2851
        %v2870 = vunpack.c.l.b16 %v2732
        %v2871 = vunpack.c.l.b16 %v2733
        %v2872 = vunpack.c.l.b16 %v2734
        %v2873 = vunpack.c.l.b16 %v2735
        %v2874 = vunpack.c.l.b16 %v2736
        %v2875 = vunpack.c.l.b16 %v2737
        %v2876 = vunpack.c.l.b16 %v2738
        %v2877 = vunpack.c.l.b16 %v2739
        %v2878 = vunpack.c.l.b16 %v2740
        %v2879 = vunpack.c.l.b16 %v2741
        %v2880 = vunpack.c.l.b16 %v2742
        %v2881 = vunpack.c.l.b16 %v2743
        %v2882 = vunpack.c.l.b16 %v2744
        %v2883 = vunpack.c.l.b16 %v2745
        %v2884 = vunpack.c.l.b16 %v2746
        %v2885 = vunpack.c.l.b16 %v2747
        %v2886 = vpack.c.b16 %v2871, %v2870
        %v2887 = vpack.c.b16 %v2873, %v2872
        %v2888 = vpack.c.b16 %v2875, %v2874
        %v2889 = vpack.c.b16 %v2877, %v2876
        %v2890 = vpack.c.b16 %v2879, %v2878
        %v2891 = vpack.c.b16 %v2881, %v2880
        %v2892 = vpack.c.b16 %v2883, %v2882
        %v2893 = vpack.c.b16 %v2885, %v2884
        %2902 = vmatprep.subr.bf16.mxu0 0
        %2903 = vmatpush1.bf16.msra.mxu0 %v2886
        %2904 = vmatprep.subr.bf16.mxu0 0
        %2905 = vmatpush1.bf16.msra.mxu0 %v2887
        %2906 = vmatprep.subr.bf16.mxu0 0
        %2907 = vmatpush1.bf16.msra.mxu0 %v2888
        %2908 = vmatprep.subr.bf16.mxu0 0
        %2909 = vmatpush1.bf16.msra.mxu0 %v2889
        %2910 = vmatprep.subr.bf16.mxu0 0
        %2911 = vmatpush1.bf16.msra.mxu0 %v2890
        %2912 = vmatprep.subr.bf16.mxu0 0
        %2913 = vmatpush1.bf16.msra.mxu0 %v2891
        %2914 = vmatprep.subr.bf16.mxu0 0
        %2915 = vmatpush1.bf16.msra.mxu0 %v2892
        %2916 = vmatprep.subr.bf16.mxu0 0
        %2917 = vmatpush1.bf16.msra.mxu0 %v2893
        %2918 = vmatprep.subr.bf16.mxu0 0
        %2919 = vmatpush1.bf16.msra.mxu0 0
        %2920 = vmatprep.subr.bf16.mxu0 0
        %2921 = vmatpush1.bf16.msra.mxu0 0
        %2922 = vmatprep.subr.bf16.mxu0 0
        %2923 = vmatpush1.bf16.msra.mxu0 0
        %2924 = vmatprep.subr.bf16.mxu0 0
        %2925 = vmatpush1.bf16.msra.mxu0 0
        %2926 = vmatprep.subr.bf16.mxu0 0
        %2927 = vmatpush1.bf16.msra.mxu0 0
        %2928 = vmatprep.subr.bf16.mxu0 0
        %2929 = vmatpush1.bf16.msra.mxu0 0
        %2930 = vmatprep.subr.bf16.mxu0 0
        %2931 = vmatpush1.bf16.msra.mxu0 0
        %2932 = vmatprep.subr.bf16.mxu0 0
        %2933 = vmatpush1.bf16.msra.mxu0 0
        %2934 = vmatprep.mubr.bf16.mxu0 0
        %2935 = vmatmul.mubr.bf16.gmra.mrb[0].mxu0 %v2847
        %v2936 = vpop.f32.mrb[0].mxu0
        %v2937 = vadd.f32 %v2852, %v2936
        %v2938 = vpop.f32.mrb[0].mxu0
        %v2939 = vpop.f32.mrb[0].mxu0
        %v2940 = vpop.f32.mrb[0].mxu0
        %2941 = vdwg.mxu0
        %v2942 = vadd.f32 %v2724, %v2937
        %s2943 = scalar_lea.vmem [#allocation31], 1
        %v2944 = vld [vmem:[%s2943] sm:$0x1]
        %s2945 = scalar_lea.vmem [#allocation32], 1
        %v2946 = vld [vmem:[%s2945] sm:$0x1]
        %s2947 = scalar_lea.vmem [#allocation34], 1
        %v2948 = vld [vmem:[%s2947] sm:$0x1]
        %s2949 = scalar_lea.vmem [#allocation35], 1
        %v2950 = vld [vmem:[%s2949] sm:$0x1]
        %s2951 = scalar_lea.vmem [#allocation37], 16
        %v2952 = vld [vmem:[%s2951] sm:$0xf]
        %v2953 = vld [vmem:[%s2951 + $0x4] sm:$0xf]
        %v2954 = vld [vmem:[%s2951 + $0x8] sm:$0xf]
        %v2955 = vld [vmem:[%s2951 + $0xc] sm:$0xf]
        %s2956 = scalar_lea.vmem [#allocation38], 16
        %v2957 = vld [vmem:[%s2956] sm:$0xf]
        %v2958 = vld [vmem:[%s2956 + $0x4] sm:$0xf]
        %v2959 = vld [vmem:[%s2956 + $0x8] sm:$0xf]
        %v2960 = vld [vmem:[%s2956 + $0xc] sm:$0xf]
        %s2961 = scalar_lea.vmem [#allocation40], 16
        %v2962 = vld [vmem:[%s2961] sm:$0xf]
        %v2963 = vld [vmem:[%s2961 + $0x4] sm:$0xf]
        %v2964 = vld [vmem:[%s2961 + $0x8] sm:$0xf]
        %v2965 = vld [vmem:[%s2961 + $0xc] sm:$0xf]
        %v2966 = vsel %vm1820, %v2942, 0.0
        %2967 = vadd.xlane.f32.xlu0 %v2966
        %v2968 = vpop.xlane.xlu0 %2967
        %v2969 = vmul.f32 %v2968, %v1824
        %v2970 = vsub.f32 %v2942, %v2969
        %v2971 = vmul.f32 %v2970, %v2970
        %v2972 = vsel %vm1820, %v2971, 0.0
        %2973 = vadd.xlane.f32.xlu0 %v2972
        %v2974 = vpop.xlane.xlu0 %2973
        %v2975 = vmul.f32 %v2974, %v1824
        %v2976 = vadd.f32 %v2975, 1e-05
        %v2977 = vrsqrt.pop %v2976
        %v2978 = vmul.f32 %v2970, %v2977
        %v2980 = vlaneseq
        %v2981 = vshrl.u32 %v2980, 7
        %v2982 = vsub.s32 0, %v2981
        %v2983 = vrot.slane %v2944, %v2982
        %v2985 = vmul.f32 %v2978, %v2983
        %v2987 = vlaneseq
        %v2988 = vshrl.u32 %v2987, 7
        %v2989 = vsub.s32 0, %v2988
        %v2990 = vrot.slane %v2946, %v2989
        %v2992 = vadd.f32 %v2985, %v2990
        %v2994 = vlaneseq
        %v2995 = vshrl.u32 %v2994, 7
        %v2996 = vsub.s32 0, %v2995
        %v2997 = vrot.slane %v2948, %v2996
        %v2999 = vmul.f32 %v2978, %v2997
        %v3001 = vlaneseq
        %v3002 = vshrl.u32 %v3001, 7
        %v3003 = vsub.s32 0, %v3002
        %v3004 = vrot.slane %v2950, %v3003
        %v3006 = vadd.f32 %v2999, %v3004
        %v3007 = vpack.c.bf16 %v2992, %v2992
        %v3012 = vunpack.c.l.b16 %v2952
        %v3013 = vunpack.c.l.b16 %v2953
        %v3014 = vunpack.c.l.b16 %v2954
        %v3015 = vunpack.c.l.b16 %v2955
        %v3016 = vpack.c.b16 %v3013, %v3012
        %v3017 = vpack.c.b16 %v3015, %v3014
        %v3021 = vsel %vm1820, %v3007, 0
        %3023 = vmatprep.subr.bf16.mxu0 0
        %3024 = vmatpush1.bf16.msra.mxu0 %v3016
        %3025 = vmatprep.subr.bf16.mxu0 0
        %3026 = vmatpush1.bf16.msra.mxu0 %v3017
        %3027 = vmatprep.subr.bf16.mxu0 0
        %3028 = vmatpush1.bf16.msra.mxu0 0
        %3029 = vmatprep.subr.bf16.mxu0 0
        %3030 = vmatpush1.bf16.msra.mxu0 0
        %3031 = vmatprep.subr.bf16.mxu0 0
        %3032 = vmatpush1.bf16.msra.mxu0 0
        %3033 = vmatprep.subr.bf16.mxu0 0
        %3034 = vmatpush1.bf16.msra.mxu0 0
        %3035 = vmatprep.subr.bf16.mxu0 0
        %3036 = vmatpush1.bf16.msra.mxu0 0
        %3037 = vmatprep.subr.bf16.mxu0 0
        %3038 = vmatpush1.bf16.msra.mxu0 0
        %3039 = vmatprep.subr.bf16.mxu0 0
        %3040 = vmatpush1.bf16.msra.mxu0 0
        %3041 = vmatprep.subr.bf16.mxu0 0
        %3042 = vmatpush1.bf16.msra.mxu0 0
        %3043 = vmatprep.subr.bf16.mxu0 0
        %3044 = vmatpush1.bf16.msra.mxu0 0
        %3045 = vmatprep.subr.bf16.mxu0 0
        %3046 = vmatpush1.bf16.msra.mxu0 0
        %3047 = vmatprep.subr.bf16.mxu0 0
        %3048 = vmatpush1.bf16.msra.mxu0 0
        %3049 = vmatprep.subr.bf16.mxu0 0
        %3050 = vmatpush1.bf16.msra.mxu0 0
        %3051 = vmatprep.subr.bf16.mxu0 0
        %3052 = vmatpush1.bf16.msra.mxu0 0
        %3053 = vmatprep.subr.bf16.mxu0 0
        %3054 = vmatpush1.bf16.msra.mxu0 0
        %3055 = vmatprep.mubr.bf16.mxu0 0
        %3056 = vmatmul.mubr.bf16.gmra.mrb[0].mxu0 %v3021
        %v3057 = vpop.f32.mrb[0].mxu0
        %v3058 = vadd.f32 0.0, %v3057
        %v3059 = vpop.f32.mrb[0].mxu0
        %v3060 = vpop.f32.mrb[0].mxu0
        %v3061 = vpop.f32.mrb[0].mxu0
        %3062 = vdwg.mxu0
        %v3063 = vpack.c.bf16 %v3006, %v3006
        %v3068 = vunpack.c.l.b16 %v2957
        %v3069 = vunpack.c.l.b16 %v2958
        %v3070 = vunpack.c.l.b16 %v2959
        %v3071 = vunpack.c.l.b16 %v2960
        %v3072 = vpack.c.b16 %v3069, %v3068
        %v3073 = vpack.c.b16 %v3071, %v3070
        %v3077 = vsel %vm1820, %v3063, 0
        %3079 = vmatprep.subr.bf16.mxu0 0
        %3080 = vmatpush1.bf16.msra.mxu0 %v3072
        %3081 = vmatprep.subr.bf16.mxu0 0
        %3082 = vmatpush1.bf16.msra.mxu0 %v3073
        %3083 = vmatprep.subr.bf16.mxu0 0
        %3084 = vmatpush1.bf16.msra.mxu0 0
        %3085 = vmatprep.subr.bf16.mxu0 0
        %3086 = vmatpush1.bf16.msra.mxu0 0
        %3087 = vmatprep.subr.bf16.mxu0 0
        %3088 = vmatpush1.bf16.msra.mxu0 0
        %3089 = vmatprep.subr.bf16.mxu0 0
        %3090 = vmatpush1.bf16.msra.mxu0 0
        %3091 = vmatprep.subr.bf16.mxu0 0
        %3092 = vmatpush1.bf16.msra.mxu0 0
        %3093 = vmatprep.subr.bf16.mxu0 0
        %3094 = vmatpush1.bf16.msra.mxu0 0
        %3095 = vmatprep.subr.bf16.mxu0 0
        %3096 = vmatpush1.bf16.msra.mxu0 0
        %3097 = vmatprep.subr.bf16.mxu0 0
        %3098 = vmatpush1.bf16.msra.mxu0 0
        %3099 = vmatprep.subr.bf16.mxu0 0
        %3100 = vmatpush1.bf16.msra.mxu0 0
        %3101 = vmatprep.subr.bf16.mxu0 0
        %3102 = vmatpush1.bf16.msra.mxu0 0
        %3103 = vmatprep.subr.bf16.mxu0 0
        %3104 = vmatpush1.bf16.msra.mxu0 0
        %3105 = vmatprep.subr.bf16.mxu0 0
        %3106 = vmatpush1.bf16.msra.mxu0 0
        %3107 = vmatprep.subr.bf16.mxu0 0
        %3108 = vmatpush1.bf16.msra.mxu0 0
        %3109 = vmatprep.subr.bf16.mxu0 0
        %3110 = vmatpush1.bf16.msra.mxu0 0
        %3111 = vmatprep.mubr.bf16.mxu0 0
        %3112 = vmatmul.mubr.bf16.gmra.mrb[0].mxu0 %v3077
        %v3113 = vpop.f32.mrb[0].mxu0
        %v3114 = vadd.f32 0.0, %v3113
        %v3115 = vpop.f32.mrb[0].mxu0
        %v3116 = vpop.f32.mrb[0].mxu0
        %v3117 = vpop.f32.mrb[0].mxu0
        %3118 = vdwg.mxu0
        %v3119 = vpack.c.bf16 %v3058, %v3058
        %v3120 = vpack.c.bf16 %v3114, %v3114
        %v3122 = vsel %vm1820, %v3119, 0
        %v3125 = vsel %vm1820, %v3120, 0
        %3127 = vmatprep.subr.bf16.mxu0 0
        %3128 = vmatpush1.bf16.xpose.msra.mxu0 %v3125
        %3129 = vmatprep.subr.bf16.mxu0 0
        %3130 = vmatpush1.bf16.xpose.msra.mxu0 0
        %3131 = vmatprep.subr.bf16.mxu0 0
        %3132 = vmatpush1.bf16.xpose.msra.mxu0 0
        %3133 = vmatprep.subr.bf16.mxu0 0
        %3134 = vmatpush1.bf16.xpose.msra.mxu0 0
        %3135 = vmatprep.subr.bf16.mxu0 0
        %3136 = vmatpush1.bf16.xpose.msra.mxu0 0
        %3137 = vmatprep.subr.bf16.mxu0 0
        %3138 = vmatpush1.bf16.xpose.msra.mxu0 0
        %3139 = vmatprep.subr.bf16.mxu0 0
        %3140 = vmatpush1.bf16.xpose.msra.mxu0 0
        %3141 = vmatprep.subr.bf16.mxu0 0
        %3142 = vmatpush1.bf16.xpose.msra.mxu0 0
        %3143 = vmatprep.subr.bf16.mxu0 0
        %3144 = vmatpush1.bf16.xpose.msra.mxu0 0
        %3145 = vmatprep.subr.bf16.mxu0 0
        %3146 = vmatpush1.bf16.xpose.msra.mxu0 0
        %3147 = vmatprep.subr.bf16.mxu0 0
        %3148 = vmatpush1.bf16.xpose.msra.mxu0 0
        %3149 = vmatprep.subr.bf16.mxu0 0
        %3150 = vmatpush1.bf16.xpose.msra.mxu0 0
        %3151 = vmatprep.subr.bf16.mxu0 0
        %3152 = vmatpush1.bf16.xpose.msra.mxu0 0
        %3153 = vmatprep.subr.bf16.mxu0 0
        %3154 = vmatpush1.bf16.xpose.msra.mxu0 0
        %3155 = vmatprep.subr.bf16.mxu0 0
        %3156 = vmatpush1.bf16.xpose.msra.mxu0 0
        %3157 = vmatprep.subr.bf16.mxu0 0
        %3158 = vmatpush1.bf16.xpose.msra.mxu0 0
        %3159 = vmatprep.mubr.bf16.mxu0 0
        %3160 = vmatmul.mubr.bf16.gmra.mrb[0].mxu0 %v3122
        %v3161 = vpop.f32.mrb[0].mxu0
        %v3162 = vadd.f32 0.0, %v3161
        %v3163 = vpop.f32.mrb[0].mxu0
        %v3164 = vpop.f32.mrb[0].mxu0
        %v3165 = vpop.f32.mrb[0].mxu0
        %3166 = vdwg.mxu0
        %v3167 = vsel %vm2605, %v3162, -inf
        %3168 = vmax.xlane.f32.xlu0 %v3167
        %v3169 = vpop.xlane.xlu0 %3168
        %v3170 = vsub.f32 %v3162, %v3169
        %v3171 = vmul.f32 %v3170, 1.442695
        %v3172 = vpow.pop %v3171
        %v3173 = vsel %vm2605, %v3172, 0.0
        %3174 = vadd.xlane.f32.xlu0 %v3173
        %v3175 = vpop.xlane.xlu0 %3174
        %v3176 = vrcp.pop %v3175
        %v3177 = vmul.f32 %v3172, %v3176
        %v3178 = vpack.c.bf16 %v3177, %v3177
        %3180 = vrot.lane.b32.xlu0 %v3120, 96
        %v3181 = vpop.permute.xlu0 %3180
        %v3183 = vsel %vm2605, %v3178, 0
        %v3186 = vsel %vm2624, %v3181, 0
        %3188 = vmatprep.subr.bf16.mxu0 0
        %3189 = vmatpush1.bf16.msra.mxu0 %v3186
        %3190 = vmatprep.subr.bf16.mxu0 0
        %3191 = vmatpush1.bf16.msra.mxu0 0
        %3192 = vmatprep.subr.bf16.mxu0 0
        %3193 = vmatpush1.bf16.msra.mxu0 0
        %3194 = vmatprep.subr.bf16.mxu0 0
        %3195 = vmatpush1.bf16.msra.mxu0 0
        %3196 = vmatprep.subr.bf16.mxu0 0
        %3197 = vmatpush1.bf16.msra.mxu0 0
        %3198 = vmatprep.subr.bf16.mxu0 0
        %3199 = vmatpush1.bf16.msra.mxu0 0
        %3200 = vmatprep.subr.bf16.mxu0 0
        %3201 = vmatpush1.bf16.msra.mxu0 0
        %3202 = vmatprep.subr.bf16.mxu0 0
        %3203 = vmatpush1.bf16.msra.mxu0 0
        %3204 = vmatprep.subr.bf16.mxu0 0
        %3205 = vmatpush1.bf16.msra.mxu0 0
        %3206 = vmatprep.subr.bf16.mxu0 0
        %3207 = vmatpush1.bf16.msra.mxu0 0
        %3208 = vmatprep.subr.bf16.mxu0 0
        %3209 = vmatpush1.bf16.msra.mxu0 0
        %3210 = vmatprep.subr.bf16.mxu0 0
        %3211 = vmatpush1.bf16.msra.mxu0 0
        %3212 = vmatprep.subr.bf16.mxu0 0
        %3213 = vmatpush1.bf16.msra.mxu0 0
        %3214 = vmatprep.subr.bf16.mxu0 0
        %3215 = vmatpush1.bf16.msra.mxu0 0
        %3216 = vmatprep.subr.bf16.mxu0 0
        %3217 = vmatpush1.bf16.msra.mxu0 0
        %3218 = vmatprep.subr.bf16.mxu0 0
        %3219 = vmatpush1.bf16.msra.mxu0 0
        %3220 = vmatprep.mubr.bf16.mxu0 0
        %3221 = vmatmul.mubr.bf16.gmra.mrb[0].mxu0 %v3183
        %v3222 = vpop.f32.mrb[0].mxu0
        %v3223 = vadd.f32 0.0, %v3222
        %v3224 = vpop.f32.mrb[0].mxu0
        %v3225 = vpop.f32.mrb[0].mxu0
        %v3226 = vpop.f32.mrb[0].mxu0
        %3227 = vdwg.mxu0
        %v3228 = vpack.c.bf16 %v3223, %v3223
        %v3233 = vunpack.c.l.b16 %v2962
        %v3234 = vunpack.c.l.b16 %v2963
        %v3235 = vunpack.c.l.b16 %v2964
        %v3236 = vunpack.c.l.b16 %v2965
        %v3237 = vpack.c.b16 %v3234, %v3233
        %v3238 = vpack.c.b16 %v3236, %v3235
        %v3242 = vsel %vm1820, %v3228, 0
        %3244 = vmatprep.subr.bf16.mxu0 0
        %3245 = vmatpush1.bf16.msra.mxu0 %v3237
        %3246 = vmatprep.subr.bf16.mxu0 0
        %3247 = vmatpush1.bf16.msra.mxu0 %v3238
        %3248 = vmatprep.subr.bf16.mxu0 0
        %3249 = vmatpush1.bf16.msra.mxu0 0
        %3250 = vmatprep.subr.bf16.mxu0 0
        %3251 = vmatpush1.bf16.msra.mxu0 0
        %3252 = vmatprep.subr.bf16.mxu0 0
        %3253 = vmatpush1.bf16.msra.mxu0 0
        %3254 = vmatprep.subr.bf16.mxu0 0
        %3255 = vmatpush1.bf16.msra.mxu0 0
        %3256 = vmatprep.subr.bf16.mxu0 0
        %3257 = vmatpush1.bf16.msra.mxu0 0
        %3258 = vmatprep.subr.bf16.mxu0 0
        %3259 = vmatpush1.bf16.msra.mxu0 0
        %3260 = vmatprep.subr.bf16.mxu0 0
        %3261 = vmatpush1.bf16.msra.mxu0 0
        %3262 = vmatprep.subr.bf16.mxu0 0
        %3263 = vmatpush1.bf16.msra.mxu0 0
        %3264 = vmatprep.subr.bf16.mxu0 0
        %3265 = vmatpush1.bf16.msra.mxu0 0
        %3266 = vmatprep.subr.bf16.mxu0 0
        %3267 = vmatpush1.bf16.msra.mxu0 0
        %3268 = vmatprep.subr.bf16.mxu0 0
        %3269 = vmatpush1.bf16.msra.mxu0 0
        %3270 = vmatprep.subr.bf16.mxu0 0
        %3271 = vmatpush1.bf16.msra.mxu0 0
        %3272 = vmatprep.subr.bf16.mxu0 0
        %3273 = vmatpush1.bf16.msra.mxu0 0
        %3274 = vmatprep.subr.bf16.mxu0 0
        %3275 = vmatpush1.bf16.msra.mxu0 0
        %3276 = vmatprep.mubr.bf16.mxu0 0
        %3277 = vmatmul.mubr.bf16.gmra.mrb[0].mxu0 %v3242
        %v3278 = vpop.f32.mrb[0].mxu0
        %v3279 = vadd.f32 0.0, %v3278
        %v3280 = vpop.f32.mrb[0].mxu0
        %v3281 = vpop.f32.mrb[0].mxu0
        %v3282 = vpop.f32.mrb[0].mxu0
        %3283 = vdwg.mxu0
        %v3284 = vadd.f32 %v2942, %v3279
        %s3285 = scalar_lea.vmem [#allocation41], 1
        %v3286 = vld [vmem:[%s3285] sm:$0x1]
        %s3287 = scalar_lea.vmem [#allocation43], 1
        %v3288 = vld [vmem:[%s3287] sm:$0x1]
        %s3289 = scalar_lea.vmem [#allocation44], 16
        %v3290 = vld [vmem:[%s3289] sm:$0xf]
        %v3291 = vld [vmem:[%s3289 + $0x4] sm:$0xf]
        %v3292 = vld [vmem:[%s3289 + $0x8] sm:$0xf]
        %v3293 = vld [vmem:[%s3289 + $0xc] sm:$0xf]
        %s3294 = scalar_lea.vmem [#allocation46], 1
        %v3295 = vld [vmem:[%s3294] sm:$0x1]
        %s3296 = scalar_lea.vmem [#allocation47], 64
        %v3297 = vld [vmem:[%s3296] sm:$0xf]
        %v3298 = vld [vmem:[%s3296 + $0x4] sm:$0xf]
        %v3299 = vld [vmem:[%s3296 + $0x8] sm:$0xf]
        %v3300 = vld [vmem:[%s3296 + $0xc] sm:$0xf]
        %v3301 = vld [vmem:[%s3296 + $0x10] sm:$0xf]
        %v3302 = vld [vmem:[%s3296 + $0x14] sm:$0xf]
        %v3303 = vld [vmem:[%s3296 + $0x18] sm:$0xf]
        %v3304 = vld [vmem:[%s3296 + $0x1c] sm:$0xf]
        %v3305 = vld [vmem:[%s3296 + $0x20] sm:$0xf]
        %v3306 = vld [vmem:[%s3296 + $0x24] sm:$0xf]
        %v3307 = vld [vmem:[%s3296 + $0x28] sm:$0xf]
        %v3308 = vld [vmem:[%s3296 + $0x2c] sm:$0xf]
        %v3309 = vld [vmem:[%s3296 + $0x30] sm:$0xf]
        %v3310 = vld [vmem:[%s3296 + $0x34] sm:$0xf]
        %v3311 = vld [vmem:[%s3296 + $0x38] sm:$0xf]
        %v3312 = vld [vmem:[%s3296 + $0x3c] sm:$0xf]
        %s3313 = scalar_lea.vmem [#allocation49], 1
        %v3314 = vld [vmem:[%s3313] sm:$0x1]
        %v3315 = vsel %vm1820, %v3284, 0.0
        %3316 = vadd.xlane.f32.xlu0 %v3315
        %v3317 = vpop.xlane.xlu0 %3316
        %v3318 = vmul.f32 %v3317, %v1824
        %v3319 = vsub.f32 %v3284, %v3318
        %v3320 = vmul.f32 %v3319, %v3319
        %v3321 = vsel %vm1820, %v3320, 0.0
        %3322 = vadd.xlane.f32.xlu0 %v3321
        %v3323 = vpop.xlane.xlu0 %3322
        %v3324 = vmul.f32 %v3323, %v1824
        %v3325 = vadd.f32 %v3324, 1e-05
        %v3326 = vrsqrt.pop %v3325
        %v3327 = vmul.f32 %v3319, %v3326
        %v3329 = vlaneseq
        %v3330 = vshrl.u32 %v3329, 7
        %v3331 = vsub.s32 0, %v3330
        %v3332 = vrot.slane %v3286, %v3331
        %v3334 = vmul.f32 %v3327, %v3332
        %v3336 = vlaneseq
        %v3337 = vshrl.u32 %v3336, 7
        %v3338 = vsub.s32 0, %v3337
        %v3339 = vrot.slane %v3288, %v3338
        %v3341 = vadd.f32 %v3334, %v3339
        %v3342 = vpack.c.bf16 %v3341, %v3341
        %v3344 = vlaneseq
        %v3345 = vshrl.u32 %v3344, 7
        %v3346 = vsub.s32 0, %v3345
        %v3347 = vrot.slane %v3295, %v3346
        %v3353 = vunpack.c.l.b16 %v3290
        %v3354 = vunpack.c.l.b16 %v3291
        %v3355 = vunpack.c.l.b16 %v3292
        %v3356 = vunpack.c.l.b16 %v3293
        %v3357 = vpack.c.b16 %v3354, %v3353
        %v3358 = vpack.c.b16 %v3356, %v3355
        %v3362 = vsel %vm1820, %v3342, 0
        %3364 = vmatprep.subr.bf16.mxu0 0
        %3365 = vmatpush1.bf16.msra.mxu0 %v3357
        %3366 = vmatprep.subr.bf16.mxu0 0
        %3367 = vmatpush1.bf16.msra.mxu0 %v3358
        %3368 = vmatprep.subr.bf16.mxu0 0
        %3369 = vmatpush1.bf16.msra.mxu0 0
        %3370 = vmatprep.subr.bf16.mxu0 0
        %3371 = vmatpush1.bf16.msra.mxu0 0
        %3372 = vmatprep.subr.bf16.mxu0 0
        %3373 = vmatpush1.bf16.msra.mxu0 0
        %3374 = vmatprep.subr.bf16.mxu0 0
        %3375 = vmatpush1.bf16.msra.mxu0 0
        %3376 = vmatprep.subr.bf16.mxu0 0
        %3377 = vmatpush1.bf16.msra.mxu0 0
        %3378 = vmatprep.subr.bf16.mxu0 0
        %3379 = vmatpush1.bf16.msra.mxu0 0
        %3380 = vmatprep.subr.bf16.mxu0 0
        %3381 = vmatpush1.bf16.msra.mxu0 0
        %3382 = vmatprep.subr.bf16.mxu0 0
        %3383 = vmatpush1.bf16.msra.mxu0 0
        %3384 = vmatprep.subr.bf16.mxu0 0
        %3385 = vmatpush1.bf16.msra.mxu0 0
        %3386 = vmatprep.subr.bf16.mxu0 0
        %3387 = vmatpush1.bf16.msra.mxu0 0
        %3388 = vmatprep.subr.bf16.mxu0 0
        %3389 = vmatpush1.bf16.msra.mxu0 0
        %3390 = vmatprep.subr.bf16.mxu0 0
        %3391 = vmatpush1.bf16.msra.mxu0 0
        %3392 = vmatprep.subr.bf16.mxu0 0
        %3393 = vmatpush1.bf16.msra.mxu0 0
        %3394 = vmatprep.subr.bf16.mxu0 0
        %3395 = vmatpush1.bf16.msra.mxu0 0
        %3396 = vmatprep.mubr.bf16.mxu0 0
        %3397 = vmatmul.mubr.bf16.gmra.mrb[0].mxu0 %v3362
        %v3398 = vpop.f32.mrb[0].mxu0
        %v3399 = vadd.f32 %v3347, %v3398
        %v3400 = vpop.f32.mrb[0].mxu0
        %v3401 = vpop.f32.mrb[0].mxu0
        %v3402 = vpop.f32.mrb[0].mxu0
        %3403 = vdwg.mxu0
        %v3404 = vmul.f32 %v3399, 0.5
        %v3405 = vmul.f32 %v3399, 0.044715
        %v3406 = vmul.f32 %v3405, %v3399
        %v3407 = vmul.f32 %v3406, %v3399
        %v3408 = vadd.f32 %v3399, %v3407
        %v3409 = vmul.f32 %v3408, 0.7978846
        %v3410 = vtanh.pop %v3409
        %v3411 = vadd.f32 %v3410, 1.0
        %v3412 = vmul.f32 %v3404, %v3411
        %v3413 = vpack.c.bf16 %v3412, %v3412
        %v3415 = vlaneseq
        %v3416 = vshrl.u32 %v3415, 7
        %v3417 = vsub.s32 0, %v3416
        %v3418 = vrot.slane %v3314, %v3417
        %v3436 = vunpack.c.l.b16 %v3297
        %v3437 = vunpack.c.l.b16 %v3298
        %v3438 = vunpack.c.l.b16 %v3299
        %v3439 = vunpack.c.l.b16 %v3300
        %v3440 = vunpack.c.l.b16 %v3301
        %v3441 = vunpack.c.l.b16 %v3302
        %v3442 = vunpack.c.l.b16 %v3303
        %v3443 = vunpack.c.l.b16 %v3304
        %v3444 = vunpack.c.l.b16 %v3305
        %v3445 = vunpack.c.l.b16 %v3306
        %v3446 = vunpack.c.l.b16 %v3307
        %v3447 = vunpack.c.l.b16 %v3308
        %v3448 = vunpack.c.l.b16 %v3309
        %v3449 = vunpack.c.l.b16 %v3310
        %v3450 = vunpack.c.l.b16 %v3311
        %v3451 = vunpack.c.l.b16 %v3312
        %v3452 = vpack.c.b16 %v3437, %v3436
        %v3453 = vpack.c.b16 %v3439, %v3438
        %v3454 = vpack.c.b16 %v3441, %v3440
        %v3455 = vpack.c.b16 %v3443, %v3442
        %v3456 = vpack.c.b16 %v3445, %v3444
        %v3457 = vpack.c.b16 %v3447, %v3446
        %v3458 = vpack.c.b16 %v3449, %v3448
        %v3459 = vpack.c.b16 %v3451, %v3450
        %3468 = vmatprep.subr.bf16.mxu0 0
        %3469 = vmatpush1.bf16.msra.mxu0 %v3452
        %3470 = vmatprep.subr.bf16.mxu0 0
        %3471 = vmatpush1.bf16.msra.mxu0 %v3453
        %3472 = vmatprep.subr.bf16.mxu0 0
        %3473 = vmatpush1.bf16.msra.mxu0 %v3454
        %3474 = vmatprep.subr.bf16.mxu0 0
        %3475 = vmatpush1.bf16.msra.mxu0 %v3455
        %3476 = vmatprep.subr.bf16.mxu0 0
        %3477 = vmatpush1.bf16.msra.mxu0 %v3456
        %3478 = vmatprep.subr.bf16.mxu0 0
        %3479 = vmatpush1.bf16.msra.mxu0 %v3457
        %3480 = vmatprep.subr.bf16.mxu0 0
        %3481 = vmatpush1.bf16.msra.mxu0 %v3458
        %3482 = vmatprep.subr.bf16.mxu0 0
        %3483 = vmatpush1.bf16.msra.mxu0 %v3459
        %3484 = vmatprep.subr.bf16.mxu0 0
        %3485 = vmatpush1.bf16.msra.mxu0 0
        %3486 = vmatprep.subr.bf16.mxu0 0
        %3487 = vmatpush1.bf16.msra.mxu0 0
        %3488 = vmatprep.subr.bf16.mxu0 0
        %3489 = vmatpush1.bf16.msra.mxu0 0
        %3490 = vmatprep.subr.bf16.mxu0 0
        %3491 = vmatpush1.bf16.msra.mxu0 0
        %3492 = vmatprep.subr.bf16.mxu0 0
        %3493 = vmatpush1.bf16.msra.mxu0 0
        %3494 = vmatprep.subr.bf16.mxu0 0
        %3495 = vmatpush1.bf16.msra.mxu0 0
        %3496 = vmatprep.subr.bf16.mxu0 0
        %3497 = vmatpush1.bf16.msra.mxu0 0
        %3498 = vmatprep.subr.bf16.mxu0 0
        %3499 = vmatpush1.bf16.msra.mxu0 0
        %3500 = vmatprep.mubr.bf16.mxu0 0
        %3501 = vmatmul.mubr.bf16.gmra.mrb[0].mxu0 %v3413
        %v3502 = vpop.f32.mrb[0].mxu0
        %v3503 = vadd.f32 %v3418, %v3502
        %v3504 = vpop.f32.mrb[0].mxu0
        %v3505 = vpop.f32.mrb[0].mxu0
        %v3506 = vpop.f32.mrb[0].mxu0
        %3507 = vdwg.mxu0
        %v3508 = vadd.f32 %v3284, %v3503
        %s3509 = scalar_lea.vmem [#allocation31], 2
        %v3510 = vld [vmem:[%s3509] sm:$0x1]
        %s3511 = scalar_lea.vmem [#allocation32], 2
        %v3512 = vld [vmem:[%s3511] sm:$0x1]
        %s3513 = scalar_lea.vmem [#allocation34], 2
        %v3514 = vld [vmem:[%s3513] sm:$0x1]
        %s3515 = scalar_lea.vmem [#allocation35], 2
        %v3516 = vld [vmem:[%s3515] sm:$0x1]
        %s3517 = scalar_lea.vmem [#allocation37], 32
        %v3518 = vld [vmem:[%s3517] sm:$0xf]
        %v3519 = vld [vmem:[%s3517 + $0x4] sm:$0xf]
        %v3520 = vld [vmem:[%s3517 + $0x8] sm:$0xf]
        %v3521 = vld [vmem:[%s3517 + $0xc] sm:$0xf]
        %s3522 = scalar_lea.vmem [#allocation38], 32
        %v3523 = vld [vmem:[%s3522] sm:$0xf]
        %v3524 = vld [vmem:[%s3522 + $0x4] sm:$0xf]
        %v3525 = vld [vmem:[%s3522 + $0x8] sm:$0xf]
        %v3526 = vld [vmem:[%s3522 + $0xc] sm:$0xf]
        %s3527 = scalar_lea.vmem [#allocation40], 32
        %v3528 = vld [vmem:[%s3527] sm:$0xf]
        %v3529 = vld [vmem:[%s3527 + $0x4] sm:$0xf]
        %v3530 = vld [vmem:[%s3527 + $0x8] sm:$0xf]
        %v3531 = vld [vmem:[%s3527 + $0xc] sm:$0xf]
        %v3532 = vsel %vm1820, %v3508, 0.0
        %3533 = vadd.xlane.f32.xlu0 %v3532
        %v3534 = vpop.xlane.xlu0 %3533
        %v3535 = vmul.f32 %v3534, %v1824
        %v3536 = vsub.f32 %v3508, %v3535
        %v3537 = vmul.f32 %v3536, %v3536
        %v3538 = vsel %vm1820, %v3537, 0.0
        %3539 = vadd.xlane.f32.xlu0 %v3538
        %v3540 = vpop.xlane.xlu0 %3539
        %v3541 = vmul.f32 %v3540, %v1824
        %v3542 = vadd.f32 %v3541, 1e-05
        %v3543 = vrsqrt.pop %v3542
        %v3544 = vmul.f32 %v3536, %v3543
        %v3546 = vlaneseq
        %v3547 = vshrl.u32 %v3546, 7
        %v3548 = vsub.s32 0, %v3547
        %v3549 = vrot.slane %v3510, %v3548
        %v3551 = vmul.f32 %v3544, %v3549
        %v3553 = vlaneseq
        %v3554 = vshrl.u32 %v3553, 7
        %v3555 = vsub.s32 0, %v3554
        %v3556 = vrot.slane %v3512, %v3555
        %v3558 = vadd.f32 %v3551, %v3556
        %v3560 = vlaneseq
        %v3561 = vshrl.u32 %v3560, 7
        %v3562 = vsub.s32 0, %v3561
        %v3563 = vrot.slane %v3514, %v3562
        %v3565 = vmul.f32 %v3544, %v3563
        %v3567 = vlaneseq
        %v3568 = vshrl.u32 %v3567, 7
        %v3569 = vsub.s32 0, %v3568
        %v3570 = vrot.slane %v3516, %v3569
        %v3572 = vadd.f32 %v3565, %v3570
        %v3573 = vpack.c.bf16 %v3558, %v3558
        %v3578 = vunpack.c.l.b16 %v3518
        %v3579 = vunpack.c.l.b16 %v3519
        %v3580 = vunpack.c.l.b16 %v3520
        %v3581 = vunpack.c.l.b16 %v3521
        %v3582 = vpack.c.b16 %v3579, %v3578
        %v3583 = vpack.c.b16 %v3581, %v3580
        %v3587 = vsel %vm1820, %v3573, 0
        %3589 = vmatprep.subr.bf16.mxu0 0
        %3590 = vmatpush1.bf16.msra.mxu0 %v3582
        %3591 = vmatprep.subr.bf16.mxu0 0
        %3592 = vmatpush1.bf16.msra.mxu0 %v3583
        %3593 = vmatprep.subr.bf16.mxu0 0
        %3594 = vmatpush1.bf16.msra.mxu0 0
        %3595 = vmatprep.subr.bf16.mxu0 0
        %3596 = vmatpush1.bf16.msra.mxu0 0
        %3597 = vmatprep.subr.bf16.mxu0 0
        %3598 = vmatpush1.bf16.msra.mxu0 0
        %3599 = vmatprep.subr.bf16.mxu0 0
        %3600 = vmatpush1.bf16.msra.mxu0 0
        %3601 = vmatprep.subr.bf16.mxu0 0
        %3602 = vmatpush1.bf16.msra.mxu0 0
        %3603 = vmatprep.subr.bf16.mxu0 0
        %3604 = vmatpush1.bf16.msra.mxu0 0
        %3605 = vmatprep.subr.bf16.mxu0 0
        %3606 = vmatpush1.bf16.msra.mxu0 0
        %3607 = vmatprep.subr.bf16.mxu0 0
        %3608 = vmatpush1.bf16.msra.mxu0 0
        %3609 = vmatprep.subr.bf16.mxu0 0
        %3610 = vmatpush1.bf16.msra.mxu0 0
        %3611 = vmatprep.subr.bf16.mxu0 0
        %3612 = vmatpush1.bf16.msra.mxu0 0
        %3613 = vmatprep.subr.bf16.mxu0 0
        %3614 = vmatpush1.bf16.msra.mxu0 0
        %3615 = vmatprep.subr.bf16.mxu0 0
        %3616 = vmatpush1.bf16.msra.mxu0 0
        %3617 = vmatprep.subr.bf16.mxu0 0
        %3618 = vmatpush1.bf16.msra.mxu0 0
        %3619 = vmatprep.subr.bf16.mxu0 0
        %3620 = vmatpush1.bf16.msra.mxu0 0
        %3621 = vmatprep.mubr.bf16.mxu0 0
        %3622 = vmatmul.mubr.bf16.gmra.mrb[0].mxu0 %v3587
        %v3623 = vpop.f32.mrb[0].mxu0
        %v3624 = vadd.f32 0.0, %v3623
        %v3625 = vpop.f32.mrb[0].mxu0
        %v3626 = vpop.f32.mrb[0].mxu0
        %v3627 = vpop.f32.mrb[0].mxu0
        %3628 = vdwg.mxu0
        %v3629 = vpack.c.bf16 %v3572, %v3572
        %v3634 = vunpack.c.l.b16 %v3523
        %v3635 = vunpack.c.l.b16 %v3524
        %v3636 = vunpack.c.l.b16 %v3525
        %v3637 = vunpack.c.l.b16 %v3526
        %v3638 = vpack.c.b16 %v3635, %v3634
        %v3639 = vpack.c.b16 %v3637, %v3636
        %v3643 = vsel %vm1820, %v3629, 0
        %3645 = vmatprep.subr.bf16.mxu0 0
        %3646 = vmatpush1.bf16.msra.mxu0 %v3638
        %3647 = vmatprep.subr.bf16.mxu0 0
        %3648 = vmatpush1.bf16.msra.mxu0 %v3639
        %3649 = vmatprep.subr.bf16.mxu0 0
        %3650 = vmatpush1.bf16.msra.mxu0 0
        %3651 = vmatprep.subr.bf16.mxu0 0
        %3652 = vmatpush1.bf16.msra.mxu0 0
        %3653 = vmatprep.subr.bf16.mxu0 0
        %3654 = vmatpush1.bf16.msra.mxu0 0
        %3655 = vmatprep.subr.bf16.mxu0 0
        %3656 = vmatpush1.bf16.msra.mxu0 0
        %3657 = vmatprep.subr.bf16.mxu0 0
        %3658 = vmatpush1.bf16.msra.mxu0 0
        %3659 = vmatprep.subr.bf16.mxu0 0
        %3660 = vmatpush1.bf16.msra.mxu0 0
        %3661 = vmatprep.subr.bf16.mxu0 0
        %3662 = vmatpush1.bf16.msra.mxu0 0
        %3663 = vmatprep.subr.bf16.mxu0 0
        %3664 = vmatpush1.bf16.msra.mxu0 0
        %3665 = vmatprep.subr.bf16.mxu0 0
        %3666 = vmatpush1.bf16.msra.mxu0 0
        %3667 = vmatprep.subr.bf16.mxu0 0
        %3668 = vmatpush1.bf16.msra.mxu0 0
        %3669 = vmatprep.subr.bf16.mxu0 0
        %3670 = vmatpush1.bf16.msra.mxu0 0
        %3671 = vmatprep.subr.bf16.mxu0 0
        %3672 = vmatpush1.bf16.msra.mxu0 0
        %3673 = vmatprep.subr.bf16.mxu0 0
        %3674 = vmatpush1.bf16.msra.mxu0 0
        %3675 = vmatprep.subr.bf16.mxu0 0
        %3676 = vmatpush1.bf16.msra.mxu0 0
        %3677 = vmatprep.mubr.bf16.mxu0 0
        %3678 = vmatmul.mubr.bf16.gmra.mrb[0].mxu0 %v3643
        %v3679 = vpop.f32.mrb[0].mxu0
        %v3680 = vadd.f32 0.0, %v3679
        %v3681 = vpop.f32.mrb[0].mxu0
        %v3682 = vpop.f32.mrb[0].mxu0
        %v3683 = vpop.f32.mrb[0].mxu0
        %3684 = vdwg.mxu0
        %v3685 = vpack.c.bf16 %v3624, %v3624
        %v3686 = vpack.c.bf16 %v3680, %v3680
        %v3688 = vsel %vm1820, %v3685, 0
        %v3691 = vsel %vm1820, %v3686, 0
        %3693 = vmatprep.subr.bf16.mxu0 0
        %3694 = vmatpush1.bf16.xpose.msra.mxu0 %v3691
        %3695 = vmatprep.subr.bf16.mxu0 0
        %3696 = vmatpush1.bf16.xpose.msra.mxu0 0
        %3697 = vmatprep.subr.bf16.mxu0 0
        %3698 = vmatpush1.bf16.xpose.msra.mxu0 0
        %3699 = vmatprep.subr.bf16.mxu0 0
        %3700 = vmatpush1.bf16.xpose.msra.mxu0 0
        %3701 = vmatprep.subr.bf16.mxu0 0
        %3702 = vmatpush1.bf16.xpose.msra.mxu0 0
        %3703 = vmatprep.subr.bf16.mxu0 0
        %3704 = vmatpush1.bf16.xpose.msra.mxu0 0
        %3705 = vmatprep.subr.bf16.mxu0 0
        %3706 = vmatpush1.bf16.xpose.msra.mxu0 0
        %3707 = vmatprep.subr.bf16.mxu0 0
        %3708 = vmatpush1.bf16.xpose.msra.mxu0 0
        %3709 = vmatprep.subr.bf16.mxu0 0
        %3710 = vmatpush1.bf16.xpose.msra.mxu0 0
        %3711 = vmatprep.subr.bf16.mxu0 0
        %3712 = vmatpush1.bf16.xpose.msra.mxu0 0
        %3713 = vmatprep.subr.bf16.mxu0 0
        %3714 = vmatpush1.bf16.xpose.msra.mxu0 0
        %3715 = vmatprep.subr.bf16.mxu0 0
        %3716 = vmatpush1.bf16.xpose.msra.mxu0 0
        %3717 = vmatprep.subr.bf16.mxu0 0
        %3718 = vmatpush1.bf16.xpose.msra.mxu0 0
        %3719 = vmatprep.subr.bf16.mxu0 0
        %3720 = vmatpush1.bf16.xpose.msra.mxu0 0
        %3721 = vmatprep.subr.bf16.mxu0 0
        %3722 = vmatpush1.bf16.xpose.msra.mxu0 0
        %3723 = vmatprep.subr.bf16.mxu0 0
        %3724 = vmatpush1.bf16.xpose.msra.mxu0 0
        %3725 = vmatprep.mubr.bf16.mxu0 0
        %3726 = vmatmul.mubr.bf16.gmra.mrb[0].mxu0 %v3688
        %v3727 = vpop.f32.mrb[0].mxu0
        %v3728 = vadd.f32 0.0, %v3727
        %v3729 = vpop.f32.mrb[0].mxu0
        %v3730 = vpop.f32.mrb[0].mxu0
        %v3731 = vpop.f32.mrb[0].mxu0
        %3732 = vdwg.mxu0
        %v3733 = vsel %vm2605, %v3728, -inf
        %3734 = vmax.xlane.f32.xlu0 %v3733
        %v3735 = vpop.xlane.xlu0 %3734
        %v3736 = vsub.f32 %v3728, %v3735
        %v3737 = vmul.f32 %v3736, 1.442695
        %v3738 = vpow.pop %v3737
        %v3739 = vsel %vm2605, %v3738, 0.0
        %3740 = vadd.xlane.f32.xlu0 %v3739
        %v3741 = vpop.xlane.xlu0 %3740
        %v3742 = vrcp.pop %v3741
        %v3743 = vmul.f32 %v3738, %v3742
        %v3744 = vpack.c.bf16 %v3743, %v3743
        %3746 = vrot.lane.b32.xlu0 %v3686, 96
        %v3747 = vpop.permute.xlu0 %3746
        %v3749 = vsel %vm2605, %v3744, 0
        %v3752 = vsel %vm2624, %v3747, 0
        %3754 = vmatprep.subr.bf16.mxu0 0
        %3755 = vmatpush1.bf16.msra.mxu0 %v3752
        %3756 = vmatprep.subr.bf16.mxu0 0
        %3757 = vmatpush1.bf16.msra.mxu0 0
        %3758 = vmatprep.subr.bf16.mxu0 0
        %3759 = vmatpush1.bf16.msra.mxu0 0
        %3760 = vmatprep.subr.bf16.mxu0 0
        %3761 = vmatpush1.bf16.msra.mxu0 0
        %3762 = vmatprep.subr.bf16.mxu0 0
        %3763 = vmatpush1.bf16.msra.mxu0 0
        %3764 = vmatprep.subr.bf16.mxu0 0
        %3765 = vmatpush1.bf16.msra.mxu0 0
        %3766 = vmatprep.subr.bf16.mxu0 0
        %3767 = vmatpush1.bf16.msra.mxu0 0
        %3768 = vmatprep.subr.bf16.mxu0 0
        %3769 = vmatpush1.bf16.msra.mxu0 0
        %3770 = vmatprep.subr.bf16.mxu0 0
        %3771 = vmatpush1.bf16.msra.mxu0 0
        %3772 = vmatprep.subr.bf16.mxu0 0
        %3773 = vmatpush1.bf16.msra.mxu0 0
        %3774 = vmatprep.subr.bf16.mxu0 0
        %3775 = vmatpush1.bf16.msra.mxu0 0
        %3776 = vmatprep.subr.bf16.mxu0 0
        %3777 = vmatpush1.bf16.msra.mxu0 0
        %3778 = vmatprep.subr.bf16.mxu0 0
        %3779 = vmatpush1.bf16.msra.mxu0 0
        %3780 = vmatprep.subr.bf16.mxu0 0
        %3781 = vmatpush1.bf16.msra.mxu0 0
        %3782 = vmatprep.subr.bf16.mxu0 0
        %3783 = vmatpush1.bf16.msra.mxu0 0
        %3784 = vmatprep.subr.bf16.mxu0 0
        %3785 = vmatpush1.bf16.msra.mxu0 0
        %3786 = vmatprep.mubr.bf16.mxu0 0
        %3787 = vmatmul.mubr.bf16.gmra.mrb[0].mxu0 %v3749
        %v3788 = vpop.f32.mrb[0].mxu0
        %v3789 = vadd.f32 0.0, %v3788
        %v3790 = vpop.f32.mrb[0].mxu0
        %v3791 = vpop.f32.mrb[0].mxu0
        %v3792 = vpop.f32.mrb[0].mxu0
        %3793 = vdwg.mxu0
        %v3794 = vpack.c.bf16 %v3789, %v3789
        %v3799 = vunpack.c.l.b16 %v3528
        %v3800 = vunpack.c.l.b16 %v3529
        %v3801 = vunpack.c.l.b16 %v3530
        %v3802 = vunpack.c.l.b16 %v3531
        %v3803 = vpack.c.b16 %v3800, %v3799
        %v3804 = vpack.c.b16 %v3802, %v3801
        %v3808 = vsel %vm1820, %v3794, 0
        %3810 = vmatprep.subr.bf16.mxu0 0
        %3811 = vmatpush1.bf16.msra.mxu0 %v3803
        %3812 = vmatprep.subr.bf16.mxu0 0
        %3813 = vmatpush1.bf16.msra.mxu0 %v3804
        %3814 = vmatprep.subr.bf16.mxu0 0
        %3815 = vmatpush1.bf16.msra.mxu0 0
        %3816 = vmatprep.subr.bf16.mxu0 0
        %3817 = vmatpush1.bf16.msra.mxu0 0
        %3818 = vmatprep.subr.bf16.mxu0 0
        %3819 = vmatpush1.bf16.msra.mxu0 0
        %3820 = vmatprep.subr.bf16.mxu0 0
        %3821 = vmatpush1.bf16.msra.mxu0 0
        %3822 = vmatprep.subr.bf16.mxu0 0
        %3823 = vmatpush1.bf16.msra.mxu0 0
        %3824 = vmatprep.subr.bf16.mxu0 0
        %3825 = vmatpush1.bf16.msra.mxu0 0
        %3826 = vmatprep.subr.bf16.mxu0 0
        %3827 = vmatpush1.bf16.msra.mxu0 0
        %3828 = vmatprep.subr.bf16.mxu0 0
        %3829 = vmatpush1.bf16.msra.mxu0 0
        %3830 = vmatprep.subr.bf16.mxu0 0
        %3831 = vmatpush1.bf16.msra.mxu0 0
        %3832 = vmatprep.subr.bf16.mxu0 0
        %3833 = vmatpush1.bf16.msra.mxu0 0
        %3834 = vmatprep.subr.bf16.mxu0 0
        %3835 = vmatpush1.bf16.msra.mxu0 0
        %3836 = vmatprep.subr.bf16.mxu0 0
        %3837 = vmatpush1.bf16.msra.mxu0 0
        %3838 = vmatprep.subr.bf16.mxu0 0
        %3839 = vmatpush1.bf16.msra.mxu0 0
        %3840 = vmatprep.subr.bf16.mxu0 0
        %3841 = vmatpush1.bf16.msra.mxu0 0
        %3842 = vmatprep.mubr.bf16.mxu0 0
        %3843 = vmatmul.mubr.bf16.gmra.mrb[0].mxu0 %v3808
        %v3844 = vpop.f32.mrb[0].mxu0
        %v3845 = vadd.f32 0.0, %v3844
        %v3846 = vpop.f32.mrb[0].mxu0
        %v3847 = vpop.f32.mrb[0].mxu0
        %v3848 = vpop.f32.mrb[0].mxu0
        %3849 = vdwg.mxu0
        %v3850 = vadd.f32 %v3508, %v3845
        %s3851 = scalar_lea.vmem [#allocation41], 2
        %v3852 = vld [vmem:[%s3851] sm:$0x1]
        %s3853 = scalar_lea.vmem [#allocation43], 2
        %v3854 = vld [vmem:[%s3853] sm:$0x1]
        %s3855 = scalar_lea.vmem [#allocation44], 32
        %v3856 = vld [vmem:[%s3855] sm:$0xf]
        %v3857 = vld [vmem:[%s3855 + $0x4] sm:$0xf]
        %v3858 = vld [vmem:[%s3855 + $0x8] sm:$0xf]
        %v3859 = vld [vmem:[%s3855 + $0xc] sm:$0xf]
        %s3860 = scalar_lea.vmem [#allocation46], 2
        %v3861 = vld [vmem:[%s3860] sm:$0x1]
        %s3862 = scalar_lea.vmem [#allocation47], 128
        %v3863 = vld [vmem:[%s3862] sm:$0xf]
        %v3864 = vld [vmem:[%s3862 + $0x4] sm:$0xf]
        %v3865 = vld [vmem:[%s3862 + $0x8] sm:$0xf]
        %v3866 = vld [vmem:[%s3862 + $0xc] sm:$0xf]
        %v3867 = vld [vmem:[%s3862 + $0x10] sm:$0xf]
        %v3868 = vld [vmem:[%s3862 + $0x14] sm:$0xf]
        %v3869 = vld [vmem:[%s3862 + $0x18] sm:$0xf]
        %v3870 = vld [vmem:[%s3862 + $0x1c] sm:$0xf]
        %v3871 = vld [vmem:[%s3862 + $0x20] sm:$0xf]
        %v3872 = vld [vmem:[%s3862 + $0x24] sm:$0xf]
        %v3873 = vld [vmem:[%s3862 + $0x28] sm:$0xf]
        %v3874 = vld [vmem:[%s3862 + $0x2c] sm:$0xf]
        %v3875 = vld [vmem:[%s3862 + $0x30] sm:$0xf]
        %v3876 = vld [vmem:[%s3862 + $0x34] sm:$0xf]
        %v3877 = vld [vmem:[%s3862 + $0x38] sm:$0xf]
        %v3878 = vld [vmem:[%s3862 + $0x3c] sm:$0xf]
        %s3879 = scalar_lea.vmem [#allocation49], 2
        %v3880 = vld [vmem:[%s3879] sm:$0x1]
        %v3881 = vsel %vm1820, %v3850, 0.0
        %3882 = vadd.xlane.f32.xlu0 %v3881
        %v3883 = vpop.xlane.xlu0 %3882
        %v3884 = vmul.f32 %v3883, %v1824
        %v3885 = vsub.f32 %v3850, %v3884
        %v3886 = vmul.f32 %v3885, %v3885
        %v3887 = vsel %vm1820, %v3886, 0.0
        %3888 = vadd.xlane.f32.xlu0 %v3887
        %v3889 = vpop.xlane.xlu0 %3888
        %v3890 = vmul.f32 %v3889, %v1824
        %v3891 = vadd.f32 %v3890, 1e-05
        %v3892 = vrsqrt.pop %v3891
        %v3893 = vmul.f32 %v3885, %v3892
        %v3895 = vlaneseq
        %v3896 = vshrl.u32 %v3895, 7
        %v3897 = vsub.s32 0, %v3896
        %v3898 = vrot.slane %v3852, %v3897
        %v3900 = vmul.f32 %v3893, %v3898
        %v3902 = vlaneseq
        %v3903 = vshrl.u32 %v3902, 7
        %v3904 = vsub.s32 0, %v3903
        %v3905 = vrot.slane %v3854, %v3904
        %v3907 = vadd.f32 %v3900, %v3905
        %v3908 = vpack.c.bf16 %v3907, %v3907
        %v3910 = vlaneseq
        %v3911 = vshrl.u32 %v3910, 7
        %v3912 = vsub.s32 0, %v3911
        %v3913 = vrot.slane %v3861, %v3912
        %v3919 = vunpack.c.l.b16 %v3856
        %v3920 = vunpack.c.l.b16 %v3857
        %v3921 = vunpack.c.l.b16 %v3858
        %v3922 = vunpack.c.l.b16 %v3859
        %v3923 = vpack.c.b16 %v3920, %v3919
        %v3924 = vpack.c.b16 %v3922, %v3921
        %v3928 = vsel %vm1820, %v3908, 0
        %3930 = vmatprep.subr.bf16.mxu0 0
        %3931 = vmatpush1.bf16.msra.mxu0 %v3923
        %3932 = vmatprep.subr.bf16.mxu0 0
        %3933 = vmatpush1.bf16.msra.mxu0 %v3924
        %3934 = vmatprep.subr.bf16.mxu0 0
        %3935 = vmatpush1.bf16.msra.mxu0 0
        %3936 = vmatprep.subr.bf16.mxu0 0
        %3937 = vmatpush1.bf16.msra.mxu0 0
        %3938 = vmatprep.subr.bf16.mxu0 0
        %3939 = vmatpush1.bf16.msra.mxu0 0
        %3940 = vmatprep.subr.bf16.mxu0 0
        %3941 = vmatpush1.bf16.msra.mxu0 0
        %3942 = vmatprep.subr.bf16.mxu0 0
        %3943 = vmatpush1.bf16.msra.mxu0 0
        %3944 = vmatprep.subr.bf16.mxu0 0
        %3945 = vmatpush1.bf16.msra.mxu0 0
        %3946 = vmatprep.subr.bf16.mxu0 0
        %3947 = vmatpush1.bf16.msra.mxu0 0
        %3948 = vmatprep.subr.bf16.mxu0 0
        %3949 = vmatpush1.bf16.msra.mxu0 0
        %3950 = vmatprep.subr.bf16.mxu0 0
        %3951 = vmatpush1.bf16.msra.mxu0 0
        %3952 = vmatprep.subr.bf16.mxu0 0
        %3953 = vmatpush1.bf16.msra.mxu0 0
        %3954 = vmatprep.subr.bf16.mxu0 0
        %3955 = vmatpush1.bf16.msra.mxu0 0
        %3956 = vmatprep.subr.bf16.mxu0 0
        %3957 = vmatpush1.bf16.msra.mxu0 0
        %3958 = vmatprep.subr.bf16.mxu0 0
        %3959 = vmatpush1.bf16.msra.mxu0 0
        %3960 = vmatprep.subr.bf16.mxu0 0
        %3961 = vmatpush1.bf16.msra.mxu0 0
        %3962 = vmatprep.mubr.bf16.mxu0 0
        %3963 = vmatmul.mubr.bf16.gmra.mrb[0].mxu0 %v3928
        %v3964 = vpop.f32.mrb[0].mxu0
        %v3965 = vadd.f32 %v3913, %v3964
        %v3966 = vpop.f32.mrb[0].mxu0
        %v3967 = vpop.f32.mrb[0].mxu0
        %v3968 = vpop.f32.mrb[0].mxu0
        %3969 = vdwg.mxu0
        %v3970 = vmul.f32 %v3965, 0.5
        %v3971 = vmul.f32 %v3965, 0.044715
        %v3972 = vmul.f32 %v3971, %v3965
        %v3973 = vmul.f32 %v3972, %v3965
        %v3974 = vadd.f32 %v3965, %v3973
        %v3975 = vmul.f32 %v3974, 0.7978846
        %v3976 = vtanh.pop %v3975
        %v3977 = vadd.f32 %v3976, 1.0
        %v3978 = vmul.f32 %v3970, %v3977
        %v3979 = vpack.c.bf16 %v3978, %v3978
        %v3981 = vlaneseq
        %v3982 = vshrl.u32 %v3981, 7
        %v3983 = vsub.s32 0, %v3982
        %v3984 = vrot.slane %v3880, %v3983
        %v4002 = vunpack.c.l.b16 %v3863
        %v4003 = vunpack.c.l.b16 %v3864
        %v4004 = vunpack.c.l.b16 %v3865
        %v4005 = vunpack.c.l.b16 %v3866
        %v4006 = vunpack.c.l.b16 %v3867
        %v4007 = vunpack.c.l.b16 %v3868
        %v4008 = vunpack.c.l.b16 %v3869
        %v4009 = vunpack.c.l.b16 %v3870
        %v4010 = vunpack.c.l.b16 %v3871
        %v4011 = vunpack.c.l.b16 %v3872
        %v4012 = vunpack.c.l.b16 %v3873
        %v4013 = vunpack.c.l.b16 %v3874
        %v4014 = vunpack.c.l.b16 %v3875
        %v4015 = vunpack.c.l.b16 %v3876
        %v4016 = vunpack.c.l.b16 %v3877
        %v4017 = vunpack.c.l.b16 %v3878
        %v4018 = vpack.c.b16 %v4003, %v4002
        %v4019 = vpack.c.b16 %v4005, %v4004
        %v4020 = vpack.c.b16 %v4007, %v4006
        %v4021 = vpack.c.b16 %v4009, %v4008
        %v4022 = vpack.c.b16 %v4011, %v4010
        %v4023 = vpack.c.b16 %v4013, %v4012
        %v4024 = vpack.c.b16 %v4015, %v4014
        %v4025 = vpack.c.b16 %v4017, %v4016
        %4034 = vmatprep.subr.bf16.mxu0 0
        %4035 = vmatpush1.bf16.msra.mxu0 %v4018
        %4036 = vmatprep.subr.bf16.mxu0 0
        %4037 = vmatpush1.bf16.msra.mxu0 %v4019
        %4038 = vmatprep.subr.bf16.mxu0 0
        %4039 = vmatpush1.bf16.msra.mxu0 %v4020
        %4040 = vmatprep.subr.bf16.mxu0 0
        %4041 = vmatpush1.bf16.msra.mxu0 %v4021
        %4042 = vmatprep.subr.bf16.mxu0 0
        %4043 = vmatpush1.bf16.msra.mxu0 %v4022
        %4044 = vmatprep.subr.bf16.mxu0 0
        %4045 = vmatpush1.bf16.msra.mxu0 %v4023
        %4046 = vmatprep.subr.bf16.mxu0 0
        %4047 = vmatpush1.bf16.msra.mxu0 %v4024
        %4048 = vmatprep.subr.bf16.mxu0 0
        %4049 = vmatpush1.bf16.msra.mxu0 %v4025
        %4050 = vmatprep.subr.bf16.mxu0 0
        %4051 = vmatpush1.bf16.msra.mxu0 0
        %4052 = vmatprep.subr.bf16.mxu0 0
        %4053 = vmatpush1.bf16.msra.mxu0 0
        %4054 = vmatprep.subr.bf16.mxu0 0
        %4055 = vmatpush1.bf16.msra.mxu0 0
        %4056 = vmatprep.subr.bf16.mxu0 0
        %4057 = vmatpush1.bf16.msra.mxu0 0
        %4058 = vmatprep.subr.bf16.mxu0 0
        %4059 = vmatpush1.bf16.msra.mxu0 0
        %4060 = vmatprep.subr.bf16.mxu0 0
        %4061 = vmatpush1.bf16.msra.mxu0 0
        %4062 = vmatprep.subr.bf16.mxu0 0
        %4063 = vmatpush1.bf16.msra.mxu0 0
        %4064 = vmatprep.subr.bf16.mxu0 0
        %4065 = vmatpush1.bf16.msra.mxu0 0
        %4066 = vmatprep.mubr.bf16.mxu0 0
        %4067 = vmatmul.mubr.bf16.gmra.mrb[0].mxu0 %v3979
        %v4068 = vpop.f32.mrb[0].mxu0
        %v4069 = vadd.f32 %v3984, %v4068
        %v4070 = vpop.f32.mrb[0].mxu0
        %v4071 = vpop.f32.mrb[0].mxu0
        %v4072 = vpop.f32.mrb[0].mxu0
        %4073 = vdwg.mxu0
        %v4074 = vadd.f32 %v3850, %v4069
        %s4075 = scalar_lea.vmem [#allocation31], 3
        %v4076 = vld [vmem:[%s4075] sm:$0x1]
        %s4077 = scalar_lea.vmem [#allocation32], 3
        %v4078 = vld [vmem:[%s4077] sm:$0x1]
        %s4079 = scalar_lea.vmem [#allocation34], 3
        %v4080 = vld [vmem:[%s4079] sm:$0x1]
        %s4081 = scalar_lea.vmem [#allocation35], 3
        %v4082 = vld [vmem:[%s4081] sm:$0x1]
        %s4083 = scalar_lea.vmem [#allocation37], 48
        %v4084 = vld [vmem:[%s4083] sm:$0xf]
        %v4085 = vld [vmem:[%s4083 + $0x4] sm:$0xf]
        %v4086 = vld [vmem:[%s4083 + $0x8] sm:$0xf]
        %v4087 = vld [vmem:[%s4083 + $0xc] sm:$0xf]
        %s4088 = scalar_lea.vmem [#allocation38], 48
        %v4089 = vld [vmem:[%s4088] sm:$0xf]
        %v4090 = vld [vmem:[%s4088 + $0x4] sm:$0xf]
        %v4091 = vld [vmem:[%s4088 + $0x8] sm:$0xf]
        %v4092 = vld [vmem:[%s4088 + $0xc] sm:$0xf]
        %s4093 = scalar_lea.vmem [#allocation40], 48
        %v4094 = vld [vmem:[%s4093] sm:$0xf]
        %v4095 = vld [vmem:[%s4093 + $0x4] sm:$0xf]
        %v4096 = vld [vmem:[%s4093 + $0x8] sm:$0xf]
        %v4097 = vld [vmem:[%s4093 + $0xc] sm:$0xf]
        %v4098 = vsel %vm1820, %v4074, 0.0
        %4099 = vadd.xlane.f32.xlu0 %v4098
        %v4100 = vpop.xlane.xlu0 %4099
        %v4101 = vmul.f32 %v4100, %v1824
        %v4102 = vsub.f32 %v4074, %v4101
        %v4103 = vmul.f32 %v4102, %v4102
        %v4104 = vsel %vm1820, %v4103, 0.0
        %4105 = vadd.xlane.f32.xlu0 %v4104
        %v4106 = vpop.xlane.xlu0 %4105
        %v4107 = vmul.f32 %v4106, %v1824
        %v4108 = vadd.f32 %v4107, 1e-05
        %v4109 = vrsqrt.pop %v4108
        %v4110 = vmul.f32 %v4102, %v4109
        %v4112 = vlaneseq
        %v4113 = vshrl.u32 %v4112, 7
        %v4114 = vsub.s32 0, %v4113
        %v4115 = vrot.slane %v4076, %v4114
        %v4117 = vmul.f32 %v4110, %v4115
        %v4119 = vlaneseq
        %v4120 = vshrl.u32 %v4119, 7
        %v4121 = vsub.s32 0, %v4120
        %v4122 = vrot.slane %v4078, %v4121
        %v4124 = vadd.f32 %v4117, %v4122
        %v4126 = vlaneseq
        %v4127 = vshrl.u32 %v4126, 7
        %v4128 = vsub.s32 0, %v4127
        %v4129 = vrot.slane %v4080, %v4128
        %v4131 = vmul.f32 %v4110, %v4129
        %v4133 = vlaneseq
        %v4134 = vshrl.u32 %v4133, 7
        %v4135 = vsub.s32 0, %v4134
        %v4136 = vrot.slane %v4082, %v4135
        %v4138 = vadd.f32 %v4131, %v4136
        %v4139 = vpack.c.bf16 %v4124, %v4124
        %v4144 = vunpack.c.l.b16 %v4084
        %v4145 = vunpack.c.l.b16 %v4085
        %v4146 = vunpack.c.l.b16 %v4086
        %v4147 = vunpack.c.l.b16 %v4087
        %v4148 = vpack.c.b16 %v4145, %v4144
        %v4149 = vpack.c.b16 %v4147, %v4146
        %v4153 = vsel %vm1820, %v4139, 0
        %4155 = vmatprep.subr.bf16.mxu0 0
        %4156 = vmatpush1.bf16.msra.mxu0 %v4148
        %4157 = vmatprep.subr.bf16.mxu0 0
        %4158 = vmatpush1.bf16.msra.mxu0 %v4149
        %4159 = vmatprep.subr.bf16.mxu0 0
        %4160 = vmatpush1.bf16.msra.mxu0 0
        %4161 = vmatprep.subr.bf16.mxu0 0
        %4162 = vmatpush1.bf16.msra.mxu0 0
        %4163 = vmatprep.subr.bf16.mxu0 0
        %4164 = vmatpush1.bf16.msra.mxu0 0
        %4165 = vmatprep.subr.bf16.mxu0 0
        %4166 = vmatpush1.bf16.msra.mxu0 0
        %4167 = vmatprep.subr.bf16.mxu0 0
        %4168 = vmatpush1.bf16.msra.mxu0 0
        %4169 = vmatprep.subr.bf16.mxu0 0
        %4170 = vmatpush1.bf16.msra.mxu0 0
        %4171 = vmatprep.subr.bf16.mxu0 0
        %4172 = vmatpush1.bf16.msra.mxu0 0
        %4173 = vmatprep.subr.bf16.mxu0 0
        %4174 = vmatpush1.bf16.msra.mxu0 0
        %4175 = vmatprep.subr.bf16.mxu0 0
        %4176 = vmatpush1.bf16.msra.mxu0 0
        %4177 = vmatprep.subr.bf16.mxu0 0
        %4178 = vmatpush1.bf16.msra.mxu0 0
        %4179 = vmatprep.subr.bf16.mxu0 0
        %4180 = vmatpush1.bf16.msra.mxu0 0
        %4181 = vmatprep.subr.bf16.mxu0 0
        %4182 = vmatpush1.bf16.msra.mxu0 0
        %4183 = vmatprep.subr.bf16.mxu0 0
        %4184 = vmatpush1.bf16.msra.mxu0 0
        %4185 = vmatprep.subr.bf16.mxu0 0
        %4186 = vmatpush1.bf16.msra.mxu0 0
        %4187 = vmatprep.mubr.bf16.mxu0 0
        %4188 = vmatmul.mubr.bf16.gmra.mrb[0].mxu0 %v4153
        %v4189 = vpop.f32.mrb[0].mxu0
        %v4190 = vadd.f32 0.0, %v4189
        %v4191 = vpop.f32.mrb[0].mxu0
        %v4192 = vpop.f32.mrb[0].mxu0
        %v4193 = vpop.f32.mrb[0].mxu0
        %4194 = vdwg.mxu0
        %v4195 = vpack.c.bf16 %v4138, %v4138
        %v4200 = vunpack.c.l.b16 %v4089
        %v4201 = vunpack.c.l.b16 %v4090
        %v4202 = vunpack.c.l.b16 %v4091
        %v4203 = vunpack.c.l.b16 %v4092
        %v4204 = vpack.c.b16 %v4201, %v4200
        %v4205 = vpack.c.b16 %v4203, %v4202
        %v4209 = vsel %vm1820, %v4195, 0
        %4211 = vmatprep.subr.bf16.mxu0 0
        %4212 = vmatpush1.bf16.msra.mxu0 %v4204
        %4213 = vmatprep.subr.bf16.mxu0 0
        %4214 = vmatpush1.bf16.msra.mxu0 %v4205
        %4215 = vmatprep.subr.bf16.mxu0 0
        %4216 = vmatpush1.bf16.msra.mxu0 0
        %4217 = vmatprep.subr.bf16.mxu0 0
        %4218 = vmatpush1.bf16.msra.mxu0 0
        %4219 = vmatprep.subr.bf16.mxu0 0
        %4220 = vmatpush1.bf16.msra.mxu0 0
        %4221 = vmatprep.subr.bf16.mxu0 0
        %4222 = vmatpush1.bf16.msra.mxu0 0
        %4223 = vmatprep.subr.bf16.mxu0 0
        %4224 = vmatpush1.bf16.msra.mxu0 0
        %4225 = vmatprep.subr.bf16.mxu0 0
        %4226 = vmatpush1.bf16.msra.mxu0 0
        %4227 = vmatprep.subr.bf16.mxu0 0
        %4228 = vmatpush1.bf16.msra.mxu0 0
        %4229 = vmatprep.subr.bf16.mxu0 0
        %4230 = vmatpush1.bf16.msra.mxu0 0
        %4231 = vmatprep.subr.bf16.mxu0 0
        %4232 = vmatpush1.bf16.msra.mxu0 0
        %4233 = vmatprep.subr.bf16.mxu0 0
        %4234 = vmatpush1.bf16.msra.mxu0 0
        %4235 = vmatprep.subr.bf16.mxu0 0
        %4236 = vmatpush1.bf16.msra.mxu0 0
        %4237 = vmatprep.subr.bf16.mxu0 0
        %4238 = vmatpush1.bf16.msra.mxu0 0
        %4239 = vmatprep.subr.bf16.mxu0 0
        %4240 = vmatpush1.bf16.msra.mxu0 0
        %4241 = vmatprep.subr.bf16.mxu0 0
        %4242 = vmatpush1.bf16.msra.mxu0 0
        %4243 = vmatprep.mubr.bf16.mxu0 0
        %4244 = vmatmul.mubr.bf16.gmra.mrb[0].mxu0 %v4209
        %v4245 = vpop.f32.mrb[0].mxu0
        %v4246 = vadd.f32 0.0, %v4245
        %v4247 = vpop.f32.mrb[0].mxu0
        %v4248 = vpop.f32.mrb[0].mxu0
        %v4249 = vpop.f32.mrb[0].mxu0
        %4250 = vdwg.mxu0
        %v4251 = vpack.c.bf16 %v4190, %v4190
        %v4252 = vpack.c.bf16 %v4246, %v4246
        %v4254 = vsel %vm1820, %v4251, 0
        %v4257 = vsel %vm1820, %v4252, 0
        %4259 = vmatprep.subr.bf16.mxu0 0
        %4260 = vmatpush1.bf16.xpose.msra.mxu0 %v4257
        %4261 = vmatprep.subr.bf16.mxu0 0
        %4262 = vmatpush1.bf16.xpose.msra.mxu0 0
        %4263 = vmatprep.subr.bf16.mxu0 0
        %4264 = vmatpush1.bf16.xpose.msra.mxu0 0
        %4265 = vmatprep.subr.bf16.mxu0 0
        %4266 = vmatpush1.bf16.xpose.msra.mxu0 0
        %4267 = vmatprep.subr.bf16.mxu0 0
        %4268 = vmatpush1.bf16.xpose.msra.mxu0 0
        %4269 = vmatprep.subr.bf16.mxu0 0
        %4270 = vmatpush1.bf16.xpose.msra.mxu0 0
        %4271 = vmatprep.subr.bf16.mxu0 0
        %4272 = vmatpush1.bf16.xpose.msra.mxu0 0
        %4273 = vmatprep.subr.bf16.mxu0 0
        %4274 = vmatpush1.bf16.xpose.msra.mxu0 0
        %4275 = vmatprep.subr.bf16.mxu0 0
        %4276 = vmatpush1.bf16.xpose.msra.mxu0 0
        %4277 = vmatprep.subr.bf16.mxu0 0
        %4278 = vmatpush1.bf16.xpose.msra.mxu0 0
        %4279 = vmatprep.subr.bf16.mxu0 0
        %4280 = vmatpush1.bf16.xpose.msra.mxu0 0
        %4281 = vmatprep.subr.bf16.mxu0 0
        %4282 = vmatpush1.bf16.xpose.msra.mxu0 0
        %4283 = vmatprep.subr.bf16.mxu0 0
        %4284 = vmatpush1.bf16.xpose.msra.mxu0 0
        %4285 = vmatprep.subr.bf16.mxu0 0
        %4286 = vmatpush1.bf16.xpose.msra.mxu0 0
        %4287 = vmatprep.subr.bf16.mxu0 0
        %4288 = vmatpush1.bf16.xpose.msra.mxu0 0
        %4289 = vmatprep.subr.bf16.mxu0 0
        %4290 = vmatpush1.bf16.xpose.msra.mxu0 0
        %4291 = vmatprep.mubr.bf16.mxu0 0
        %4292 = vmatmul.mubr.bf16.gmra.mrb[0].mxu0 %v4254
        %v4293 = vpop.f32.mrb[0].mxu0
        %v4294 = vadd.f32 0.0, %v4293
        %v4295 = vpop.f32.mrb[0].mxu0
        %v4296 = vpop.f32.mrb[0].mxu0
        %v4297 = vpop.f32.mrb[0].mxu0
        %4298 = vdwg.mxu0
        %v4299 = vsel %vm2605, %v4294, -inf
        %4300 = vmax.xlane.f32.xlu0 %v4299
        %v4301 = vpop.xlane.xlu0 %4300
        %v4302 = vsub.f32 %v4294, %v4301
        %v4303 = vmul.f32 %v4302, 1.442695
        %v4304 = vpow.pop %v4303
        %v4305 = vsel %vm2605, %v4304, 0.0
        %4306 = vadd.xlane.f32.xlu0 %v4305
        %v4307 = vpop.xlane.xlu0 %4306
        %v4308 = vrcp.pop %v4307
        %v4309 = vmul.f32 %v4304, %v4308
        %v4310 = vpack.c.bf16 %v4309, %v4309
        %4312 = vrot.lane.b32.xlu0 %v4252, 96
        %v4313 = vpop.permute.xlu0 %4312
        %v4315 = vsel %vm2605, %v4310, 0
        %v4318 = vsel %vm2624, %v4313, 0
        %4320 = vmatprep.subr.bf16.mxu0 0
        %4321 = vmatpush1.bf16.msra.mxu0 %v4318
        %4322 = vmatprep.subr.bf16.mxu0 0
        %4323 = vmatpush1.bf16.msra.mxu0 0
        %4324 = vmatprep.subr.bf16.mxu0 0
        %4325 = vmatpush1.bf16.msra.mxu0 0
        %4326 = vmatprep.subr.bf16.mxu0 0
        %4327 = vmatpush1.bf16.msra.mxu0 0
        %4328 = vmatprep.subr.bf16.mxu0 0
        %4329 = vmatpush1.bf16.msra.mxu0 0
        %4330 = vmatprep.subr.bf16.mxu0 0
        %4331 = vmatpush1.bf16.msra.mxu0 0
        %4332 = vmatprep.subr.bf16.mxu0 0
        %4333 = vmatpush1.bf16.msra.mxu0 0
        %4334 = vmatprep.subr.bf16.mxu0 0
        %4335 = vmatpush1.bf16.msra.mxu0 0
        %4336 = vmatprep.subr.bf16.mxu0 0
        %4337 = vmatpush1.bf16.msra.mxu0 0
        %4338 = vmatprep.subr.bf16.mxu0 0
        %4339 = vmatpush1.bf16.msra.mxu0 0
        %4340 = vmatprep.subr.bf16.mxu0 0
        %4341 = vmatpush1.bf16.msra.mxu0 0
        %4342 = vmatprep.subr.bf16.mxu0 0
        %4343 = vmatpush1.bf16.msra.mxu0 0
        %4344 = vmatprep.subr.bf16.mxu0 0
        %4345 = vmatpush1.bf16.msra.mxu0 0
        %4346 = vmatprep.subr.bf16.mxu0 0
        %4347 = vmatpush1.bf16.msra.mxu0 0
        %4348 = vmatprep.subr.bf16.mxu0 0
        %4349 = vmatpush1.bf16.msra.mxu0 0
        %4350 = vmatprep.subr.bf16.mxu0 0
        %4351 = vmatpush1.bf16.msra.mxu0 0
        %4352 = vmatprep.mubr.bf16.mxu0 0
        %4353 = vmatmul.mubr.bf16.gmra.mrb[0].mxu0 %v4315
        %v4354 = vpop.f32.mrb[0].mxu0
        %v4355 = vadd.f32 0.0, %v4354
        %v4356 = vpop.f32.mrb[0].mxu0
        %v4357 = vpop.f32.mrb[0].mxu0
        %v4358 = vpop.f32.mrb[0].mxu0
        %4359 = vdwg.mxu0
        %v4360 = vpack.c.bf16 %v4355, %v4355
        %v4365 = vunpack.c.l.b16 %v4094
        %v4366 = vunpack.c.l.b16 %v4095
        %v4367 = vunpack.c.l.b16 %v4096
        %v4368 = vunpack.c.l.b16 %v4097
        %v4369 = vpack.c.b16 %v4366, %v4365
        %v4370 = vpack.c.b16 %v4368, %v4367
        %v4374 = vsel %vm1820, %v4360, 0
        %4376 = vmatprep.subr.bf16.mxu0 0
        %4377 = vmatpush1.bf16.msra.mxu0 %v4369
        %4378 = vmatprep.subr.bf16.mxu0 0
        %4379 = vmatpush1.bf16.msra.mxu0 %v4370
        %4380 = vmatprep.subr.bf16.mxu0 0
        %4381 = vmatpush1.bf16.msra.mxu0 0
        %4382 = vmatprep.subr.bf16.mxu0 0
        %4383 = vmatpush1.bf16.msra.mxu0 0
        %4384 = vmatprep.subr.bf16.mxu0 0
        %4385 = vmatpush1.bf16.msra.mxu0 0
        %4386 = vmatprep.subr.bf16.mxu0 0
        %4387 = vmatpush1.bf16.msra.mxu0 0
        %4388 = vmatprep.subr.bf16.mxu0 0
        %4389 = vmatpush1.bf16.msra.mxu0 0
        %4390 = vmatprep.subr.bf16.mxu0 0
        %4391 = vmatpush1.bf16.msra.mxu0 0
        %4392 = vmatprep.subr.bf16.mxu0 0
        %4393 = vmatpush1.bf16.msra.mxu0 0
        %4394 = vmatprep.subr.bf16.mxu0 0
        %4395 = vmatpush1.bf16.msra.mxu0 0
        %4396 = vmatprep.subr.bf16.mxu0 0
        %4397 = vmatpush1.bf16.msra.mxu0 0
        %4398 = vmatprep.subr.bf16.mxu0 0
        %4399 = vmatpush1.bf16.msra.mxu0 0
        %4400 = vmatprep.subr.bf16.mxu0 0
        %4401 = vmatpush1.bf16.msra.mxu0 0
        %4402 = vmatprep.subr.bf16.mxu0 0
        %4403 = vmatpush1.bf16.msra.mxu0 0
        %4404 = vmatprep.subr.bf16.mxu0 0
        %4405 = vmatpush1.bf16.msra.mxu0 0
        %4406 = vmatprep.subr.bf16.mxu0 0
        %4407 = vmatpush1.bf16.msra.mxu0 0
        %4408 = vmatprep.mubr.bf16.mxu0 0
        %4409 = vmatmul.mubr.bf16.gmra.mrb[0].mxu0 %v4374
        %v4410 = vpop.f32.mrb[0].mxu0
        %v4411 = vadd.f32 0.0, %v4410
        %v4412 = vpop.f32.mrb[0].mxu0
        %v4413 = vpop.f32.mrb[0].mxu0
        %v4414 = vpop.f32.mrb[0].mxu0
        %4415 = vdwg.mxu0
        %v4416 = vadd.f32 %v4074, %v4411
        %s4417 = scalar_lea.vmem [#allocation41], 3
        %v4418 = vld [vmem:[%s4417] sm:$0x1]
        %s4419 = scalar_lea.vmem [#allocation43], 3
        %v4420 = vld [vmem:[%s4419] sm:$0x1]
        %s4421 = scalar_lea.vmem [#allocation44], 48
        %v4422 = vld [vmem:[%s4421] sm:$0xf]
        %v4423 = vld [vmem:[%s4421 + $0x4] sm:$0xf]
        %v4424 = vld [vmem:[%s4421 + $0x8] sm:$0xf]
        %v4425 = vld [vmem:[%s4421 + $0xc] sm:$0xf]
        %s4426 = scalar_lea.vmem [#allocation46], 3
        %v4427 = vld [vmem:[%s4426] sm:$0x1]
        %s4428 = scalar_lea.vmem [#allocation47], 192
        %v4429 = vld [vmem:[%s4428] sm:$0xf]
        %v4430 = vld [vmem:[%s4428 + $0x4] sm:$0xf]
        %v4431 = vld [vmem:[%s4428 + $0x8] sm:$0xf]
        %v4432 = vld [vmem:[%s4428 + $0xc] sm:$0xf]
        %v4433 = vld [vmem:[%s4428 + $0x10] sm:$0xf]
        %v4434 = vld [vmem:[%s4428 + $0x14] sm:$0xf]
        %v4435 = vld [vmem:[%s4428 + $0x18] sm:$0xf]
        %v4436 = vld [vmem:[%s4428 + $0x1c] sm:$0xf]
        %v4437 = vld [vmem:[%s4428 + $0x20] sm:$0xf]
        %v4438 = vld [vmem:[%s4428 + $0x24] sm:$0xf]
        %v4439 = vld [vmem:[%s4428 + $0x28] sm:$0xf]
        %v4440 = vld [vmem:[%s4428 + $0x2c] sm:$0xf]
        %v4441 = vld [vmem:[%s4428 + $0x30] sm:$0xf]
        %v4442 = vld [vmem:[%s4428 + $0x34] sm:$0xf]
        %v4443 = vld [vmem:[%s4428 + $0x38] sm:$0xf]
        %v4444 = vld [vmem:[%s4428 + $0x3c] sm:$0xf]
        %s4445 = scalar_lea.vmem [#allocation49], 3
        %v4446 = vld [vmem:[%s4445] sm:$0x1]
        %v4447 = vsel %vm1820, %v4416, 0.0
        %4448 = vadd.xlane.f32.xlu0 %v4447
        %v4449 = vpop.xlane.xlu0 %4448
        %v4450 = vmul.f32 %v4449, %v1824
        %v4451 = vsub.f32 %v4416, %v4450
        %v4452 = vmul.f32 %v4451, %v4451
        %v4453 = vsel %vm1820, %v4452, 0.0
        %4454 = vadd.xlane.f32.xlu0 %v4453
        %v4455 = vpop.xlane.xlu0 %4454
        %v4456 = vmul.f32 %v4455, %v1824
        %v4457 = vadd.f32 %v4456, 1e-05
        %v4458 = vrsqrt.pop %v4457
        %v4459 = vmul.f32 %v4451, %v4458
        %v4461 = vlaneseq
        %v4462 = vshrl.u32 %v4461, 7
        %v4463 = vsub.s32 0, %v4462
        %v4464 = vrot.slane %v4418, %v4463
        %v4466 = vmul.f32 %v4459, %v4464
        %v4468 = vlaneseq
        %v4469 = vshrl.u32 %v4468, 7
        %v4470 = vsub.s32 0, %v4469
        %v4471 = vrot.slane %v4420, %v4470
        %v4473 = vadd.f32 %v4466, %v4471
        %v4474 = vpack.c.bf16 %v4473, %v4473
        %v4476 = vlaneseq
        %v4477 = vshrl.u32 %v4476, 7
        %v4478 = vsub.s32 0, %v4477
        %v4479 = vrot.slane %v4427, %v4478
        %v4485 = vunpack.c.l.b16 %v4422
        %v4486 = vunpack.c.l.b16 %v4423
        %v4487 = vunpack.c.l.b16 %v4424
        %v4488 = vunpack.c.l.b16 %v4425
        %v4489 = vpack.c.b16 %v4486, %v4485
        %v4490 = vpack.c.b16 %v4488, %v4487
        %v4494 = vsel %vm1820, %v4474, 0
        %4496 = vmatprep.subr.bf16.mxu0 0
        %4497 = vmatpush1.bf16.msra.mxu0 %v4489
        %4498 = vmatprep.subr.bf16.mxu0 0
        %4499 = vmatpush1.bf16.msra.mxu0 %v4490
        %4500 = vmatprep.subr.bf16.mxu0 0
        %4501 = vmatpush1.bf16.msra.mxu0 0
        %4502 = vmatprep.subr.bf16.mxu0 0
        %4503 = vmatpush1.bf16.msra.mxu0 0
        %4504 = vmatprep.subr.bf16.mxu0 0
        %4505 = vmatpush1.bf16.msra.mxu0 0
        %4506 = vmatprep.subr.bf16.mxu0 0
        %4507 = vmatpush1.bf16.msra.mxu0 0
        %4508 = vmatprep.subr.bf16.mxu0 0
        %4509 = vmatpush1.bf16.msra.mxu0 0
        %4510 = vmatprep.subr.bf16.mxu0 0
        %4511 = vmatpush1.bf16.msra.mxu0 0
        %4512 = vmatprep.subr.bf16.mxu0 0
        %4513 = vmatpush1.bf16.msra.mxu0 0
        %4514 = vmatprep.subr.bf16.mxu0 0
        %4515 = vmatpush1.bf16.msra.mxu0 0
        %4516 = vmatprep.subr.bf16.mxu0 0
        %4517 = vmatpush1.bf16.msra.mxu0 0
        %4518 = vmatprep.subr.bf16.mxu0 0
        %4519 = vmatpush1.bf16.msra.mxu0 0
        %4520 = vmatprep.subr.bf16.mxu0 0
        %4521 = vmatpush1.bf16.msra.mxu0 0
        %4522 = vmatprep.subr.bf16.mxu0 0
        %4523 = vmatpush1.bf16.msra.mxu0 0
        %4524 = vmatprep.subr.bf16.mxu0 0
        %4525 = vmatpush1.bf16.msra.mxu0 0
        %4526 = vmatprep.subr.bf16.mxu0 0
        %4527 = vmatpush1.bf16.msra.mxu0 0
        %4528 = vmatprep.mubr.bf16.mxu0 0
        %4529 = vmatmul.mubr.bf16.gmra.mrb[0].mxu0 %v4494
        %v4530 = vpop.f32.mrb[0].mxu0
        %v4531 = vadd.f32 %v4479, %v4530
        %v4532 = vpop.f32.mrb[0].mxu0
        %v4533 = vpop.f32.mrb[0].mxu0
        %v4534 = vpop.f32.mrb[0].mxu0
        %4535 = vdwg.mxu0
        %v4536 = vmul.f32 %v4531, 0.5
        %v4537 = vmul.f32 %v4531, 0.044715
        %v4538 = vmul.f32 %v4537, %v4531
        %v4539 = vmul.f32 %v4538, %v4531
        %v4540 = vadd.f32 %v4531, %v4539
        %v4541 = vmul.f32 %v4540, 0.7978846
        %v4542 = vtanh.pop %v4541
        %v4543 = vadd.f32 %v4542, 1.0
        %v4544 = vmul.f32 %v4536, %v4543
        %v4545 = vpack.c.bf16 %v4544, %v4544
        %v4547 = vlaneseq
        %v4548 = vshrl.u32 %v4547, 7
        %v4549 = vsub.s32 0, %v4548
        %v4550 = vrot.slane %v4446, %v4549
        %v4568 = vunpack.c.l.b16 %v4429
        %v4569 = vunpack.c.l.b16 %v4430
        %v4570 = vunpack.c.l.b16 %v4431
        %v4571 = vunpack.c.l.b16 %v4432
        %v4572 = vunpack.c.l.b16 %v4433
        %v4573 = vunpack.c.l.b16 %v4434
        %v4574 = vunpack.c.l.b16 %v4435
        %v4575 = vunpack.c.l.b16 %v4436
        %v4576 = vunpack.c.l.b16 %v4437
        %v4577 = vunpack.c.l.b16 %v4438
        %v4578 = vunpack.c.l.b16 %v4439
        %v4579 = vunpack.c.l.b16 %v4440
        %v4580 = vunpack.c.l.b16 %v4441
        %v4581 = vunpack.c.l.b16 %v4442
        %v4582 = vunpack.c.l.b16 %v4443
        %v4583 = vunpack.c.l.b16 %v4444
        %v4584 = vpack.c.b16 %v4569, %v4568
        %v4585 = vpack.c.b16 %v4571, %v4570
        %v4586 = vpack.c.b16 %v4573, %v4572
        %v4587 = vpack.c.b16 %v4575, %v4574
        %v4588 = vpack.c.b16 %v4577, %v4576
        %v4589 = vpack.c.b16 %v4579, %v4578
        %v4590 = vpack.c.b16 %v4581, %v4580
        %v4591 = vpack.c.b16 %v4583, %v4582
        %4600 = vmatprep.subr.bf16.mxu0 0
        %4601 = vmatpush1.bf16.msra.mxu0 %v4584
        %4602 = vmatprep.subr.bf16.mxu0 0
        %4603 = vmatpush1.bf16.msra.mxu0 %v4585
        %4604 = vmatprep.subr.bf16.mxu0 0
        %4605 = vmatpush1.bf16.msra.mxu0 %v4586
        %4606 = vmatprep.subr.bf16.mxu0 0
        %4607 = vmatpush1.bf16.msra.mxu0 %v4587
        %4608 = vmatprep.subr.bf16.mxu0 0
        %4609 = vmatpush1.bf16.msra.mxu0 %v4588
        %4610 = vmatprep.subr.bf16.mxu0 0
        %4611 = vmatpush1.bf16.msra.mxu0 %v4589
        %4612 = vmatprep.subr.bf16.mxu0 0
        %4613 = vmatpush1.bf16.msra.mxu0 %v4590
        %4614 = vmatprep.subr.bf16.mxu0 0
        %4615 = vmatpush1.bf16.msra.mxu0 %v4591
        %4616 = vmatprep.subr.bf16.mxu0 0
        %4617 = vmatpush1.bf16.msra.mxu0 0
        %4618 = vmatprep.subr.bf16.mxu0 0
        %4619 = vmatpush1.bf16.msra.mxu0 0
        %4620 = vmatprep.subr.bf16.mxu0 0
        %4621 = vmatpush1.bf16.msra.mxu0 0
        %4622 = vmatprep.subr.bf16.mxu0 0
        %4623 = vmatpush1.bf16.msra.mxu0 0
        %4624 = vmatprep.subr.bf16.mxu0 0
        %4625 = vmatpush1.bf16.msra.mxu0 0
        %4626 = vmatprep.subr.bf16.mxu0 0
        %4627 = vmatpush1.bf16.msra.mxu0 0
        %4628 = vmatprep.subr.bf16.mxu0 0
        %4629 = vmatpush1.bf16.msra.mxu0 0
        %4630 = vmatprep.subr.bf16.mxu0 0
        %4631 = vmatpush1.bf16.msra.mxu0 0
        %4632 = vmatprep.mubr.bf16.mxu0 0
        %4633 = vmatmul.mubr.bf16.gmra.mrb[0].mxu0 %v4545
        %v4634 = vpop.f32.mrb[0].mxu0
        %v4635 = vadd.f32 %v4550, %v4634
        %v4636 = vpop.f32.mrb[0].mxu0
        %v4637 = vpop.f32.mrb[0].mxu0
        %v4638 = vpop.f32.mrb[0].mxu0
        %4639 = vdwg.mxu0
        %v4640 = vadd.f32 %v4416, %v4635
        %v4641 = vld [vmem:[#allocation50] sm:$0x1]
        %v4642 = vld [vmem:[#allocation52] sm:$0x1]
        %v4643 = vsel %vm1820, %v4640, 0.0
        %4644 = vadd.xlane.f32.xlu0 %v4643
        %v4645 = vpop.xlane.xlu0 %4644
        %v4646 = vmul.f32 %v4645, %v1824
        %v4647 = vsub.f32 %v4640, %v4646
        %v4648 = vmul.f32 %v4647, %v4647
        %v4649 = vsel %vm1820, %v4648, 0.0
        %4650 = vadd.xlane.f32.xlu0 %v4649
        %v4651 = vpop.xlane.xlu0 %4650
        %v4652 = vmul.f32 %v4651, %v1824
        %v4653 = vadd.f32 %v4652, 1e-05
        %v4654 = vrsqrt.pop %v4653
        %v4655 = vmul.f32 %v4647, %v4654
        %v4657 = vlaneseq
        %v4658 = vshrl.u32 %v4657, 7
        %v4659 = vsub.s32 0, %v4658
        %v4660 = vrot.slane %v4641, %v4659
        %v4662 = vmul.f32 %v4655, %v4660
        %v4664 = vlaneseq
        %v4665 = vshrl.u32 %v4664, 7
        %v4666 = vsub.s32 0, %v4665
        %v4667 = vrot.slane %v4642, %v4666
        %v4669 = vadd.f32 %v4662, %v4667
        %v4670 = vld [vmem:[#allocation53] sm:$0xf]
        %v4671 = vld [vmem:[#allocation53 + $0x4] sm:$0xf]
        %v4672 = vld [vmem:[#allocation53 + $0x8] sm:$0xf]
        %v4673 = vld [vmem:[#allocation53 + $0xc] sm:$0xf]
        %v4674 = vpack.c.bf16 %v4669, %v4669
        %v4675 = vld [vmem:[#allocation55] sm:$0x1]
        %v4677 = vlaneseq
        %v4678 = vshrl.u32 %v4677, 7
        %v4679 = vsub.s32 0, %v4678
        %v4680 = vrot.slane %v4675, %v4679
        %v4686 = vunpack.c.l.b16 %v4670
        %v4687 = vunpack.c.l.b16 %v4671
        %v4688 = vunpack.c.l.b16 %v4672
        %v4689 = vunpack.c.l.b16 %v4673
        %v4690 = vpack.c.b16 %v4687, %v4686
        %v4691 = vpack.c.b16 %v4689, %v4688
        %v4695 = vsel %vm1820, %v4674, 0
        %4697 = vmatprep.subr.bf16.mxu0 0
        %4698 = vmatpush1.bf16.msra.mxu0 %v4690
        %4699 = vmatprep.subr.bf16.mxu0 0
        %4700 = vmatpush1.bf16.msra.mxu0 %v4691
        %4701 = vmatprep.subr.bf16.mxu0 0
        %4702 = vmatpush1.bf16.msra.mxu0 0
        %4703 = vmatprep.subr.bf16.mxu0 0
        %4704 = vmatpush1.bf16.msra.mxu0 0
        %4705 = vmatprep.subr.bf16.mxu0 0
        %4706 = vmatpush1.bf16.msra.mxu0 0
        %4707 = vmatprep.subr.bf16.mxu0 0
        %4708 = vmatpush1.bf16.msra.mxu0 0
        %4709 = vmatprep.subr.bf16.mxu0 0
        %4710 = vmatpush1.bf16.msra.mxu0 0
        %4711 = vmatprep.subr.bf16.mxu0 0
        %4712 = vmatpush1.bf16.msra.mxu0 0
        %4713 = vmatprep.subr.bf16.mxu0 0
        %4714 = vmatpush1.bf16.msra.mxu0 0
        %4715 = vmatprep.subr.bf16.mxu0 0
        %4716 = vmatpush1.bf16.msra.mxu0 0
        %4717 = vmatprep.subr.bf16.mxu0 0
        %4718 = vmatpush1.bf16.msra.mxu0 0
        %4719 = vmatprep.subr.bf16.mxu0 0
        %4720 = vmatpush1.bf16.msra.mxu0 0
        %4721 = vmatprep.subr.bf16.mxu0 0
        %4722 = vmatpush1.bf16.msra.mxu0 0
        %4723 = vmatprep.subr.bf16.mxu0 0
        %4724 = vmatpush1.bf16.msra.mxu0 0
        %4725 = vmatprep.subr.bf16.mxu0 0
        %4726 = vmatpush1.bf16.msra.mxu0 0
        %4727 = vmatprep.subr.bf16.mxu0 0
        %4728 = vmatpush1.bf16.msra.mxu0 0
        %4729 = vmatprep.mubr.bf16.mxu0 0
        %4730 = vmatmul.mubr.bf16.gmra.mrb[0].mxu0 %v4695
        %v4731 = vpop.f32.mrb[0].mxu0
        %v4732 = vadd.f32 %v4680, %v4731
        %v4733 = vpop.f32.mrb[0].mxu0
        %v4734 = vpop.f32.mrb[0].mxu0
        %v4735 = vpop.f32.mrb[0].mxu0
        %4736 = vdwg.mxu0
        %4737 = vst.msk [vmem:[%s1796] sm:$0xff] %vm1820, %v4732
        %v4738 = vld [vmem:[%s1543] sm:$0x1]
        %v4739 = vld [vmem:[#allocation56] sm:$0x1]
        %v4740 = vld [vmem:[#allocation58] sm:$0x1]
        %vm4741 = vcmask 253952
        %v4742 = vsel %vm4741, %v4738, 0.0
        %4743 = vadd.xlane.f32.xlu0 %v4742
        %v4744 = vpop.xlane.xlu0 %4743
        %v4745 = vmul.f32 %v4744, %v1824
        %v4746 = vsub.f32 %v4738, %v4745
        %v4747 = vmul.f32 %v4746, %v4746
        %v4748 = vsel %vm4741, %v4747, 0.0
        %4749 = vadd.xlane.f32.xlu0 %v4748
        %v4750 = vpop.xlane.xlu0 %4749
        %v4751 = vmul.f32 %v4750, %v1824
        %v4752 = vadd.f32 %v4751, 1e-05
        %v4753 = vrsqrt.pop %v4752
        %v4754 = vmul.f32 %v4746, %v4753
        %v4755 = vmul.f32 %v4754, %v4739
        %v4756 = vadd.f32 %v4755, %v4740
        %v4758 = vlaneseq
        %v4759 = vshrl.u32 %v4758, 7
        %v4760 = vsub.s32 0, %v4759
        %v4761 = vrot.slane %v4756, %v4760
        %v4763 = vadd.f32 %v4761, %v4732
        %v4764 = vld [vmem:[#allocation59] sm:$0xff]
        %v4765 = vld [vmem:[#allocation59 + $0x8] sm:$0xff]
        %v4766 = vld [vmem:[#allocation59 + $0x10] sm:$0xff]
        %v4767 = vld [vmem:[#allocation59 + $0x18] sm:$0xff]
        %v4768 = vld [vmem:[#allocation59 + $0x20] sm:$0xff]
        %v4769 = vld [vmem:[#allocation59 + $0x28] sm:$0xff]
        %v4770 = vld [vmem:[#allocation59 + $0x30] sm:$0xff]
        %v4771 = vld [vmem:[#allocation59 + $0x38] sm:$0xff]
        %v4772 = vld [vmem:[#allocation59 + $0x40] sm:$0xff]
        %v4773 = vld [vmem:[#allocation59 + $0x48] sm:$0xff]
        %v4774 = vld [vmem:[#allocation59 + $0x50] sm:$0xff]
        %v4775 = vld [vmem:[#allocation59 + $0x58] sm:$0xff]
        %v4776 = vld [vmem:[#allocation59 + $0x60] sm:$0xff]
        %v4777 = vld [vmem:[#allocation59 + $0x68] sm:$0xff]
        %v4778 = vld [vmem:[#allocation59 + $0x70] sm:$0xff]
        %v4779 = vld [vmem:[#allocation59 + $0x78] sm:$0xff]
        %v4780 = vpack.c.bf16 %v4763, %v4763
        %v4781 = vld [vmem:[#allocation61] sm:$0xff]
        %v4783 = vlaneseq
        %v4784 = vshrl.u32 %v4783, 7
        %v4785 = vsub.s32 0, %v4784
        %v4786 = vrot.slane %v4781, %v4785
        %v4787 = vlaneseq
        %v4788 = vshrl.u32 %v4787, 7
        %v4789 = vsub.s32 1, %v4788
        %v4790 = vrot.slane %v4781, %v4789
        %v4791 = vlaneseq
        %v4792 = vshrl.u32 %v4791, 7
        %v4793 = vsub.s32 2, %v4792
        %v4794 = vrot.slane %v4781, %v4793
        %v4795 = vlaneseq
        %v4796 = vshrl.u32 %v4795, 7
        %v4797 = vsub.s32 3, %v4796
        %v4798 = vrot.slane %v4781, %v4797
        %v4799 = vlaneseq
        %v4800 = vshrl.u32 %v4799, 7
        %v4801 = vsub.s32 4, %v4800
        %v4802 = vrot.slane %v4781, %v4801
        %v4803 = vlaneseq
        %v4804 = vshrl.u32 %v4803, 7
        %v4805 = vsub.s32 5, %v4804
        %v4806 = vrot.slane %v4781, %v4805
        %v4807 = vlaneseq
        %v4808 = vshrl.u32 %v4807, 7
        %v4809 = vsub.s32 6, %v4808
        %v4810 = vrot.slane %v4781, %v4809
        %v4811 = vlaneseq
        %v4812 = vshrl.u32 %v4811, 7
        %v4813 = vsub.s32 7, %v4812
        %v4814 = vrot.slane %v4781, %v4813
        %v4839 = vunpack.c.l.b16 %v4764
        %v4840 = vunpack.c.h.b16 %v4764
        %v4841 = vunpack.c.l.b16 %v4765
        %v4842 = vunpack.c.h.b16 %v4765
        %v4843 = vunpack.c.l.b16 %v4766
        %v4844 = vunpack.c.h.b16 %v4766
        %v4845 = vunpack.c.l.b16 %v4767
        %v4846 = vunpack.c.h.b16 %v4767
        %v4847 = vunpack.c.l.b16 %v4768
        %v4848 = vunpack.c.h.b16 %v4768
        %v4849 = vunpack.c.l.b16 %v4769
        %v4850 = vunpack.c.h.b16 %v4769
        %v4851 = vunpack.c.l.b16 %v4770
        %v4852 = vunpack.c.h.b16 %v4770
        %v4853 = vunpack.c.l.b16 %v4771
        %v4854 = vunpack.c.h.b16 %v4771
        %v4855 = vunpack.c.l.b16 %v4772
        %v4856 = vunpack.c.h.b16 %v4772
        %v4857 = vunpack.c.l.b16 %v4773
        %v4858 = vunpack.c.h.b16 %v4773
        %v4859 = vunpack.c.l.b16 %v4774
        %v4860 = vunpack.c.h.b16 %v4774
        %v4861 = vunpack.c.l.b16 %v4775
        %v4862 = vunpack.c.h.b16 %v4775
        %v4863 = vunpack.c.l.b16 %v4776
        %v4864 = vunpack.c.h.b16 %v4776
        %v4865 = vunpack.c.l.b16 %v4777
        %v4866 = vunpack.c.h.b16 %v4777
        %v4867 = vunpack.c.l.b16 %v4778
        %v4868 = vunpack.c.h.b16 %v4778
        %v4869 = vunpack.c.l.b16 %v4779
        %v4870 = vunpack.c.h.b16 %v4779
        %v4871 = vpack.c.b16 %v4847, %v4839
        %v4872 = vpack.c.b16 %v4848, %v4840
        %v4873 = vpack.c.b16 %v4849, %v4841
        %v4874 = vpack.c.b16 %v4850, %v4842
        %v4875 = vpack.c.b16 %v4851, %v4843
        %v4876 = vpack.c.b16 %v4852, %v4844
        %v4877 = vpack.c.b16 %v4853, %v4845
        %v4878 = vpack.c.b16 %v4854, %v4846
        %v4879 = vpack.c.b16 %v4863, %v4855
        %v4880 = vpack.c.b16 %v4864, %v4856
        %v4881 = vpack.c.b16 %v4865, %v4857
        %v4882 = vpack.c.b16 %v4866, %v4858
        %v4883 = vpack.c.b16 %v4867, %v4859
        %v4884 = vpack.c.b16 %v4868, %v4860
        %v4885 = vpack.c.b16 %v4869, %v4861
        %v4886 = vpack.c.b16 %v4870, %v4862
        %v4904 = vsel %vm1820, %v4780, 0
        %4906 = vmatprep.subr.bf16.mxu0 %v4872
        %4907 = vmatpush1.bf16.msra.mxu0 %v4871
        %4908 = vmatprep.subr.bf16.mxu0 %v4880
        %4909 = vmatpush1.bf16.msra.mxu0 %v4879
        %4910 = vmatprep.subr.bf16.mxu0 0
        %4911 = vmatpush1.bf16.msra.mxu0 0
        %4912 = vmatprep.subr.bf16.mxu0 0
        %4913 = vmatpush1.bf16.msra.mxu0 0
        %4914 = vmatprep.subr.bf16.mxu0 0
        %4915 = vmatpush1.bf16.msra.mxu0 0
        %4916 = vmatprep.subr.bf16.mxu0 0
        %4917 = vmatpush1.bf16.msra.mxu0 0
        %4918 = vmatprep.subr.bf16.mxu0 0
        %4919 = vmatpush1.bf16.msra.mxu0 0
        %4920 = vmatprep.subr.bf16.mxu0 0
        %4921 = vmatpush1.bf16.msra.mxu0 0
        %4922 = vmatprep.subr.bf16.mxu0 0
        %4923 = vmatpush1.bf16.msra.mxu0 0
        %4924 = vmatprep.subr.bf16.mxu0 0
        %4925 = vmatpush1.bf16.msra.mxu0 0
        %4926 = vmatprep.subr.bf16.mxu0 0
        %4927 = vmatpush1.bf16.msra.mxu0 0
        %4928 = vmatprep.subr.bf16.mxu0 0
        %4929 = vmatpush1.bf16.msra.mxu0 0
        %4930 = vmatprep.subr.bf16.mxu0 0
        %4931 = vmatpush1.bf16.msra.mxu0 0
        %4932 = vmatprep.subr.bf16.mxu0 0
        %4933 = vmatpush1.bf16.msra.mxu0 0
        %4934 = vmatprep.subr.bf16.mxu0 0
        %4935 = vmatpush1.bf16.msra.mxu0 0
        %4936 = vmatprep.subr.bf16.mxu0 0
        %4937 = vmatpush1.bf16.msra.mxu0 0
        %4938 = vmatprep.mubr.bf16.mxu0 0
        %4939 = vmatmul.mubr.bf16.gmra.mrb[0].mxu0 %v4904
        %v4940 = vpop.f32.mrb[0].mxu0
        %v4941 = vadd.f32 %v4786, %v4940
        %v4942 = vpop.f32.mrb[0].mxu0
        %v4943 = vadd.f32 %v4790, %v4942
        %v4944 = vpop.f32.mrb[0].mxu0
        %v4945 = vpop.f32.mrb[0].mxu0
        %4946 = vdwg.mxu0
        %4947 = vmatprep.subr.bf16.mxu0 %v4874
        %4948 = vmatpush1.bf16.msra.mxu0 %v4873
        %4949 = vmatprep.subr.bf16.mxu0 %v4882
        %4950 = vmatpush1.bf16.msra.mxu0 %v4881
        %4951 = vmatprep.subr.bf16.mxu0 0
        %4952 = vmatpush1.bf16.msra.mxu0 0
        %4953 = vmatprep.subr.bf16.mxu0 0
        %4954 = vmatpush1.bf16.msra.mxu0 0
        %4955 = vmatprep.subr.bf16.mxu0 0
        %4956 = vmatpush1.bf16.msra.mxu0 0
        %4957 = vmatprep.subr.bf16.mxu0 0
        %4958 = vmatpush1.bf16.msra.mxu0 0
        %4959 = vmatprep.subr.bf16.mxu0 0
        %4960 = vmatpush1.bf16.msra.mxu0 0
        %4961 = vmatprep.subr.bf16.mxu0 0
        %4962 = vmatpush1.bf16.msra.mxu0 0
        %4963 = vmatprep.subr.bf16.mxu0 0
        %4964 = vmatpush1.bf16.msra.mxu0 0
        %4965 = vmatprep.subr.bf16.mxu0 0
        %4966 = vmatpush1.bf16.msra.mxu0 0
        %4967 = vmatprep.subr.bf16.mxu0 0
        %4968 = vmatpush1.bf16.msra.mxu0 0
        %4969 = vmatprep.subr.bf16.mxu0 0
        %4970 = vmatpush1.bf16.msra.mxu0 0
        %4971 = vmatprep.subr.bf16.mxu0 0
        %4972 = vmatpush1.bf16.msra.mxu0 0
        %4973 = vmatprep.subr.bf16.mxu0 0
        %4974 = vmatpush1.bf16.msra.mxu0 0
        %4975 = vmatprep.subr.bf16.mxu0 0
        %4976 = vmatpush1.bf16.msra.mxu0 0
        %4977 = vmatprep.subr.bf16.mxu0 0
        %4978 = vmatpush1.bf16.msra.mxu0 0
        %4979 = vmatprep.mubr.bf16.mxu0 0
        %4980 = vmatmul.mubr.bf16.gmra.mrb[0].mxu0 %v4904
        %v4981 = vpop.f32.mrb[0].mxu0
        %v4982 = vadd.f32 %v4794, %v4981
        %v4983 = vpop.f32.mrb[0].mxu0
        %v4984 = vadd.f32 %v4798, %v4983
        %v4985 = vpop.f32.mrb[0].mxu0
        %v4986 = vpop.f32.mrb[0].mxu0
        %4987 = vdwg.mxu0
        %4988 = vmatprep.subr.bf16.mxu0 %v4876
        %4989 = vmatpush1.bf16.msra.mxu0 %v4875
        %4990 = vmatprep.subr.bf16.mxu0 %v4884
        %4991 = vmatpush1.bf16.msra.mxu0 %v4883
        %4992 = vmatprep.subr.bf16.mxu0 0
        %4993 = vmatpush1.bf16.msra.mxu0 0
        %4994 = vmatprep.subr.bf16.mxu0 0
        %4995 = vmatpush1.bf16.msra.mxu0 0
        %4996 = vmatprep.subr.bf16.mxu0 0
        %4997 = vmatpush1.bf16.msra.mxu0 0
        %4998 = vmatprep.subr.bf16.mxu0 0
        %4999 = vmatpush1.bf16.msra.mxu0 0
        %5000 = vmatprep.subr.bf16.mxu0 0
        %5001 = vmatpush1.bf16.msra.mxu0 0
        %5002 = vmatprep.subr.bf16.mxu0 0
        %5003 = vmatpush1.bf16.msra.mxu0 0
        %5004 = vmatprep.subr.bf16.mxu0 0
        %5005 = vmatpush1.bf16.msra.mxu0 0
        %5006 = vmatprep.subr.bf16.mxu0 0
        %5007 = vmatpush1.bf16.msra.mxu0 0
        %5008 = vmatprep.subr.bf16.mxu0 0
        %5009 = vmatpush1.bf16.msra.mxu0 0
        %5010 = vmatprep.subr.bf16.mxu0 0
        %5011 = vmatpush1.bf16.msra.mxu0 0
        %5012 = vmatprep.subr.bf16.mxu0 0
        %5013 = vmatpush1.bf16.msra.mxu0 0
        %5014 = vmatprep.subr.bf16.mxu0 0
        %5015 = vmatpush1.bf16.msra.mxu0 0
        %5016 = vmatprep.subr.bf16.mxu0 0
        %5017 = vmatpush1.bf16.msra.mxu0 0
        %5018 = vmatprep.subr.bf16.mxu0 0
        %5019 = vmatpush1.bf16.msra.mxu0 0
        %5020 = vmatprep.mubr.bf16.mxu0 0
        %5021 = vmatmul.mubr.bf16.gmra.mrb[0].mxu0 %v4904
        %v5022 = vpop.f32.mrb[0].mxu0
        %v5023 = vadd.f32 %v4802, %v5022
        %v5024 = vpop.f32.mrb[0].mxu0
        %v5025 = vadd.f32 %v4806, %v5024
        %v5026 = vpop.f32.mrb[0].mxu0
        %v5027 = vpop.f32.mrb[0].mxu0
        %5028 = vdwg.mxu0
        %5029 = vmatprep.subr.bf16.mxu0 %v4878
        %5030 = vmatpush1.bf16.msra.mxu0 %v4877
        %5031 = vmatprep.subr.bf16.mxu0 %v4886
        %5032 = vmatpush1.bf16.msra.mxu0 %v4885
        %5033 = vmatprep.subr.bf16.mxu0 0
        %5034 = vmatpush1.bf16.msra.mxu0 0
        %5035 = vmatprep.subr.bf16.mxu0 0
        %5036 = vmatpush1.bf16.msra.mxu0 0
        %5037 = vmatprep.subr.bf16.mxu0 0
        %5038 = vmatpush1.bf16.msra.mxu0 0
        %5039 = vmatprep.subr.bf16.mxu0 0
        %5040 = vmatpush1.bf16.msra.mxu0 0
        %5041 = vmatprep.subr.bf16.mxu0 0
        %5042 = vmatpush1.bf16.msra.mxu0 0
        %5043 = vmatprep.subr.bf16.mxu0 0
        %5044 = vmatpush1.bf16.msra.mxu0 0
        %5045 = vmatprep.subr.bf16.mxu0 0
        %5046 = vmatpush1.bf16.msra.mxu0 0
        %5047 = vmatprep.subr.bf16.mxu0 0
        %5048 = vmatpush1.bf16.msra.mxu0 0
        %5049 = vmatprep.subr.bf16.mxu0 0
        %5050 = vmatpush1.bf16.msra.mxu0 0
        %5051 = vmatprep.subr.bf16.mxu0 0
        %5052 = vmatpush1.bf16.msra.mxu0 0
        %5053 = vmatprep.subr.bf16.mxu0 0
        %5054 = vmatpush1.bf16.msra.mxu0 0
        %5055 = vmatprep.subr.bf16.mxu0 0
        %5056 = vmatpush1.bf16.msra.mxu0 0
        %5057 = vmatprep.subr.bf16.mxu0 0
        %5058 = vmatpush1.bf16.msra.mxu0 0
        %5059 = vmatprep.subr.bf16.mxu0 0
        %5060 = vmatpush1.bf16.msra.mxu0 0
        %5061 = vmatprep.mubr.bf16.mxu0 0
        %5062 = vmatmul.mubr.bf16.gmra.mrb[0].mxu0 %v4904
        %v5063 = vpop.f32.mrb[0].mxu0
        %v5064 = vadd.f32 %v4810, %v5063
        %v5065 = vpop.f32.mrb[0].mxu0
        %v5066 = vadd.f32 %v4814, %v5065
        %v5067 = vpop.f32.mrb[0].mxu0
        %v5068 = vpop.f32.mrb[0].mxu0
        %5069 = vdwg.mxu0
        %5070 = vst [vmem:[%s1789] sm:$0xff] %v4941
        %5071 = vst [vmem:[%s1789 + $0x8] sm:$0xff] %v4943
        %5072 = vst [vmem:[%s1789 + $0x10] sm:$0xff] %v4982
        %5073 = vst [vmem:[%s1789 + $0x18] sm:$0xff] %v4984
        %5074 = vst [vmem:[%s1789 + $0x20] sm:$0xff] %v5023
        %5075 = vst [vmem:[%s1789 + $0x28] sm:$0xff] %v5025
        %5076 = vst [vmem:[%s1789 + $0x30] sm:$0xff] %v5064
        %5077 = vst [vmem:[%s1789 + $0x38] sm:$0xff] %v5066
        %s5078 = sand.u32 %s965, 1
        %s5079 = scalar_lea.sflag [#allocation4], %s5078
        %s5080 = sand.u32 %s965, 1
        %s5081 = smul.addr %s5080, 64
        %s5082 = scalar_lea.vmem [#allocation62], %s5081
        %s5083 = sand.u32 %s991, 1
        %s5084 = scalar_lea.sflag [#allocation64], %s5083
        %s5085 = sand.u32 %s991, 1
        %s5086 = smul.addr %s5085, 8
        %s5087 = scalar_lea.vmem [#allocation63], %s5086
        // Predicated region
        $region333: #{set_prediction_forward.1} parent=175 // pred_check
          %p5088 = pneg %p975
        $region334: #{set_prediction_forward.1} parent=175 // pred_check_branch
          %5090 = sbr.rel (%p5088) target = $region336
        $region335: #{set_prediction_forward.1} parent=175 // pred_region
          %s5092 = ssub.s32 1024, 1024
          %5093 = vsyncadd %s5079, %s5092
          %s5094 = smul.addr %s123, 8
          %s5095 = smul.addr %s5094, 128
          %s5096 = scalar_lea.hbm %s79, %s5095
          %s5098 = sshll.u32 %s5082, 4
          %s5099 = int_to_ptr.vmem [resolvable:$true] %s5098
          %5101 = dma.vmem_to_hbm [thread:$0]  %s5099, 1024, %s5096, %s5079
        $region336: #{set_prediction_forward.1} parent=175 // pred_fallthru
          _
        // Predicated region
        $region337: #{set_prediction_forward.1} parent=175 // pred_check
          %p5102 = pneg %p1001
        $region338: #{set_prediction_forward.1} parent=175 // pred_check_branch
          %5104 = sbr.rel (%p5102) target = $region340
        $region339: #{set_prediction_forward.1} parent=175 // pred_region
          %s5106 = ssub.s32 128, 128
          %5107 = vsyncadd %s5084, %s5106
          %s5108 = smul.addr %s123, 128
          %s5109 = scalar_lea.hbm %s81, %s5108
          %s5111 = sshll.u32 %s5087, 4
          %s5112 = int_to_ptr.vmem [resolvable:$true] %s5111
          %5114 = dma.vmem_to_hbm [thread:$0]  %s5112, 128, %s5109, %s5084
        $region340: #{set_prediction_forward.1} parent=175 // pred_fallthru
          _
      $region176: #{set_prediction_forward.1} parent=5 // pred_fallthru
        _
      %p5115 = scmp.le.s32.totalorder 2, %s118
      // Predicated region
      $region341: #{set_prediction_forward.1} parent=5 // pred_check
        %p5116 = pneg %p5115
      $region342: #{set_prediction_forward.1} parent=5 // pred_check_branch
        %5118 = sbr.rel (%p5116) target = $region344
      $region343: #{set_prediction_forward.1} parent=5 // pred_region
        %s5119 = ssub.s32 %s118, 2
        // Predicated region
        $region345: #{set_prediction_forward.1} parent=343 // pred_check
          %p5120 = pneg %p981
        $region346: #{set_prediction_forward.1} parent=343 // pred_check_branch
          %5122 = sbr.rel (%p5120) target = $region348
        $region347: #{set_prediction_forward.1} parent=343 // pred_region
          %s5123 = sand.u32 %s966, 1
          %s5124 = scalar_lea.sflag [#allocation4], %s5123
          %s5125 = sand.u32 %s966, 1
          %s5126 = smul.addr %s5125, 64
          %s5127 = scalar_lea.vmem [#allocation62], %s5126
          %5128 = dma.done %s5124, 1024
        $region348: #{set_prediction_forward.1} parent=343 // pred_fallthru
          _
        // Predicated region
        $region349: #{set_prediction_forward.1} parent=343 // pred_check
          %p5129 = pneg %p1007
        $region350: #{set_prediction_forward.1} parent=343 // pred_check_branch
          %5131 = sbr.rel (%p5129) target = $region352
        $region351: #{set_prediction_forward.1} parent=343 // pred_region
          %s5132 = sand.u32 %s992, 1
          %s5133 = scalar_lea.sflag [#allocation64], %s5132
          %s5134 = sand.u32 %s992, 1
          %s5135 = smul.addr %s5134, 8
          %s5136 = scalar_lea.vmem [#allocation63], %s5135
          %5137 = dma.done %s5133, 128
        $region352: #{set_prediction_forward.1} parent=343 // pred_fallthru
          _
      $region344: #{set_prediction_forward.1} parent=5 // pred_fallthru
        _
    $region6: #{set_prediction_forward.1} parent=1 // loop_footer
      %s122 = sadd.s32 1, %s118
    $region7: #{set_prediction_forward.1} parent=1 // loop_footer_branch
      %117 = sbr.rel target = $region3
    $region8: #{set_prediction_forward.1} parent=1 // loop_exit
      _
    %5138 = vsyncpa [#allocation3], 1
    %s5139 = scalar_lea.sflag [#allocation3], 1
    %5140 = vsyncpa %s5139, 1
    %5141 = vsyncpa [#allocation6], 1
    %s5142 = scalar_lea.sflag [#allocation6], 1
    %5143 = vsyncpa %s5142, 1
    %5144 = vsyncpa [#allocation9], 1
    %5145 = vsyncpa [#allocation12], 1
    %5146 = vsyncpa [#allocation15], 1
    %5147 = vsyncpa [#allocation18], 1
    %5148 = vsyncpa [#allocation21], 1
    %5149 = vsyncpa [#allocation24], 1
    %5150 = vsyncpa [#allocation27], 1
    %5151 = vsyncpa [#allocation30], 1
    %5152 = vsyncpa [#allocation33], 1
    %5153 = vsyncpa [#allocation36], 1
    %5154 = vsyncpa [#allocation39], 1
    %5155 = vsyncpa [#allocation42], 1
    %5156 = vsyncpa [#allocation45], 1
    %5157 = vsyncpa [#allocation48], 1
    %5158 = vsyncpa [#allocation51], 1
    %5159 = vsyncpa [#allocation54], 1
    %5160 = vsyncpa [#allocation57], 1
    %5161 = vsyncpa [#allocation60], 1
    %5162 = vsyncpa [#allocation4], 1
    %s5163 = scalar_lea.sflag [#allocation4], 1
    %5164 = vsyncpa %s5163, 1
    %5165 = vsyncpa [#allocation64], 1
    %s5166 = scalar_lea.sflag [#allocation64], 1
    %5167 = vsyncpa %s5166, 1

</llo_original>
